<compile_context>
chip_gen: v6e
topology: v6e:2x2x1
jax: 0.10.0
libtpu: 0.0.40
codegen_flags: <defaults>
</compile_context>

<pallas_src>
import functools

import jax
import jax.numpy as jnp
from jax import lax
from jax.experimental import pallas as pl
from jax.experimental.pallas import tpu as pltpu


# ---------------------------------------------------------------------------
# Fused Pallas kernel
# ---------------------------------------------------------------------------
def make_fused_kernel(T, B, hidden_sizes, V):
    """Kernel ref order:
         x2d(T*B,D),
         [w_ih_t(Din,4H), w_hh_t(H,4H), b(1,4H)] per cell  (gate order i,f,o,g),
         wl(T,H_last,V), bl(1,V), out(B,V),
         [xproj(T*B,4H), hseq] per cell   (hseq of last cell is (T,B,H)).
    """
    n_cells = len(hidden_sizes)

    def kernel(*refs):
        x_ref = refs[0]
        cell_refs = refs[1:1 + 3 * n_cells]
        wl_ref = refs[1 + 3 * n_cells]
        bl_ref = refs[2 + 3 * n_cells]
        o_ref = refs[3 + 3 * n_cells]
        scratch_refs = refs[4 + 3 * n_cells:]

        cur_in = x_ref[...]                      # (T*B, D) time-major slab
        h_last_ref = None

        for k in range(n_cells):
            H = hidden_sizes[k]
            w_ih = cell_refs[3 * k][...]         # (Din, 4H)
            w_hh = cell_refs[3 * k + 1][...]     # (H, 4H)
            b = cell_refs[3 * k + 2][...]        # (1, 4H)
            xproj_ref = scratch_refs[2 * k]      # (T*B, 4H)
            hseq_ref = scratch_refs[2 * k + 1]
            last = (k == n_cells - 1)

            # Input projection for ALL timesteps in one MXU pass (off the
            # serial chain).
            xproj_ref[...] = (
                jnp.dot(cur_in, w_ih, preferred_element_type=jnp.float32) + b)

            def step(t, carry, *, H=H, w_hh=w_hh, xproj_ref=xproj_ref,
                     hseq_ref=hseq_ref, last=last):
                h, c = carry
                row = pl.multiple_of(t * B, B)   # aligned: B == sublane tile
                z = xproj_ref[pl.ds(row, B), :] + jnp.dot(
                    h, w_hh, preferred_element_type=jnp.float32)
                # Gate order (i, f, o, g): one sigmoid over 3H lanes, one tanh.
                sig = jax.nn.sigmoid(z[:, :3 * H])
                i_g = sig[:, 0 * H:1 * H]
                f_g = sig[:, 1 * H:2 * H]
                o_g = sig[:, 2 * H:3 * H]
                g_g = jnp.tanh(z[:, 3 * H:4 * H])
                c_new = f_g * c + i_g * g_g
                h_new = o_g * jnp.tanh(c_new)
                if last:
                    hseq_ref[t] = h_new                       # (T, B, H) scratch
                else:
                    hseq_ref[pl.ds(row, B), :] = h_new        # (T*B, H) scratch
                return h_new, c_new

            zeros = jnp.zeros((B, H), jnp.float32)
            lax.fori_loop(0, T, step, (zeros, zeros), unroll=True)

            if last:
                h_last_ref = hseq_ref
            else:
                cur_in = hseq_ref[...]           # (T*B, H): next layer's input

        # Classifier: logits[b, v] = bl[v] + sum_t h_last[t, b, :] @ wl[t, :, v]
        h_last = h_last_ref[...]                 # (T, B, H_last)
        per_t = jnp.einsum('tbh,thv->tbv', h_last, wl_ref[...],
                           preferred_element_type=jnp.float32)
        logits = jnp.sum(per_t, axis=0) + bl_ref[...]          # (B, V)

        # log_softmax over the logical vocab lanes (explicitly mask padding).
        lane = lax.broadcasted_iota(jnp.int32, logits.shape, 1)
        valid = lane < V
        neg = jnp.full_like(logits, -1e30)
        m = jnp.max(jnp.where(valid, logits, neg), axis=1, keepdims=True)
        s = logits - m
        ex = jnp.exp(jnp.where(valid, s, neg))
        lse = jnp.log(jnp.sum(ex, axis=1, keepdims=True))
        o_ref[...] = s - lse

    return kernel


def run_fused(x2d, cell_params, wl, bl, *, T, B_pad):
    """x2d: (T*B_pad, D); cell_params: [(w_ih_t, w_hh_t, b), ...] gate order
    (i,f,o,g); wl: (T, H_last, V); bl: (1, V). Returns (B_pad, V) log-probs."""
    hidden_sizes = tuple(b.shape[-1] // 4 for (_, _, b) in cell_params)
    V = bl.shape[-1]
    n_cells = len(hidden_sizes)

    kernel = make_fused_kernel(T, B_pad, hidden_sizes, V)

    in_specs = [pl.BlockSpec(x2d.shape, lambda i: (0, 0))]
    flat_inputs = [x2d]
    for w_ih, w_hh, b in cell_params:
        in_specs += [pl.BlockSpec(w_ih.shape, lambda i: (0, 0)),
                     pl.BlockSpec(w_hh.shape, lambda i: (0, 0)),
                     pl.BlockSpec(b.shape, lambda i: (0, 0))]
        flat_inputs += [w_ih, w_hh, b]
    in_specs += [pl.BlockSpec(wl.shape, lambda i: (0, 0, 0)),
                 pl.BlockSpec(bl.shape, lambda i: (0, 0))]
    flat_inputs += [wl, bl]

    scratch_shapes = []
    for k, H in enumerate(hidden_sizes):
        scratch_shapes.append(pltpu.VMEM((T * B_pad, 4 * H), jnp.float32))
        if k < n_cells - 1:
            scratch_shapes.append(pltpu.VMEM((T * B_pad, H), jnp.float32))
        else:
            scratch_shapes.append(pltpu.VMEM((T, B_pad, H), jnp.float32))

    return pl.pallas_call(
        kernel,
        out_shape=jax.ShapeDtypeStruct((B_pad, V), jnp.float32),
        grid_spec=pltpu.PrefetchScalarGridSpec(
            num_scalar_prefetch=0,
            grid=(1,),                     # single step: everything in VMEM
            in_specs=in_specs,
            out_specs=pl.BlockSpec((B_pad, V), lambda i: (0, 0)),
            scratch_shapes=scratch_shapes),
        compiler_params=pltpu.CompilerParams(
            dimension_semantics=("arbitrary",)),
    )(*flat_inputs)


# ---------------------------------------------------------------------------
# Parameters (deterministic, synthetic; stored in PyTorch layout)
# ---------------------------------------------------------------------------
def init_params(key, vocab_size, input_size, hidden1, hidden2, max_len,
                num_layers):
    ks = jax.random.split(key, 16)
    kc = iter(ks)

    def u(k, shape, scale):
        return jax.random.uniform(k, shape, jnp.float32, -scale, scale)

    params = {"embed": jax.random.normal(next(kc), (vocab_size, input_size),
                                         jnp.float32)}

    def make_stack(in_dim, hid, n_layers):
        layers = []
        s = 1.0 / (hid ** 0.5)
        d = in_dim
        for _ in range(n_layers):
            w_ih = u(next(kc), (4 * hid, d), s)       # PyTorch: (4H, D)
            w_hh = u(next(kc), (4 * hid, hid), s)     # PyTorch: (4H, H)
            b_ih = u(next(kc), (4 * hid,), s)
            b_hh = u(next(kc), (4 * hid,), s)
            layers.append(
                dict(w_ih_t=w_ih.T, w_hh_t=w_hh.T,
                     b=(b_ih + b_hh).reshape(1, 4 * hid)))
            d = hid
        return layers

    params["lstm1"] = make_stack(input_size, hidden1, num_layers)
    params["lstm2"] = make_stack(hidden1, hidden2, num_layers)

    s = 1.0 / ((hidden2 * max_len) ** 0.5)
    params["line_w"] = u(next(kc), (vocab_size, hidden2 * max_len), s)
    params["line_b"] = u(next(kc), (vocab_size,), s)
    return params


def _reorder_ifog(a, H):
    """Reorder last-axis gate blocks from PyTorch (i, f, g, o) to (i, f, o, g)."""
    return jnp.concatenate(
        [a[..., :2 * H], a[..., 3 * H:4 * H], a[..., 2 * H:3 * H]], axis=-1)


# ---------------------------------------------------------------------------
# Forward pass (embedding gather in XLA, everything else in one Pallas call)
# ---------------------------------------------------------------------------
def forward(params, x_ids, max_len):
    B, T = x_ids.shape
    assert T == max_len

    # TODO(synk): Embedding max_norm=1 is emulated functionally on the whole
    # table (PyTorch renorms only gathered rows, in place); gather stays in XLA.
    emb_w = params["embed"]
    norms = jnp.linalg.norm(emb_w, axis=1, keepdims=True)
    scale = jnp.where(norms > 1.0, 1.0 / (norms + 1e-7), 1.0)
    emb_w = emb_w * scale

    # Gather into time-major layout, pad batch to the f32 sublane tile (8) and
    # present x as a lane/sublane-dense (T*B_pad, D) slab.
    x_tbd = jnp.take(emb_w, x_ids.T, axis=0).astype(jnp.float32)   # (T, B, D)
    B_pad = max(8, ((B + 7) // 8) * 8)
    x_tbd = jnp.pad(x_tbd, ((0, 0), (0, B_pad - B), (0, 0)))
    x2d = x_tbd.reshape(T * B_pad, x_tbd.shape[-1])

    # Kernel-layout weights: gate-reordered (i,f,o,g), x/h projections split.
    cell_params = []
    for layer in params["lstm1"] + params["lstm2"]:
        H = layer["w_hh_t"].shape[0]
        cell_params.append((_reorder_ifog(layer["w_ih_t"], H),
                            _reorder_ifog(layer["w_hh_t"], H),
                            _reorder_ifog(layer["b"], H)))

    H2 = params["lstm2"][-1]["w_hh_t"].shape[0]
    V = params["line_b"].shape[0]
    # line_w: (V, T*H2); feature index f = t*H2 + h  ->  wl[t, h, v]
    wl = params["line_w"].T.reshape(T, H2, V)
    bl = params["line_b"].reshape(1, V)

    # Dropout layer exists in __init__ but is never applied in forward().
    out = run_fused(x2d, cell_params, wl, bl, T=T, B_pad=B_pad)
    return out[:B]


# ---------------------------------------------------------------------------
# Pure-JAX reference (for correctness check of the Pallas kernel)
# ---------------------------------------------------------------------------
def _ref_lstm_layer(x_tbd, w_ih_t, w_hh_t, b):
    T, B, D = x_tbd.shape
    H = w_hh_t.shape[0]

    def step(carry, x_t):
        h, c = carry
        gates = x_t @ w_ih_t + h @ w_hh_t + b
        i = jax.nn.sigmoid(gates[:, 0 * H:1 * H])
        f = jax.nn.sigmoid(gates[:, 1 * H:2 * H])
        g = jnp.tanh(gates[:, 2 * H:3 * H])
        o = jax.nn.sigmoid(gates[:, 3 * H:4 * H])
        c = f * c + i * g
        h = o * jnp.tanh(c)
        return (h, c), h

    init = (jnp.zeros((B, H), jnp.float32), jnp.zeros((B, H), jnp.float32))
    _, hs = lax.scan(step, init, x_tbd)
    return hs


def _ref_forward(params, x_ids, max_len):
    B, T = x_ids.shape
    emb_w = params["embed"]
    norms = jnp.linalg.norm(emb_w, axis=1, keepdims=True)
    scale = jnp.where(norms > 1.0, 1.0 / (norms + 1e-7), 1.0)
    x = jnp.take(emb_w * scale, x_ids, axis=0)
    h = jnp.transpose(x, (1, 0, 2)).astype(jnp.float32)
    for layer in params["lstm1"]:
        h = _ref_lstm_layer(h, layer["w_ih_t"], layer["w_hh_t"], layer["b"])
    for layer in params["lstm2"]:
        h = _ref_lstm_layer(h, layer["w_ih_t"], layer["w_hh_t"], layer["b"])
    out_bt = jnp.transpose(h, (1, 0, 2)).reshape(B, -1)
    logits = out_bt @ params["line_w"].T + params["line_b"]
    return jax.nn.log_softmax(logits, axis=1)


# ---------------------------------------------------------------------------
if __name__ == "__main__":
    VOCAB = 50
    INPUT = 16
    HID1 = 32
    HID2 = 32
    NUM_LAYERS = 1
    MAX_LEN = 30
    BATCH = 2

    key = jax.random.PRNGKey(0)
    kp, kx = jax.random.split(key)
    params = init_params(kp, VOCAB, INPUT, HID1, HID2, MAX_LEN, NUM_LAYERS)
    x_ids = jax.random.randint(kx, (BATCH, MAX_LEN), 0, VOCAB, dtype=jnp.int32)

    fwd = jax.jit(functools.partial(forward, max_len=MAX_LEN))
    pred = jax.block_until_ready(fwd(params, x_ids))

    ref = jax.block_until_ready(_ref_forward(params, x_ids, MAX_LEN))
    assert pred.shape == (BATCH, VOCAB)
    assert jnp.max(jnp.abs(pred - ref)) < 1e-4

    print("KERNEL_OK")
</pallas_src>

<mosaic_0001>
module attributes {stable_mosaic.version = 11 : i64} {
  func.func @kernel(%arg0: i32, %arg1: memref<240x16xf32, #tpu.memory_space<vmem>>, %arg2: memref<16x128xf32, #tpu.memory_space<vmem>>, %arg3: memref<32x128xf32, #tpu.memory_space<vmem>>, %arg4: memref<1x128xf32, #tpu.memory_space<vmem>>, %arg5: memref<32x128xf32, #tpu.memory_space<vmem>>, %arg6: memref<32x128xf32, #tpu.memory_space<vmem>>, %arg7: memref<1x128xf32, #tpu.memory_space<vmem>>, %arg8: memref<30x32x50xf32, #tpu.memory_space<vmem>>, %arg9: memref<1x50xf32, #tpu.memory_space<vmem>>, %arg10: memref<8x50xf32, #tpu.memory_space<vmem>>, %arg11: memref<240x128xf32, #tpu.memory_space<vmem>>, %arg12: memref<240x32xf32, #tpu.memory_space<vmem>>, %arg13: memref<240x128xf32, #tpu.memory_space<vmem>>, %arg14: memref<30x8x32xf32, #tpu.memory_space<vmem>>) attributes {dimension_semantics = [#tpu.dimension_semantics<arbitrary>], iteration_bounds = array<i64: 1>, scalar_prefetch = 0 : i64, scratch_operands = 4 : i64, tpu.core_type = #tpu.core_type<tc>, window_params = [{pipeline_mode = #tpu.pipeline_mode<synchronous>, transform_indices = @transform_0, window_bounds = array<i64: 240, 16>}, {pipeline_mode = #tpu.pipeline_mode<synchronous>, transform_indices = @transform_1, window_bounds = array<i64: 16, 128>}, {pipeline_mode = #tpu.pipeline_mode<synchronous>, transform_indices = @transform_2, window_bounds = array<i64: 32, 128>}, {pipeline_mode = #tpu.pipeline_mode<synchronous>, transform_indices = @transform_3, window_bounds = array<i64: 1, 128>}, {pipeline_mode = #tpu.pipeline_mode<synchronous>, transform_indices = @transform_4, window_bounds = array<i64: 32, 128>}, {pipeline_mode = #tpu.pipeline_mode<synchronous>, transform_indices = @transform_5, window_bounds = array<i64: 32, 128>}, {pipeline_mode = #tpu.pipeline_mode<synchronous>, transform_indices = @transform_6, window_bounds = array<i64: 1, 128>}, {pipeline_mode = #tpu.pipeline_mode<synchronous>, transform_indices = @transform_7, window_bounds = array<i64: 30, 32, 50>}, {pipeline_mode = #tpu.pipeline_mode<synchronous>, transform_indices = @transform_8, window_bounds = array<i64: 1, 50>}, {pipeline_mode = #tpu.pipeline_mode<synchronous>, transform_indices = @transform_9, window_bounds = array<i64: 8, 50>}]} {
    %c0 = arith.constant 0 : index
    %c0_0 = arith.constant 0 : index
    %0 = vector.load %arg1[%c0, %c0_0] : memref<240x16xf32, #tpu.memory_space<vmem>>, vector<240x16xf32>
    %c0_1 = arith.constant 0 : index
    %c0_2 = arith.constant 0 : index
    %1 = vector.load %arg2[%c0_1, %c0_2] : memref<16x128xf32, #tpu.memory_space<vmem>>, vector<16x128xf32>
    %c0_3 = arith.constant 0 : index
    %c0_4 = arith.constant 0 : index
    %2 = vector.load %arg3[%c0_3, %c0_4] : memref<32x128xf32, #tpu.memory_space<vmem>>, vector<32x128xf32>
    %c0_5 = arith.constant 0 : index
    %c0_6 = arith.constant 0 : index
    %3 = vector.load %arg4[%c0_5, %c0_6] : memref<1x128xf32, #tpu.memory_space<vmem>>, vector<1x128xf32>
    %cst = arith.constant dense<0.000000e+00> : vector<240x128xf32>
    %4 = tpu.matmul %0, %1, %cst {dimension_numbers = #tpu.dot_dimension_numbers<[1], [0], [0], [1], [0, 0, 1, 1], [], []>} : vector<240x16xf32>, vector<16x128xf32>, vector<240x128xf32> -> vector<240x128xf32>
    %5 = vector.broadcast %3 : vector<1x128xf32> to vector<240x128xf32>
    %6 = arith.addf %4, %5 : vector<240x128xf32>
    %c0_7 = arith.constant 0 : index
    %c0_8 = arith.constant 0 : index
    %7 = vector.load %arg11[%c0_7, %c0_8] : memref<240x128xf32, #tpu.memory_space<vmem>>, vector<240x128xf32>
    tpu.vector_store %arg11[%c0_7, %c0_8], %6 {strides = array<i32>} : memref<240x128xf32, #tpu.memory_space<vmem>>, vector<240x128xf32>,
    %cst_9 = arith.constant 0.000000e+00 : f32
    %8 = vector.broadcast %cst_9 : f32 to vector<8x32xf32>
    %c0_i32 = arith.constant 0 : i32
    %c8_i32 = arith.constant 8 : i32
    %9 = arith.muli %c0_i32, %c8_i32 : i32
    %10 = tpu.assume_multiple %9, 8 : i32
    %11 = arith.index_cast %10 : i32 to index
    %c0_10 = arith.constant 0 : index
    %12 = vector.load %arg11[%11, %c0_10] : memref<240x128xf32, #tpu.memory_space<vmem>>, vector<8x128xf32>
    %cst_11 = arith.constant dense<0.000000e+00> : vector<8x128xf32>
    %13 = tpu.matmul %8, %2, %cst_11 {dimension_numbers = #tpu.dot_dimension_numbers<[1], [0], [0], [1], [0, 0, 1, 1], [], []>} : vector<8x32xf32>, vector<32x128xf32>, vector<8x128xf32> -> vector<8x128xf32>
    %14 = arith.addf %12, %13 : vector<8x128xf32>
    %15 = vector.extract_strided_slice %14 {offsets = [0, 0], sizes = [8, 96], strides = [1, 1]} : vector<8x128xf32> to vector<8x96xf32>
    %16 = arith.negf %15 : vector<8x96xf32>
    %17 = math.exp %16 : vector<8x96xf32>
    %cst_12 = arith.constant 1.000000e+00 : f32
    %18 = vector.broadcast %cst_12 : f32 to vector<8x96xf32>
    %19 = arith.addf %18, %17 : vector<8x96xf32>
    %20 = arith.divf %18, %19 : vector<8x96xf32>
    %21 = vector.extract_strided_slice %20 {offsets = [0, 0], sizes = [8, 32], strides = [1, 1]} : vector<8x96xf32> to vector<8x32xf32>
    %22 = vector.extract_strided_slice %20 {offsets = [0, 32], sizes = [8, 32], strides = [1, 1]} : vector<8x96xf32> to vector<8x32xf32>
    %23 = vector.extract_strided_slice %20 {offsets = [0, 64], sizes = [8, 32], strides = [1, 1]} : vector<8x96xf32> to vector<8x32xf32>
    %24 = vector.extract_strided_slice %14 {offsets = [0, 96], sizes = [8, 32], strides = [1, 1]} : vector<8x128xf32> to vector<8x32xf32>
    %25 = math.tanh %24 : vector<8x32xf32>
    %26 = arith.mulf %22, %8 : vector<8x32xf32>
    %27 = arith.mulf %21, %25 : vector<8x32xf32>
    %28 = arith.addf %26, %27 : vector<8x32xf32>
    %29 = math.tanh %28 : vector<8x32xf32>
    %30 = arith.mulf %23, %29 : vector<8x32xf32>
    %31 = arith.index_cast %10 : i32 to index
    %c0_13 = arith.constant 0 : index
    %32 = vector.load %arg12[%31, %c0_13] : memref<240x32xf32, #tpu.memory_space<vmem>>, vector<8x32xf32>
    tpu.vector_store %arg12[%31, %c0_13], %30 {strides = array<i32>} : memref<240x32xf32, #tpu.memory_space<vmem>>, vector<8x32xf32>,
    %c1_i32 = arith.constant 1 : i32
    %c8_i32_14 = arith.constant 8 : i32
    %33 = arith.muli %c1_i32, %c8_i32_14 : i32
    %34 = tpu.assume_multiple %33, 8 : i32
    %35 = arith.index_cast %34 : i32 to index
    %c0_15 = arith.constant 0 : index
    %36 = vector.load %arg11[%35, %c0_15] : memref<240x128xf32, #tpu.memory_space<vmem>>, vector<8x128xf32>
    %cst_16 = arith.constant dense<0.000000e+00> : vector<8x128xf32>
    %37 = tpu.matmul %30, %2, %cst_16 {dimension_numbers = #tpu.dot_dimension_numbers<[1], [0], [0], [1], [0, 0, 1, 1], [], []>} : vector<8x32xf32>, vector<32x128xf32>, vector<8x128xf32> -> vector<8x128xf32>
    %38 = arith.addf %36, %37 : vector<8x128xf32>
    %39 = vector.extract_strided_slice %38 {offsets = [0, 0], sizes = [8, 96], strides = [1, 1]} : vector<8x128xf32> to vector<8x96xf32>
    %40 = arith.negf %39 : vector<8x96xf32>
    %41 = math.exp %40 : vector<8x96xf32>
    %cst_17 = arith.constant 1.000000e+00 : f32
    %42 = vector.broadcast %cst_17 : f32 to vector<8x96xf32>
    %43 = arith.addf %42, %41 : vector<8x96xf32>
    %44 = arith.divf %42, %43 : vector<8x96xf32>
    %45 = vector.extract_strided_slice %44 {offsets = [0, 0], sizes = [8, 32], strides = [1, 1]} : vector<8x96xf32> to vector<8x32xf32>
    %46 = vector.extract_strided_slice %44 {offsets = [0, 32], sizes = [8, 32], strides = [1, 1]} : vector<8x96xf32> to vector<8x32xf32>
    %47 = vector.extract_strided_slice %44 {offsets = [0, 64], sizes = [8, 32], strides = [1, 1]} : vector<8x96xf32> to vector<8x32xf32>
    %48 = vector.extract_strided_slice %38 {offsets = [0, 96], sizes = [8, 32], strides = [1, 1]} : vector<8x128xf32> to vector<8x32xf32>
    %49 = math.tanh %48 : vector<8x32xf32>
    %50 = arith.mulf %46, %28 : vector<8x32xf32>
    %51 = arith.mulf %45, %49 : vector<8x32xf32>
    %52 = arith.addf %50, %51 : vector<8x32xf32>
    %53 = math.tanh %52 : vector<8x32xf32>
    %54 = arith.mulf %47, %53 : vector<8x32xf32>
    %55 = arith.index_cast %34 : i32 to index
    %c0_18 = arith.constant 0 : index
    %56 = vector.load %arg12[%55, %c0_18] : memref<240x32xf32, #tpu.memory_space<vmem>>, vector<8x32xf32>
    tpu.vector_store %arg12[%55, %c0_18], %54 {strides = array<i32>} : memref<240x32xf32, #tpu.memory_space<vmem>>, vector<8x32xf32>,
    %c2_i32 = arith.constant 2 : i32
    %c8_i32_19 = arith.constant 8 : i32
    %57 = arith.muli %c2_i32, %c8_i32_19 : i32
    %58 = tpu.assume_multiple %57, 8 : i32
    %59 = arith.index_cast %58 : i32 to index
    %c0_20 = arith.constant 0 : index
    %60 = vector.load %arg11[%59, %c0_20] : memref<240x128xf32, #tpu.memory_space<vmem>>, vector<8x128xf32>
    %cst_21 = arith.constant dense<0.000000e+00> : vector<8x128xf32>
    %61 = tpu.matmul %54, %2, %cst_21 {dimension_numbers = #tpu.dot_dimension_numbers<[1], [0], [0], [1], [0, 0, 1, 1], [], []>} : vector<8x32xf32>, vector<32x128xf32>, vector<8x128xf32> -> vector<8x128xf32>
    %62 = arith.addf %60, %61 : vector<8x128xf32>
    %63 = vector.extract_strided_slice %62 {offsets = [0, 0], sizes = [8, 96], strides = [1, 1]} : vector<8x128xf32> to vector<8x96xf32>
    %64 = arith.negf %63 : vector<8x96xf32>
    %65 = math.exp %64 : vector<8x96xf32>
    %cst_22 = arith.constant 1.000000e+00 : f32
    %66 = vector.broadcast %cst_22 : f32 to vector<8x96xf32>
    %67 = arith.addf %66, %65 : vector<8x96xf32>
    %68 = arith.divf %66, %67 : vector<8x96xf32>
    %69 = vector.extract_strided_slice %68 {offsets = [0, 0], sizes = [8, 32], strides = [1, 1]} : vector<8x96xf32> to vector<8x32xf32>
    %70 = vector.extract_strided_slice %68 {offsets = [0, 32], sizes = [8, 32], strides = [1, 1]} : vector<8x96xf32> to vector<8x32xf32>
    %71 = vector.extract_strided_slice %68 {offsets = [0, 64], sizes = [8, 32], strides = [1, 1]} : vector<8x96xf32> to vector<8x32xf32>
    %72 = vector.extract_strided_slice %62 {offsets = [0, 96], sizes = [8, 32], strides = [1, 1]} : vector<8x128xf32> to vector<8x32xf32>
    %73 = math.tanh %72 : vector<8x32xf32>
    %74 = arith.mulf %70, %52 : vector<8x32xf32>
    %75 = arith.mulf %69, %73 : vector<8x32xf32>
    %76 = arith.addf %74, %75 : vector<8x32xf32>
    %77 = math.tanh %76 : vector<8x32xf32>
    %78 = arith.mulf %71, %77 : vector<8x32xf32>
    %79 = arith.index_cast %58 : i32 to index
    %c0_23 = arith.constant 0 : index
    %80 = vector.load %arg12[%79, %c0_23] : memref<240x32xf32, #tpu.memory_space<vmem>>, vector<8x32xf32>
    tpu.vector_store %arg12[%79, %c0_23], %78 {strides = array<i32>} : memref<240x32xf32, #tpu.memory_space<vmem>>, vector<8x32xf32>,
    %c3_i32 = arith.constant 3 : i32
    %c8_i32_24 = arith.constant 8 : i32
    %81 = arith.muli %c3_i32, %c8_i32_24 : i32
    %82 = tpu.assume_multiple %81, 8 : i32
    %83 = arith.index_cast %82 : i32 to index
    %c0_25 = arith.constant 0 : index
    %84 = vector.load %arg11[%83, %c0_25] : memref<240x128xf32, #tpu.memory_space<vmem>>, vector<8x128xf32>
    %cst_26 = arith.constant dense<0.000000e+00> : vector<8x128xf32>
    %85 = tpu.matmul %78, %2, %cst_26 {dimension_numbers = #tpu.dot_dimension_numbers<[1], [0], [0], [1], [0, 0, 1, 1], [], []>} : vector<8x32xf32>, vector<32x128xf32>, vector<8x128xf32> -> vector<8x128xf32>
    %86 = arith.addf %84, %85 : vector<8x128xf32>
    %87 = vector.extract_strided_slice %86 {offsets = [0, 0], sizes = [8, 96], strides = [1, 1]} : vector<8x128xf32> to vector<8x96xf32>
    %88 = arith.negf %87 : vector<8x96xf32>
    %89 = math.exp %88 : vector<8x96xf32>
    %cst_27 = arith.constant 1.000000e+00 : f32
    %90 = vector.broadcast %cst_27 : f32 to vector<8x96xf32>
    %91 = arith.addf %90, %89 : vector<8x96xf32>
    %92 = arith.divf %90, %91 : vector<8x96xf32>
    %93 = vector.extract_strided_slice %92 {offsets = [0, 0], sizes = [8, 32], strides = [1, 1]} : vector<8x96xf32> to vector<8x32xf32>
    %94 = vector.extract_strided_slice %92 {offsets = [0, 32], sizes = [8, 32], strides = [1, 1]} : vector<8x96xf32> to vector<8x32xf32>
    %95 = vector.extract_strided_slice %92 {offsets = [0, 64], sizes = [8, 32], strides = [1, 1]} : vector<8x96xf32> to vector<8x32xf32>
    %96 = vector.extract_strided_slice %86 {offsets = [0, 96], sizes = [8, 32], strides = [1, 1]} : vector<8x128xf32> to vector<8x32xf32>
    %97 = math.tanh %96 : vector<8x32xf32>
    %98 = arith.mulf %94, %76 : vector<8x32xf32>
    %99 = arith.mulf %93, %97 : vector<8x32xf32>
    %100 = arith.addf %98, %99 : vector<8x32xf32>
    %101 = math.tanh %100 : vector<8x32xf32>
    %102 = arith.mulf %95, %101 : vector<8x32xf32>
    %103 = arith.index_cast %82 : i32 to index
    %c0_28 = arith.constant 0 : index
    %104 = vector.load %arg12[%103, %c0_28] : memref<240x32xf32, #tpu.memory_space<vmem>>, vector<8x32xf32>
    tpu.vector_store %arg12[%103, %c0_28], %102 {strides = array<i32>} : memref<240x32xf32, #tpu.memory_space<vmem>>, vector<8x32xf32>,
    %c4_i32 = arith.constant 4 : i32
    %c8_i32_29 = arith.constant 8 : i32
    %105 = arith.muli %c4_i32, %c8_i32_29 : i32
    %106 = tpu.assume_multiple %105, 8 : i32
    %107 = arith.index_cast %106 : i32 to index
    %c0_30 = arith.constant 0 : index
    %108 = vector.load %arg11[%107, %c0_30] : memref<240x128xf32, #tpu.memory_space<vmem>>, vector<8x128xf32>
    %cst_31 = arith.constant dense<0.000000e+00> : vector<8x128xf32>
    %109 = tpu.matmul %102, %2, %cst_31 {dimension_numbers = #tpu.dot_dimension_numbers<[1], [0], [0], [1], [0, 0, 1, 1], [], []>} : vector<8x32xf32>, vector<32x128xf32>, vector<8x128xf32> -> vector<8x128xf32>
    %110 = arith.addf %108, %109 : vector<8x128xf32>
    %111 = vector.extract_strided_slice %110 {offsets = [0, 0], sizes = [8, 96], strides = [1, 1]} : vector<8x128xf32> to vector<8x96xf32>
    %112 = arith.negf %111 : vector<8x96xf32>
    %113 = math.exp %112 : vector<8x96xf32>
    %cst_32 = arith.constant 1.000000e+00 : f32
    %114 = vector.broadcast %cst_32 : f32 to vector<8x96xf32>
    %115 = arith.addf %114, %113 : vector<8x96xf32>
    %116 = arith.divf %114, %115 : vector<8x96xf32>
    %117 = vector.extract_strided_slice %116 {offsets = [0, 0], sizes = [8, 32], strides = [1, 1]} : vector<8x96xf32> to vector<8x32xf32>
    %118 = vector.extract_strided_slice %116 {offsets = [0, 32], sizes = [8, 32], strides = [1, 1]} : vector<8x96xf32> to vector<8x32xf32>
    %119 = vector.extract_strided_slice %116 {offsets = [0, 64], sizes = [8, 32], strides = [1, 1]} : vector<8x96xf32> to vector<8x32xf32>
    %120 = vector.extract_strided_slice %110 {offsets = [0, 96], sizes = [8, 32], strides = [1, 1]} : vector<8x128xf32> to vector<8x32xf32>
    %121 = math.tanh %120 : vector<8x32xf32>
    %122 = arith.mulf %118, %100 : vector<8x32xf32>
    %123 = arith.mulf %117, %121 : vector<8x32xf32>
    %124 = arith.addf %122, %123 : vector<8x32xf32>
    %125 = math.tanh %124 : vector<8x32xf32>
    %126 = arith.mulf %119, %125 : vector<8x32xf32>
    %127 = arith.index_cast %106 : i32 to index
    %c0_33 = arith.constant 0 : index
    %128 = vector.load %arg12[%127, %c0_33] : memref<240x32xf32, #tpu.memory_space<vmem>>, vector<8x32xf32>
    tpu.vector_store %arg12[%127, %c0_33], %126 {strides = array<i32>} : memref<240x32xf32, #tpu.memory_space<vmem>>, vector<8x32xf32>,
    %c5_i32 = arith.constant 5 : i32
    %c8_i32_34 = arith.constant 8 : i32
    %129 = arith.muli %c5_i32, %c8_i32_34 : i32
    %130 = tpu.assume_multiple %129, 8 : i32
    %131 = arith.index_cast %130 : i32 to index
    %c0_35 = arith.constant 0 : index
    %132 = vector.load %arg11[%131, %c0_35] : memref<240x128xf32, #tpu.memory_space<vmem>>, vector<8x128xf32>
    %cst_36 = arith.constant dense<0.000000e+00> : vector<8x128xf32>
    %133 = tpu.matmul %126, %2, %cst_36 {dimension_numbers = #tpu.dot_dimension_numbers<[1], [0], [0], [1], [0, 0, 1, 1], [], []>} : vector<8x32xf32>, vector<32x128xf32>, vector<8x128xf32> -> vector<8x128xf32>
    %134 = arith.addf %132, %133 : vector<8x128xf32>
    %135 = vector.extract_strided_slice %134 {offsets = [0, 0], sizes = [8, 96], strides = [1, 1]} : vector<8x128xf32> to vector<8x96xf32>
    %136 = arith.negf %135 : vector<8x96xf32>
    %137 = math.exp %136 : vector<8x96xf32>
    %cst_37 = arith.constant 1.000000e+00 : f32
    %138 = vector.broadcast %cst_37 : f32 to vector<8x96xf32>
    %139 = arith.addf %138, %137 : vector<8x96xf32>
    %140 = arith.divf %138, %139 : vector<8x96xf32>
    %141 = vector.extract_strided_slice %140 {offsets = [0, 0], sizes = [8, 32], strides = [1, 1]} : vector<8x96xf32> to vector<8x32xf32>
    %142 = vector.extract_strided_slice %140 {offsets = [0, 32], sizes = [8, 32], strides = [1, 1]} : vector<8x96xf32> to vector<8x32xf32>
    %143 = vector.extract_strided_slice %140 {offsets = [0, 64], sizes = [8, 32], strides = [1, 1]} : vector<8x96xf32> to vector<8x32xf32>
    %144 = vector.extract_strided_slice %134 {offsets = [0, 96], sizes = [8, 32], strides = [1, 1]} : vector<8x128xf32> to vector<8x32xf32>
    %145 = math.tanh %144 : vector<8x32xf32>
    %146 = arith.mulf %142, %124 : vector<8x32xf32>
    %147 = arith.mulf %141, %145 : vector<8x32xf32>
    %148 = arith.addf %146, %147 : vector<8x32xf32>
    %149 = math.tanh %148 : vector<8x32xf32>
    %150 = arith.mulf %143, %149 : vector<8x32xf32>
    %151 = arith.index_cast %130 : i32 to index
    %c0_38 = arith.constant 0 : index
    %152 = vector.load %arg12[%151, %c0_38] : memref<240x32xf32, #tpu.memory_space<vmem>>, vector<8x32xf32>
    tpu.vector_store %arg12[%151, %c0_38], %150 {strides = array<i32>} : memref<240x32xf32, #tpu.memory_space<vmem>>, vector<8x32xf32>,
    %c6_i32 = arith.constant 6 : i32
    %c8_i32_39 = arith.constant 8 : i32
    %153 = arith.muli %c6_i32, %c8_i32_39 : i32
    %154 = tpu.assume_multiple %153, 8 : i32
    %155 = arith.index_cast %154 : i32 to index
    %c0_40 = arith.constant 0 : index
    %156 = vector.load %arg11[%155, %c0_40] : memref<240x128xf32, #tpu.memory_space<vmem>>, vector<8x128xf32>
    %cst_41 = arith.constant dense<0.000000e+00> : vector<8x128xf32>
    %157 = tpu.matmul %150, %2, %cst_41 {dimension_numbers = #tpu.dot_dimension_numbers<[1], [0], [0], [1], [0, 0, 1, 1], [], []>} : vector<8x32xf32>, vector<32x128xf32>, vector<8x128xf32> -> vector<8x128xf32>
    %158 = arith.addf %156, %157 : vector<8x128xf32>
    %159 = vector.extract_strided_slice %158 {offsets = [0, 0], sizes = [8, 96], strides = [1, 1]} : vector<8x128xf32> to vector<8x96xf32>
    %160 = arith.negf %159 : vector<8x96xf32>
    %161 = math.exp %160 : vector<8x96xf32>
    %cst_42 = arith.constant 1.000000e+00 : f32
    %162 = vector.broadcast %cst_42 : f32 to vector<8x96xf32>
    %163 = arith.addf %162, %161 : vector<8x96xf32>
    %164 = arith.divf %162, %163 : vector<8x96xf32>
    %165 = vector.extract_strided_slice %164 {offsets = [0, 0], sizes = [8, 32], strides = [1, 1]} : vector<8x96xf32> to vector<8x32xf32>
    %166 = vector.extract_strided_slice %164 {offsets = [0, 32], sizes = [8, 32], strides = [1, 1]} : vector<8x96xf32> to vector<8x32xf32>
    %167 = vector.extract_strided_slice %164 {offsets = [0, 64], sizes = [8, 32], strides = [1, 1]} : vector<8x96xf32> to vector<8x32xf32>
    %168 = vector.extract_strided_slice %158 {offsets = [0, 96], sizes = [8, 32], strides = [1, 1]} : vector<8x128xf32> to vector<8x32xf32>
    %169 = math.tanh %168 : vector<8x32xf32>
    %170 = arith.mulf %166, %148 : vector<8x32xf32>
    %171 = arith.mulf %165, %169 : vector<8x32xf32>
    %172 = arith.addf %170, %171 : vector<8x32xf32>
    %173 = math.tanh %172 : vector<8x32xf32>
    %174 = arith.mulf %167, %173 : vector<8x32xf32>
    %175 = arith.index_cast %154 : i32 to index
    %c0_43 = arith.constant 0 : index
    %176 = vector.load %arg12[%175, %c0_43] : memref<240x32xf32, #tpu.memory_space<vmem>>, vector<8x32xf32>
    tpu.vector_store %arg12[%175, %c0_43], %174 {strides = array<i32>} : memref<240x32xf32, #tpu.memory_space<vmem>>, vector<8x32xf32>,
    %c7_i32 = arith.constant 7 : i32
    %c8_i32_44 = arith.constant 8 : i32
    %177 = arith.muli %c7_i32, %c8_i32_44 : i32
    %178 = tpu.assume_multiple %177, 8 : i32
    %179 = arith.index_cast %178 : i32 to index
    %c0_45 = arith.constant 0 : index
    %180 = vector.load %arg11[%179, %c0_45] : memref<240x128xf32, #tpu.memory_space<vmem>>, vector<8x128xf32>
    %cst_46 = arith.constant dense<0.000000e+00> : vector<8x128xf32>
    %181 = tpu.matmul %174, %2, %cst_46 {dimension_numbers = #tpu.dot_dimension_numbers<[1], [0], [0], [1], [0, 0, 1, 1], [], []>} : vector<8x32xf32>, vector<32x128xf32>, vector<8x128xf32> -> vector<8x128xf32>
    %182 = arith.addf %180, %181 : vector<8x128xf32>
    %183 = vector.extract_strided_slice %182 {offsets = [0, 0], sizes = [8, 96], strides = [1, 1]} : vector<8x128xf32> to vector<8x96xf32>
    %184 = arith.negf %183 : vector<8x96xf32>
    %185 = math.exp %184 : vector<8x96xf32>
    %cst_47 = arith.constant 1.000000e+00 : f32
    %186 = vector.broadcast %cst_47 : f32 to vector<8x96xf32>
    %187 = arith.addf %186, %185 : vector<8x96xf32>
    %188 = arith.divf %186, %187 : vector<8x96xf32>
    %189 = vector.extract_strided_slice %188 {offsets = [0, 0], sizes = [8, 32], strides = [1, 1]} : vector<8x96xf32> to vector<8x32xf32>
    %190 = vector.extract_strided_slice %188 {offsets = [0, 32], sizes = [8, 32], strides = [1, 1]} : vector<8x96xf32> to vector<8x32xf32>
    %191 = vector.extract_strided_slice %188 {offsets = [0, 64], sizes = [8, 32], strides = [1, 1]} : vector<8x96xf32> to vector<8x32xf32>
    %192 = vector.extract_strided_slice %182 {offsets = [0, 96], sizes = [8, 32], strides = [1, 1]} : vector<8x128xf32> to vector<8x32xf32>
    %193 = math.tanh %192 : vector<8x32xf32>
    %194 = arith.mulf %190, %172 : vector<8x32xf32>
    %195 = arith.mulf %189, %193 : vector<8x32xf32>
    %196 = arith.addf %194, %195 : vector<8x32xf32>
    %197 = math.tanh %196 : vector<8x32xf32>
    %198 = arith.mulf %191, %197 : vector<8x32xf32>
    %199 = arith.index_cast %178 : i32 to index
    %c0_48 = arith.constant 0 : index
    %200 = vector.load %arg12[%199, %c0_48] : memref<240x32xf32, #tpu.memory_space<vmem>>, vector<8x32xf32>
    tpu.vector_store %arg12[%199, %c0_48], %198 {strides = array<i32>} : memref<240x32xf32, #tpu.memory_space<vmem>>, vector<8x32xf32>,
    %c8_i32_49 = arith.constant 8 : i32
    %c8_i32_50 = arith.constant 8 : i32
    %201 = arith.muli %c8_i32_49, %c8_i32_50 : i32
    %202 = tpu.assume_multiple %201, 8 : i32
    %203 = arith.index_cast %202 : i32 to index
    %c0_51 = arith.constant 0 : index
    %204 = vector.load %arg11[%203, %c0_51] : memref<240x128xf32, #tpu.memory_space<vmem>>, vector<8x128xf32>
    %cst_52 = arith.constant dense<0.000000e+00> : vector<8x128xf32>
    %205 = tpu.matmul %198, %2, %cst_52 {dimension_numbers = #tpu.dot_dimension_numbers<[1], [0], [0], [1], [0, 0, 1, 1], [], []>} : vector<8x32xf32>, vector<32x128xf32>, vector<8x128xf32> -> vector<8x128xf32>
    %206 = arith.addf %204, %205 : vector<8x128xf32>
    %207 = vector.extract_strided_slice %206 {offsets = [0, 0], sizes = [8, 96], strides = [1, 1]} : vector<8x128xf32> to vector<8x96xf32>
    %208 = arith.negf %207 : vector<8x96xf32>
    %209 = math.exp %208 : vector<8x96xf32>
    %cst_53 = arith.constant 1.000000e+00 : f32
    %210 = vector.broadcast %cst_53 : f32 to vector<8x96xf32>
    %211 = arith.addf %210, %209 : vector<8x96xf32>
    %212 = arith.divf %210, %211 : vector<8x96xf32>
    %213 = vector.extract_strided_slice %212 {offsets = [0, 0], sizes = [8, 32], strides = [1, 1]} : vector<8x96xf32> to vector<8x32xf32>
    %214 = vector.extract_strided_slice %212 {offsets = [0, 32], sizes = [8, 32], strides = [1, 1]} : vector<8x96xf32> to vector<8x32xf32>
    %215 = vector.extract_strided_slice %212 {offsets = [0, 64], sizes = [8, 32], strides = [1, 1]} : vector<8x96xf32> to vector<8x32xf32>
    %216 = vector.extract_strided_slice %206 {offsets = [0, 96], sizes = [8, 32], strides = [1, 1]} : vector<8x128xf32> to vector<8x32xf32>
    %217 = math.tanh %216 : vector<8x32xf32>
    %218 = arith.mulf %214, %196 : vector<8x32xf32>
    %219 = arith.mulf %213, %217 : vector<8x32xf32>
    %220 = arith.addf %218, %219 : vector<8x32xf32>
    %221 = math.tanh %220 : vector<8x32xf32>
    %222 = arith.mulf %215, %221 : vector<8x32xf32>
    %223 = arith.index_cast %202 : i32 to index
    %c0_54 = arith.constant 0 : index
    %224 = vector.load %arg12[%223, %c0_54] : memref<240x32xf32, #tpu.memory_space<vmem>>, vector<8x32xf32>
    tpu.vector_store %arg12[%223, %c0_54], %222 {strides = array<i32>} : memref<240x32xf32, #tpu.memory_space<vmem>>, vector<8x32xf32>,
    %c9_i32 = arith.constant 9 : i32
    %c8_i32_55 = arith.constant 8 : i32
    %225 = arith.muli %c9_i32, %c8_i32_55 : i32
    %226 = tpu.assume_multiple %225, 8 : i32
    %227 = arith.index_cast %226 : i32 to index
    %c0_56 = arith.constant 0 : index
    %228 = vector.load %arg11[%227, %c0_56] : memref<240x128xf32, #tpu.memory_space<vmem>>, vector<8x128xf32>
    %cst_57 = arith.constant dense<0.000000e+00> : vector<8x128xf32>
    %229 = tpu.matmul %222, %2, %cst_57 {dimension_numbers = #tpu.dot_dimension_numbers<[1], [0], [0], [1], [0, 0, 1, 1], [], []>} : vector<8x32xf32>, vector<32x128xf32>, vector<8x128xf32> -> vector<8x128xf32>
    %230 = arith.addf %228, %229 : vector<8x128xf32>
    %231 = vector.extract_strided_slice %230 {offsets = [0, 0], sizes = [8, 96], strides = [1, 1]} : vector<8x128xf32> to vector<8x96xf32>
    %232 = arith.negf %231 : vector<8x96xf32>
    %233 = math.exp %232 : vector<8x96xf32>
    %cst_58 = arith.constant 1.000000e+00 : f32
    %234 = vector.broadcast %cst_58 : f32 to vector<8x96xf32>
    %235 = arith.addf %234, %233 : vector<8x96xf32>
    %236 = arith.divf %234, %235 : vector<8x96xf32>
    %237 = vector.extract_strided_slice %236 {offsets = [0, 0], sizes = [8, 32], strides = [1, 1]} : vector<8x96xf32> to vector<8x32xf32>
    %238 = vector.extract_strided_slice %236 {offsets = [0, 32], sizes = [8, 32], strides = [1, 1]} : vector<8x96xf32> to vector<8x32xf32>
    %239 = vector.extract_strided_slice %236 {offsets = [0, 64], sizes = [8, 32], strides = [1, 1]} : vector<8x96xf32> to vector<8x32xf32>
    %240 = vector.extract_strided_slice %230 {offsets = [0, 96], sizes = [8, 32], strides = [1, 1]} : vector<8x128xf32> to vector<8x32xf32>
    %241 = math.tanh %240 : vector<8x32xf32>
    %242 = arith.mulf %238, %220 : vector<8x32xf32>
    %243 = arith.mulf %237, %241 : vector<8x32xf32>
    %244 = arith.addf %242, %243 : vector<8x32xf32>
    %245 = math.tanh %244 : vector<8x32xf32>
    %246 = arith.mulf %239, %245 : vector<8x32xf32>
    %247 = arith.index_cast %226 : i32 to index
    %c0_59 = arith.constant 0 : index
    %248 = vector.load %arg12[%247, %c0_59] : memref<240x32xf32, #tpu.memory_space<vmem>>, vector<8x32xf32>
    tpu.vector_store %arg12[%247, %c0_59], %246 {strides = array<i32>} : memref<240x32xf32, #tpu.memory_space<vmem>>, vector<8x32xf32>,
    %c10_i32 = arith.constant 10 : i32
    %c8_i32_60 = arith.constant 8 : i32
    %249 = arith.muli %c10_i32, %c8_i32_60 : i32
    %250 = tpu.assume_multiple %249, 8 : i32
    %251 = arith.index_cast %250 : i32 to index
    %c0_61 = arith.constant 0 : index
    %252 = vector.load %arg11[%251, %c0_61] : memref<240x128xf32, #tpu.memory_space<vmem>>, vector<8x128xf32>
    %cst_62 = arith.constant dense<0.000000e+00> : vector<8x128xf32>
    %253 = tpu.matmul %246, %2, %cst_62 {dimension_numbers = #tpu.dot_dimension_numbers<[1], [0], [0], [1], [0, 0, 1, 1], [], []>} : vector<8x32xf32>, vector<32x128xf32>, vector<8x128xf32> -> vector<8x128xf32>
    %254 = arith.addf %252, %253 : vector<8x128xf32>
    %255 = vector.extract_strided_slice %254 {offsets = [0, 0], sizes = [8, 96], strides = [1, 1]} : vector<8x128xf32> to vector<8x96xf32>
    %256 = arith.negf %255 : vector<8x96xf32>
    %257 = math.exp %256 : vector<8x96xf32>
    %cst_63 = arith.constant 1.000000e+00 : f32
    %258 = vector.broadcast %cst_63 : f32 to vector<8x96xf32>
    %259 = arith.addf %258, %257 : vector<8x96xf32>
    %260 = arith.divf %258, %259 : vector<8x96xf32>
    %261 = vector.extract_strided_slice %260 {offsets = [0, 0], sizes = [8, 32], strides = [1, 1]} : vector<8x96xf32> to vector<8x32xf32>
    %262 = vector.extract_strided_slice %260 {offsets = [0, 32], sizes = [8, 32], strides = [1, 1]} : vector<8x96xf32> to vector<8x32xf32>
    %263 = vector.extract_strided_slice %260 {offsets = [0, 64], sizes = [8, 32], strides = [1, 1]} : vector<8x96xf32> to vector<8x32xf32>
    %264 = vector.extract_strided_slice %254 {offsets = [0, 96], sizes = [8, 32], strides = [1, 1]} : vector<8x128xf32> to vector<8x32xf32>
    %265 = math.tanh %264 : vector<8x32xf32>
    %266 = arith.mulf %262, %244 : vector<8x32xf32>
    %267 = arith.mulf %261, %265 : vector<8x32xf32>
    %268 = arith.addf %266, %267 : vector<8x32xf32>
    %269 = math.tanh %268 : vector<8x32xf32>
    %270 = arith.mulf %263, %269 : vector<8x32xf32>
    %271 = arith.index_cast %250 : i32 to index
    %c0_64 = arith.constant 0 : index
    %272 = vector.load %arg12[%271, %c0_64] : memref<240x32xf32, #tpu.memory_space<vmem>>, vector<8x32xf32>
    tpu.vector_store %arg12[%271, %c0_64], %270 {strides = array<i32>} : memref<240x32xf32, #tpu.memory_space<vmem>>, vector<8x32xf32>,
    %c11_i32 = arith.constant 11 : i32
    %c8_i32_65 = arith.constant 8 : i32
    %273 = arith.muli %c11_i32, %c8_i32_65 : i32
    %274 = tpu.assume_multiple %273, 8 : i32
    %275 = arith.index_cast %274 : i32 to index
    %c0_66 = arith.constant 0 : index
    %276 = vector.load %arg11[%275, %c0_66] : memref<240x128xf32, #tpu.memory_space<vmem>>, vector<8x128xf32>
    %cst_67 = arith.constant dense<0.000000e+00> : vector<8x128xf32>
    %277 = tpu.matmul %270, %2, %cst_67 {dimension_numbers = #tpu.dot_dimension_numbers<[1], [0], [0], [1], [0, 0, 1, 1], [], []>} : vector<8x32xf32>, vector<32x128xf32>, vector<8x128xf32> -> vector<8x128xf32>
    %278 = arith.addf %276, %277 : vector<8x128xf32>
    %279 = vector.extract_strided_slice %278 {offsets = [0, 0], sizes = [8, 96], strides = [1, 1]} : vector<8x128xf32> to vector<8x96xf32>
    %280 = arith.negf %279 : vector<8x96xf32>
    %281 = math.exp %280 : vector<8x96xf32>
    %cst_68 = arith.constant 1.000000e+00 : f32
    %282 = vector.broadcast %cst_68 : f32 to vector<8x96xf32>
    %283 = arith.addf %282, %281 : vector<8x96xf32>
    %284 = arith.divf %282, %283 : vector<8x96xf32>
    %285 = vector.extract_strided_slice %284 {offsets = [0, 0], sizes = [8, 32], strides = [1, 1]} : vector<8x96xf32> to vector<8x32xf32>
    %286 = vector.extract_strided_slice %284 {offsets = [0, 32], sizes = [8, 32], strides = [1, 1]} : vector<8x96xf32> to vector<8x32xf32>
    %287 = vector.extract_strided_slice %284 {offsets = [0, 64], sizes = [8, 32], strides = [1, 1]} : vector<8x96xf32> to vector<8x32xf32>
    %288 = vector.extract_strided_slice %278 {offsets = [0, 96], sizes = [8, 32], strides = [1, 1]} : vector<8x128xf32> to vector<8x32xf32>
    %289 = math.tanh %288 : vector<8x32xf32>
    %290 = arith.mulf %286, %268 : vector<8x32xf32>
    %291 = arith.mulf %285, %289 : vector<8x32xf32>
    %292 = arith.addf %290, %291 : vector<8x32xf32>
    %293 = math.tanh %292 : vector<8x32xf32>
    %294 = arith.mulf %287, %293 : vector<8x32xf32>
    %295 = arith.index_cast %274 : i32 to index
    %c0_69 = arith.constant 0 : index
    %296 = vector.load %arg12[%295, %c0_69] : memref<240x32xf32, #tpu.memory_space<vmem>>, vector<8x32xf32>
    tpu.vector_store %arg12[%295, %c0_69], %294 {strides = array<i32>} : memref<240x32xf32, #tpu.memory_space<vmem>>, vector<8x32xf32>,
    %c12_i32 = arith.constant 12 : i32
    %c8_i32_70 = arith.constant 8 : i32
    %297 = arith.muli %c12_i32, %c8_i32_70 : i32
    %298 = tpu.assume_multiple %297, 8 : i32
    %299 = arith.index_cast %298 : i32 to index
    %c0_71 = arith.constant 0 : index
    %300 = vector.load %arg11[%299, %c0_71] : memref<240x128xf32, #tpu.memory_space<vmem>>, vector<8x128xf32>
    %cst_72 = arith.constant dense<0.000000e+00> : vector<8x128xf32>
    %301 = tpu.matmul %294, %2, %cst_72 {dimension_numbers = #tpu.dot_dimension_numbers<[1], [0], [0], [1], [0, 0, 1, 1], [], []>} : vector<8x32xf32>, vector<32x128xf32>, vector<8x128xf32> -> vector<8x128xf32>
    %302 = arith.addf %300, %301 : vector<8x128xf32>
    %303 = vector.extract_strided_slice %302 {offsets = [0, 0], sizes = [8, 96], strides = [1, 1]} : vector<8x128xf32> to vector<8x96xf32>
    %304 = arith.negf %303 : vector<8x96xf32>
    %305 = math.exp %304 : vector<8x96xf32>
    %cst_73 = arith.constant 1.000000e+00 : f32
    %306 = vector.broadcast %cst_73 : f32 to vector<8x96xf32>
    %307 = arith.addf %306, %305 : vector<8x96xf32>
    %308 = arith.divf %306, %307 : vector<8x96xf32>
    %309 = vector.extract_strided_slice %308 {offsets = [0, 0], sizes = [8, 32], strides = [1, 1]} : vector<8x96xf32> to vector<8x32xf32>
    %310 = vector.extract_strided_slice %308 {offsets = [0, 32], sizes = [8, 32], strides = [1, 1]} : vector<8x96xf32> to vector<8x32xf32>
    %311 = vector.extract_strided_slice %308 {offsets = [0, 64], sizes = [8, 32], strides = [1, 1]} : vector<8x96xf32> to vector<8x32xf32>
    %312 = vector.extract_strided_slice %302 {offsets = [0, 96], sizes = [8, 32], strides = [1, 1]} : vector<8x128xf32> to vector<8x32xf32>
    %313 = math.tanh %312 : vector<8x32xf32>
    %314 = arith.mulf %310, %292 : vector<8x32xf32>
    %315 = arith.mulf %309, %313 : vector<8x32xf32>
    %316 = arith.addf %314, %315 : vector<8x32xf32>
    %317 = math.tanh %316 : vector<8x32xf32>
    %318 = arith.mulf %311, %317 : vector<8x32xf32>
    %319 = arith.index_cast %298 : i32 to index
    %c0_74 = arith.constant 0 : index
    %320 = vector.load %arg12[%319, %c0_74] : memref<240x32xf32, #tpu.memory_space<vmem>>, vector<8x32xf32>
    tpu.vector_store %arg12[%319, %c0_74], %318 {strides = array<i32>} : memref<240x32xf32, #tpu.memory_space<vmem>>, vector<8x32xf32>,
    %c13_i32 = arith.constant 13 : i32
    %c8_i32_75 = arith.constant 8 : i32
    %321 = arith.muli %c13_i32, %c8_i32_75 : i32
    %322 = tpu.assume_multiple %321, 8 : i32
    %323 = arith.index_cast %322 : i32 to index
    %c0_76 = arith.constant 0 : index
    %324 = vector.load %arg11[%323, %c0_76] : memref<240x128xf32, #tpu.memory_space<vmem>>, vector<8x128xf32>
    %cst_77 = arith.constant dense<0.000000e+00> : vector<8x128xf32>
    %325 = tpu.matmul %318, %2, %cst_77 {dimension_numbers = #tpu.dot_dimension_numbers<[1], [0], [0], [1], [0, 0, 1, 1], [], []>} : vector<8x32xf32>, vector<32x128xf32>, vector<8x128xf32> -> vector<8x128xf32>
    %326 = arith.addf %324, %325 : vector<8x128xf32>
    %327 = vector.extract_strided_slice %326 {offsets = [0, 0], sizes = [8, 96], strides = [1, 1]} : vector<8x128xf32> to vector<8x96xf32>
    %328 = arith.negf %327 : vector<8x96xf32>
    %329 = math.exp %328 : vector<8x96xf32>
    %cst_78 = arith.constant 1.000000e+00 : f32
    %330 = vector.broadcast %cst_78 : f32 to vector<8x96xf32>
    %331 = arith.addf %330, %329 : vector<8x96xf32>
    %332 = arith.divf %330, %331 : vector<8x96xf32>
    %333 = vector.extract_strided_slice %332 {offsets = [0, 0], sizes = [8, 32], strides = [1, 1]} : vector<8x96xf32> to vector<8x32xf32>
    %334 = vector.extract_strided_slice %332 {offsets = [0, 32], sizes = [8, 32], strides = [1, 1]} : vector<8x96xf32> to vector<8x32xf32>
    %335 = vector.extract_strided_slice %332 {offsets = [0, 64], sizes = [8, 32], strides = [1, 1]} : vector<8x96xf32> to vector<8x32xf32>
    %336 = vector.extract_strided_slice %326 {offsets = [0, 96], sizes = [8, 32], strides = [1, 1]} : vector<8x128xf32> to vector<8x32xf32>
    %337 = math.tanh %336 : vector<8x32xf32>
    %338 = arith.mulf %334, %316 : vector<8x32xf32>
    %339 = arith.mulf %333, %337 : vector<8x32xf32>
    %340 = arith.addf %338, %339 : vector<8x32xf32>
    %341 = math.tanh %340 : vector<8x32xf32>
    %342 = arith.mulf %335, %341 : vector<8x32xf32>
    %343 = arith.index_cast %322 : i32 to index
    %c0_79 = arith.constant 0 : index
    %344 = vector.load %arg12[%343, %c0_79] : memref<240x32xf32, #tpu.memory_space<vmem>>, vector<8x32xf32>
    tpu.vector_store %arg12[%343, %c0_79], %342 {strides = array<i32>} : memref<240x32xf32, #tpu.memory_space<vmem>>, vector<8x32xf32>,
    %c14_i32 = arith.constant 14 : i32
    %c8_i32_80 = arith.constant 8 : i32
    %345 = arith.muli %c14_i32, %c8_i32_80 : i32
    %346 = tpu.assume_multiple %345, 8 : i32
    %347 = arith.index_cast %346 : i32 to index
    %c0_81 = arith.constant 0 : index
    %348 = vector.load %arg11[%347, %c0_81] : memref<240x128xf32, #tpu.memory_space<vmem>>, vector<8x128xf32>
    %cst_82 = arith.constant dense<0.000000e+00> : vector<8x128xf32>
    %349 = tpu.matmul %342, %2, %cst_82 {dimension_numbers = #tpu.dot_dimension_numbers<[1], [0], [0], [1], [0, 0, 1, 1], [], []>} : vector<8x32xf32>, vector<32x128xf32>, vector<8x128xf32> -> vector<8x128xf32>
    %350 = arith.addf %348, %349 : vector<8x128xf32>
    %351 = vector.extract_strided_slice %350 {offsets = [0, 0], sizes = [8, 96], strides = [1, 1]} : vector<8x128xf32> to vector<8x96xf32>
    %352 = arith.negf %351 : vector<8x96xf32>
    %353 = math.exp %352 : vector<8x96xf32>
    %cst_83 = arith.constant 1.000000e+00 : f32
    %354 = vector.broadcast %cst_83 : f32 to vector<8x96xf32>
    %355 = arith.addf %354, %353 : vector<8x96xf32>
    %356 = arith.divf %354, %355 : vector<8x96xf32>
    %357 = vector.extract_strided_slice %356 {offsets = [0, 0], sizes = [8, 32], strides = [1, 1]} : vector<8x96xf32> to vector<8x32xf32>
    %358 = vector.extract_strided_slice %356 {offsets = [0, 32], sizes = [8, 32], strides = [1, 1]} : vector<8x96xf32> to vector<8x32xf32>
    %359 = vector.extract_strided_slice %356 {offsets = [0, 64], sizes = [8, 32], strides = [1, 1]} : vector<8x96xf32> to vector<8x32xf32>
    %360 = vector.extract_strided_slice %350 {offsets = [0, 96], sizes = [8, 32], strides = [1, 1]} : vector<8x128xf32> to vector<8x32xf32>
    %361 = math.tanh %360 : vector<8x32xf32>
    %362 = arith.mulf %358, %340 : vector<8x32xf32>
    %363 = arith.mulf %357, %361 : vector<8x32xf32>
    %364 = arith.addf %362, %363 : vector<8x32xf32>
    %365 = math.tanh %364 : vector<8x32xf32>
    %366 = arith.mulf %359, %365 : vector<8x32xf32>
    %367 = arith.index_cast %346 : i32 to index
    %c0_84 = arith.constant 0 : index
    %368 = vector.load %arg12[%367, %c0_84] : memref<240x32xf32, #tpu.memory_space<vmem>>, vector<8x32xf32>
    tpu.vector_store %arg12[%367, %c0_84], %366 {strides = array<i32>} : memref<240x32xf32, #tpu.memory_space<vmem>>, vector<8x32xf32>,
    %c15_i32 = arith.constant 15 : i32
    %c8_i32_85 = arith.constant 8 : i32
    %369 = arith.muli %c15_i32, %c8_i32_85 : i32
    %370 = tpu.assume_multiple %369, 8 : i32
    %371 = arith.index_cast %370 : i32 to index
    %c0_86 = arith.constant 0 : index
    %372 = vector.load %arg11[%371, %c0_86] : memref<240x128xf32, #tpu.memory_space<vmem>>, vector<8x128xf32>
    %cst_87 = arith.constant dense<0.000000e+00> : vector<8x128xf32>
    %373 = tpu.matmul %366, %2, %cst_87 {dimension_numbers = #tpu.dot_dimension_numbers<[1], [0], [0], [1], [0, 0, 1, 1], [], []>} : vector<8x32xf32>, vector<32x128xf32>, vector<8x128xf32> -> vector<8x128xf32>
    %374 = arith.addf %372, %373 : vector<8x128xf32>
    %375 = vector.extract_strided_slice %374 {offsets = [0, 0], sizes = [8, 96], strides = [1, 1]} : vector<8x128xf32> to vector<8x96xf32>
    %376 = arith.negf %375 : vector<8x96xf32>
    %377 = math.exp %376 : vector<8x96xf32>
    %cst_88 = arith.constant 1.000000e+00 : f32
    %378 = vector.broadcast %cst_88 : f32 to vector<8x96xf32>
    %379 = arith.addf %378, %377 : vector<8x96xf32>
    %380 = arith.divf %378, %379 : vector<8x96xf32>
    %381 = vector.extract_strided_slice %380 {offsets = [0, 0], sizes = [8, 32], strides = [1, 1]} : vector<8x96xf32> to vector<8x32xf32>
    %382 = vector.extract_strided_slice %380 {offsets = [0, 32], sizes = [8, 32], strides = [1, 1]} : vector<8x96xf32> to vector<8x32xf32>
    %383 = vector.extract_strided_slice %380 {offsets = [0, 64], sizes = [8, 32], strides = [1, 1]} : vector<8x96xf32> to vector<8x32xf32>
    %384 = vector.extract_strided_slice %374 {offsets = [0, 96], sizes = [8, 32], strides = [1, 1]} : vector<8x128xf32> to vector<8x32xf32>
    %385 = math.tanh %384 : vector<8x32xf32>
    %386 = arith.mulf %382, %364 : vector<8x32xf32>
    %387 = arith.mulf %381, %385 : vector<8x32xf32>
    %388 = arith.addf %386, %387 : vector<8x32xf32>
    %389 = math.tanh %388 : vector<8x32xf32>
    %390 = arith.mulf %383, %389 : vector<8x32xf32>
    %391 = arith.index_cast %370 : i32 to index
    %c0_89 = arith.constant 0 : index
    %392 = vector.load %arg12[%391, %c0_89] : memref<240x32xf32, #tpu.memory_space<vmem>>, vector<8x32xf32>
    tpu.vector_store %arg12[%391, %c0_89], %390 {strides = array<i32>} : memref<240x32xf32, #tpu.memory_space<vmem>>, vector<8x32xf32>,
    %c16_i32 = arith.constant 16 : i32
    %c8_i32_90 = arith.constant 8 : i32
    %393 = arith.muli %c16_i32, %c8_i32_90 : i32
    %394 = tpu.assume_multiple %393, 8 : i32
    %395 = arith.index_cast %394 : i32 to index
    %c0_91 = arith.constant 0 : index
    %396 = vector.load %arg11[%395, %c0_91] : memref<240x128xf32, #tpu.memory_space<vmem>>, vector<8x128xf32>
    %cst_92 = arith.constant dense<0.000000e+00> : vector<8x128xf32>
    %397 = tpu.matmul %390, %2, %cst_92 {dimension_numbers = #tpu.dot_dimension_numbers<[1], [0], [0], [1], [0, 0, 1, 1], [], []>} : vector<8x32xf32>, vector<32x128xf32>, vector<8x128xf32> -> vector<8x128xf32>
    %398 = arith.addf %396, %397 : vector<8x128xf32>
    %399 = vector.extract_strided_slice %398 {offsets = [0, 0], sizes = [8, 96], strides = [1, 1]} : vector<8x128xf32> to vector<8x96xf32>
    %400 = arith.negf %399 : vector<8x96xf32>
    %401 = math.exp %400 : vector<8x96xf32>
    %cst_93 = arith.constant 1.000000e+00 : f32
    %402 = vector.broadcast %cst_93 : f32 to vector<8x96xf32>
    %403 = arith.addf %402, %401 : vector<8x96xf32>
    %404 = arith.divf %402, %403 : vector<8x96xf32>
    %405 = vector.extract_strided_slice %404 {offsets = [0, 0], sizes = [8, 32], strides = [1, 1]} : vector<8x96xf32> to vector<8x32xf32>
    %406 = vector.extract_strided_slice %404 {offsets = [0, 32], sizes = [8, 32], strides = [1, 1]} : vector<8x96xf32> to vector<8x32xf32>
    %407 = vector.extract_strided_slice %404 {offsets = [0, 64], sizes = [8, 32], strides = [1, 1]} : vector<8x96xf32> to vector<8x32xf32>
    %408 = vector.extract_strided_slice %398 {offsets = [0, 96], sizes = [8, 32], strides = [1, 1]} : vector<8x128xf32> to vector<8x32xf32>
    %409 = math.tanh %408 : vector<8x32xf32>
    %410 = arith.mulf %406, %388 : vector<8x32xf32>
    %411 = arith.mulf %405, %409 : vector<8x32xf32>
    %412 = arith.addf %410, %411 : vector<8x32xf32>
    %413 = math.tanh %412 : vector<8x32xf32>
    %414 = arith.mulf %407, %413 : vector<8x32xf32>
    %415 = arith.index_cast %394 : i32 to index
    %c0_94 = arith.constant 0 : index
    %416 = vector.load %arg12[%415, %c0_94] : memref<240x32xf32, #tpu.memory_space<vmem>>, vector<8x32xf32>
    tpu.vector_store %arg12[%415, %c0_94], %414 {strides = array<i32>} : memref<240x32xf32, #tpu.memory_space<vmem>>, vector<8x32xf32>,
    %c17_i32 = arith.constant 17 : i32
    %c8_i32_95 = arith.constant 8 : i32
    %417 = arith.muli %c17_i32, %c8_i32_95 : i32
    %418 = tpu.assume_multiple %417, 8 : i32
    %419 = arith.index_cast %418 : i32 to index
    %c0_96 = arith.constant 0 : index
    %420 = vector.load %arg11[%419, %c0_96] : memref<240x128xf32, #tpu.memory_space<vmem>>, vector<8x128xf32>
    %cst_97 = arith.constant dense<0.000000e+00> : vector<8x128xf32>
    %421 = tpu.matmul %414, %2, %cst_97 {dimension_numbers = #tpu.dot_dimension_numbers<[1], [0], [0], [1], [0, 0, 1, 1], [], []>} : vector<8x32xf32>, vector<32x128xf32>, vector<8x128xf32> -> vector<8x128xf32>
    %422 = arith.addf %420, %421 : vector<8x128xf32>
    %423 = vector.extract_strided_slice %422 {offsets = [0, 0], sizes = [8, 96], strides = [1, 1]} : vector<8x128xf32> to vector<8x96xf32>
    %424 = arith.negf %423 : vector<8x96xf32>
    %425 = math.exp %424 : vector<8x96xf32>
    %cst_98 = arith.constant 1.000000e+00 : f32
    %426 = vector.broadcast %cst_98 : f32 to vector<8x96xf32>
    %427 = arith.addf %426, %425 : vector<8x96xf32>
    %428 = arith.divf %426, %427 : vector<8x96xf32>
    %429 = vector.extract_strided_slice %428 {offsets = [0, 0], sizes = [8, 32], strides = [1, 1]} : vector<8x96xf32> to vector<8x32xf32>
    %430 = vector.extract_strided_slice %428 {offsets = [0, 32], sizes = [8, 32], strides = [1, 1]} : vector<8x96xf32> to vector<8x32xf32>
    %431 = vector.extract_strided_slice %428 {offsets = [0, 64], sizes = [8, 32], strides = [1, 1]} : vector<8x96xf32> to vector<8x32xf32>
    %432 = vector.extract_strided_slice %422 {offsets = [0, 96], sizes = [8, 32], strides = [1, 1]} : vector<8x128xf32> to vector<8x32xf32>
    %433 = math.tanh %432 : vector<8x32xf32>
    %434 = arith.mulf %430, %412 : vector<8x32xf32>
    %435 = arith.mulf %429, %433 : vector<8x32xf32>
    %436 = arith.addf %434, %435 : vector<8x32xf32>
    %437 = math.tanh %436 : vector<8x32xf32>
    %438 = arith.mulf %431, %437 : vector<8x32xf32>
    %439 = arith.index_cast %418 : i32 to index
    %c0_99 = arith.constant 0 : index
    %440 = vector.load %arg12[%439, %c0_99] : memref<240x32xf32, #tpu.memory_space<vmem>>, vector<8x32xf32>
    tpu.vector_store %arg12[%439, %c0_99], %438 {strides = array<i32>} : memref<240x32xf32, #tpu.memory_space<vmem>>, vector<8x32xf32>,
    %c18_i32 = arith.constant 18 : i32
    %c8_i32_100 = arith.constant 8 : i32
    %441 = arith.muli %c18_i32, %c8_i32_100 : i32
    %442 = tpu.assume_multiple %441, 8 : i32
    %443 = arith.index_cast %442 : i32 to index
    %c0_101 = arith.constant 0 : index
    %444 = vector.load %arg11[%443, %c0_101] : memref<240x128xf32, #tpu.memory_space<vmem>>, vector<8x128xf32>
    %cst_102 = arith.constant dense<0.000000e+00> : vector<8x128xf32>
    %445 = tpu.matmul %438, %2, %cst_102 {dimension_numbers = #tpu.dot_dimension_numbers<[1], [0], [0], [1], [0, 0, 1, 1], [], []>} : vector<8x32xf32>, vector<32x128xf32>, vector<8x128xf32> -> vector<8x128xf32>
    %446 = arith.addf %444, %445 : vector<8x128xf32>
    %447 = vector.extract_strided_slice %446 {offsets = [0, 0], sizes = [8, 96], strides = [1, 1]} : vector<8x128xf32> to vector<8x96xf32>
    %448 = arith.negf %447 : vector<8x96xf32>
    %449 = math.exp %448 : vector<8x96xf32>
    %cst_103 = arith.constant 1.000000e+00 : f32
    %450 = vector.broadcast %cst_103 : f32 to vector<8x96xf32>
    %451 = arith.addf %450, %449 : vector<8x96xf32>
    %452 = arith.divf %450, %451 : vector<8x96xf32>
    %453 = vector.extract_strided_slice %452 {offsets = [0, 0], sizes = [8, 32], strides = [1, 1]} : vector<8x96xf32> to vector<8x32xf32>
    %454 = vector.extract_strided_slice %452 {offsets = [0, 32], sizes = [8, 32], strides = [1, 1]} : vector<8x96xf32> to vector<8x32xf32>
    %455 = vector.extract_strided_slice %452 {offsets = [0, 64], sizes = [8, 32], strides = [1, 1]} : vector<8x96xf32> to vector<8x32xf32>
    %456 = vector.extract_strided_slice %446 {offsets = [0, 96], sizes = [8, 32], strides = [1, 1]} : vector<8x128xf32> to vector<8x32xf32>
    %457 = math.tanh %456 : vector<8x32xf32>
    %458 = arith.mulf %454, %436 : vector<8x32xf32>
    %459 = arith.mulf %453, %457 : vector<8x32xf32>
    %460 = arith.addf %458, %459 : vector<8x32xf32>
    %461 = math.tanh %460 : vector<8x32xf32>
    %462 = arith.mulf %455, %461 : vector<8x32xf32>
    %463 = arith.index_cast %442 : i32 to index
    %c0_104 = arith.constant 0 : index
    %464 = vector.load %arg12[%463, %c0_104] : memref<240x32xf32, #tpu.memory_space<vmem>>, vector<8x32xf32>
    tpu.vector_store %arg12[%463, %c0_104], %462 {strides = array<i32>} : memref<240x32xf32, #tpu.memory_space<vmem>>, vector<8x32xf32>,
    %c19_i32 = arith.constant 19 : i32
    %c8_i32_105 = arith.constant 8 : i32
    %465 = arith.muli %c19_i32, %c8_i32_105 : i32
    %466 = tpu.assume_multiple %465, 8 : i32
    %467 = arith.index_cast %466 : i32 to index
    %c0_106 = arith.constant 0 : index
    %468 = vector.load %arg11[%467, %c0_106] : memref<240x128xf32, #tpu.memory_space<vmem>>, vector<8x128xf32>
    %cst_107 = arith.constant dense<0.000000e+00> : vector<8x128xf32>
    %469 = tpu.matmul %462, %2, %cst_107 {dimension_numbers = #tpu.dot_dimension_numbers<[1], [0], [0], [1], [0, 0, 1, 1], [], []>} : vector<8x32xf32>, vector<32x128xf32>, vector<8x128xf32> -> vector<8x128xf32>
    %470 = arith.addf %468, %469 : vector<8x128xf32>
    %471 = vector.extract_strided_slice %470 {offsets = [0, 0], sizes = [8, 96], strides = [1, 1]} : vector<8x128xf32> to vector<8x96xf32>
    %472 = arith.negf %471 : vector<8x96xf32>
    %473 = math.exp %472 : vector<8x96xf32>
    %cst_108 = arith.constant 1.000000e+00 : f32
    %474 = vector.broadcast %cst_108 : f32 to vector<8x96xf32>
    %475 = arith.addf %474, %473 : vector<8x96xf32>
    %476 = arith.divf %474, %475 : vector<8x96xf32>
    %477 = vector.extract_strided_slice %476 {offsets = [0, 0], sizes = [8, 32], strides = [1, 1]} : vector<8x96xf32> to vector<8x32xf32>
    %478 = vector.extract_strided_slice %476 {offsets = [0, 32], sizes = [8, 32], strides = [1, 1]} : vector<8x96xf32> to vector<8x32xf32>
    %479 = vector.extract_strided_slice %476 {offsets = [0, 64], sizes = [8, 32], strides = [1, 1]} : vector<8x96xf32> to vector<8x32xf32>
    %480 = vector.extract_strided_slice %470 {offsets = [0, 96], sizes = [8, 32], strides = [1, 1]} : vector<8x128xf32> to vector<8x32xf32>
    %481 = math.tanh %480 : vector<8x32xf32>
    %482 = arith.mulf %478, %460 : vector<8x32xf32>
    %483 = arith.mulf %477, %481 : vector<8x32xf32>
    %484 = arith.addf %482, %483 : vector<8x32xf32>
    %485 = math.tanh %484 : vector<8x32xf32>
    %486 = arith.mulf %479, %485 : vector<8x32xf32>
    %487 = arith.index_cast %466 : i32 to index
    %c0_109 = arith.constant 0 : index
    %488 = vector.load %arg12[%487, %c0_109] : memref<240x32xf32, #tpu.memory_space<vmem>>, vector<8x32xf32>
    tpu.vector_store %arg12[%487, %c0_109], %486 {strides = array<i32>} : memref<240x32xf32, #tpu.memory_space<vmem>>, vector<8x32xf32>,
    %c20_i32 = arith.constant 20 : i32
    %c8_i32_110 = arith.constant 8 : i32
    %489 = arith.muli %c20_i32, %c8_i32_110 : i32
    %490 = tpu.assume_multiple %489, 8 : i32
    %491 = arith.index_cast %490 : i32 to index
    %c0_111 = arith.constant 0 : index
    %492 = vector.load %arg11[%491, %c0_111] : memref<240x128xf32, #tpu.memory_space<vmem>>, vector<8x128xf32>
    %cst_112 = arith.constant dense<0.000000e+00> : vector<8x128xf32>
    %493 = tpu.matmul %486, %2, %cst_112 {dimension_numbers = #tpu.dot_dimension_numbers<[1], [0], [0], [1], [0, 0, 1, 1], [], []>} : vector<8x32xf32>, vector<32x128xf32>, vector<8x128xf32> -> vector<8x128xf32>
    %494 = arith.addf %492, %493 : vector<8x128xf32>
    %495 = vector.extract_strided_slice %494 {offsets = [0, 0], sizes = [8, 96], strides = [1, 1]} : vector<8x128xf32> to vector<8x96xf32>
    %496 = arith.negf %495 : vector<8x96xf32>
    %497 = math.exp %496 : vector<8x96xf32>
    %cst_113 = arith.constant 1.000000e+00 : f32
    %498 = vector.broadcast %cst_113 : f32 to vector<8x96xf32>
    %499 = arith.addf %498, %497 : vector<8x96xf32>
    %500 = arith.divf %498, %499 : vector<8x96xf32>
    %501 = vector.extract_strided_slice %500 {offsets = [0, 0], sizes = [8, 32], strides = [1, 1]} : vector<8x96xf32> to vector<8x32xf32>
    %502 = vector.extract_strided_slice %500 {offsets = [0, 32], sizes = [8, 32], strides = [1, 1]} : vector<8x96xf32> to vector<8x32xf32>
    %503 = vector.extract_strided_slice %500 {offsets = [0, 64], sizes = [8, 32], strides = [1, 1]} : vector<8x96xf32> to vector<8x32xf32>
    %504 = vector.extract_strided_slice %494 {offsets = [0, 96], sizes = [8, 32], strides = [1, 1]} : vector<8x128xf32> to vector<8x32xf32>
    %505 = math.tanh %504 : vector<8x32xf32>
    %506 = arith.mulf %502, %484 : vector<8x32xf32>
    %507 = arith.mulf %501, %505 : vector<8x32xf32>
    %508 = arith.addf %506, %507 : vector<8x32xf32>
    %509 = math.tanh %508 : vector<8x32xf32>
    %510 = arith.mulf %503, %509 : vector<8x32xf32>
    %511 = arith.index_cast %490 : i32 to index
    %c0_114 = arith.constant 0 : index
    %512 = vector.load %arg12[%511, %c0_114] : memref<240x32xf32, #tpu.memory_space<vmem>>, vector<8x32xf32>
    tpu.vector_store %arg12[%511, %c0_114], %510 {strides = array<i32>} : memref<240x32xf32, #tpu.memory_space<vmem>>, vector<8x32xf32>,
    %c21_i32 = arith.constant 21 : i32
    %c8_i32_115 = arith.constant 8 : i32
    %513 = arith.muli %c21_i32, %c8_i32_115 : i32
    %514 = tpu.assume_multiple %513, 8 : i32
    %515 = arith.index_cast %514 : i32 to index
    %c0_116 = arith.constant 0 : index
    %516 = vector.load %arg11[%515, %c0_116] : memref<240x128xf32, #tpu.memory_space<vmem>>, vector<8x128xf32>
    %cst_117 = arith.constant dense<0.000000e+00> : vector<8x128xf32>
    %517 = tpu.matmul %510, %2, %cst_117 {dimension_numbers = #tpu.dot_dimension_numbers<[1], [0], [0], [1], [0, 0, 1, 1], [], []>} : vector<8x32xf32>, vector<32x128xf32>, vector<8x128xf32> -> vector<8x128xf32>
    %518 = arith.addf %516, %517 : vector<8x128xf32>
    %519 = vector.extract_strided_slice %518 {offsets = [0, 0], sizes = [8, 96], strides = [1, 1]} : vector<8x128xf32> to vector<8x96xf32>
    %520 = arith.negf %519 : vector<8x96xf32>
    %521 = math.exp %520 : vector<8x96xf32>
    %cst_118 = arith.constant 1.000000e+00 : f32
    %522 = vector.broadcast %cst_118 : f32 to vector<8x96xf32>
    %523 = arith.addf %522, %521 : vector<8x96xf32>
    %524 = arith.divf %522, %523 : vector<8x96xf32>
    %525 = vector.extract_strided_slice %524 {offsets = [0, 0], sizes = [8, 32], strides = [1, 1]} : vector<8x96xf32> to vector<8x32xf32>
    %526 = vector.extract_strided_slice %524 {offsets = [0, 32], sizes = [8, 32], strides = [1, 1]} : vector<8x96xf32> to vector<8x32xf32>
    %527 = vector.extract_strided_slice %524 {offsets = [0, 64], sizes = [8, 32], strides = [1, 1]} : vector<8x96xf32> to vector<8x32xf32>
    %528 = vector.extract_strided_slice %518 {offsets = [0, 96], sizes = [8, 32], strides = [1, 1]} : vector<8x128xf32> to vector<8x32xf32>
    %529 = math.tanh %528 : vector<8x32xf32>
    %530 = arith.mulf %526, %508 : vector<8x32xf32>
    %531 = arith.mulf %525, %529 : vector<8x32xf32>
    %532 = arith.addf %530, %531 : vector<8x32xf32>
    %533 = math.tanh %532 : vector<8x32xf32>
    %534 = arith.mulf %527, %533 : vector<8x32xf32>
    %535 = arith.index_cast %514 : i32 to index
    %c0_119 = arith.constant 0 : index
    %536 = vector.load %arg12[%535, %c0_119] : memref<240x32xf32, #tpu.memory_space<vmem>>, vector<8x32xf32>
    tpu.vector_store %arg12[%535, %c0_119], %534 {strides = array<i32>} : memref<240x32xf32, #tpu.memory_space<vmem>>, vector<8x32xf32>,
    %c22_i32 = arith.constant 22 : i32
    %c8_i32_120 = arith.constant 8 : i32
    %537 = arith.muli %c22_i32, %c8_i32_120 : i32
    %538 = tpu.assume_multiple %537, 8 : i32
    %539 = arith.index_cast %538 : i32 to index
    %c0_121 = arith.constant 0 : index
    %540 = vector.load %arg11[%539, %c0_121] : memref<240x128xf32, #tpu.memory_space<vmem>>, vector<8x128xf32>
    %cst_122 = arith.constant dense<0.000000e+00> : vector<8x128xf32>
    %541 = tpu.matmul %534, %2, %cst_122 {dimension_numbers = #tpu.dot_dimension_numbers<[1], [0], [0], [1], [0, 0, 1, 1], [], []>} : vector<8x32xf32>, vector<32x128xf32>, vector<8x128xf32> -> vector<8x128xf32>
    %542 = arith.addf %540, %541 : vector<8x128xf32>
    %543 = vector.extract_strided_slice %542 {offsets = [0, 0], sizes = [8, 96], strides = [1, 1]} : vector<8x128xf32> to vector<8x96xf32>
    %544 = arith.negf %543 : vector<8x96xf32>
    %545 = math.exp %544 : vector<8x96xf32>
    %cst_123 = arith.constant 1.000000e+00 : f32
    %546 = vector.broadcast %cst_123 : f32 to vector<8x96xf32>
    %547 = arith.addf %546, %545 : vector<8x96xf32>
    %548 = arith.divf %546, %547 : vector<8x96xf32>
    %549 = vector.extract_strided_slice %548 {offsets = [0, 0], sizes = [8, 32], strides = [1, 1]} : vector<8x96xf32> to vector<8x32xf32>
    %550 = vector.extract_strided_slice %548 {offsets = [0, 32], sizes = [8, 32], strides = [1, 1]} : vector<8x96xf32> to vector<8x32xf32>
    %551 = vector.extract_strided_slice %548 {offsets = [0, 64], sizes = [8, 32], strides = [1, 1]} : vector<8x96xf32> to vector<8x32xf32>
    %552 = vector.extract_strided_slice %542 {offsets = [0, 96], sizes = [8, 32], strides = [1, 1]} : vector<8x128xf32> to vector<8x32xf32>
    %553 = math.tanh %552 : vector<8x32xf32>
    %554 = arith.mulf %550, %532 : vector<8x32xf32>
    %555 = arith.mulf %549, %553 : vector<8x32xf32>
    %556 = arith.addf %554, %555 : vector<8x32xf32>
    %557 = math.tanh %556 : vector<8x32xf32>
    %558 = arith.mulf %551, %557 : vector<8x32xf32>
    %559 = arith.index_cast %538 : i32 to index
    %c0_124 = arith.constant 0 : index
    %560 = vector.load %arg12[%559, %c0_124] : memref<240x32xf32, #tpu.memory_space<vmem>>, vector<8x32xf32>
    tpu.vector_store %arg12[%559, %c0_124], %558 {strides = array<i32>} : memref<240x32xf32, #tpu.memory_space<vmem>>, vector<8x32xf32>,
    %c23_i32 = arith.constant 23 : i32
    %c8_i32_125 = arith.constant 8 : i32
    %561 = arith.muli %c23_i32, %c8_i32_125 : i32
    %562 = tpu.assume_multiple %561, 8 : i32
    %563 = arith.index_cast %562 : i32 to index
    %c0_126 = arith.constant 0 : index
    %564 = vector.load %arg11[%563, %c0_126] : memref<240x128xf32, #tpu.memory_space<vmem>>, vector<8x128xf32>
    %cst_127 = arith.constant dense<0.000000e+00> : vector<8x128xf32>
    %565 = tpu.matmul %558, %2, %cst_127 {dimension_numbers = #tpu.dot_dimension_numbers<[1], [0], [0], [1], [0, 0, 1, 1], [], []>} : vector<8x32xf32>, vector<32x128xf32>, vector<8x128xf32> -> vector<8x128xf32>
    %566 = arith.addf %564, %565 : vector<8x128xf32>
    %567 = vector.extract_strided_slice %566 {offsets = [0, 0], sizes = [8, 96], strides = [1, 1]} : vector<8x128xf32> to vector<8x96xf32>
    %568 = arith.negf %567 : vector<8x96xf32>
    %569 = math.exp %568 : vector<8x96xf32>
    %cst_128 = arith.constant 1.000000e+00 : f32
    %570 = vector.broadcast %cst_128 : f32 to vector<8x96xf32>
    %571 = arith.addf %570, %569 : vector<8x96xf32>
    %572 = arith.divf %570, %571 : vector<8x96xf32>
    %573 = vector.extract_strided_slice %572 {offsets = [0, 0], sizes = [8, 32], strides = [1, 1]} : vector<8x96xf32> to vector<8x32xf32>
    %574 = vector.extract_strided_slice %572 {offsets = [0, 32], sizes = [8, 32], strides = [1, 1]} : vector<8x96xf32> to vector<8x32xf32>
    %575 = vector.extract_strided_slice %572 {offsets = [0, 64], sizes = [8, 32], strides = [1, 1]} : vector<8x96xf32> to vector<8x32xf32>
    %576 = vector.extract_strided_slice %566 {offsets = [0, 96], sizes = [8, 32], strides = [1, 1]} : vector<8x128xf32> to vector<8x32xf32>
    %577 = math.tanh %576 : vector<8x32xf32>
    %578 = arith.mulf %574, %556 : vector<8x32xf32>
    %579 = arith.mulf %573, %577 : vector<8x32xf32>
    %580 = arith.addf %578, %579 : vector<8x32xf32>
    %581 = math.tanh %580 : vector<8x32xf32>
    %582 = arith.mulf %575, %581 : vector<8x32xf32>
    %583 = arith.index_cast %562 : i32 to index
    %c0_129 = arith.constant 0 : index
    %584 = vector.load %arg12[%583, %c0_129] : memref<240x32xf32, #tpu.memory_space<vmem>>, vector<8x32xf32>
    tpu.vector_store %arg12[%583, %c0_129], %582 {strides = array<i32>} : memref<240x32xf32, #tpu.memory_space<vmem>>, vector<8x32xf32>,
    %c24_i32 = arith.constant 24 : i32
    %c8_i32_130 = arith.constant 8 : i32
    %585 = arith.muli %c24_i32, %c8_i32_130 : i32
    %586 = tpu.assume_multiple %585, 8 : i32
    %587 = arith.index_cast %586 : i32 to index
    %c0_131 = arith.constant 0 : index
    %588 = vector.load %arg11[%587, %c0_131] : memref<240x128xf32, #tpu.memory_space<vmem>>, vector<8x128xf32>
    %cst_132 = arith.constant dense<0.000000e+00> : vector<8x128xf32>
    %589 = tpu.matmul %582, %2, %cst_132 {dimension_numbers = #tpu.dot_dimension_numbers<[1], [0], [0], [1], [0, 0, 1, 1], [], []>} : vector<8x32xf32>, vector<32x128xf32>, vector<8x128xf32> -> vector<8x128xf32>
    %590 = arith.addf %588, %589 : vector<8x128xf32>
    %591 = vector.extract_strided_slice %590 {offsets = [0, 0], sizes = [8, 96], strides = [1, 1]} : vector<8x128xf32> to vector<8x96xf32>
    %592 = arith.negf %591 : vector<8x96xf32>
    %593 = math.exp %592 : vector<8x96xf32>
    %cst_133 = arith.constant 1.000000e+00 : f32
    %594 = vector.broadcast %cst_133 : f32 to vector<8x96xf32>
    %595 = arith.addf %594, %593 : vector<8x96xf32>
    %596 = arith.divf %594, %595 : vector<8x96xf32>
    %597 = vector.extract_strided_slice %596 {offsets = [0, 0], sizes = [8, 32], strides = [1, 1]} : vector<8x96xf32> to vector<8x32xf32>
    %598 = vector.extract_strided_slice %596 {offsets = [0, 32], sizes = [8, 32], strides = [1, 1]} : vector<8x96xf32> to vector<8x32xf32>
    %599 = vector.extract_strided_slice %596 {offsets = [0, 64], sizes = [8, 32], strides = [1, 1]} : vector<8x96xf32> to vector<8x32xf32>
    %600 = vector.extract_strided_slice %590 {offsets = [0, 96], sizes = [8, 32], strides = [1, 1]} : vector<8x128xf32> to vector<8x32xf32>
    %601 = math.tanh %600 : vector<8x32xf32>
    %602 = arith.mulf %598, %580 : vector<8x32xf32>
    %603 = arith.mulf %597, %601 : vector<8x32xf32>
    %604 = arith.addf %602, %603 : vector<8x32xf32>
    %605 = math.tanh %604 : vector<8x32xf32>
    %606 = arith.mulf %599, %605 : vector<8x32xf32>
    %607 = arith.index_cast %586 : i32 to index
    %c0_134 = arith.constant 0 : index
    %608 = vector.load %arg12[%607, %c0_134] : memref<240x32xf32, #tpu.memory_space<vmem>>, vector<8x32xf32>
    tpu.vector_store %arg12[%607, %c0_134], %606 {strides = array<i32>} : memref<240x32xf32, #tpu.memory_space<vmem>>, vector<8x32xf32>,
    %c25_i32 = arith.constant 25 : i32
    %c8_i32_135 = arith.constant 8 : i32
    %609 = arith.muli %c25_i32, %c8_i32_135 : i32
    %610 = tpu.assume_multiple %609, 8 : i32
    %611 = arith.index_cast %610 : i32 to index
    %c0_136 = arith.constant 0 : index
    %612 = vector.load %arg11[%611, %c0_136] : memref<240x128xf32, #tpu.memory_space<vmem>>, vector<8x128xf32>
    %cst_137 = arith.constant dense<0.000000e+00> : vector<8x128xf32>
    %613 = tpu.matmul %606, %2, %cst_137 {dimension_numbers = #tpu.dot_dimension_numbers<[1], [0], [0], [1], [0, 0, 1, 1], [], []>} : vector<8x32xf32>, vector<32x128xf32>, vector<8x128xf32> -> vector<8x128xf32>
    %614 = arith.addf %612, %613 : vector<8x128xf32>
    %615 = vector.extract_strided_slice %614 {offsets = [0, 0], sizes = [8, 96], strides = [1, 1]} : vector<8x128xf32> to vector<8x96xf32>
    %616 = arith.negf %615 : vector<8x96xf32>
    %617 = math.exp %616 : vector<8x96xf32>
    %cst_138 = arith.constant 1.000000e+00 : f32
    %618 = vector.broadcast %cst_138 : f32 to vector<8x96xf32>
    %619 = arith.addf %618, %617 : vector<8x96xf32>
    %620 = arith.divf %618, %619 : vector<8x96xf32>
    %621 = vector.extract_strided_slice %620 {offsets = [0, 0], sizes = [8, 32], strides = [1, 1]} : vector<8x96xf32> to vector<8x32xf32>
    %622 = vector.extract_strided_slice %620 {offsets = [0, 32], sizes = [8, 32], strides = [1, 1]} : vector<8x96xf32> to vector<8x32xf32>
    %623 = vector.extract_strided_slice %620 {offsets = [0, 64], sizes = [8, 32], strides = [1, 1]} : vector<8x96xf32> to vector<8x32xf32>
    %624 = vector.extract_strided_slice %614 {offsets = [0, 96], sizes = [8, 32], strides = [1, 1]} : vector<8x128xf32> to vector<8x32xf32>
    %625 = math.tanh %624 : vector<8x32xf32>
    %626 = arith.mulf %622, %604 : vector<8x32xf32>
    %627 = arith.mulf %621, %625 : vector<8x32xf32>
    %628 = arith.addf %626, %627 : vector<8x32xf32>
    %629 = math.tanh %628 : vector<8x32xf32>
    %630 = arith.mulf %623, %629 : vector<8x32xf32>
    %631 = arith.index_cast %610 : i32 to index
    %c0_139 = arith.constant 0 : index
    %632 = vector.load %arg12[%631, %c0_139] : memref<240x32xf32, #tpu.memory_space<vmem>>, vector<8x32xf32>
    tpu.vector_store %arg12[%631, %c0_139], %630 {strides = array<i32>} : memref<240x32xf32, #tpu.memory_space<vmem>>, vector<8x32xf32>,
    %c26_i32 = arith.constant 26 : i32
    %c8_i32_140 = arith.constant 8 : i32
    %633 = arith.muli %c26_i32, %c8_i32_140 : i32
    %634 = tpu.assume_multiple %633, 8 : i32
    %635 = arith.index_cast %634 : i32 to index
    %c0_141 = arith.constant 0 : index
    %636 = vector.load %arg11[%635, %c0_141] : memref<240x128xf32, #tpu.memory_space<vmem>>, vector<8x128xf32>
    %cst_142 = arith.constant dense<0.000000e+00> : vector<8x128xf32>
    %637 = tpu.matmul %630, %2, %cst_142 {dimension_numbers = #tpu.dot_dimension_numbers<[1], [0], [0], [1], [0, 0, 1, 1], [], []>} : vector<8x32xf32>, vector<32x128xf32>, vector<8x128xf32> -> vector<8x128xf32>
    %638 = arith.addf %636, %637 : vector<8x128xf32>
    %639 = vector.extract_strided_slice %638 {offsets = [0, 0], sizes = [8, 96], strides = [1, 1]} : vector<8x128xf32> to vector<8x96xf32>
    %640 = arith.negf %639 : vector<8x96xf32>
    %641 = math.exp %640 : vector<8x96xf32>
    %cst_143 = arith.constant 1.000000e+00 : f32
    %642 = vector.broadcast %cst_143 : f32 to vector<8x96xf32>
    %643 = arith.addf %642, %641 : vector<8x96xf32>
    %644 = arith.divf %642, %643 : vector<8x96xf32>
    %645 = vector.extract_strided_slice %644 {offsets = [0, 0], sizes = [8, 32], strides = [1, 1]} : vector<8x96xf32> to vector<8x32xf32>
    %646 = vector.extract_strided_slice %644 {offsets = [0, 32], sizes = [8, 32], strides = [1, 1]} : vector<8x96xf32> to vector<8x32xf32>
    %647 = vector.extract_strided_slice %644 {offsets = [0, 64], sizes = [8, 32], strides = [1, 1]} : vector<8x96xf32> to vector<8x32xf32>
    %648 = vector.extract_strided_slice %638 {offsets = [0, 96], sizes = [8, 32], strides = [1, 1]} : vector<8x128xf32> to vector<8x32xf32>
    %649 = math.tanh %648 : vector<8x32xf32>
    %650 = arith.mulf %646, %628 : vector<8x32xf32>
    %651 = arith.mulf %645, %649 : vector<8x32xf32>
    %652 = arith.addf %650, %651 : vector<8x32xf32>
    %653 = math.tanh %652 : vector<8x32xf32>
    %654 = arith.mulf %647, %653 : vector<8x32xf32>
    %655 = arith.index_cast %634 : i32 to index
    %c0_144 = arith.constant 0 : index
    %656 = vector.load %arg12[%655, %c0_144] : memref<240x32xf32, #tpu.memory_space<vmem>>, vector<8x32xf32>
    tpu.vector_store %arg12[%655, %c0_144], %654 {strides = array<i32>} : memref<240x32xf32, #tpu.memory_space<vmem>>, vector<8x32xf32>,
    %c27_i32 = arith.constant 27 : i32
    %c8_i32_145 = arith.constant 8 : i32
    %657 = arith.muli %c27_i32, %c8_i32_145 : i32
    %658 = tpu.assume_multiple %657, 8 : i32
    %659 = arith.index_cast %658 : i32 to index
    %c0_146 = arith.constant 0 : index
    %660 = vector.load %arg11[%659, %c0_146] : memref<240x128xf32, #tpu.memory_space<vmem>>, vector<8x128xf32>
    %cst_147 = arith.constant dense<0.000000e+00> : vector<8x128xf32>
    %661 = tpu.matmul %654, %2, %cst_147 {dimension_numbers = #tpu.dot_dimension_numbers<[1], [0], [0], [1], [0, 0, 1, 1], [], []>} : vector<8x32xf32>, vector<32x128xf32>, vector<8x128xf32> -> vector<8x128xf32>
    %662 = arith.addf %660, %661 : vector<8x128xf32>
    %663 = vector.extract_strided_slice %662 {offsets = [0, 0], sizes = [8, 96], strides = [1, 1]} : vector<8x128xf32> to vector<8x96xf32>
    %664 = arith.negf %663 : vector<8x96xf32>
    %665 = math.exp %664 : vector<8x96xf32>
    %cst_148 = arith.constant 1.000000e+00 : f32
    %666 = vector.broadcast %cst_148 : f32 to vector<8x96xf32>
    %667 = arith.addf %666, %665 : vector<8x96xf32>
    %668 = arith.divf %666, %667 : vector<8x96xf32>
    %669 = vector.extract_strided_slice %668 {offsets = [0, 0], sizes = [8, 32], strides = [1, 1]} : vector<8x96xf32> to vector<8x32xf32>
    %670 = vector.extract_strided_slice %668 {offsets = [0, 32], sizes = [8, 32], strides = [1, 1]} : vector<8x96xf32> to vector<8x32xf32>
    %671 = vector.extract_strided_slice %668 {offsets = [0, 64], sizes = [8, 32], strides = [1, 1]} : vector<8x96xf32> to vector<8x32xf32>
    %672 = vector.extract_strided_slice %662 {offsets = [0, 96], sizes = [8, 32], strides = [1, 1]} : vector<8x128xf32> to vector<8x32xf32>
    %673 = math.tanh %672 : vector<8x32xf32>
    %674 = arith.mulf %670, %652 : vector<8x32xf32>
    %675 = arith.mulf %669, %673 : vector<8x32xf32>
    %676 = arith.addf %674, %675 : vector<8x32xf32>
    %677 = math.tanh %676 : vector<8x32xf32>
    %678 = arith.mulf %671, %677 : vector<8x32xf32>
    %679 = arith.index_cast %658 : i32 to index
    %c0_149 = arith.constant 0 : index
    %680 = vector.load %arg12[%679, %c0_149] : memref<240x32xf32, #tpu.memory_space<vmem>>, vector<8x32xf32>
    tpu.vector_store %arg12[%679, %c0_149], %678 {strides = array<i32>} : memref<240x32xf32, #tpu.memory_space<vmem>>, vector<8x32xf32>,
    %c28_i32 = arith.constant 28 : i32
    %c8_i32_150 = arith.constant 8 : i32
    %681 = arith.muli %c28_i32, %c8_i32_150 : i32
    %682 = tpu.assume_multiple %681, 8 : i32
    %683 = arith.index_cast %682 : i32 to index
    %c0_151 = arith.constant 0 : index
    %684 = vector.load %arg11[%683, %c0_151] : memref<240x128xf32, #tpu.memory_space<vmem>>, vector<8x128xf32>
    %cst_152 = arith.constant dense<0.000000e+00> : vector<8x128xf32>
    %685 = tpu.matmul %678, %2, %cst_152 {dimension_numbers = #tpu.dot_dimension_numbers<[1], [0], [0], [1], [0, 0, 1, 1], [], []>} : vector<8x32xf32>, vector<32x128xf32>, vector<8x128xf32> -> vector<8x128xf32>
    %686 = arith.addf %684, %685 : vector<8x128xf32>
    %687 = vector.extract_strided_slice %686 {offsets = [0, 0], sizes = [8, 96], strides = [1, 1]} : vector<8x128xf32> to vector<8x96xf32>
    %688 = arith.negf %687 : vector<8x96xf32>
    %689 = math.exp %688 : vector<8x96xf32>
    %cst_153 = arith.constant 1.000000e+00 : f32
    %690 = vector.broadcast %cst_153 : f32 to vector<8x96xf32>
    %691 = arith.addf %690, %689 : vector<8x96xf32>
    %692 = arith.divf %690, %691 : vector<8x96xf32>
    %693 = vector.extract_strided_slice %692 {offsets = [0, 0], sizes = [8, 32], strides = [1, 1]} : vector<8x96xf32> to vector<8x32xf32>
    %694 = vector.extract_strided_slice %692 {offsets = [0, 32], sizes = [8, 32], strides = [1, 1]} : vector<8x96xf32> to vector<8x32xf32>
    %695 = vector.extract_strided_slice %692 {offsets = [0, 64], sizes = [8, 32], strides = [1, 1]} : vector<8x96xf32> to vector<8x32xf32>
    %696 = vector.extract_strided_slice %686 {offsets = [0, 96], sizes = [8, 32], strides = [1, 1]} : vector<8x128xf32> to vector<8x32xf32>
    %697 = math.tanh %696 : vector<8x32xf32>
    %698 = arith.mulf %694, %676 : vector<8x32xf32>
    %699 = arith.mulf %693, %697 : vector<8x32xf32>
    %700 = arith.addf %698, %699 : vector<8x32xf32>
    %701 = math.tanh %700 : vector<8x32xf32>
    %702 = arith.mulf %695, %701 : vector<8x32xf32>
    %703 = arith.index_cast %682 : i32 to index
    %c0_154 = arith.constant 0 : index
    %704 = vector.load %arg12[%703, %c0_154] : memref<240x32xf32, #tpu.memory_space<vmem>>, vector<8x32xf32>
    tpu.vector_store %arg12[%703, %c0_154], %702 {strides = array<i32>} : memref<240x32xf32, #tpu.memory_space<vmem>>, vector<8x32xf32>,
    %c29_i32 = arith.constant 29 : i32
    %c8_i32_155 = arith.constant 8 : i32
    %705 = arith.muli %c29_i32, %c8_i32_155 : i32
    %706 = tpu.assume_multiple %705, 8 : i32
    %707 = arith.index_cast %706 : i32 to index
    %c0_156 = arith.constant 0 : index
    %708 = vector.load %arg11[%707, %c0_156] : memref<240x128xf32, #tpu.memory_space<vmem>>, vector<8x128xf32>
    %cst_157 = arith.constant dense<0.000000e+00> : vector<8x128xf32>
    %709 = tpu.matmul %702, %2, %cst_157 {dimension_numbers = #tpu.dot_dimension_numbers<[1], [0], [0], [1], [0, 0, 1, 1], [], []>} : vector<8x32xf32>, vector<32x128xf32>, vector<8x128xf32> -> vector<8x128xf32>
    %710 = arith.addf %708, %709 : vector<8x128xf32>
    %711 = vector.extract_strided_slice %710 {offsets = [0, 0], sizes = [8, 96], strides = [1, 1]} : vector<8x128xf32> to vector<8x96xf32>
    %712 = arith.negf %711 : vector<8x96xf32>
    %713 = math.exp %712 : vector<8x96xf32>
    %cst_158 = arith.constant 1.000000e+00 : f32
    %714 = vector.broadcast %cst_158 : f32 to vector<8x96xf32>
    %715 = arith.addf %714, %713 : vector<8x96xf32>
    %716 = arith.divf %714, %715 : vector<8x96xf32>
    %717 = vector.extract_strided_slice %716 {offsets = [0, 0], sizes = [8, 32], strides = [1, 1]} : vector<8x96xf32> to vector<8x32xf32>
    %718 = vector.extract_strided_slice %716 {offsets = [0, 32], sizes = [8, 32], strides = [1, 1]} : vector<8x96xf32> to vector<8x32xf32>
    %719 = vector.extract_strided_slice %716 {offsets = [0, 64], sizes = [8, 32], strides = [1, 1]} : vector<8x96xf32> to vector<8x32xf32>
    %720 = vector.extract_strided_slice %710 {offsets = [0, 96], sizes = [8, 32], strides = [1, 1]} : vector<8x128xf32> to vector<8x32xf32>
    %721 = math.tanh %720 : vector<8x32xf32>
    %722 = arith.mulf %718, %700 : vector<8x32xf32>
    %723 = arith.mulf %717, %721 : vector<8x32xf32>
    %724 = arith.addf %722, %723 : vector<8x32xf32>
    %725 = math.tanh %724 : vector<8x32xf32>
    %726 = arith.mulf %719, %725 : vector<8x32xf32>
    %727 = arith.index_cast %706 : i32 to index
    %c0_159 = arith.constant 0 : index
    %728 = vector.load %arg12[%727, %c0_159] : memref<240x32xf32, #tpu.memory_space<vmem>>, vector<8x32xf32>
    tpu.vector_store %arg12[%727, %c0_159], %726 {strides = array<i32>} : memref<240x32xf32, #tpu.memory_space<vmem>>, vector<8x32xf32>,
    %c30_i32 = arith.constant 30 : i32
    %c0_160 = arith.constant 0 : index
    %c0_161 = arith.constant 0 : index
    %729 = vector.load %arg12[%c0_160, %c0_161] : memref<240x32xf32, #tpu.memory_space<vmem>>, vector<240x32xf32>
    %c0_162 = arith.constant 0 : index
    %c0_163 = arith.constant 0 : index
    %730 = vector.load %arg5[%c0_162, %c0_163] : memref<32x128xf32, #tpu.memory_space<vmem>>, vector<32x128xf32>
    %c0_164 = arith.constant 0 : index
    %c0_165 = arith.constant 0 : index
    %731 = vector.load %arg6[%c0_164, %c0_165] : memref<32x128xf32, #tpu.memory_space<vmem>>, vector<32x128xf32>
    %c0_166 = arith.constant 0 : index
    %c0_167 = arith.constant 0 : index
    %732 = vector.load %arg7[%c0_166, %c0_167] : memref<1x128xf32, #tpu.memory_space<vmem>>, vector<1x128xf32>
    %cst_168 = arith.constant dense<0.000000e+00> : vector<240x128xf32>
    %733 = tpu.matmul %729, %730, %cst_168 {dimension_numbers = #tpu.dot_dimension_numbers<[1], [0], [0], [1], [0, 0, 1, 1], [], []>} : vector<240x32xf32>, vector<32x128xf32>, vector<240x128xf32> -> vector<240x128xf32>
    %734 = vector.broadcast %732 : vector<1x128xf32> to vector<240x128xf32>
    %735 = arith.addf %733, %734 : vector<240x128xf32>
    %c0_169 = arith.constant 0 : index
    %c0_170 = arith.constant 0 : index
    %736 = vector.load %arg13[%c0_169, %c0_170] : memref<240x128xf32, #tpu.memory_space<vmem>>, vector<240x128xf32>
    tpu.vector_store %arg13[%c0_169, %c0_170], %735 {strides = array<i32>} : memref<240x128xf32, #tpu.memory_space<vmem>>, vector<240x128xf32>,
    %cst_171 = arith.constant 0.000000e+00 : f32
    %737 = vector.broadcast %cst_171 : f32 to vector<8x32xf32>
    %c0_i32_172 = arith.constant 0 : i32
    %c8_i32_173 = arith.constant 8 : i32
    %738 = arith.muli %c0_i32_172, %c8_i32_173 : i32
    %739 = tpu.assume_multiple %738, 8 : i32
    %740 = arith.index_cast %739 : i32 to index
    %c0_174 = arith.constant 0 : index
    %741 = vector.load %arg13[%740, %c0_174] : memref<240x128xf32, #tpu.memory_space<vmem>>, vector<8x128xf32>
    %cst_175 = arith.constant dense<0.000000e+00> : vector<8x128xf32>
    %742 = tpu.matmul %737, %731, %cst_175 {dimension_numbers = #tpu.dot_dimension_numbers<[1], [0], [0], [1], [0, 0, 1, 1], [], []>} : vector<8x32xf32>, vector<32x128xf32>, vector<8x128xf32> -> vector<8x128xf32>
    %743 = arith.addf %741, %742 : vector<8x128xf32>
    %744 = vector.extract_strided_slice %743 {offsets = [0, 0], sizes = [8, 96], strides = [1, 1]} : vector<8x128xf32> to vector<8x96xf32>
    %745 = arith.negf %744 : vector<8x96xf32>
    %746 = math.exp %745 : vector<8x96xf32>
    %cst_176 = arith.constant 1.000000e+00 : f32
    %747 = vector.broadcast %cst_176 : f32 to vector<8x96xf32>
    %748 = arith.addf %747, %746 : vector<8x96xf32>
    %749 = arith.divf %747, %748 : vector<8x96xf32>
    %750 = vector.extract_strided_slice %749 {offsets = [0, 0], sizes = [8, 32], strides = [1, 1]} : vector<8x96xf32> to vector<8x32xf32>
    %751 = vector.extract_strided_slice %749 {offsets = [0, 32], sizes = [8, 32], strides = [1, 1]} : vector<8x96xf32> to vector<8x32xf32>
    %752 = vector.extract_strided_slice %749 {offsets = [0, 64], sizes = [8, 32], strides = [1, 1]} : vector<8x96xf32> to vector<8x32xf32>
    %753 = vector.extract_strided_slice %743 {offsets = [0, 96], sizes = [8, 32], strides = [1, 1]} : vector<8x128xf32> to vector<8x32xf32>
    %754 = math.tanh %753 : vector<8x32xf32>
    %755 = arith.mulf %751, %737 : vector<8x32xf32>
    %756 = arith.mulf %750, %754 : vector<8x32xf32>
    %757 = arith.addf %755, %756 : vector<8x32xf32>
    %758 = math.tanh %757 : vector<8x32xf32>
    %759 = arith.mulf %752, %758 : vector<8x32xf32>
    %760 = arith.index_cast %c0_i32_172 : i32 to index
    %c0_177 = arith.constant 0 : index
    %c0_178 = arith.constant 0 : index
    %761 = vector.load %arg14[%760, %c0_177, %c0_178] : memref<30x8x32xf32, #tpu.memory_space<vmem>>, vector<1x8x32xf32>
    %762 = vector.shape_cast %761 : vector<1x8x32xf32> to vector<8x32xf32>
    %763 = vector.shape_cast %759 : vector<8x32xf32> to vector<1x8x32xf32>
    tpu.vector_store %arg14[%760, %c0_177, %c0_178], %763 {strides = array<i32>} : memref<30x8x32xf32, #tpu.memory_space<vmem>>, vector<1x8x32xf32>,
    %c1_i32_179 = arith.constant 1 : i32
    %c8_i32_180 = arith.constant 8 : i32
    %764 = arith.muli %c1_i32_179, %c8_i32_180 : i32
    %765 = tpu.assume_multiple %764, 8 : i32
    %766 = arith.index_cast %765 : i32 to index
    %c0_181 = arith.constant 0 : index
    %767 = vector.load %arg13[%766, %c0_181] : memref<240x128xf32, #tpu.memory_space<vmem>>, vector<8x128xf32>
    %cst_182 = arith.constant dense<0.000000e+00> : vector<8x128xf32>
    %768 = tpu.matmul %759, %731, %cst_182 {dimension_numbers = #tpu.dot_dimension_numbers<[1], [0], [0], [1], [0, 0, 1, 1], [], []>} : vector<8x32xf32>, vector<32x128xf32>, vector<8x128xf32> -> vector<8x128xf32>
    %769 = arith.addf %767, %768 : vector<8x128xf32>
    %770 = vector.extract_strided_slice %769 {offsets = [0, 0], sizes = [8, 96], strides = [1, 1]} : vector<8x128xf32> to vector<8x96xf32>
    %771 = arith.negf %770 : vector<8x96xf32>
    %772 = math.exp %771 : vector<8x96xf32>
    %cst_183 = arith.constant 1.000000e+00 : f32
    %773 = vector.broadcast %cst_183 : f32 to vector<8x96xf32>
    %774 = arith.addf %773, %772 : vector<8x96xf32>
    %775 = arith.divf %773, %774 : vector<8x96xf32>
    %776 = vector.extract_strided_slice %775 {offsets = [0, 0], sizes = [8, 32], strides = [1, 1]} : vector<8x96xf32> to vector<8x32xf32>
    %777 = vector.extract_strided_slice %775 {offsets = [0, 32], sizes = [8, 32], strides = [1, 1]} : vector<8x96xf32> to vector<8x32xf32>
    %778 = vector.extract_strided_slice %775 {offsets = [0, 64], sizes = [8, 32], strides = [1, 1]} : vector<8x96xf32> to vector<8x32xf32>
    %779 = vector.extract_strided_slice %769 {offsets = [0, 96], sizes = [8, 32], strides = [1, 1]} : vector<8x128xf32> to vector<8x32xf32>
    %780 = math.tanh %779 : vector<8x32xf32>
    %781 = arith.mulf %777, %757 : vector<8x32xf32>
    %782 = arith.mulf %776, %780 : vector<8x32xf32>
    %783 = arith.addf %781, %782 : vector<8x32xf32>
    %784 = math.tanh %783 : vector<8x32xf32>
    %785 = arith.mulf %778, %784 : vector<8x32xf32>
    %786 = arith.index_cast %c1_i32_179 : i32 to index
    %c0_184 = arith.constant 0 : index
    %c0_185 = arith.constant 0 : index
    %787 = vector.load %arg14[%786, %c0_184, %c0_185] : memref<30x8x32xf32, #tpu.memory_space<vmem>>, vector<1x8x32xf32>
    %788 = vector.shape_cast %787 : vector<1x8x32xf32> to vector<8x32xf32>
    %789 = vector.shape_cast %785 : vector<8x32xf32> to vector<1x8x32xf32>
    tpu.vector_store %arg14[%786, %c0_184, %c0_185], %789 {strides = array<i32>} : memref<30x8x32xf32, #tpu.memory_space<vmem>>, vector<1x8x32xf32>,
    %c2_i32_186 = arith.constant 2 : i32
    %c8_i32_187 = arith.constant 8 : i32
    %790 = arith.muli %c2_i32_186, %c8_i32_187 : i32
    %791 = tpu.assume_multiple %790, 8 : i32
    %792 = arith.index_cast %791 : i32 to index
    %c0_188 = arith.constant 0 : index
    %793 = vector.load %arg13[%792, %c0_188] : memref<240x128xf32, #tpu.memory_space<vmem>>, vector<8x128xf32>
    %cst_189 = arith.constant dense<0.000000e+00> : vector<8x128xf32>
    %794 = tpu.matmul %785, %731, %cst_189 {dimension_numbers = #tpu.dot_dimension_numbers<[1], [0], [0], [1], [0, 0, 1, 1], [], []>} : vector<8x32xf32>, vector<32x128xf32>, vector<8x128xf32> -> vector<8x128xf32>
    %795 = arith.addf %793, %794 : vector<8x128xf32>
    %796 = vector.extract_strided_slice %795 {offsets = [0, 0], sizes = [8, 96], strides = [1, 1]} : vector<8x128xf32> to vector<8x96xf32>
    %797 = arith.negf %796 : vector<8x96xf32>
    %798 = math.exp %797 : vector<8x96xf32>
    %cst_190 = arith.constant 1.000000e+00 : f32
    %799 = vector.broadcast %cst_190 : f32 to vector<8x96xf32>
    %800 = arith.addf %799, %798 : vector<8x96xf32>
    %801 = arith.divf %799, %800 : vector<8x96xf32>
    %802 = vector.extract_strided_slice %801 {offsets = [0, 0], sizes = [8, 32], strides = [1, 1]} : vector<8x96xf32> to vector<8x32xf32>
    %803 = vector.extract_strided_slice %801 {offsets = [0, 32], sizes = [8, 32], strides = [1, 1]} : vector<8x96xf32> to vector<8x32xf32>
    %804 = vector.extract_strided_slice %801 {offsets = [0, 64], sizes = [8, 32], strides = [1, 1]} : vector<8x96xf32> to vector<8x32xf32>
    %805 = vector.extract_strided_slice %795 {offsets = [0, 96], sizes = [8, 32], strides = [1, 1]} : vector<8x128xf32> to vector<8x32xf32>
    %806 = math.tanh %805 : vector<8x32xf32>
    %807 = arith.mulf %803, %783 : vector<8x32xf32>
    %808 = arith.mulf %802, %806 : vector<8x32xf32>
    %809 = arith.addf %807, %808 : vector<8x32xf32>
    %810 = math.tanh %809 : vector<8x32xf32>
    %811 = arith.mulf %804, %810 : vector<8x32xf32>
    %812 = arith.index_cast %c2_i32_186 : i32 to index
    %c0_191 = arith.constant 0 : index
    %c0_192 = arith.constant 0 : index
    %813 = vector.load %arg14[%812, %c0_191, %c0_192] : memref<30x8x32xf32, #tpu.memory_space<vmem>>, vector<1x8x32xf32>
    %814 = vector.shape_cast %813 : vector<1x8x32xf32> to vector<8x32xf32>
    %815 = vector.shape_cast %811 : vector<8x32xf32> to vector<1x8x32xf32>
    tpu.vector_store %arg14[%812, %c0_191, %c0_192], %815 {strides = array<i32>} : memref<30x8x32xf32, #tpu.memory_space<vmem>>, vector<1x8x32xf32>,
    %c3_i32_193 = arith.constant 3 : i32
    %c8_i32_194 = arith.constant 8 : i32
    %816 = arith.muli %c3_i32_193, %c8_i32_194 : i32
    %817 = tpu.assume_multiple %816, 8 : i32
    %818 = arith.index_cast %817 : i32 to index
    %c0_195 = arith.constant 0 : index
    %819 = vector.load %arg13[%818, %c0_195] : memref<240x128xf32, #tpu.memory_space<vmem>>, vector<8x128xf32>
    %cst_196 = arith.constant dense<0.000000e+00> : vector<8x128xf32>
    %820 = tpu.matmul %811, %731, %cst_196 {dimension_numbers = #tpu.dot_dimension_numbers<[1], [0], [0], [1], [0, 0, 1, 1], [], []>} : vector<8x32xf32>, vector<32x128xf32>, vector<8x128xf32> -> vector<8x128xf32>
    %821 = arith.addf %819, %820 : vector<8x128xf32>
    %822 = vector.extract_strided_slice %821 {offsets = [0, 0], sizes = [8, 96], strides = [1, 1]} : vector<8x128xf32> to vector<8x96xf32>
    %823 = arith.negf %822 : vector<8x96xf32>
    %824 = math.exp %823 : vector<8x96xf32>
    %cst_197 = arith.constant 1.000000e+00 : f32
    %825 = vector.broadcast %cst_197 : f32 to vector<8x96xf32>
    %826 = arith.addf %825, %824 : vector<8x96xf32>
    %827 = arith.divf %825, %826 : vector<8x96xf32>
    %828 = vector.extract_strided_slice %827 {offsets = [0, 0], sizes = [8, 32], strides = [1, 1]} : vector<8x96xf32> to vector<8x32xf32>
    %829 = vector.extract_strided_slice %827 {offsets = [0, 32], sizes = [8, 32], strides = [1, 1]} : vector<8x96xf32> to vector<8x32xf32>
    %830 = vector.extract_strided_slice %827 {offsets = [0, 64], sizes = [8, 32], strides = [1, 1]} : vector<8x96xf32> to vector<8x32xf32>
    %831 = vector.extract_strided_slice %821 {offsets = [0, 96], sizes = [8, 32], strides = [1, 1]} : vector<8x128xf32> to vector<8x32xf32>
    %832 = math.tanh %831 : vector<8x32xf32>
    %833 = arith.mulf %829, %809 : vector<8x32xf32>
    %834 = arith.mulf %828, %832 : vector<8x32xf32>
    %835 = arith.addf %833, %834 : vector<8x32xf32>
    %836 = math.tanh %835 : vector<8x32xf32>
    %837 = arith.mulf %830, %836 : vector<8x32xf32>
    %838 = arith.index_cast %c3_i32_193 : i32 to index
    %c0_198 = arith.constant 0 : index
    %c0_199 = arith.constant 0 : index
    %839 = vector.load %arg14[%838, %c0_198, %c0_199] : memref<30x8x32xf32, #tpu.memory_space<vmem>>, vector<1x8x32xf32>
    %840 = vector.shape_cast %839 : vector<1x8x32xf32> to vector<8x32xf32>
    %841 = vector.shape_cast %837 : vector<8x32xf32> to vector<1x8x32xf32>
    tpu.vector_store %arg14[%838, %c0_198, %c0_199], %841 {strides = array<i32>} : memref<30x8x32xf32, #tpu.memory_space<vmem>>, vector<1x8x32xf32>,
    %c4_i32_200 = arith.constant 4 : i32
    %c8_i32_201 = arith.constant 8 : i32
    %842 = arith.muli %c4_i32_200, %c8_i32_201 : i32
    %843 = tpu.assume_multiple %842, 8 : i32
    %844 = arith.index_cast %843 : i32 to index
    %c0_202 = arith.constant 0 : index
    %845 = vector.load %arg13[%844, %c0_202] : memref<240x128xf32, #tpu.memory_space<vmem>>, vector<8x128xf32>
    %cst_203 = arith.constant dense<0.000000e+00> : vector<8x128xf32>
    %846 = tpu.matmul %837, %731, %cst_203 {dimension_numbers = #tpu.dot_dimension_numbers<[1], [0], [0], [1], [0, 0, 1, 1], [], []>} : vector<8x32xf32>, vector<32x128xf32>, vector<8x128xf32> -> vector<8x128xf32>
    %847 = arith.addf %845, %846 : vector<8x128xf32>
    %848 = vector.extract_strided_slice %847 {offsets = [0, 0], sizes = [8, 96], strides = [1, 1]} : vector<8x128xf32> to vector<8x96xf32>
    %849 = arith.negf %848 : vector<8x96xf32>
    %850 = math.exp %849 : vector<8x96xf32>
    %cst_204 = arith.constant 1.000000e+00 : f32
    %851 = vector.broadcast %cst_204 : f32 to vector<8x96xf32>
    %852 = arith.addf %851, %850 : vector<8x96xf32>
    %853 = arith.divf %851, %852 : vector<8x96xf32>
    %854 = vector.extract_strided_slice %853 {offsets = [0, 0], sizes = [8, 32], strides = [1, 1]} : vector<8x96xf32> to vector<8x32xf32>
    %855 = vector.extract_strided_slice %853 {offsets = [0, 32], sizes = [8, 32], strides = [1, 1]} : vector<8x96xf32> to vector<8x32xf32>
    %856 = vector.extract_strided_slice %853 {offsets = [0, 64], sizes = [8, 32], strides = [1, 1]} : vector<8x96xf32> to vector<8x32xf32>
    %857 = vector.extract_strided_slice %847 {offsets = [0, 96], sizes = [8, 32], strides = [1, 1]} : vector<8x128xf32> to vector<8x32xf32>
    %858 = math.tanh %857 : vector<8x32xf32>
    %859 = arith.mulf %855, %835 : vector<8x32xf32>
    %860 = arith.mulf %854, %858 : vector<8x32xf32>
    %861 = arith.addf %859, %860 : vector<8x32xf32>
    %862 = math.tanh %861 : vector<8x32xf32>
    %863 = arith.mulf %856, %862 : vector<8x32xf32>
    %864 = arith.index_cast %c4_i32_200 : i32 to index
    %c0_205 = arith.constant 0 : index
    %c0_206 = arith.constant 0 : index
    %865 = vector.load %arg14[%864, %c0_205, %c0_206] : memref<30x8x32xf32, #tpu.memory_space<vmem>>, vector<1x8x32xf32>
    %866 = vector.shape_cast %865 : vector<1x8x32xf32> to vector<8x32xf32>
    %867 = vector.shape_cast %863 : vector<8x32xf32> to vector<1x8x32xf32>
    tpu.vector_store %arg14[%864, %c0_205, %c0_206], %867 {strides = array<i32>} : memref<30x8x32xf32, #tpu.memory_space<vmem>>, vector<1x8x32xf32>,
    %c5_i32_207 = arith.constant 5 : i32
    %c8_i32_208 = arith.constant 8 : i32
    %868 = arith.muli %c5_i32_207, %c8_i32_208 : i32
    %869 = tpu.assume_multiple %868, 8 : i32
    %870 = arith.index_cast %869 : i32 to index
    %c0_209 = arith.constant 0 : index
    %871 = vector.load %arg13[%870, %c0_209] : memref<240x128xf32, #tpu.memory_space<vmem>>, vector<8x128xf32>
    %cst_210 = arith.constant dense<0.000000e+00> : vector<8x128xf32>
    %872 = tpu.matmul %863, %731, %cst_210 {dimension_numbers = #tpu.dot_dimension_numbers<[1], [0], [0], [1], [0, 0, 1, 1], [], []>} : vector<8x32xf32>, vector<32x128xf32>, vector<8x128xf32> -> vector<8x128xf32>
    %873 = arith.addf %871, %872 : vector<8x128xf32>
    %874 = vector.extract_strided_slice %873 {offsets = [0, 0], sizes = [8, 96], strides = [1, 1]} : vector<8x128xf32> to vector<8x96xf32>
    %875 = arith.negf %874 : vector<8x96xf32>
    %876 = math.exp %875 : vector<8x96xf32>
    %cst_211 = arith.constant 1.000000e+00 : f32
    %877 = vector.broadcast %cst_211 : f32 to vector<8x96xf32>
    %878 = arith.addf %877, %876 : vector<8x96xf32>
    %879 = arith.divf %877, %878 : vector<8x96xf32>
    %880 = vector.extract_strided_slice %879 {offsets = [0, 0], sizes = [8, 32], strides = [1, 1]} : vector<8x96xf32> to vector<8x32xf32>
    %881 = vector.extract_strided_slice %879 {offsets = [0, 32], sizes = [8, 32], strides = [1, 1]} : vector<8x96xf32> to vector<8x32xf32>
    %882 = vector.extract_strided_slice %879 {offsets = [0, 64], sizes = [8, 32], strides = [1, 1]} : vector<8x96xf32> to vector<8x32xf32>
    %883 = vector.extract_strided_slice %873 {offsets = [0, 96], sizes = [8, 32], strides = [1, 1]} : vector<8x128xf32> to vector<8x32xf32>
    %884 = math.tanh %883 : vector<8x32xf32>
    %885 = arith.mulf %881, %861 : vector<8x32xf32>
    %886 = arith.mulf %880, %884 : vector<8x32xf32>
    %887 = arith.addf %885, %886 : vector<8x32xf32>
    %888 = math.tanh %887 : vector<8x32xf32>
    %889 = arith.mulf %882, %888 : vector<8x32xf32>
    %890 = arith.index_cast %c5_i32_207 : i32 to index
    %c0_212 = arith.constant 0 : index
    %c0_213 = arith.constant 0 : index
    %891 = vector.load %arg14[%890, %c0_212, %c0_213] : memref<30x8x32xf32, #tpu.memory_space<vmem>>, vector<1x8x32xf32>
    %892 = vector.shape_cast %891 : vector<1x8x32xf32> to vector<8x32xf32>
    %893 = vector.shape_cast %889 : vector<8x32xf32> to vector<1x8x32xf32>
    tpu.vector_store %arg14[%890, %c0_212, %c0_213], %893 {strides = array<i32>} : memref<30x8x32xf32, #tpu.memory_space<vmem>>, vector<1x8x32xf32>,
    %c6_i32_214 = arith.constant 6 : i32
    %c8_i32_215 = arith.constant 8 : i32
    %894 = arith.muli %c6_i32_214, %c8_i32_215 : i32
    %895 = tpu.assume_multiple %894, 8 : i32
    %896 = arith.index_cast %895 : i32 to index
    %c0_216 = arith.constant 0 : index
    %897 = vector.load %arg13[%896, %c0_216] : memref<240x128xf32, #tpu.memory_space<vmem>>, vector<8x128xf32>
    %cst_217 = arith.constant dense<0.000000e+00> : vector<8x128xf32>
    %898 = tpu.matmul %889, %731, %cst_217 {dimension_numbers = #tpu.dot_dimension_numbers<[1], [0], [0], [1], [0, 0, 1, 1], [], []>} : vector<8x32xf32>, vector<32x128xf32>, vector<8x128xf32> -> vector<8x128xf32>
    %899 = arith.addf %897, %898 : vector<8x128xf32>
    %900 = vector.extract_strided_slice %899 {offsets = [0, 0], sizes = [8, 96], strides = [1, 1]} : vector<8x128xf32> to vector<8x96xf32>
    %901 = arith.negf %900 : vector<8x96xf32>
    %902 = math.exp %901 : vector<8x96xf32>
    %cst_218 = arith.constant 1.000000e+00 : f32
    %903 = vector.broadcast %cst_218 : f32 to vector<8x96xf32>
    %904 = arith.addf %903, %902 : vector<8x96xf32>
    %905 = arith.divf %903, %904 : vector<8x96xf32>
    %906 = vector.extract_strided_slice %905 {offsets = [0, 0], sizes = [8, 32], strides = [1, 1]} : vector<8x96xf32> to vector<8x32xf32>
    %907 = vector.extract_strided_slice %905 {offsets = [0, 32], sizes = [8, 32], strides = [1, 1]} : vector<8x96xf32> to vector<8x32xf32>
    %908 = vector.extract_strided_slice %905 {offsets = [0, 64], sizes = [8, 32], strides = [1, 1]} : vector<8x96xf32> to vector<8x32xf32>
    %909 = vector.extract_strided_slice %899 {offsets = [0, 96], sizes = [8, 32], strides = [1, 1]} : vector<8x128xf32> to vector<8x32xf32>
    %910 = math.tanh %909 : vector<8x32xf32>
    %911 = arith.mulf %907, %887 : vector<8x32xf32>
    %912 = arith.mulf %906, %910 : vector<8x32xf32>
    %913 = arith.addf %911, %912 : vector<8x32xf32>
    %914 = math.tanh %913 : vector<8x32xf32>
    %915 = arith.mulf %908, %914 : vector<8x32xf32>
    %916 = arith.index_cast %c6_i32_214 : i32 to index
    %c0_219 = arith.constant 0 : index
    %c0_220 = arith.constant 0 : index
    %917 = vector.load %arg14[%916, %c0_219, %c0_220] : memref<30x8x32xf32, #tpu.memory_space<vmem>>, vector<1x8x32xf32>
    %918 = vector.shape_cast %917 : vector<1x8x32xf32> to vector<8x32xf32>
    %919 = vector.shape_cast %915 : vector<8x32xf32> to vector<1x8x32xf32>
    tpu.vector_store %arg14[%916, %c0_219, %c0_220], %919 {strides = array<i32>} : memref<30x8x32xf32, #tpu.memory_space<vmem>>, vector<1x8x32xf32>,
    %c7_i32_221 = arith.constant 7 : i32
    %c8_i32_222 = arith.constant 8 : i32
    %920 = arith.muli %c7_i32_221, %c8_i32_222 : i32
    %921 = tpu.assume_multiple %920, 8 : i32
    %922 = arith.index_cast %921 : i32 to index
    %c0_223 = arith.constant 0 : index
    %923 = vector.load %arg13[%922, %c0_223] : memref<240x128xf32, #tpu.memory_space<vmem>>, vector<8x128xf32>
    %cst_224 = arith.constant dense<0.000000e+00> : vector<8x128xf32>
    %924 = tpu.matmul %915, %731, %cst_224 {dimension_numbers = #tpu.dot_dimension_numbers<[1], [0], [0], [1], [0, 0, 1, 1], [], []>} : vector<8x32xf32>, vector<32x128xf32>, vector<8x128xf32> -> vector<8x128xf32>
    %925 = arith.addf %923, %924 : vector<8x128xf32>
    %926 = vector.extract_strided_slice %925 {offsets = [0, 0], sizes = [8, 96], strides = [1, 1]} : vector<8x128xf32> to vector<8x96xf32>
    %927 = arith.negf %926 : vector<8x96xf32>
    %928 = math.exp %927 : vector<8x96xf32>
    %cst_225 = arith.constant 1.000000e+00 : f32
    %929 = vector.broadcast %cst_225 : f32 to vector<8x96xf32>
    %930 = arith.addf %929, %928 : vector<8x96xf32>
    %931 = arith.divf %929, %930 : vector<8x96xf32>
    %932 = vector.extract_strided_slice %931 {offsets = [0, 0], sizes = [8, 32], strides = [1, 1]} : vector<8x96xf32> to vector<8x32xf32>
    %933 = vector.extract_strided_slice %931 {offsets = [0, 32], sizes = [8, 32], strides = [1, 1]} : vector<8x96xf32> to vector<8x32xf32>
    %934 = vector.extract_strided_slice %931 {offsets = [0, 64], sizes = [8, 32], strides = [1, 1]} : vector<8x96xf32> to vector<8x32xf32>
    %935 = vector.extract_strided_slice %925 {offsets = [0, 96], sizes = [8, 32], strides = [1, 1]} : vector<8x128xf32> to vector<8x32xf32>
    %936 = math.tanh %935 : vector<8x32xf32>
    %937 = arith.mulf %933, %913 : vector<8x32xf32>
    %938 = arith.mulf %932, %936 : vector<8x32xf32>
    %939 = arith.addf %937, %938 : vector<8x32xf32>
    %940 = math.tanh %939 : vector<8x32xf32>
    %941 = arith.mulf %934, %940 : vector<8x32xf32>
    %942 = arith.index_cast %c7_i32_221 : i32 to index
    %c0_226 = arith.constant 0 : index
    %c0_227 = arith.constant 0 : index
    %943 = vector.load %arg14[%942, %c0_226, %c0_227] : memref<30x8x32xf32, #tpu.memory_space<vmem>>, vector<1x8x32xf32>
    %944 = vector.shape_cast %943 : vector<1x8x32xf32> to vector<8x32xf32>
    %945 = vector.shape_cast %941 : vector<8x32xf32> to vector<1x8x32xf32>
    tpu.vector_store %arg14[%942, %c0_226, %c0_227], %945 {strides = array<i32>} : memref<30x8x32xf32, #tpu.memory_space<vmem>>, vector<1x8x32xf32>,
    %c8_i32_228 = arith.constant 8 : i32
    %c8_i32_229 = arith.constant 8 : i32
    %946 = arith.muli %c8_i32_228, %c8_i32_229 : i32
    %947 = tpu.assume_multiple %946, 8 : i32
    %948 = arith.index_cast %947 : i32 to index
    %c0_230 = arith.constant 0 : index
    %949 = vector.load %arg13[%948, %c0_230] : memref<240x128xf32, #tpu.memory_space<vmem>>, vector<8x128xf32>
    %cst_231 = arith.constant dense<0.000000e+00> : vector<8x128xf32>
    %950 = tpu.matmul %941, %731, %cst_231 {dimension_numbers = #tpu.dot_dimension_numbers<[1], [0], [0], [1], [0, 0, 1, 1], [], []>} : vector<8x32xf32>, vector<32x128xf32>, vector<8x128xf32> -> vector<8x128xf32>
    %951 = arith.addf %949, %950 : vector<8x128xf32>
    %952 = vector.extract_strided_slice %951 {offsets = [0, 0], sizes = [8, 96], strides = [1, 1]} : vector<8x128xf32> to vector<8x96xf32>
    %953 = arith.negf %952 : vector<8x96xf32>
    %954 = math.exp %953 : vector<8x96xf32>
    %cst_232 = arith.constant 1.000000e+00 : f32
    %955 = vector.broadcast %cst_232 : f32 to vector<8x96xf32>
    %956 = arith.addf %955, %954 : vector<8x96xf32>
    %957 = arith.divf %955, %956 : vector<8x96xf32>
    %958 = vector.extract_strided_slice %957 {offsets = [0, 0], sizes = [8, 32], strides = [1, 1]} : vector<8x96xf32> to vector<8x32xf32>
    %959 = vector.extract_strided_slice %957 {offsets = [0, 32], sizes = [8, 32], strides = [1, 1]} : vector<8x96xf32> to vector<8x32xf32>
    %960 = vector.extract_strided_slice %957 {offsets = [0, 64], sizes = [8, 32], strides = [1, 1]} : vector<8x96xf32> to vector<8x32xf32>
    %961 = vector.extract_strided_slice %951 {offsets = [0, 96], sizes = [8, 32], strides = [1, 1]} : vector<8x128xf32> to vector<8x32xf32>
    %962 = math.tanh %961 : vector<8x32xf32>
    %963 = arith.mulf %959, %939 : vector<8x32xf32>
    %964 = arith.mulf %958, %962 : vector<8x32xf32>
    %965 = arith.addf %963, %964 : vector<8x32xf32>
    %966 = math.tanh %965 : vector<8x32xf32>
    %967 = arith.mulf %960, %966 : vector<8x32xf32>
    %968 = arith.index_cast %c8_i32_228 : i32 to index
    %c0_233 = arith.constant 0 : index
    %c0_234 = arith.constant 0 : index
    %969 = vector.load %arg14[%968, %c0_233, %c0_234] : memref<30x8x32xf32, #tpu.memory_space<vmem>>, vector<1x8x32xf32>
    %970 = vector.shape_cast %969 : vector<1x8x32xf32> to vector<8x32xf32>
    %971 = vector.shape_cast %967 : vector<8x32xf32> to vector<1x8x32xf32>
    tpu.vector_store %arg14[%968, %c0_233, %c0_234], %971 {strides = array<i32>} : memref<30x8x32xf32, #tpu.memory_space<vmem>>, vector<1x8x32xf32>,
    %c9_i32_235 = arith.constant 9 : i32
    %c8_i32_236 = arith.constant 8 : i32
    %972 = arith.muli %c9_i32_235, %c8_i32_236 : i32
    %973 = tpu.assume_multiple %972, 8 : i32
    %974 = arith.index_cast %973 : i32 to index
    %c0_237 = arith.constant 0 : index
    %975 = vector.load %arg13[%974, %c0_237] : memref<240x128xf32, #tpu.memory_space<vmem>>, vector<8x128xf32>
    %cst_238 = arith.constant dense<0.000000e+00> : vector<8x128xf32>
    %976 = tpu.matmul %967, %731, %cst_238 {dimension_numbers = #tpu.dot_dimension_numbers<[1], [0], [0], [1], [0, 0, 1, 1], [], []>} : vector<8x32xf32>, vector<32x128xf32>, vector<8x128xf32> -> vector<8x128xf32>
    %977 = arith.addf %975, %976 : vector<8x128xf32>
    %978 = vector.extract_strided_slice %977 {offsets = [0, 0], sizes = [8, 96], strides = [1, 1]} : vector<8x128xf32> to vector<8x96xf32>
    %979 = arith.negf %978 : vector<8x96xf32>
    %980 = math.exp %979 : vector<8x96xf32>
    %cst_239 = arith.constant 1.000000e+00 : f32
    %981 = vector.broadcast %cst_239 : f32 to vector<8x96xf32>
    %982 = arith.addf %981, %980 : vector<8x96xf32>
    %983 = arith.divf %981, %982 : vector<8x96xf32>
    %984 = vector.extract_strided_slice %983 {offsets = [0, 0], sizes = [8, 32], strides = [1, 1]} : vector<8x96xf32> to vector<8x32xf32>
    %985 = vector.extract_strided_slice %983 {offsets = [0, 32], sizes = [8, 32], strides = [1, 1]} : vector<8x96xf32> to vector<8x32xf32>
    %986 = vector.extract_strided_slice %983 {offsets = [0, 64], sizes = [8, 32], strides = [1, 1]} : vector<8x96xf32> to vector<8x32xf32>
    %987 = vector.extract_strided_slice %977 {offsets = [0, 96], sizes = [8, 32], strides = [1, 1]} : vector<8x128xf32> to vector<8x32xf32>
    %988 = math.tanh %987 : vector<8x32xf32>
    %989 = arith.mulf %985, %965 : vector<8x32xf32>
    %990 = arith.mulf %984, %988 : vector<8x32xf32>
    %991 = arith.addf %989, %990 : vector<8x32xf32>
    %992 = math.tanh %991 : vector<8x32xf32>
    %993 = arith.mulf %986, %992 : vector<8x32xf32>
    %994 = arith.index_cast %c9_i32_235 : i32 to index
    %c0_240 = arith.constant 0 : index
    %c0_241 = arith.constant 0 : index
    %995 = vector.load %arg14[%994, %c0_240, %c0_241] : memref<30x8x32xf32, #tpu.memory_space<vmem>>, vector<1x8x32xf32>
    %996 = vector.shape_cast %995 : vector<1x8x32xf32> to vector<8x32xf32>
    %997 = vector.shape_cast %993 : vector<8x32xf32> to vector<1x8x32xf32>
    tpu.vector_store %arg14[%994, %c0_240, %c0_241], %997 {strides = array<i32>} : memref<30x8x32xf32, #tpu.memory_space<vmem>>, vector<1x8x32xf32>,
    %c10_i32_242 = arith.constant 10 : i32
    %c8_i32_243 = arith.constant 8 : i32
    %998 = arith.muli %c10_i32_242, %c8_i32_243 : i32
    %999 = tpu.assume_multiple %998, 8 : i32
    %1000 = arith.index_cast %999 : i32 to index
    %c0_244 = arith.constant 0 : index
    %1001 = vector.load %arg13[%1000, %c0_244] : memref<240x128xf32, #tpu.memory_space<vmem>>, vector<8x128xf32>
    %cst_245 = arith.constant dense<0.000000e+00> : vector<8x128xf32>
    %1002 = tpu.matmul %993, %731, %cst_245 {dimension_numbers = #tpu.dot_dimension_numbers<[1], [0], [0], [1], [0, 0, 1, 1], [], []>} : vector<8x32xf32>, vector<32x128xf32>, vector<8x128xf32> -> vector<8x128xf32>
    %1003 = arith.addf %1001, %1002 : vector<8x128xf32>
    %1004 = vector.extract_strided_slice %1003 {offsets = [0, 0], sizes = [8, 96], strides = [1, 1]} : vector<8x128xf32> to vector<8x96xf32>
    %1005 = arith.negf %1004 : vector<8x96xf32>
    %1006 = math.exp %1005 : vector<8x96xf32>
    %cst_246 = arith.constant 1.000000e+00 : f32
    %1007 = vector.broadcast %cst_246 : f32 to vector<8x96xf32>
    %1008 = arith.addf %1007, %1006 : vector<8x96xf32>
    %1009 = arith.divf %1007, %1008 : vector<8x96xf32>
    %1010 = vector.extract_strided_slice %1009 {offsets = [0, 0], sizes = [8, 32], strides = [1, 1]} : vector<8x96xf32> to vector<8x32xf32>
    %1011 = vector.extract_strided_slice %1009 {offsets = [0, 32], sizes = [8, 32], strides = [1, 1]} : vector<8x96xf32> to vector<8x32xf32>
    %1012 = vector.extract_strided_slice %1009 {offsets = [0, 64], sizes = [8, 32], strides = [1, 1]} : vector<8x96xf32> to vector<8x32xf32>
    %1013 = vector.extract_strided_slice %1003 {offsets = [0, 96], sizes = [8, 32], strides = [1, 1]} : vector<8x128xf32> to vector<8x32xf32>
    %1014 = math.tanh %1013 : vector<8x32xf32>
    %1015 = arith.mulf %1011, %991 : vector<8x32xf32>
    %1016 = arith.mulf %1010, %1014 : vector<8x32xf32>
    %1017 = arith.addf %1015, %1016 : vector<8x32xf32>
    %1018 = math.tanh %1017 : vector<8x32xf32>
    %1019 = arith.mulf %1012, %1018 : vector<8x32xf32>
    %1020 = arith.index_cast %c10_i32_242 : i32 to index
    %c0_247 = arith.constant 0 : index
    %c0_248 = arith.constant 0 : index
    %1021 = vector.load %arg14[%1020, %c0_247, %c0_248] : memref<30x8x32xf32, #tpu.memory_space<vmem>>, vector<1x8x32xf32>
    %1022 = vector.shape_cast %1021 : vector<1x8x32xf32> to vector<8x32xf32>
    %1023 = vector.shape_cast %1019 : vector<8x32xf32> to vector<1x8x32xf32>
    tpu.vector_store %arg14[%1020, %c0_247, %c0_248], %1023 {strides = array<i32>} : memref<30x8x32xf32, #tpu.memory_space<vmem>>, vector<1x8x32xf32>,
    %c11_i32_249 = arith.constant 11 : i32
    %c8_i32_250 = arith.constant 8 : i32
    %1024 = arith.muli %c11_i32_249, %c8_i32_250 : i32
    %1025 = tpu.assume_multiple %1024, 8 : i32
    %1026 = arith.index_cast %1025 : i32 to index
    %c0_251 = arith.constant 0 : index
    %1027 = vector.load %arg13[%1026, %c0_251] : memref<240x128xf32, #tpu.memory_space<vmem>>, vector<8x128xf32>
    %cst_252 = arith.constant dense<0.000000e+00> : vector<8x128xf32>
    %1028 = tpu.matmul %1019, %731, %cst_252 {dimension_numbers = #tpu.dot_dimension_numbers<[1], [0], [0], [1], [0, 0, 1, 1], [], []>} : vector<8x32xf32>, vector<32x128xf32>, vector<8x128xf32> -> vector<8x128xf32>
    %1029 = arith.addf %1027, %1028 : vector<8x128xf32>
    %1030 = vector.extract_strided_slice %1029 {offsets = [0, 0], sizes = [8, 96], strides = [1, 1]} : vector<8x128xf32> to vector<8x96xf32>
    %1031 = arith.negf %1030 : vector<8x96xf32>
    %1032 = math.exp %1031 : vector<8x96xf32>
    %cst_253 = arith.constant 1.000000e+00 : f32
    %1033 = vector.broadcast %cst_253 : f32 to vector<8x96xf32>
    %1034 = arith.addf %1033, %1032 : vector<8x96xf32>
    %1035 = arith.divf %1033, %1034 : vector<8x96xf32>
    %1036 = vector.extract_strided_slice %1035 {offsets = [0, 0], sizes = [8, 32], strides = [1, 1]} : vector<8x96xf32> to vector<8x32xf32>
    %1037 = vector.extract_strided_slice %1035 {offsets = [0, 32], sizes = [8, 32], strides = [1, 1]} : vector<8x96xf32> to vector<8x32xf32>
    %1038 = vector.extract_strided_slice %1035 {offsets = [0, 64], sizes = [8, 32], strides = [1, 1]} : vector<8x96xf32> to vector<8x32xf32>
    %1039 = vector.extract_strided_slice %1029 {offsets = [0, 96], sizes = [8, 32], strides = [1, 1]} : vector<8x128xf32> to vector<8x32xf32>
    %1040 = math.tanh %1039 : vector<8x32xf32>
    %1041 = arith.mulf %1037, %1017 : vector<8x32xf32>
    %1042 = arith.mulf %1036, %1040 : vector<8x32xf32>
    %1043 = arith.addf %1041, %1042 : vector<8x32xf32>
    %1044 = math.tanh %1043 : vector<8x32xf32>
    %1045 = arith.mulf %1038, %1044 : vector<8x32xf32>
    %1046 = arith.index_cast %c11_i32_249 : i32 to index
    %c0_254 = arith.constant 0 : index
    %c0_255 = arith.constant 0 : index
    %1047 = vector.load %arg14[%1046, %c0_254, %c0_255] : memref<30x8x32xf32, #tpu.memory_space<vmem>>, vector<1x8x32xf32>
    %1048 = vector.shape_cast %1047 : vector<1x8x32xf32> to vector<8x32xf32>
    %1049 = vector.shape_cast %1045 : vector<8x32xf32> to vector<1x8x32xf32>
    tpu.vector_store %arg14[%1046, %c0_254, %c0_255], %1049 {strides = array<i32>} : memref<30x8x32xf32, #tpu.memory_space<vmem>>, vector<1x8x32xf32>,
    %c12_i32_256 = arith.constant 12 : i32
    %c8_i32_257 = arith.constant 8 : i32
    %1050 = arith.muli %c12_i32_256, %c8_i32_257 : i32
    %1051 = tpu.assume_multiple %1050, 8 : i32
    %1052 = arith.index_cast %1051 : i32 to index
    %c0_258 = arith.constant 0 : index
    %1053 = vector.load %arg13[%1052, %c0_258] : memref<240x128xf32, #tpu.memory_space<vmem>>, vector<8x128xf32>
    %cst_259 = arith.constant dense<0.000000e+00> : vector<8x128xf32>
    %1054 = tpu.matmul %1045, %731, %cst_259 {dimension_numbers = #tpu.dot_dimension_numbers<[1], [0], [0], [1], [0, 0, 1, 1], [], []>} : vector<8x32xf32>, vector<32x128xf32>, vector<8x128xf32> -> vector<8x128xf32>
    %1055 = arith.addf %1053, %1054 : vector<8x128xf32>
    %1056 = vector.extract_strided_slice %1055 {offsets = [0, 0], sizes = [8, 96], strides = [1, 1]} : vector<8x128xf32> to vector<8x96xf32>
    %1057 = arith.negf %1056 : vector<8x96xf32>
    %1058 = math.exp %1057 : vector<8x96xf32>
    %cst_260 = arith.constant 1.000000e+00 : f32
    %1059 = vector.broadcast %cst_260 : f32 to vector<8x96xf32>
    %1060 = arith.addf %1059, %1058 : vector<8x96xf32>
    %1061 = arith.divf %1059, %1060 : vector<8x96xf32>
    %1062 = vector.extract_strided_slice %1061 {offsets = [0, 0], sizes = [8, 32], strides = [1, 1]} : vector<8x96xf32> to vector<8x32xf32>
    %1063 = vector.extract_strided_slice %1061 {offsets = [0, 32], sizes = [8, 32], strides = [1, 1]} : vector<8x96xf32> to vector<8x32xf32>
    %1064 = vector.extract_strided_slice %1061 {offsets = [0, 64], sizes = [8, 32], strides = [1, 1]} : vector<8x96xf32> to vector<8x32xf32>
    %1065 = vector.extract_strided_slice %1055 {offsets = [0, 96], sizes = [8, 32], strides = [1, 1]} : vector<8x128xf32> to vector<8x32xf32>
    %1066 = math.tanh %1065 : vector<8x32xf32>
    %1067 = arith.mulf %1063, %1043 : vector<8x32xf32>
    %1068 = arith.mulf %1062, %1066 : vector<8x32xf32>
    %1069 = arith.addf %1067, %1068 : vector<8x32xf32>
    %1070 = math.tanh %1069 : vector<8x32xf32>
    %1071 = arith.mulf %1064, %1070 : vector<8x32xf32>
    %1072 = arith.index_cast %c12_i32_256 : i32 to index
    %c0_261 = arith.constant 0 : index
    %c0_262 = arith.constant 0 : index
    %1073 = vector.load %arg14[%1072, %c0_261, %c0_262] : memref<30x8x32xf32, #tpu.memory_space<vmem>>, vector<1x8x32xf32>
    %1074 = vector.shape_cast %1073 : vector<1x8x32xf32> to vector<8x32xf32>
    %1075 = vector.shape_cast %1071 : vector<8x32xf32> to vector<1x8x32xf32>
    tpu.vector_store %arg14[%1072, %c0_261, %c0_262], %1075 {strides = array<i32>} : memref<30x8x32xf32, #tpu.memory_space<vmem>>, vector<1x8x32xf32>,
    %c13_i32_263 = arith.constant 13 : i32
    %c8_i32_264 = arith.constant 8 : i32
    %1076 = arith.muli %c13_i32_263, %c8_i32_264 : i32
    %1077 = tpu.assume_multiple %1076, 8 : i32
    %1078 = arith.index_cast %1077 : i32 to index
    %c0_265 = arith.constant 0 : index
    %1079 = vector.load %arg13[%1078, %c0_265] : memref<240x128xf32, #tpu.memory_space<vmem>>, vector<8x128xf32>
    %cst_266 = arith.constant dense<0.000000e+00> : vector<8x128xf32>
    %1080 = tpu.matmul %1071, %731, %cst_266 {dimension_numbers = #tpu.dot_dimension_numbers<[1], [0], [0], [1], [0, 0, 1, 1], [], []>} : vector<8x32xf32>, vector<32x128xf32>, vector<8x128xf32> -> vector<8x128xf32>
    %1081 = arith.addf %1079, %1080 : vector<8x128xf32>
    %1082 = vector.extract_strided_slice %1081 {offsets = [0, 0], sizes = [8, 96], strides = [1, 1]} : vector<8x128xf32> to vector<8x96xf32>
    %1083 = arith.negf %1082 : vector<8x96xf32>
    %1084 = math.exp %1083 : vector<8x96xf32>
    %cst_267 = arith.constant 1.000000e+00 : f32
    %1085 = vector.broadcast %cst_267 : f32 to vector<8x96xf32>
    %1086 = arith.addf %1085, %1084 : vector<8x96xf32>
    %1087 = arith.divf %1085, %1086 : vector<8x96xf32>
    %1088 = vector.extract_strided_slice %1087 {offsets = [0, 0], sizes = [8, 32], strides = [1, 1]} : vector<8x96xf32> to vector<8x32xf32>
    %1089 = vector.extract_strided_slice %1087 {offsets = [0, 32], sizes = [8, 32], strides = [1, 1]} : vector<8x96xf32> to vector<8x32xf32>
    %1090 = vector.extract_strided_slice %1087 {offsets = [0, 64], sizes = [8, 32], strides = [1, 1]} : vector<8x96xf32> to vector<8x32xf32>
    %1091 = vector.extract_strided_slice %1081 {offsets = [0, 96], sizes = [8, 32], strides = [1, 1]} : vector<8x128xf32> to vector<8x32xf32>
    %1092 = math.tanh %1091 : vector<8x32xf32>
    %1093 = arith.mulf %1089, %1069 : vector<8x32xf32>
    %1094 = arith.mulf %1088, %1092 : vector<8x32xf32>
    %1095 = arith.addf %1093, %1094 : vector<8x32xf32>
    %1096 = math.tanh %1095 : vector<8x32xf32>
    %1097 = arith.mulf %1090, %1096 : vector<8x32xf32>
    %1098 = arith.index_cast %c13_i32_263 : i32 to index
    %c0_268 = arith.constant 0 : index
    %c0_269 = arith.constant 0 : index
    %1099 = vector.load %arg14[%1098, %c0_268, %c0_269] : memref<30x8x32xf32, #tpu.memory_space<vmem>>, vector<1x8x32xf32>
    %1100 = vector.shape_cast %1099 : vector<1x8x32xf32> to vector<8x32xf32>
    %1101 = vector.shape_cast %1097 : vector<8x32xf32> to vector<1x8x32xf32>
    tpu.vector_store %arg14[%1098, %c0_268, %c0_269], %1101 {strides = array<i32>} : memref<30x8x32xf32, #tpu.memory_space<vmem>>, vector<1x8x32xf32>,
    %c14_i32_270 = arith.constant 14 : i32
    %c8_i32_271 = arith.constant 8 : i32
    %1102 = arith.muli %c14_i32_270, %c8_i32_271 : i32
    %1103 = tpu.assume_multiple %1102, 8 : i32
    %1104 = arith.index_cast %1103 : i32 to index
    %c0_272 = arith.constant 0 : index
    %1105 = vector.load %arg13[%1104, %c0_272] : memref<240x128xf32, #tpu.memory_space<vmem>>, vector<8x128xf32>
    %cst_273 = arith.constant dense<0.000000e+00> : vector<8x128xf32>
    %1106 = tpu.matmul %1097, %731, %cst_273 {dimension_numbers = #tpu.dot_dimension_numbers<[1], [0], [0], [1], [0, 0, 1, 1], [], []>} : vector<8x32xf32>, vector<32x128xf32>, vector<8x128xf32> -> vector<8x128xf32>
    %1107 = arith.addf %1105, %1106 : vector<8x128xf32>
    %1108 = vector.extract_strided_slice %1107 {offsets = [0, 0], sizes = [8, 96], strides = [1, 1]} : vector<8x128xf32> to vector<8x96xf32>
    %1109 = arith.negf %1108 : vector<8x96xf32>
    %1110 = math.exp %1109 : vector<8x96xf32>
    %cst_274 = arith.constant 1.000000e+00 : f32
    %1111 = vector.broadcast %cst_274 : f32 to vector<8x96xf32>
    %1112 = arith.addf %1111, %1110 : vector<8x96xf32>
    %1113 = arith.divf %1111, %1112 : vector<8x96xf32>
    %1114 = vector.extract_strided_slice %1113 {offsets = [0, 0], sizes = [8, 32], strides = [1, 1]} : vector<8x96xf32> to vector<8x32xf32>
    %1115 = vector.extract_strided_slice %1113 {offsets = [0, 32], sizes = [8, 32], strides = [1, 1]} : vector<8x96xf32> to vector<8x32xf32>
    %1116 = vector.extract_strided_slice %1113 {offsets = [0, 64], sizes = [8, 32], strides = [1, 1]} : vector<8x96xf32> to vector<8x32xf32>
    %1117 = vector.extract_strided_slice %1107 {offsets = [0, 96], sizes = [8, 32], strides = [1, 1]} : vector<8x128xf32> to vector<8x32xf32>
    %1118 = math.tanh %1117 : vector<8x32xf32>
    %1119 = arith.mulf %1115, %1095 : vector<8x32xf32>
    %1120 = arith.mulf %1114, %1118 : vector<8x32xf32>
    %1121 = arith.addf %1119, %1120 : vector<8x32xf32>
    %1122 = math.tanh %1121 : vector<8x32xf32>
    %1123 = arith.mulf %1116, %1122 : vector<8x32xf32>
    %1124 = arith.index_cast %c14_i32_270 : i32 to index
    %c0_275 = arith.constant 0 : index
    %c0_276 = arith.constant 0 : index
    %1125 = vector.load %arg14[%1124, %c0_275, %c0_276] : memref<30x8x32xf32, #tpu.memory_space<vmem>>, vector<1x8x32xf32>
    %1126 = vector.shape_cast %1125 : vector<1x8x32xf32> to vector<8x32xf32>
    %1127 = vector.shape_cast %1123 : vector<8x32xf32> to vector<1x8x32xf32>
    tpu.vector_store %arg14[%1124, %c0_275, %c0_276], %1127 {strides = array<i32>} : memref<30x8x32xf32, #tpu.memory_space<vmem>>, vector<1x8x32xf32>,
    %c15_i32_277 = arith.constant 15 : i32
    %c8_i32_278 = arith.constant 8 : i32
    %1128 = arith.muli %c15_i32_277, %c8_i32_278 : i32
    %1129 = tpu.assume_multiple %1128, 8 : i32
    %1130 = arith.index_cast %1129 : i32 to index
    %c0_279 = arith.constant 0 : index
    %1131 = vector.load %arg13[%1130, %c0_279] : memref<240x128xf32, #tpu.memory_space<vmem>>, vector<8x128xf32>
    %cst_280 = arith.constant dense<0.000000e+00> : vector<8x128xf32>
    %1132 = tpu.matmul %1123, %731, %cst_280 {dimension_numbers = #tpu.dot_dimension_numbers<[1], [0], [0], [1], [0, 0, 1, 1], [], []>} : vector<8x32xf32>, vector<32x128xf32>, vector<8x128xf32> -> vector<8x128xf32>
    %1133 = arith.addf %1131, %1132 : vector<8x128xf32>
    %1134 = vector.extract_strided_slice %1133 {offsets = [0, 0], sizes = [8, 96], strides = [1, 1]} : vector<8x128xf32> to vector<8x96xf32>
    %1135 = arith.negf %1134 : vector<8x96xf32>
    %1136 = math.exp %1135 : vector<8x96xf32>
    %cst_281 = arith.constant 1.000000e+00 : f32
    %1137 = vector.broadcast %cst_281 : f32 to vector<8x96xf32>
    %1138 = arith.addf %1137, %1136 : vector<8x96xf32>
    %1139 = arith.divf %1137, %1138 : vector<8x96xf32>
    %1140 = vector.extract_strided_slice %1139 {offsets = [0, 0], sizes = [8, 32], strides = [1, 1]} : vector<8x96xf32> to vector<8x32xf32>
    %1141 = vector.extract_strided_slice %1139 {offsets = [0, 32], sizes = [8, 32], strides = [1, 1]} : vector<8x96xf32> to vector<8x32xf32>
    %1142 = vector.extract_strided_slice %1139 {offsets = [0, 64], sizes = [8, 32], strides = [1, 1]} : vector<8x96xf32> to vector<8x32xf32>
    %1143 = vector.extract_strided_slice %1133 {offsets = [0, 96], sizes = [8, 32], strides = [1, 1]} : vector<8x128xf32> to vector<8x32xf32>
    %1144 = math.tanh %1143 : vector<8x32xf32>
    %1145 = arith.mulf %1141, %1121 : vector<8x32xf32>
    %1146 = arith.mulf %1140, %1144 : vector<8x32xf32>
    %1147 = arith.addf %1145, %1146 : vector<8x32xf32>
    %1148 = math.tanh %1147 : vector<8x32xf32>
    %1149 = arith.mulf %1142, %1148 : vector<8x32xf32>
    %1150 = arith.index_cast %c15_i32_277 : i32 to index
    %c0_282 = arith.constant 0 : index
    %c0_283 = arith.constant 0 : index
    %1151 = vector.load %arg14[%1150, %c0_282, %c0_283] : memref<30x8x32xf32, #tpu.memory_space<vmem>>, vector<1x8x32xf32>
    %1152 = vector.shape_cast %1151 : vector<1x8x32xf32> to vector<8x32xf32>
    %1153 = vector.shape_cast %1149 : vector<8x32xf32> to vector<1x8x32xf32>
    tpu.vector_store %arg14[%1150, %c0_282, %c0_283], %1153 {strides = array<i32>} : memref<30x8x32xf32, #tpu.memory_space<vmem>>, vector<1x8x32xf32>,
    %c16_i32_284 = arith.constant 16 : i32
    %c8_i32_285 = arith.constant 8 : i32
    %1154 = arith.muli %c16_i32_284, %c8_i32_285 : i32
    %1155 = tpu.assume_multiple %1154, 8 : i32
    %1156 = arith.index_cast %1155 : i32 to index
    %c0_286 = arith.constant 0 : index
    %1157 = vector.load %arg13[%1156, %c0_286] : memref<240x128xf32, #tpu.memory_space<vmem>>, vector<8x128xf32>
    %cst_287 = arith.constant dense<0.000000e+00> : vector<8x128xf32>
    %1158 = tpu.matmul %1149, %731, %cst_287 {dimension_numbers = #tpu.dot_dimension_numbers<[1], [0], [0], [1], [0, 0, 1, 1], [], []>} : vector<8x32xf32>, vector<32x128xf32>, vector<8x128xf32> -> vector<8x128xf32>
    %1159 = arith.addf %1157, %1158 : vector<8x128xf32>
    %1160 = vector.extract_strided_slice %1159 {offsets = [0, 0], sizes = [8, 96], strides = [1, 1]} : vector<8x128xf32> to vector<8x96xf32>
    %1161 = arith.negf %1160 : vector<8x96xf32>
    %1162 = math.exp %1161 : vector<8x96xf32>
    %cst_288 = arith.constant 1.000000e+00 : f32
    %1163 = vector.broadcast %cst_288 : f32 to vector<8x96xf32>
    %1164 = arith.addf %1163, %1162 : vector<8x96xf32>
    %1165 = arith.divf %1163, %1164 : vector<8x96xf32>
    %1166 = vector.extract_strided_slice %1165 {offsets = [0, 0], sizes = [8, 32], strides = [1, 1]} : vector<8x96xf32> to vector<8x32xf32>
    %1167 = vector.extract_strided_slice %1165 {offsets = [0, 32], sizes = [8, 32], strides = [1, 1]} : vector<8x96xf32> to vector<8x32xf32>
    %1168 = vector.extract_strided_slice %1165 {offsets = [0, 64], sizes = [8, 32], strides = [1, 1]} : vector<8x96xf32> to vector<8x32xf32>
    %1169 = vector.extract_strided_slice %1159 {offsets = [0, 96], sizes = [8, 32], strides = [1, 1]} : vector<8x128xf32> to vector<8x32xf32>
    %1170 = math.tanh %1169 : vector<8x32xf32>
    %1171 = arith.mulf %1167, %1147 : vector<8x32xf32>
    %1172 = arith.mulf %1166, %1170 : vector<8x32xf32>
    %1173 = arith.addf %1171, %1172 : vector<8x32xf32>
    %1174 = math.tanh %1173 : vector<8x32xf32>
    %1175 = arith.mulf %1168, %1174 : vector<8x32xf32>
    %1176 = arith.index_cast %c16_i32_284 : i32 to index
    %c0_289 = arith.constant 0 : index
    %c0_290 = arith.constant 0 : index
    %1177 = vector.load %arg14[%1176, %c0_289, %c0_290] : memref<30x8x32xf32, #tpu.memory_space<vmem>>, vector<1x8x32xf32>
    %1178 = vector.shape_cast %1177 : vector<1x8x32xf32> to vector<8x32xf32>
    %1179 = vector.shape_cast %1175 : vector<8x32xf32> to vector<1x8x32xf32>
    tpu.vector_store %arg14[%1176, %c0_289, %c0_290], %1179 {strides = array<i32>} : memref<30x8x32xf32, #tpu.memory_space<vmem>>, vector<1x8x32xf32>,
    %c17_i32_291 = arith.constant 17 : i32
    %c8_i32_292 = arith.constant 8 : i32
    %1180 = arith.muli %c17_i32_291, %c8_i32_292 : i32
    %1181 = tpu.assume_multiple %1180, 8 : i32
    %1182 = arith.index_cast %1181 : i32 to index
    %c0_293 = arith.constant 0 : index
    %1183 = vector.load %arg13[%1182, %c0_293] : memref<240x128xf32, #tpu.memory_space<vmem>>, vector<8x128xf32>
    %cst_294 = arith.constant dense<0.000000e+00> : vector<8x128xf32>
    %1184 = tpu.matmul %1175, %731, %cst_294 {dimension_numbers = #tpu.dot_dimension_numbers<[1], [0], [0], [1], [0, 0, 1, 1], [], []>} : vector<8x32xf32>, vector<32x128xf32>, vector<8x128xf32> -> vector<8x128xf32>
    %1185 = arith.addf %1183, %1184 : vector<8x128xf32>
    %1186 = vector.extract_strided_slice %1185 {offsets = [0, 0], sizes = [8, 96], strides = [1, 1]} : vector<8x128xf32> to vector<8x96xf32>
    %1187 = arith.negf %1186 : vector<8x96xf32>
    %1188 = math.exp %1187 : vector<8x96xf32>
    %cst_295 = arith.constant 1.000000e+00 : f32
    %1189 = vector.broadcast %cst_295 : f32 to vector<8x96xf32>
    %1190 = arith.addf %1189, %1188 : vector<8x96xf32>
    %1191 = arith.divf %1189, %1190 : vector<8x96xf32>
    %1192 = vector.extract_strided_slice %1191 {offsets = [0, 0], sizes = [8, 32], strides = [1, 1]} : vector<8x96xf32> to vector<8x32xf32>
    %1193 = vector.extract_strided_slice %1191 {offsets = [0, 32], sizes = [8, 32], strides = [1, 1]} : vector<8x96xf32> to vector<8x32xf32>
    %1194 = vector.extract_strided_slice %1191 {offsets = [0, 64], sizes = [8, 32], strides = [1, 1]} : vector<8x96xf32> to vector<8x32xf32>
    %1195 = vector.extract_strided_slice %1185 {offsets = [0, 96], sizes = [8, 32], strides = [1, 1]} : vector<8x128xf32> to vector<8x32xf32>
    %1196 = math.tanh %1195 : vector<8x32xf32>
    %1197 = arith.mulf %1193, %1173 : vector<8x32xf32>
    %1198 = arith.mulf %1192, %1196 : vector<8x32xf32>
    %1199 = arith.addf %1197, %1198 : vector<8x32xf32>
    %1200 = math.tanh %1199 : vector<8x32xf32>
    %1201 = arith.mulf %1194, %1200 : vector<8x32xf32>
    %1202 = arith.index_cast %c17_i32_291 : i32 to index
    %c0_296 = arith.constant 0 : index
    %c0_297 = arith.constant 0 : index
    %1203 = vector.load %arg14[%1202, %c0_296, %c0_297] : memref<30x8x32xf32, #tpu.memory_space<vmem>>, vector<1x8x32xf32>
    %1204 = vector.shape_cast %1203 : vector<1x8x32xf32> to vector<8x32xf32>
    %1205 = vector.shape_cast %1201 : vector<8x32xf32> to vector<1x8x32xf32>
    tpu.vector_store %arg14[%1202, %c0_296, %c0_297], %1205 {strides = array<i32>} : memref<30x8x32xf32, #tpu.memory_space<vmem>>, vector<1x8x32xf32>,
    %c18_i32_298 = arith.constant 18 : i32
    %c8_i32_299 = arith.constant 8 : i32
    %1206 = arith.muli %c18_i32_298, %c8_i32_299 : i32
    %1207 = tpu.assume_multiple %1206, 8 : i32
    %1208 = arith.index_cast %1207 : i32 to index
    %c0_300 = arith.constant 0 : index
    %1209 = vector.load %arg13[%1208, %c0_300] : memref<240x128xf32, #tpu.memory_space<vmem>>, vector<8x128xf32>
    %cst_301 = arith.constant dense<0.000000e+00> : vector<8x128xf32>
    %1210 = tpu.matmul %1201, %731, %cst_301 {dimension_numbers = #tpu.dot_dimension_numbers<[1], [0], [0], [1], [0, 0, 1, 1], [], []>} : vector<8x32xf32>, vector<32x128xf32>, vector<8x128xf32> -> vector<8x128xf32>
    %1211 = arith.addf %1209, %1210 : vector<8x128xf32>
    %1212 = vector.extract_strided_slice %1211 {offsets = [0, 0], sizes = [8, 96], strides = [1, 1]} : vector<8x128xf32> to vector<8x96xf32>
    %1213 = arith.negf %1212 : vector<8x96xf32>
    %1214 = math.exp %1213 : vector<8x96xf32>
    %cst_302 = arith.constant 1.000000e+00 : f32
    %1215 = vector.broadcast %cst_302 : f32 to vector<8x96xf32>
    %1216 = arith.addf %1215, %1214 : vector<8x96xf32>
    %1217 = arith.divf %1215, %1216 : vector<8x96xf32>
    %1218 = vector.extract_strided_slice %1217 {offsets = [0, 0], sizes = [8, 32], strides = [1, 1]} : vector<8x96xf32> to vector<8x32xf32>
    %1219 = vector.extract_strided_slice %1217 {offsets = [0, 32], sizes = [8, 32], strides = [1, 1]} : vector<8x96xf32> to vector<8x32xf32>
    %1220 = vector.extract_strided_slice %1217 {offsets = [0, 64], sizes = [8, 32], strides = [1, 1]} : vector<8x96xf32> to vector<8x32xf32>
    %1221 = vector.extract_strided_slice %1211 {offsets = [0, 96], sizes = [8, 32], strides = [1, 1]} : vector<8x128xf32> to vector<8x32xf32>
    %1222 = math.tanh %1221 : vector<8x32xf32>
    %1223 = arith.mulf %1219, %1199 : vector<8x32xf32>
    %1224 = arith.mulf %1218, %1222 : vector<8x32xf32>
    %1225 = arith.addf %1223, %1224 : vector<8x32xf32>
    %1226 = math.tanh %1225 : vector<8x32xf32>
    %1227 = arith.mulf %1220, %1226 : vector<8x32xf32>
    %1228 = arith.index_cast %c18_i32_298 : i32 to index
    %c0_303 = arith.constant 0 : index
    %c0_304 = arith.constant 0 : index
    %1229 = vector.load %arg14[%1228, %c0_303, %c0_304] : memref<30x8x32xf32, #tpu.memory_space<vmem>>, vector<1x8x32xf32>
    %1230 = vector.shape_cast %1229 : vector<1x8x32xf32> to vector<8x32xf32>
    %1231 = vector.shape_cast %1227 : vector<8x32xf32> to vector<1x8x32xf32>
    tpu.vector_store %arg14[%1228, %c0_303, %c0_304], %1231 {strides = array<i32>} : memref<30x8x32xf32, #tpu.memory_space<vmem>>, vector<1x8x32xf32>,
    %c19_i32_305 = arith.constant 19 : i32
    %c8_i32_306 = arith.constant 8 : i32
    %1232 = arith.muli %c19_i32_305, %c8_i32_306 : i32
    %1233 = tpu.assume_multiple %1232, 8 : i32
    %1234 = arith.index_cast %1233 : i32 to index
    %c0_307 = arith.constant 0 : index
    %1235 = vector.load %arg13[%1234, %c0_307] : memref<240x128xf32, #tpu.memory_space<vmem>>, vector<8x128xf32>
    %cst_308 = arith.constant dense<0.000000e+00> : vector<8x128xf32>
    %1236 = tpu.matmul %1227, %731, %cst_308 {dimension_numbers = #tpu.dot_dimension_numbers<[1], [0], [0], [1], [0, 0, 1, 1], [], []>} : vector<8x32xf32>, vector<32x128xf32>, vector<8x128xf32> -> vector<8x128xf32>
    %1237 = arith.addf %1235, %1236 : vector<8x128xf32>
    %1238 = vector.extract_strided_slice %1237 {offsets = [0, 0], sizes = [8, 96], strides = [1, 1]} : vector<8x128xf32> to vector<8x96xf32>
    %1239 = arith.negf %1238 : vector<8x96xf32>
    %1240 = math.exp %1239 : vector<8x96xf32>
    %cst_309 = arith.constant 1.000000e+00 : f32
    %1241 = vector.broadcast %cst_309 : f32 to vector<8x96xf32>
    %1242 = arith.addf %1241, %1240 : vector<8x96xf32>
    %1243 = arith.divf %1241, %1242 : vector<8x96xf32>
    %1244 = vector.extract_strided_slice %1243 {offsets = [0, 0], sizes = [8, 32], strides = [1, 1]} : vector<8x96xf32> to vector<8x32xf32>
    %1245 = vector.extract_strided_slice %1243 {offsets = [0, 32], sizes = [8, 32], strides = [1, 1]} : vector<8x96xf32> to vector<8x32xf32>
    %1246 = vector.extract_strided_slice %1243 {offsets = [0, 64], sizes = [8, 32], strides = [1, 1]} : vector<8x96xf32> to vector<8x32xf32>
    %1247 = vector.extract_strided_slice %1237 {offsets = [0, 96], sizes = [8, 32], strides = [1, 1]} : vector<8x128xf32> to vector<8x32xf32>
    %1248 = math.tanh %1247 : vector<8x32xf32>
    %1249 = arith.mulf %1245, %1225 : vector<8x32xf32>
    %1250 = arith.mulf %1244, %1248 : vector<8x32xf32>
    %1251 = arith.addf %1249, %1250 : vector<8x32xf32>
    %1252 = math.tanh %1251 : vector<8x32xf32>
    %1253 = arith.mulf %1246, %1252 : vector<8x32xf32>
    %1254 = arith.index_cast %c19_i32_305 : i32 to index
    %c0_310 = arith.constant 0 : index
    %c0_311 = arith.constant 0 : index
    %1255 = vector.load %arg14[%1254, %c0_310, %c0_311] : memref<30x8x32xf32, #tpu.memory_space<vmem>>, vector<1x8x32xf32>
    %1256 = vector.shape_cast %1255 : vector<1x8x32xf32> to vector<8x32xf32>
    %1257 = vector.shape_cast %1253 : vector<8x32xf32> to vector<1x8x32xf32>
    tpu.vector_store %arg14[%1254, %c0_310, %c0_311], %1257 {strides = array<i32>} : memref<30x8x32xf32, #tpu.memory_space<vmem>>, vector<1x8x32xf32>,
    %c20_i32_312 = arith.constant 20 : i32
    %c8_i32_313 = arith.constant 8 : i32
    %1258 = arith.muli %c20_i32_312, %c8_i32_313 : i32
    %1259 = tpu.assume_multiple %1258, 8 : i32
    %1260 = arith.index_cast %1259 : i32 to index
    %c0_314 = arith.constant 0 : index
    %1261 = vector.load %arg13[%1260, %c0_314] : memref<240x128xf32, #tpu.memory_space<vmem>>, vector<8x128xf32>
    %cst_315 = arith.constant dense<0.000000e+00> : vector<8x128xf32>
    %1262 = tpu.matmul %1253, %731, %cst_315 {dimension_numbers = #tpu.dot_dimension_numbers<[1], [0], [0], [1], [0, 0, 1, 1], [], []>} : vector<8x32xf32>, vector<32x128xf32>, vector<8x128xf32> -> vector<8x128xf32>
    %1263 = arith.addf %1261, %1262 : vector<8x128xf32>
    %1264 = vector.extract_strided_slice %1263 {offsets = [0, 0], sizes = [8, 96], strides = [1, 1]} : vector<8x128xf32> to vector<8x96xf32>
    %1265 = arith.negf %1264 : vector<8x96xf32>
    %1266 = math.exp %1265 : vector<8x96xf32>
    %cst_316 = arith.constant 1.000000e+00 : f32
    %1267 = vector.broadcast %cst_316 : f32 to vector<8x96xf32>
    %1268 = arith.addf %1267, %1266 : vector<8x96xf32>
    %1269 = arith.divf %1267, %1268 : vector<8x96xf32>
    %1270 = vector.extract_strided_slice %1269 {offsets = [0, 0], sizes = [8, 32], strides = [1, 1]} : vector<8x96xf32> to vector<8x32xf32>
    %1271 = vector.extract_strided_slice %1269 {offsets = [0, 32], sizes = [8, 32], strides = [1, 1]} : vector<8x96xf32> to vector<8x32xf32>
    %1272 = vector.extract_strided_slice %1269 {offsets = [0, 64], sizes = [8, 32], strides = [1, 1]} : vector<8x96xf32> to vector<8x32xf32>
    %1273 = vector.extract_strided_slice %1263 {offsets = [0, 96], sizes = [8, 32], strides = [1, 1]} : vector<8x128xf32> to vector<8x32xf32>
    %1274 = math.tanh %1273 : vector<8x32xf32>
    %1275 = arith.mulf %1271, %1251 : vector<8x32xf32>
    %1276 = arith.mulf %1270, %1274 : vector<8x32xf32>
    %1277 = arith.addf %1275, %1276 : vector<8x32xf32>
    %1278 = math.tanh %1277 : vector<8x32xf32>
    %1279 = arith.mulf %1272, %1278 : vector<8x32xf32>
    %1280 = arith.index_cast %c20_i32_312 : i32 to index
    %c0_317 = arith.constant 0 : index
    %c0_318 = arith.constant 0 : index
    %1281 = vector.load %arg14[%1280, %c0_317, %c0_318] : memref<30x8x32xf32, #tpu.memory_space<vmem>>, vector<1x8x32xf32>
    %1282 = vector.shape_cast %1281 : vector<1x8x32xf32> to vector<8x32xf32>
    %1283 = vector.shape_cast %1279 : vector<8x32xf32> to vector<1x8x32xf32>
    tpu.vector_store %arg14[%1280, %c0_317, %c0_318], %1283 {strides = array<i32>} : memref<30x8x32xf32, #tpu.memory_space<vmem>>, vector<1x8x32xf32>,
    %c21_i32_319 = arith.constant 21 : i32
    %c8_i32_320 = arith.constant 8 : i32
    %1284 = arith.muli %c21_i32_319, %c8_i32_320 : i32
    %1285 = tpu.assume_multiple %1284, 8 : i32
    %1286 = arith.index_cast %1285 : i32 to index
    %c0_321 = arith.constant 0 : index
    %1287 = vector.load %arg13[%1286, %c0_321] : memref<240x128xf32, #tpu.memory_space<vmem>>, vector<8x128xf32>
    %cst_322 = arith.constant dense<0.000000e+00> : vector<8x128xf32>
    %1288 = tpu.matmul %1279, %731, %cst_322 {dimension_numbers = #tpu.dot_dimension_numbers<[1], [0], [0], [1], [0, 0, 1, 1], [], []>} : vector<8x32xf32>, vector<32x128xf32>, vector<8x128xf32> -> vector<8x128xf32>
    %1289 = arith.addf %1287, %1288 : vector<8x128xf32>
    %1290 = vector.extract_strided_slice %1289 {offsets = [0, 0], sizes = [8, 96], strides = [1, 1]} : vector<8x128xf32> to vector<8x96xf32>
    %1291 = arith.negf %1290 : vector<8x96xf32>
    %1292 = math.exp %1291 : vector<8x96xf32>
    %cst_323 = arith.constant 1.000000e+00 : f32
    %1293 = vector.broadcast %cst_323 : f32 to vector<8x96xf32>
    %1294 = arith.addf %1293, %1292 : vector<8x96xf32>
    %1295 = arith.divf %1293, %1294 : vector<8x96xf32>
    %1296 = vector.extract_strided_slice %1295 {offsets = [0, 0], sizes = [8, 32], strides = [1, 1]} : vector<8x96xf32> to vector<8x32xf32>
    %1297 = vector.extract_strided_slice %1295 {offsets = [0, 32], sizes = [8, 32], strides = [1, 1]} : vector<8x96xf32> to vector<8x32xf32>
    %1298 = vector.extract_strided_slice %1295 {offsets = [0, 64], sizes = [8, 32], strides = [1, 1]} : vector<8x96xf32> to vector<8x32xf32>
    %1299 = vector.extract_strided_slice %1289 {offsets = [0, 96], sizes = [8, 32], strides = [1, 1]} : vector<8x128xf32> to vector<8x32xf32>
    %1300 = math.tanh %1299 : vector<8x32xf32>
    %1301 = arith.mulf %1297, %1277 : vector<8x32xf32>
    %1302 = arith.mulf %1296, %1300 : vector<8x32xf32>
    %1303 = arith.addf %1301, %1302 : vector<8x32xf32>
    %1304 = math.tanh %1303 : vector<8x32xf32>
    %1305 = arith.mulf %1298, %1304 : vector<8x32xf32>
    %1306 = arith.index_cast %c21_i32_319 : i32 to index
    %c0_324 = arith.constant 0 : index
    %c0_325 = arith.constant 0 : index
    %1307 = vector.load %arg14[%1306, %c0_324, %c0_325] : memref<30x8x32xf32, #tpu.memory_space<vmem>>, vector<1x8x32xf32>
    %1308 = vector.shape_cast %1307 : vector<1x8x32xf32> to vector<8x32xf32>
    %1309 = vector.shape_cast %1305 : vector<8x32xf32> to vector<1x8x32xf32>
    tpu.vector_store %arg14[%1306, %c0_324, %c0_325], %1309 {strides = array<i32>} : memref<30x8x32xf32, #tpu.memory_space<vmem>>, vector<1x8x32xf32>,
    %c22_i32_326 = arith.constant 22 : i32
    %c8_i32_327 = arith.constant 8 : i32
    %1310 = arith.muli %c22_i32_326, %c8_i32_327 : i32
    %1311 = tpu.assume_multiple %1310, 8 : i32
    %1312 = arith.index_cast %1311 : i32 to index
    %c0_328 = arith.constant 0 : index
    %1313 = vector.load %arg13[%1312, %c0_328] : memref<240x128xf32, #tpu.memory_space<vmem>>, vector<8x128xf32>
    %cst_329 = arith.constant dense<0.000000e+00> : vector<8x128xf32>
    %1314 = tpu.matmul %1305, %731, %cst_329 {dimension_numbers = #tpu.dot_dimension_numbers<[1], [0], [0], [1], [0, 0, 1, 1], [], []>} : vector<8x32xf32>, vector<32x128xf32>, vector<8x128xf32> -> vector<8x128xf32>
    %1315 = arith.addf %1313, %1314 : vector<8x128xf32>
    %1316 = vector.extract_strided_slice %1315 {offsets = [0, 0], sizes = [8, 96], strides = [1, 1]} : vector<8x128xf32> to vector<8x96xf32>
    %1317 = arith.negf %1316 : vector<8x96xf32>
    %1318 = math.exp %1317 : vector<8x96xf32>
    %cst_330 = arith.constant 1.000000e+00 : f32
    %1319 = vector.broadcast %cst_330 : f32 to vector<8x96xf32>
    %1320 = arith.addf %1319, %1318 : vector<8x96xf32>
    %1321 = arith.divf %1319, %1320 : vector<8x96xf32>
    %1322 = vector.extract_strided_slice %1321 {offsets = [0, 0], sizes = [8, 32], strides = [1, 1]} : vector<8x96xf32> to vector<8x32xf32>
    %1323 = vector.extract_strided_slice %1321 {offsets = [0, 32], sizes = [8, 32], strides = [1, 1]} : vector<8x96xf32> to vector<8x32xf32>
    %1324 = vector.extract_strided_slice %1321 {offsets = [0, 64], sizes = [8, 32], strides = [1, 1]} : vector<8x96xf32> to vector<8x32xf32>
    %1325 = vector.extract_strided_slice %1315 {offsets = [0, 96], sizes = [8, 32], strides = [1, 1]} : vector<8x128xf32> to vector<8x32xf32>
    %1326 = math.tanh %1325 : vector<8x32xf32>
    %1327 = arith.mulf %1323, %1303 : vector<8x32xf32>
    %1328 = arith.mulf %1322, %1326 : vector<8x32xf32>
    %1329 = arith.addf %1327, %1328 : vector<8x32xf32>
    %1330 = math.tanh %1329 : vector<8x32xf32>
    %1331 = arith.mulf %1324, %1330 : vector<8x32xf32>
    %1332 = arith.index_cast %c22_i32_326 : i32 to index
    %c0_331 = arith.constant 0 : index
    %c0_332 = arith.constant 0 : index
    %1333 = vector.load %arg14[%1332, %c0_331, %c0_332] : memref<30x8x32xf32, #tpu.memory_space<vmem>>, vector<1x8x32xf32>
    %1334 = vector.shape_cast %1333 : vector<1x8x32xf32> to vector<8x32xf32>
    %1335 = vector.shape_cast %1331 : vector<8x32xf32> to vector<1x8x32xf32>
    tpu.vector_store %arg14[%1332, %c0_331, %c0_332], %1335 {strides = array<i32>} : memref<30x8x32xf32, #tpu.memory_space<vmem>>, vector<1x8x32xf32>,
    %c23_i32_333 = arith.constant 23 : i32
    %c8_i32_334 = arith.constant 8 : i32
    %1336 = arith.muli %c23_i32_333, %c8_i32_334 : i32
    %1337 = tpu.assume_multiple %1336, 8 : i32
    %1338 = arith.index_cast %1337 : i32 to index
    %c0_335 = arith.constant 0 : index
    %1339 = vector.load %arg13[%1338, %c0_335] : memref<240x128xf32, #tpu.memory_space<vmem>>, vector<8x128xf32>
    %cst_336 = arith.constant dense<0.000000e+00> : vector<8x128xf32>
    %1340 = tpu.matmul %1331, %731, %cst_336 {dimension_numbers = #tpu.dot_dimension_numbers<[1], [0], [0], [1], [0, 0, 1, 1], [], []>} : vector<8x32xf32>, vector<32x128xf32>, vector<8x128xf32> -> vector<8x128xf32>
    %1341 = arith.addf %1339, %1340 : vector<8x128xf32>
    %1342 = vector.extract_strided_slice %1341 {offsets = [0, 0], sizes = [8, 96], strides = [1, 1]} : vector<8x128xf32> to vector<8x96xf32>
    %1343 = arith.negf %1342 : vector<8x96xf32>
    %1344 = math.exp %1343 : vector<8x96xf32>
    %cst_337 = arith.constant 1.000000e+00 : f32
    %1345 = vector.broadcast %cst_337 : f32 to vector<8x96xf32>
    %1346 = arith.addf %1345, %1344 : vector<8x96xf32>
    %1347 = arith.divf %1345, %1346 : vector<8x96xf32>
    %1348 = vector.extract_strided_slice %1347 {offsets = [0, 0], sizes = [8, 32], strides = [1, 1]} : vector<8x96xf32> to vector<8x32xf32>
    %1349 = vector.extract_strided_slice %1347 {offsets = [0, 32], sizes = [8, 32], strides = [1, 1]} : vector<8x96xf32> to vector<8x32xf32>
    %1350 = vector.extract_strided_slice %1347 {offsets = [0, 64], sizes = [8, 32], strides = [1, 1]} : vector<8x96xf32> to vector<8x32xf32>
    %1351 = vector.extract_strided_slice %1341 {offsets = [0, 96], sizes = [8, 32], strides = [1, 1]} : vector<8x128xf32> to vector<8x32xf32>
    %1352 = math.tanh %1351 : vector<8x32xf32>
    %1353 = arith.mulf %1349, %1329 : vector<8x32xf32>
    %1354 = arith.mulf %1348, %1352 : vector<8x32xf32>
    %1355 = arith.addf %1353, %1354 : vector<8x32xf32>
    %1356 = math.tanh %1355 : vector<8x32xf32>
    %1357 = arith.mulf %1350, %1356 : vector<8x32xf32>
    %1358 = arith.index_cast %c23_i32_333 : i32 to index
    %c0_338 = arith.constant 0 : index
    %c0_339 = arith.constant 0 : index
    %1359 = vector.load %arg14[%1358, %c0_338, %c0_339] : memref<30x8x32xf32, #tpu.memory_space<vmem>>, vector<1x8x32xf32>
    %1360 = vector.shape_cast %1359 : vector<1x8x32xf32> to vector<8x32xf32>
    %1361 = vector.shape_cast %1357 : vector<8x32xf32> to vector<1x8x32xf32>
    tpu.vector_store %arg14[%1358, %c0_338, %c0_339], %1361 {strides = array<i32>} : memref<30x8x32xf32, #tpu.memory_space<vmem>>, vector<1x8x32xf32>,
    %c24_i32_340 = arith.constant 24 : i32
    %c8_i32_341 = arith.constant 8 : i32
    %1362 = arith.muli %c24_i32_340, %c8_i32_341 : i32
    %1363 = tpu.assume_multiple %1362, 8 : i32
    %1364 = arith.index_cast %1363 : i32 to index
    %c0_342 = arith.constant 0 : index
    %1365 = vector.load %arg13[%1364, %c0_342] : memref<240x128xf32, #tpu.memory_space<vmem>>, vector<8x128xf32>
    %cst_343 = arith.constant dense<0.000000e+00> : vector<8x128xf32>
    %1366 = tpu.matmul %1357, %731, %cst_343 {dimension_numbers = #tpu.dot_dimension_numbers<[1], [0], [0], [1], [0, 0, 1, 1], [], []>} : vector<8x32xf32>, vector<32x128xf32>, vector<8x128xf32> -> vector<8x128xf32>
    %1367 = arith.addf %1365, %1366 : vector<8x128xf32>
    %1368 = vector.extract_strided_slice %1367 {offsets = [0, 0], sizes = [8, 96], strides = [1, 1]} : vector<8x128xf32> to vector<8x96xf32>
    %1369 = arith.negf %1368 : vector<8x96xf32>
    %1370 = math.exp %1369 : vector<8x96xf32>
    %cst_344 = arith.constant 1.000000e+00 : f32
    %1371 = vector.broadcast %cst_344 : f32 to vector<8x96xf32>
    %1372 = arith.addf %1371, %1370 : vector<8x96xf32>
    %1373 = arith.divf %1371, %1372 : vector<8x96xf32>
    %1374 = vector.extract_strided_slice %1373 {offsets = [0, 0], sizes = [8, 32], strides = [1, 1]} : vector<8x96xf32> to vector<8x32xf32>
    %1375 = vector.extract_strided_slice %1373 {offsets = [0, 32], sizes = [8, 32], strides = [1, 1]} : vector<8x96xf32> to vector<8x32xf32>
    %1376 = vector.extract_strided_slice %1373 {offsets = [0, 64], sizes = [8, 32], strides = [1, 1]} : vector<8x96xf32> to vector<8x32xf32>
    %1377 = vector.extract_strided_slice %1367 {offsets = [0, 96], sizes = [8, 32], strides = [1, 1]} : vector<8x128xf32> to vector<8x32xf32>
    %1378 = math.tanh %1377 : vector<8x32xf32>
    %1379 = arith.mulf %1375, %1355 : vector<8x32xf32>
    %1380 = arith.mulf %1374, %1378 : vector<8x32xf32>
    %1381 = arith.addf %1379, %1380 : vector<8x32xf32>
    %1382 = math.tanh %1381 : vector<8x32xf32>
    %1383 = arith.mulf %1376, %1382 : vector<8x32xf32>
    %1384 = arith.index_cast %c24_i32_340 : i32 to index
    %c0_345 = arith.constant 0 : index
    %c0_346 = arith.constant 0 : index
    %1385 = vector.load %arg14[%1384, %c0_345, %c0_346] : memref<30x8x32xf32, #tpu.memory_space<vmem>>, vector<1x8x32xf32>
    %1386 = vector.shape_cast %1385 : vector<1x8x32xf32> to vector<8x32xf32>
    %1387 = vector.shape_cast %1383 : vector<8x32xf32> to vector<1x8x32xf32>
    tpu.vector_store %arg14[%1384, %c0_345, %c0_346], %1387 {strides = array<i32>} : memref<30x8x32xf32, #tpu.memory_space<vmem>>, vector<1x8x32xf32>,
    %c25_i32_347 = arith.constant 25 : i32
    %c8_i32_348 = arith.constant 8 : i32
    %1388 = arith.muli %c25_i32_347, %c8_i32_348 : i32
    %1389 = tpu.assume_multiple %1388, 8 : i32
    %1390 = arith.index_cast %1389 : i32 to index
    %c0_349 = arith.constant 0 : index
    %1391 = vector.load %arg13[%1390, %c0_349] : memref<240x128xf32, #tpu.memory_space<vmem>>, vector<8x128xf32>
    %cst_350 = arith.constant dense<0.000000e+00> : vector<8x128xf32>
    %1392 = tpu.matmul %1383, %731, %cst_350 {dimension_numbers = #tpu.dot_dimension_numbers<[1], [0], [0], [1], [0, 0, 1, 1], [], []>} : vector<8x32xf32>, vector<32x128xf32>, vector<8x128xf32> -> vector<8x128xf32>
    %1393 = arith.addf %1391, %1392 : vector<8x128xf32>
    %1394 = vector.extract_strided_slice %1393 {offsets = [0, 0], sizes = [8, 96], strides = [1, 1]} : vector<8x128xf32> to vector<8x96xf32>
    %1395 = arith.negf %1394 : vector<8x96xf32>
    %1396 = math.exp %1395 : vector<8x96xf32>
    %cst_351 = arith.constant 1.000000e+00 : f32
    %1397 = vector.broadcast %cst_351 : f32 to vector<8x96xf32>
    %1398 = arith.addf %1397, %1396 : vector<8x96xf32>
    %1399 = arith.divf %1397, %1398 : vector<8x96xf32>
    %1400 = vector.extract_strided_slice %1399 {offsets = [0, 0], sizes = [8, 32], strides = [1, 1]} : vector<8x96xf32> to vector<8x32xf32>
    %1401 = vector.extract_strided_slice %1399 {offsets = [0, 32], sizes = [8, 32], strides = [1, 1]} : vector<8x96xf32> to vector<8x32xf32>
    %1402 = vector.extract_strided_slice %1399 {offsets = [0, 64], sizes = [8, 32], strides = [1, 1]} : vector<8x96xf32> to vector<8x32xf32>
    %1403 = vector.extract_strided_slice %1393 {offsets = [0, 96], sizes = [8, 32], strides = [1, 1]} : vector<8x128xf32> to vector<8x32xf32>
    %1404 = math.tanh %1403 : vector<8x32xf32>
    %1405 = arith.mulf %1401, %1381 : vector<8x32xf32>
    %1406 = arith.mulf %1400, %1404 : vector<8x32xf32>
    %1407 = arith.addf %1405, %1406 : vector<8x32xf32>
    %1408 = math.tanh %1407 : vector<8x32xf32>
    %1409 = arith.mulf %1402, %1408 : vector<8x32xf32>
    %1410 = arith.index_cast %c25_i32_347 : i32 to index
    %c0_352 = arith.constant 0 : index
    %c0_353 = arith.constant 0 : index
    %1411 = vector.load %arg14[%1410, %c0_352, %c0_353] : memref<30x8x32xf32, #tpu.memory_space<vmem>>, vector<1x8x32xf32>
    %1412 = vector.shape_cast %1411 : vector<1x8x32xf32> to vector<8x32xf32>
    %1413 = vector.shape_cast %1409 : vector<8x32xf32> to vector<1x8x32xf32>
    tpu.vector_store %arg14[%1410, %c0_352, %c0_353], %1413 {strides = array<i32>} : memref<30x8x32xf32, #tpu.memory_space<vmem>>, vector<1x8x32xf32>,
    %c26_i32_354 = arith.constant 26 : i32
    %c8_i32_355 = arith.constant 8 : i32
    %1414 = arith.muli %c26_i32_354, %c8_i32_355 : i32
    %1415 = tpu.assume_multiple %1414, 8 : i32
    %1416 = arith.index_cast %1415 : i32 to index
    %c0_356 = arith.constant 0 : index
    %1417 = vector.load %arg13[%1416, %c0_356] : memref<240x128xf32, #tpu.memory_space<vmem>>, vector<8x128xf32>
    %cst_357 = arith.constant dense<0.000000e+00> : vector<8x128xf32>
    %1418 = tpu.matmul %1409, %731, %cst_357 {dimension_numbers = #tpu.dot_dimension_numbers<[1], [0], [0], [1], [0, 0, 1, 1], [], []>} : vector<8x32xf32>, vector<32x128xf32>, vector<8x128xf32> -> vector<8x128xf32>
    %1419 = arith.addf %1417, %1418 : vector<8x128xf32>
    %1420 = vector.extract_strided_slice %1419 {offsets = [0, 0], sizes = [8, 96], strides = [1, 1]} : vector<8x128xf32> to vector<8x96xf32>
    %1421 = arith.negf %1420 : vector<8x96xf32>
    %1422 = math.exp %1421 : vector<8x96xf32>
    %cst_358 = arith.constant 1.000000e+00 : f32
    %1423 = vector.broadcast %cst_358 : f32 to vector<8x96xf32>
    %1424 = arith.addf %1423, %1422 : vector<8x96xf32>
    %1425 = arith.divf %1423, %1424 : vector<8x96xf32>
    %1426 = vector.extract_strided_slice %1425 {offsets = [0, 0], sizes = [8, 32], strides = [1, 1]} : vector<8x96xf32> to vector<8x32xf32>
    %1427 = vector.extract_strided_slice %1425 {offsets = [0, 32], sizes = [8, 32], strides = [1, 1]} : vector<8x96xf32> to vector<8x32xf32>
    %1428 = vector.extract_strided_slice %1425 {offsets = [0, 64], sizes = [8, 32], strides = [1, 1]} : vector<8x96xf32> to vector<8x32xf32>
    %1429 = vector.extract_strided_slice %1419 {offsets = [0, 96], sizes = [8, 32], strides = [1, 1]} : vector<8x128xf32> to vector<8x32xf32>
    %1430 = math.tanh %1429 : vector<8x32xf32>
    %1431 = arith.mulf %1427, %1407 : vector<8x32xf32>
    %1432 = arith.mulf %1426, %1430 : vector<8x32xf32>
    %1433 = arith.addf %1431, %1432 : vector<8x32xf32>
    %1434 = math.tanh %1433 : vector<8x32xf32>
    %1435 = arith.mulf %1428, %1434 : vector<8x32xf32>
    %1436 = arith.index_cast %c26_i32_354 : i32 to index
    %c0_359 = arith.constant 0 : index
    %c0_360 = arith.constant 0 : index
    %1437 = vector.load %arg14[%1436, %c0_359, %c0_360] : memref<30x8x32xf32, #tpu.memory_space<vmem>>, vector<1x8x32xf32>
    %1438 = vector.shape_cast %1437 : vector<1x8x32xf32> to vector<8x32xf32>
    %1439 = vector.shape_cast %1435 : vector<8x32xf32> to vector<1x8x32xf32>
    tpu.vector_store %arg14[%1436, %c0_359, %c0_360], %1439 {strides = array<i32>} : memref<30x8x32xf32, #tpu.memory_space<vmem>>, vector<1x8x32xf32>,
    %c27_i32_361 = arith.constant 27 : i32
    %c8_i32_362 = arith.constant 8 : i32
    %1440 = arith.muli %c27_i32_361, %c8_i32_362 : i32
    %1441 = tpu.assume_multiple %1440, 8 : i32
    %1442 = arith.index_cast %1441 : i32 to index
    %c0_363 = arith.constant 0 : index
    %1443 = vector.load %arg13[%1442, %c0_363] : memref<240x128xf32, #tpu.memory_space<vmem>>, vector<8x128xf32>
    %cst_364 = arith.constant dense<0.000000e+00> : vector<8x128xf32>
    %1444 = tpu.matmul %1435, %731, %cst_364 {dimension_numbers = #tpu.dot_dimension_numbers<[1], [0], [0], [1], [0, 0, 1, 1], [], []>} : vector<8x32xf32>, vector<32x128xf32>, vector<8x128xf32> -> vector<8x128xf32>
    %1445 = arith.addf %1443, %1444 : vector<8x128xf32>
    %1446 = vector.extract_strided_slice %1445 {offsets = [0, 0], sizes = [8, 96], strides = [1, 1]} : vector<8x128xf32> to vector<8x96xf32>
    %1447 = arith.negf %1446 : vector<8x96xf32>
    %1448 = math.exp %1447 : vector<8x96xf32>
    %cst_365 = arith.constant 1.000000e+00 : f32
    %1449 = vector.broadcast %cst_365 : f32 to vector<8x96xf32>
    %1450 = arith.addf %1449, %1448 : vector<8x96xf32>
    %1451 = arith.divf %1449, %1450 : vector<8x96xf32>
    %1452 = vector.extract_strided_slice %1451 {offsets = [0, 0], sizes = [8, 32], strides = [1, 1]} : vector<8x96xf32> to vector<8x32xf32>
    %1453 = vector.extract_strided_slice %1451 {offsets = [0, 32], sizes = [8, 32], strides = [1, 1]} : vector<8x96xf32> to vector<8x32xf32>
    %1454 = vector.extract_strided_slice %1451 {offsets = [0, 64], sizes = [8, 32], strides = [1, 1]} : vector<8x96xf32> to vector<8x32xf32>
    %1455 = vector.extract_strided_slice %1445 {offsets = [0, 96], sizes = [8, 32], strides = [1, 1]} : vector<8x128xf32> to vector<8x32xf32>
    %1456 = math.tanh %1455 : vector<8x32xf32>
    %1457 = arith.mulf %1453, %1433 : vector<8x32xf32>
    %1458 = arith.mulf %1452, %1456 : vector<8x32xf32>
    %1459 = arith.addf %1457, %1458 : vector<8x32xf32>
    %1460 = math.tanh %1459 : vector<8x32xf32>
    %1461 = arith.mulf %1454, %1460 : vector<8x32xf32>
    %1462 = arith.index_cast %c27_i32_361 : i32 to index
    %c0_366 = arith.constant 0 : index
    %c0_367 = arith.constant 0 : index
    %1463 = vector.load %arg14[%1462, %c0_366, %c0_367] : memref<30x8x32xf32, #tpu.memory_space<vmem>>, vector<1x8x32xf32>
    %1464 = vector.shape_cast %1463 : vector<1x8x32xf32> to vector<8x32xf32>
    %1465 = vector.shape_cast %1461 : vector<8x32xf32> to vector<1x8x32xf32>
    tpu.vector_store %arg14[%1462, %c0_366, %c0_367], %1465 {strides = array<i32>} : memref<30x8x32xf32, #tpu.memory_space<vmem>>, vector<1x8x32xf32>,
    %c28_i32_368 = arith.constant 28 : i32
    %c8_i32_369 = arith.constant 8 : i32
    %1466 = arith.muli %c28_i32_368, %c8_i32_369 : i32
    %1467 = tpu.assume_multiple %1466, 8 : i32
    %1468 = arith.index_cast %1467 : i32 to index
    %c0_370 = arith.constant 0 : index
    %1469 = vector.load %arg13[%1468, %c0_370] : memref<240x128xf32, #tpu.memory_space<vmem>>, vector<8x128xf32>
    %cst_371 = arith.constant dense<0.000000e+00> : vector<8x128xf32>
    %1470 = tpu.matmul %1461, %731, %cst_371 {dimension_numbers = #tpu.dot_dimension_numbers<[1], [0], [0], [1], [0, 0, 1, 1], [], []>} : vector<8x32xf32>, vector<32x128xf32>, vector<8x128xf32> -> vector<8x128xf32>
    %1471 = arith.addf %1469, %1470 : vector<8x128xf32>
    %1472 = vector.extract_strided_slice %1471 {offsets = [0, 0], sizes = [8, 96], strides = [1, 1]} : vector<8x128xf32> to vector<8x96xf32>
    %1473 = arith.negf %1472 : vector<8x96xf32>
    %1474 = math.exp %1473 : vector<8x96xf32>
    %cst_372 = arith.constant 1.000000e+00 : f32
    %1475 = vector.broadcast %cst_372 : f32 to vector<8x96xf32>
    %1476 = arith.addf %1475, %1474 : vector<8x96xf32>
    %1477 = arith.divf %1475, %1476 : vector<8x96xf32>
    %1478 = vector.extract_strided_slice %1477 {offsets = [0, 0], sizes = [8, 32], strides = [1, 1]} : vector<8x96xf32> to vector<8x32xf32>
    %1479 = vector.extract_strided_slice %1477 {offsets = [0, 32], sizes = [8, 32], strides = [1, 1]} : vector<8x96xf32> to vector<8x32xf32>
    %1480 = vector.extract_strided_slice %1477 {offsets = [0, 64], sizes = [8, 32], strides = [1, 1]} : vector<8x96xf32> to vector<8x32xf32>
    %1481 = vector.extract_strided_slice %1471 {offsets = [0, 96], sizes = [8, 32], strides = [1, 1]} : vector<8x128xf32> to vector<8x32xf32>
    %1482 = math.tanh %1481 : vector<8x32xf32>
    %1483 = arith.mulf %1479, %1459 : vector<8x32xf32>
    %1484 = arith.mulf %1478, %1482 : vector<8x32xf32>
    %1485 = arith.addf %1483, %1484 : vector<8x32xf32>
    %1486 = math.tanh %1485 : vector<8x32xf32>
    %1487 = arith.mulf %1480, %1486 : vector<8x32xf32>
    %1488 = arith.index_cast %c28_i32_368 : i32 to index
    %c0_373 = arith.constant 0 : index
    %c0_374 = arith.constant 0 : index
    %1489 = vector.load %arg14[%1488, %c0_373, %c0_374] : memref<30x8x32xf32, #tpu.memory_space<vmem>>, vector<1x8x32xf32>
    %1490 = vector.shape_cast %1489 : vector<1x8x32xf32> to vector<8x32xf32>
    %1491 = vector.shape_cast %1487 : vector<8x32xf32> to vector<1x8x32xf32>
    tpu.vector_store %arg14[%1488, %c0_373, %c0_374], %1491 {strides = array<i32>} : memref<30x8x32xf32, #tpu.memory_space<vmem>>, vector<1x8x32xf32>,
    %c29_i32_375 = arith.constant 29 : i32
    %c8_i32_376 = arith.constant 8 : i32
    %1492 = arith.muli %c29_i32_375, %c8_i32_376 : i32
    %1493 = tpu.assume_multiple %1492, 8 : i32
    %1494 = arith.index_cast %1493 : i32 to index
    %c0_377 = arith.constant 0 : index
    %1495 = vector.load %arg13[%1494, %c0_377] : memref<240x128xf32, #tpu.memory_space<vmem>>, vector<8x128xf32>
    %cst_378 = arith.constant dense<0.000000e+00> : vector<8x128xf32>
    %1496 = tpu.matmul %1487, %731, %cst_378 {dimension_numbers = #tpu.dot_dimension_numbers<[1], [0], [0], [1], [0, 0, 1, 1], [], []>} : vector<8x32xf32>, vector<32x128xf32>, vector<8x128xf32> -> vector<8x128xf32>
    %1497 = arith.addf %1495, %1496 : vector<8x128xf32>
    %1498 = vector.extract_strided_slice %1497 {offsets = [0, 0], sizes = [8, 96], strides = [1, 1]} : vector<8x128xf32> to vector<8x96xf32>
    %1499 = arith.negf %1498 : vector<8x96xf32>
    %1500 = math.exp %1499 : vector<8x96xf32>
    %cst_379 = arith.constant 1.000000e+00 : f32
    %1501 = vector.broadcast %cst_379 : f32 to vector<8x96xf32>
    %1502 = arith.addf %1501, %1500 : vector<8x96xf32>
    %1503 = arith.divf %1501, %1502 : vector<8x96xf32>
    %1504 = vector.extract_strided_slice %1503 {offsets = [0, 0], sizes = [8, 32], strides = [1, 1]} : vector<8x96xf32> to vector<8x32xf32>
    %1505 = vector.extract_strided_slice %1503 {offsets = [0, 32], sizes = [8, 32], strides = [1, 1]} : vector<8x96xf32> to vector<8x32xf32>
    %1506 = vector.extract_strided_slice %1503 {offsets = [0, 64], sizes = [8, 32], strides = [1, 1]} : vector<8x96xf32> to vector<8x32xf32>
    %1507 = vector.extract_strided_slice %1497 {offsets = [0, 96], sizes = [8, 32], strides = [1, 1]} : vector<8x128xf32> to vector<8x32xf32>
    %1508 = math.tanh %1507 : vector<8x32xf32>
    %1509 = arith.mulf %1505, %1485 : vector<8x32xf32>
    %1510 = arith.mulf %1504, %1508 : vector<8x32xf32>
    %1511 = arith.addf %1509, %1510 : vector<8x32xf32>
    %1512 = math.tanh %1511 : vector<8x32xf32>
    %1513 = arith.mulf %1506, %1512 : vector<8x32xf32>
    %1514 = arith.index_cast %c29_i32_375 : i32 to index
    %c0_380 = arith.constant 0 : index
    %c0_381 = arith.constant 0 : index
    %1515 = vector.load %arg14[%1514, %c0_380, %c0_381] : memref<30x8x32xf32, #tpu.memory_space<vmem>>, vector<1x8x32xf32>
    %1516 = vector.shape_cast %1515 : vector<1x8x32xf32> to vector<8x32xf32>
    %1517 = vector.shape_cast %1513 : vector<8x32xf32> to vector<1x8x32xf32>
    tpu.vector_store %arg14[%1514, %c0_380, %c0_381], %1517 {strides = array<i32>} : memref<30x8x32xf32, #tpu.memory_space<vmem>>, vector<1x8x32xf32>,
    %c30_i32_382 = arith.constant 30 : i32
    %c0_383 = arith.constant 0 : index
    %c0_384 = arith.constant 0 : index
    %c0_385 = arith.constant 0 : index
    %1518 = vector.load %arg14[%c0_383, %c0_384, %c0_385] : memref<30x8x32xf32, #tpu.memory_space<vmem>>, vector<30x8x32xf32>
    %c0_386 = arith.constant 0 : index
    %c0_387 = arith.constant 0 : index
    %c0_388 = arith.constant 0 : index
    %1519 = vector.load %arg8[%c0_386, %c0_387, %c0_388] : memref<30x32x50xf32, #tpu.memory_space<vmem>>, vector<30x32x50xf32>
    "tpu.trace_start"() <{level = 10 : i32, message = "tbh,thv->tbv"}> : () -> ()
    %cst_389 = arith.constant dense<0.000000e+00> : vector<30x8x50xf32>
    %1520 = tpu.matmul %1518, %1519, %cst_389 {dimension_numbers = #tpu.dot_dimension_numbers<[2], [1], [1], [2], [0, 0, 0, 1, 1, 2], [0], [0]>} : vector<30x8x32xf32>, vector<30x32x50xf32>, vector<30x8x50xf32> -> vector<30x8x50xf32>
    "tpu.trace_stop"() : () -> ()
    %cst_390 = arith.constant dense<0.000000e+00> : vector<8x50xf32>
    %1521 = vector.multi_reduction <add>, %1520, %cst_390 [0] : vector<30x8x50xf32> to vector<8x50xf32>
    %c0_391 = arith.constant 0 : index
    %c0_392 = arith.constant 0 : index
    %1522 = vector.load %arg9[%c0_391, %c0_392] : memref<1x50xf32, #tpu.memory_space<vmem>>, vector<1x50xf32>
    %1523 = vector.broadcast %1522 : vector<1x50xf32> to vector<8x50xf32>
    %1524 = arith.addf %1521, %1523 : vector<8x50xf32>
    %1525 = tpu.iota {dimensions = array<i32: 1>} : vector<8x50xi32>
    %c50_i32 = arith.constant 50 : i32
    %1526 = vector.broadcast %c50_i32 : i32 to vector<8x50xi32>
    %1527 = arith.cmpi slt, %1525, %1526 : vector<8x50xi32>
    %cst_393 = arith.constant -1.000000e+30 : f32
    %1528 = vector.broadcast %cst_393 : f32 to vector<8x50xf32>
    %1529 = arith.select %1527, %1524, %1528 : vector<8x50xi1>, vector<8x50xf32>
    %cst_394 = arith.constant dense<0xFF800000> : vector<8xf32>
    %1530 = vector.multi_reduction <maximumf>, %1529, %cst_394 [1] : vector<8x50xf32> to vector<8xf32>
    %1531 = vector.shape_cast %1530 : vector<8xf32> to vector<8x1xf32>
    %1532 = vector.broadcast %1531 : vector<8x1xf32> to vector<8x50xf32>
    %1533 = arith.subf %1524, %1532 : vector<8x50xf32>
    %1534 = arith.select %1527, %1533, %1528 : vector<8x50xi1>, vector<8x50xf32>
    %1535 = math.exp %1534 : vector<8x50xf32>
    %cst_395 = arith.constant dense<0.000000e+00> : vector<8xf32>
    %1536 = vector.multi_reduction <add>, %1535, %cst_395 [1] : vector<8x50xf32> to vector<8xf32>
    %1537 = vector.shape_cast %1536 : vector<8xf32> to vector<8x1xf32>
    %1538 = math.log %1537 : vector<8x1xf32>
    %1539 = vector.broadcast %1538 : vector<8x1xf32> to vector<8x50xf32>
    %1540 = arith.subf %1533, %1539 : vector<8x50xf32>
    %c0_396 = arith.constant 0 : index
    %c0_397 = arith.constant 0 : index
    %1541 = vector.load %arg10[%c0_396, %c0_397] : memref<8x50xf32, #tpu.memory_space<vmem>>, vector<8x50xf32>
    tpu.vector_store %arg10[%c0_396, %c0_397], %1540 {strides = array<i32>} : memref<8x50xf32, #tpu.memory_space<vmem>>, vector<8x50xf32>,
    return
  }
  func.func @transform_0(%arg0: i32) -> (i32, i32) {
    %c0_i32 = arith.constant 0 : i32
    %c0_i32_0 = arith.constant 0 : i32
    %c0_i32_1 = arith.constant 0 : i32
    return %c0_i32, %c0_i32_0 : i32, i32
  }
  func.func @transform_1(%arg0: i32) -> (i32, i32) {
    %c0_i32 = arith.constant 0 : i32
    %c0_i32_0 = arith.constant 0 : i32
    %c0_i32_1 = arith.constant 0 : i32
    return %c0_i32, %c0_i32_0 : i32, i32
  }
  func.func @transform_2(%arg0: i32) -> (i32, i32) {
    %c0_i32 = arith.constant 0 : i32
    %c0_i32_0 = arith.constant 0 : i32
    %c0_i32_1 = arith.constant 0 : i32
    return %c0_i32, %c0_i32_0 : i32, i32
  }
  func.func @transform_3(%arg0: i32) -> (i32, i32) {
    %c0_i32 = arith.constant 0 : i32
    %c0_i32_0 = arith.constant 0 : i32
    %c0_i32_1 = arith.constant 0 : i32
    return %c0_i32, %c0_i32_0 : i32, i32
  }
  func.func @transform_4(%arg0: i32) -> (i32, i32) {
    %c0_i32 = arith.constant 0 : i32
    %c0_i32_0 = arith.constant 0 : i32
    %c0_i32_1 = arith.constant 0 : i32
    return %c0_i32, %c0_i32_0 : i32, i32
  }
  func.func @transform_5(%arg0: i32) -> (i32, i32) {
    %c0_i32 = arith.constant 0 : i32
    %c0_i32_0 = arith.constant 0 : i32
    %c0_i32_1 = arith.constant 0 : i32
    return %c0_i32, %c0_i32_0 : i32, i32
  }
  func.func @transform_6(%arg0: i32) -> (i32, i32) {
    %c0_i32 = arith.constant 0 : i32
    %c0_i32_0 = arith.constant 0 : i32
    %c0_i32_1 = arith.constant 0 : i32
    return %c0_i32, %c0_i32_0 : i32, i32
  }
  func.func @transform_7(%arg0: i32) -> (i32, i32, i32) {
    %c0_i32 = arith.constant 0 : i32
    %c0_i32_0 = arith.constant 0 : i32
    %c0_i32_1 = arith.constant 0 : i32
    %c0_i32_2 = arith.constant 0 : i32
    return %c0_i32, %c0_i32_0, %c0_i32_1 : i32, i32, i32
  }
  func.func @transform_8(%arg0: i32) -> (i32, i32) {
    %c0_i32 = arith.constant 0 : i32
    %c0_i32_0 = arith.constant 0 : i32
    %c0_i32_1 = arith.constant 0 : i32
    return %c0_i32, %c0_i32_0 : i32, i32
  }
  func.func @transform_9(%arg0: i32) -> (i32, i32) {
    %c0_i32 = arith.constant 0 : i32
    %c0_i32_0 = arith.constant 0 : i32
    %c0_i32_1 = arith.constant 0 : i32
    return %c0_i32, %c0_i32_0 : i32, i32
  }
}

</mosaic_0001>

<llo_original>
// kernel: forward.1
$region0: #{forward.1}
  #allocation0 [shape = 'u32[]', space=smem, size = 0x4, offset = 0x4, fixed_abs, tag = 'smem constant byte address 0x4 - core index']
  #allocation1 [shape = 'u32[144,128]{1,0:T(1,128)}', space=vmem, size = 0x12000, scoped, tag = 'internal scratch']
  #allocation2 [shape = 'f32[240,128]{1,0:T(8,128)}', space=vmem, size = 0x1e000, scoped, tag = 'scratch operand']
  #allocation3 [shape = 'f32[240,32]{1,0:T(8,128)}', space=vmem, size = 0x1e000, scoped, tag = 'scratch operand']
  #allocation4 [shape = 'f32[240,128]{1,0:T(8,128)}', space=vmem, size = 0x1e000, scoped, tag = 'scratch operand']
  #allocation5 [shape = 'f32[30,8,32]{2,1,0:T(8,128)}', space=vmem, size = 0x1e000, scoped, tag = 'scratch operand']
  %s0 = inlined_call_operand.vmem [shape: f32[240,16], index: 0, kind: input, shape index: {}]
  %s1 = inlined_call_operand.vmem [shape: f32[16,128], index: 1, kind: input, shape index: {}]
  %s2 = inlined_call_operand.vmem [shape: f32[32,128], index: 2, kind: input, shape index: {}]
  %s3 = inlined_call_operand.vmem [shape: f32[1,128], index: 3, kind: input, shape index: {}]
  %s4 = inlined_call_operand.vmem [shape: f32[32,128], index: 4, kind: input, shape index: {}]
  %s5 = inlined_call_operand.vmem [shape: f32[32,128], index: 5, kind: input, shape index: {}]
  %s6 = inlined_call_operand.vmem [shape: f32[1,128], index: 6, kind: input, shape index: {}]
  %s7 = inlined_call_operand.vmem [shape: f32[30,32,50], index: 7, kind: input, shape index: {}]
  %s8 = inlined_call_operand.vmem [shape: f32[1,50], index: 8, kind: input, shape index: {}]
  %s9 = inlined_call_operand.vmem [shape: f32[8,50], index: 9, kind: output, shape index: {}]
  %s10 = sld [smem:[#allocation0]]
  $region46: #{forward.1} parent=0
    _
  %s12 = ssub.s32 1, %s10
  %s13 = scalar_select 0, %s12, %s10
  // Predicated region
  $region2: #{forward.1} parent=0 // pred_check
    _
  $region3: #{forward.1} parent=0 // pred_check_branch
    %15 = sbr.rel (0) target = $region5
  $region4: #{forward.1} parent=0 // pred_region
    _
  $region5: #{forward.1} parent=0 // pred_fallthru
    _
  // Predicated region
  $region6: #{forward.1} parent=0 // pred_check
    _
  $region7: #{forward.1} parent=0 // pred_check_branch
    %17 = sbr.rel (0) target = $region9
  $region8: #{forward.1} parent=0 // pred_region
    _
  $region9: #{forward.1} parent=0 // pred_fallthru
    _
  // Predicated region
  $region10: #{forward.1} parent=0 // pred_check
    _
  $region11: #{forward.1} parent=0 // pred_check_branch
    %19 = sbr.rel (0) target = $region13
  $region12: #{forward.1} parent=0 // pred_region
    _
  $region13: #{forward.1} parent=0 // pred_fallthru
    _
  // Predicated region
  $region14: #{forward.1} parent=0 // pred_check
    _
  $region15: #{forward.1} parent=0 // pred_check_branch
    %21 = sbr.rel (0) target = $region17
  $region16: #{forward.1} parent=0 // pred_region
    _
  $region17: #{forward.1} parent=0 // pred_fallthru
    _
  // Predicated region
  $region18: #{forward.1} parent=0 // pred_check
    _
  $region19: #{forward.1} parent=0 // pred_check_branch
    %23 = sbr.rel (0) target = $region21
  $region20: #{forward.1} parent=0 // pred_region
    _
  $region21: #{forward.1} parent=0 // pred_fallthru
    _
  // Predicated region
  $region22: #{forward.1} parent=0 // pred_check
    _
  $region23: #{forward.1} parent=0 // pred_check_branch
    %25 = sbr.rel (0) target = $region25
  $region24: #{forward.1} parent=0 // pred_region
    _
  $region25: #{forward.1} parent=0 // pred_fallthru
    _
  // Predicated region
  $region26: #{forward.1} parent=0 // pred_check
    _
  $region27: #{forward.1} parent=0 // pred_check_branch
    %27 = sbr.rel (0) target = $region29
  $region28: #{forward.1} parent=0 // pred_region
    _
  $region29: #{forward.1} parent=0 // pred_fallthru
    _
  // Predicated region
  $region30: #{forward.1} parent=0 // pred_check
    _
  $region31: #{forward.1} parent=0 // pred_check_branch
    %29 = sbr.rel (0) target = $region33
  $region32: #{forward.1} parent=0 // pred_region
    _
  $region33: #{forward.1} parent=0 // pred_fallthru
    _
  // Predicated region
  $region34: #{forward.1} parent=0 // pred_check
    _
  $region35: #{forward.1} parent=0 // pred_check_branch
    %31 = sbr.rel (0) target = $region37
  $region36: #{forward.1} parent=0 // pred_region
    _
  $region37: #{forward.1} parent=0 // pred_fallthru
    _
  %v32 = vld [vmem:[%s0] sm:$0xff]
  %v33 = vld [vmem:[%s0 + $0x8] sm:$0xff]
  %v34 = vld [vmem:[%s0 + $0x10] sm:$0xff]
  %v35 = vld [vmem:[%s0 + $0x18] sm:$0xff]
  %v36 = vld [vmem:[%s0 + $0x20] sm:$0xff]
  %v37 = vld [vmem:[%s0 + $0x28] sm:$0xff]
  %v38 = vld [vmem:[%s0 + $0x30] sm:$0xff]
  %v39 = vld [vmem:[%s0 + $0x38] sm:$0xff]
  %v40 = vld [vmem:[%s0 + $0x40] sm:$0xff]
  %v41 = vld [vmem:[%s0 + $0x48] sm:$0xff]
  %v42 = vld [vmem:[%s0 + $0x50] sm:$0xff]
  %v43 = vld [vmem:[%s0 + $0x58] sm:$0xff]
  %v44 = vld [vmem:[%s0 + $0x60] sm:$0xff]
  %v45 = vld [vmem:[%s0 + $0x68] sm:$0xff]
  %v46 = vld [vmem:[%s0 + $0x70] sm:$0xff]
  %v47 = vld [vmem:[%s0 + $0x78] sm:$0xff]
  %v48 = vld [vmem:[%s0 + $0x80] sm:$0xff]
  %v49 = vld [vmem:[%s0 + $0x88] sm:$0xff]
  %v50 = vld [vmem:[%s0 + $0x90] sm:$0xff]
  %v51 = vld [vmem:[%s0 + $0x98] sm:$0xff]
  %v52 = vld [vmem:[%s0 + $0xa0] sm:$0xff]
  %v53 = vld [vmem:[%s0 + $0xa8] sm:$0xff]
  %v54 = vld [vmem:[%s0 + $0xb0] sm:$0xff]
  %v55 = vld [vmem:[%s0 + $0xb8] sm:$0xff]
  %v56 = vld [vmem:[%s0 + $0xc0] sm:$0xff]
  %v57 = vld [vmem:[%s0 + $0xc8] sm:$0xff]
  %v58 = vld [vmem:[%s0 + $0xd0] sm:$0xff]
  %v59 = vld [vmem:[%s0 + $0xd8] sm:$0xff]
  %v60 = vld [vmem:[%s0 + $0xe0] sm:$0xff]
  %v61 = vld [vmem:[%s0 + $0xe8] sm:$0xff]
  %v62 = vld [vmem:[%s1] sm:$0xff]
  %v63 = vld [vmem:[%s1 + $0x8] sm:$0xff]
  %v64 = vld [vmem:[%s2] sm:$0xff]
  %v65 = vld [vmem:[%s2 + $0x8] sm:$0xff]
  %v66 = vld [vmem:[%s2 + $0x10] sm:$0xff]
  %v67 = vld [vmem:[%s2 + $0x18] sm:$0xff]
  %v68 = vld [vmem:[%s3] sm:$0x1]
  %v70 = vlaneseq
  %v71 = vshrl.u32 %v70, 7
  %v72 = vsub.s32 0, %v71
  %v73 = vrot.slane %v68, %v72
  %vm75 = vcmask 130048
  %v77 = vsel %vm75, %v32, 0
  %v80 = vsel %vm75, %v33, 0
  %v83 = vsel %vm75, %v34, 0
  %v86 = vsel %vm75, %v35, 0
  %v89 = vsel %vm75, %v36, 0
  %v92 = vsel %vm75, %v37, 0
  %v95 = vsel %vm75, %v38, 0
  %v98 = vsel %vm75, %v39, 0
  %v101 = vsel %vm75, %v40, 0
  %v104 = vsel %vm75, %v41, 0
  %v107 = vsel %vm75, %v42, 0
  %v110 = vsel %vm75, %v43, 0
  %v113 = vsel %vm75, %v44, 0
  %v116 = vsel %vm75, %v45, 0
  %v119 = vsel %vm75, %v46, 0
  %v122 = vsel %vm75, %v47, 0
  %v125 = vsel %vm75, %v48, 0
  %v128 = vsel %vm75, %v49, 0
  %v131 = vsel %vm75, %v50, 0
  %v134 = vsel %vm75, %v51, 0
  %v137 = vsel %vm75, %v52, 0
  %v140 = vsel %vm75, %v53, 0
  %v143 = vsel %vm75, %v54, 0
  %v146 = vsel %vm75, %v55, 0
  %v149 = vsel %vm75, %v56, 0
  %v152 = vsel %vm75, %v57, 0
  %v155 = vsel %vm75, %v58, 0
  %v158 = vsel %vm75, %v59, 0
  %v161 = vsel %vm75, %v60, 0
  %v164 = vsel %vm75, %v61, 0
  %166 = vmatprep.subr.mxu0 0.0
  %167 = vmatpush1.msra.mxu0 0.0
  %168 = vmatprep.subr.mxu0 0.0
  %169 = vmatpush1.msra.mxu0 0.0
  %170 = vmatprep.subr.mxu0 0.0
  %171 = vmatpush1.msra.mxu0 0.0
  %172 = vmatprep.subr.mxu0 0.0
  %173 = vmatpush1.msra.mxu0 0.0
  %174 = vmatprep.subr.mxu0 0.0
  %175 = vmatpush1.msra.mxu0 0.0
  %176 = vmatprep.subr.mxu0 0.0
  %177 = vmatpush1.msra.mxu0 0.0
  %178 = vmatprep.subr.mxu0 0.0
  %179 = vmatpush1.msra.mxu0 0.0
  %180 = vmatprep.subr.mxu0 0.0
  %181 = vmatpush1.msra.mxu0 0.0
  %182 = vmatprep.subr.mxu0 0.0
  %183 = vmatpush1.msra.mxu0 0.0
  %184 = vmatprep.subr.mxu0 0.0
  %185 = vmatpush1.msra.mxu0 0.0
  %186 = vmatprep.subr.mxu0 0.0
  %187 = vmatpush1.msra.mxu0 0.0
  %188 = vmatprep.subr.mxu0 0.0
  %189 = vmatpush1.msra.mxu0 0.0
  %190 = vmatprep.subr.mxu0 0.0
  %191 = vmatpush1.msra.mxu0 0.0
  %192 = vmatprep.subr.mxu0 0.0
  %193 = vmatpush1.msra.mxu0 0.0
  %194 = vmatprep.subr.mxu0 0.0
  %195 = vmatpush1.msra.mxu0 %v63
  %196 = vmatprep.subr.mxu0 0.0
  %197 = vmatpush1.msra.mxu0 %v62
  %198 = vmatprep.subr.mxu0 0.0
  %199 = vmatpush2.msra.mxu0 0.0
  %200 = vmatprep.subr.mxu0 0.0
  %201 = vmatpush2.msra.mxu0 0.0
  %202 = vmatprep.subr.mxu0 0.0
  %203 = vmatpush2.msra.mxu0 0.0
  %204 = vmatprep.subr.mxu0 0.0
  %205 = vmatpush2.msra.mxu0 0.0
  %206 = vmatprep.subr.mxu0 0.0
  %207 = vmatpush2.msra.mxu0 0.0
  %208 = vmatprep.subr.mxu0 0.0
  %209 = vmatpush2.msra.mxu0 0.0
  %210 = vmatprep.subr.mxu0 0.0
  %211 = vmatpush2.msra.mxu0 0.0
  %212 = vmatprep.subr.mxu0 0.0
  %213 = vmatpush2.msra.mxu0 0.0
  %214 = vmatprep.subr.mxu0 0.0
  %215 = vmatpush2.msra.mxu0 0.0
  %216 = vmatprep.subr.mxu0 0.0
  %217 = vmatpush2.msra.mxu0 0.0
  %218 = vmatprep.subr.mxu0 0.0
  %219 = vmatpush2.msra.mxu0 0.0
  %220 = vmatprep.subr.mxu0 0.0
  %221 = vmatpush2.msra.mxu0 0.0
  %222 = vmatprep.subr.mxu0 0.0
  %223 = vmatpush2.msra.mxu0 0.0
  %224 = vmatprep.subr.mxu0 0.0
  %225 = vmatpush2.msra.mxu0 0.0
  %226 = vmatprep.subr.mxu0 0.0
  %227 = vmatpush2.msra.mxu0 0.0
  %228 = vmatprep.subr.mxu0 0.0
  %229 = vmatpush2.msra.mxu0 0.0
  %230 = vmatprep.mubr.f32.mxu0 0.0
  %231 = vmatmul.mubr.f32.gmra.mxu0 %v77
  %v232 = vpop.f32.mrf.mxu0
  %v233 = vadd.f32 %v73, %v232
  %v234 = vpop.f32.mrf.mxu0
  %235 = vmatprep.mubr.f32.mxu0 0.0
  %236 = vmatmul.mubr.f32.gmra.mxu0 %v80
  %v237 = vpop.f32.mrf.mxu0
  %v238 = vadd.f32 %v73, %v237
  %v239 = vpop.f32.mrf.mxu0
  %240 = vmatprep.mubr.f32.mxu0 0.0
  %241 = vmatmul.mubr.f32.gmra.mxu0 %v83
  %v242 = vpop.f32.mrf.mxu0
  %v243 = vadd.f32 %v73, %v242
  %v244 = vpop.f32.mrf.mxu0
  %245 = vmatprep.mubr.f32.mxu0 0.0
  %246 = vmatmul.mubr.f32.gmra.mxu0 %v86
  %v247 = vpop.f32.mrf.mxu0
  %v248 = vadd.f32 %v73, %v247
  %v249 = vpop.f32.mrf.mxu0
  %250 = vmatprep.mubr.f32.mxu0 0.0
  %251 = vmatmul.mubr.f32.gmra.mxu0 %v89
  %v252 = vpop.f32.mrf.mxu0
  %v253 = vadd.f32 %v73, %v252
  %v254 = vpop.f32.mrf.mxu0
  %255 = vmatprep.mubr.f32.mxu0 0.0
  %256 = vmatmul.mubr.f32.gmra.mxu0 %v92
  %v257 = vpop.f32.mrf.mxu0
  %v258 = vadd.f32 %v73, %v257
  %v259 = vpop.f32.mrf.mxu0
  %260 = vmatprep.mubr.f32.mxu0 0.0
  %261 = vmatmul.mubr.f32.gmra.mxu0 %v95
  %v262 = vpop.f32.mrf.mxu0
  %v263 = vadd.f32 %v73, %v262
  %v264 = vpop.f32.mrf.mxu0
  %265 = vmatprep.mubr.f32.mxu0 0.0
  %266 = vmatmul.mubr.f32.gmra.mxu0 %v98
  %v267 = vpop.f32.mrf.mxu0
  %v268 = vadd.f32 %v73, %v267
  %v269 = vpop.f32.mrf.mxu0
  %270 = vmatprep.mubr.f32.mxu0 0.0
  %271 = vmatmul.mubr.f32.gmra.mxu0 %v101
  %v272 = vpop.f32.mrf.mxu0
  %v273 = vadd.f32 %v73, %v272
  %v274 = vpop.f32.mrf.mxu0
  %275 = vmatprep.mubr.f32.mxu0 0.0
  %276 = vmatmul.mubr.f32.gmra.mxu0 %v104
  %v277 = vpop.f32.mrf.mxu0
  %v278 = vadd.f32 %v73, %v277
  %v279 = vpop.f32.mrf.mxu0
  %280 = vmatprep.mubr.f32.mxu0 0.0
  %281 = vmatmul.mubr.f32.gmra.mxu0 %v107
  %v282 = vpop.f32.mrf.mxu0
  %v283 = vadd.f32 %v73, %v282
  %v284 = vpop.f32.mrf.mxu0
  %285 = vmatprep.mubr.f32.mxu0 0.0
  %286 = vmatmul.mubr.f32.gmra.mxu0 %v110
  %v287 = vpop.f32.mrf.mxu0
  %v288 = vadd.f32 %v73, %v287
  %v289 = vpop.f32.mrf.mxu0
  %290 = vmatprep.mubr.f32.mxu0 0.0
  %291 = vmatmul.mubr.f32.gmra.mxu0 %v113
  %v292 = vpop.f32.mrf.mxu0
  %v293 = vadd.f32 %v73, %v292
  %v294 = vpop.f32.mrf.mxu0
  %295 = vmatprep.mubr.f32.mxu0 0.0
  %296 = vmatmul.mubr.f32.gmra.mxu0 %v116
  %v297 = vpop.f32.mrf.mxu0
  %v298 = vadd.f32 %v73, %v297
  %v299 = vpop.f32.mrf.mxu0
  %300 = vmatprep.mubr.f32.mxu0 0.0
  %301 = vmatmul.mubr.f32.gmra.mxu0 %v119
  %v302 = vpop.f32.mrf.mxu0
  %v303 = vadd.f32 %v73, %v302
  %v304 = vpop.f32.mrf.mxu0
  %305 = vmatprep.mubr.f32.mxu0 0.0
  %306 = vmatmul.mubr.f32.gmra.mxu0 %v122
  %v307 = vpop.f32.mrf.mxu0
  %v308 = vadd.f32 %v73, %v307
  %v309 = vpop.f32.mrf.mxu0
  %310 = vmatprep.mubr.f32.mxu0 0.0
  %311 = vmatmul.mubr.f32.gmra.mxu0 %v125
  %v312 = vpop.f32.mrf.mxu0
  %v313 = vadd.f32 %v73, %v312
  %v314 = vpop.f32.mrf.mxu0
  %315 = vmatprep.mubr.f32.mxu0 0.0
  %316 = vmatmul.mubr.f32.gmra.mxu0 %v128
  %v317 = vpop.f32.mrf.mxu0
  %v318 = vadd.f32 %v73, %v317
  %v319 = vpop.f32.mrf.mxu0
  %320 = vmatprep.mubr.f32.mxu0 0.0
  %321 = vmatmul.mubr.f32.gmra.mxu0 %v131
  %v322 = vpop.f32.mrf.mxu0
  %v323 = vadd.f32 %v73, %v322
  %v324 = vpop.f32.mrf.mxu0
  %325 = vmatprep.mubr.f32.mxu0 0.0
  %326 = vmatmul.mubr.f32.gmra.mxu0 %v134
  %v327 = vpop.f32.mrf.mxu0
  %v328 = vadd.f32 %v73, %v327
  %v329 = vpop.f32.mrf.mxu0
  %330 = vmatprep.mubr.f32.mxu0 0.0
  %331 = vmatmul.mubr.f32.gmra.mxu0 %v137
  %v332 = vpop.f32.mrf.mxu0
  %v333 = vadd.f32 %v73, %v332
  %v334 = vpop.f32.mrf.mxu0
  %335 = vmatprep.mubr.f32.mxu0 0.0
  %336 = vmatmul.mubr.f32.gmra.mxu0 %v140
  %v337 = vpop.f32.mrf.mxu0
  %v338 = vadd.f32 %v73, %v337
  %v339 = vpop.f32.mrf.mxu0
  %340 = vmatprep.mubr.f32.mxu0 0.0
  %341 = vmatmul.mubr.f32.gmra.mxu0 %v143
  %v342 = vpop.f32.mrf.mxu0
  %v343 = vadd.f32 %v73, %v342
  %v344 = vpop.f32.mrf.mxu0
  %345 = vmatprep.mubr.f32.mxu0 0.0
  %346 = vmatmul.mubr.f32.gmra.mxu0 %v146
  %v347 = vpop.f32.mrf.mxu0
  %v348 = vadd.f32 %v73, %v347
  %v349 = vpop.f32.mrf.mxu0
  %350 = vmatprep.mubr.f32.mxu0 0.0
  %351 = vmatmul.mubr.f32.gmra.mxu0 %v149
  %v352 = vpop.f32.mrf.mxu0
  %v353 = vadd.f32 %v73, %v352
  %v354 = vpop.f32.mrf.mxu0
  %355 = vmatprep.mubr.f32.mxu0 0.0
  %356 = vmatmul.mubr.f32.gmra.mxu0 %v152
  %v357 = vpop.f32.mrf.mxu0
  %v358 = vadd.f32 %v73, %v357
  %v359 = vpop.f32.mrf.mxu0
  %360 = vmatprep.mubr.f32.mxu0 0.0
  %361 = vmatmul.mubr.f32.gmra.mxu0 %v155
  %v362 = vpop.f32.mrf.mxu0
  %v363 = vadd.f32 %v73, %v362
  %v364 = vpop.f32.mrf.mxu0
  %365 = vmatprep.mubr.f32.mxu0 0.0
  %366 = vmatmul.mubr.f32.gmra.mxu0 %v158
  %v367 = vpop.f32.mrf.mxu0
  %v368 = vadd.f32 %v73, %v367
  %v369 = vpop.f32.mrf.mxu0
  %370 = vmatprep.mubr.f32.mxu0 0.0
  %371 = vmatmul.mubr.f32.gmra.mxu0 %v161
  %v372 = vpop.f32.mrf.mxu0
  %v373 = vadd.f32 %v73, %v372
  %v374 = vpop.f32.mrf.mxu0
  %375 = vmatprep.mubr.f32.mxu0 0.0
  %376 = vmatmul.mubr.f32.gmra.mxu0 %v164
  %v377 = vpop.f32.mrf.mxu0
  %v378 = vadd.f32 %v73, %v377
  %v379 = vpop.f32.mrf.mxu0
  %380 = vdwg.mxu0
  %381 = vst [vmem:[#allocation2] sm:$0xff] %v233
  %382 = vst [vmem:[#allocation2 + $0x8] sm:$0xff] %v238
  %383 = vst [vmem:[#allocation2 + $0x10] sm:$0xff] %v243
  %384 = vst [vmem:[#allocation2 + $0x18] sm:$0xff] %v248
  %385 = vst [vmem:[#allocation2 + $0x20] sm:$0xff] %v253
  %386 = vst [vmem:[#allocation2 + $0x28] sm:$0xff] %v258
  %387 = vst [vmem:[#allocation2 + $0x30] sm:$0xff] %v263
  %388 = vst [vmem:[#allocation2 + $0x38] sm:$0xff] %v268
  %389 = vst [vmem:[#allocation2 + $0x40] sm:$0xff] %v273
  %390 = vst [vmem:[#allocation2 + $0x48] sm:$0xff] %v278
  %391 = vst [vmem:[#allocation2 + $0x50] sm:$0xff] %v283
  %392 = vst [vmem:[#allocation2 + $0x58] sm:$0xff] %v288
  %393 = vst [vmem:[#allocation2 + $0x60] sm:$0xff] %v293
  %394 = vst [vmem:[#allocation2 + $0x68] sm:$0xff] %v298
  %395 = vst [vmem:[#allocation2 + $0x70] sm:$0xff] %v303
  %396 = vst [vmem:[#allocation2 + $0x78] sm:$0xff] %v308
  %397 = vst [vmem:[#allocation2 + $0x80] sm:$0xff] %v313
  %398 = vst [vmem:[#allocation2 + $0x88] sm:$0xff] %v318
  %399 = vst [vmem:[#allocation2 + $0x90] sm:$0xff] %v323
  %400 = vst [vmem:[#allocation2 + $0x98] sm:$0xff] %v328
  %401 = vst [vmem:[#allocation2 + $0xa0] sm:$0xff] %v333
  %402 = vst [vmem:[#allocation2 + $0xa8] sm:$0xff] %v338
  %403 = vst [vmem:[#allocation2 + $0xb0] sm:$0xff] %v343
  %404 = vst [vmem:[#allocation2 + $0xb8] sm:$0xff] %v348
  %405 = vst [vmem:[#allocation2 + $0xc0] sm:$0xff] %v353
  %406 = vst [vmem:[#allocation2 + $0xc8] sm:$0xff] %v358
  %407 = vst [vmem:[#allocation2 + $0xd0] sm:$0xff] %v363
  %408 = vst [vmem:[#allocation2 + $0xd8] sm:$0xff] %v368
  %409 = vst [vmem:[#allocation2 + $0xe0] sm:$0xff] %v373
  %410 = vst [vmem:[#allocation2 + $0xe8] sm:$0xff] %v378
  %v411 = vld [vmem:[#allocation2] sm:$0xff]
  %vm412 = vcmask 261120
  %v414 = vsel %vm412, 0.0, 0
  %416 = vmatprep.subr.mxu0 0.0
  %417 = vmatpush1.msra.mxu0 0.0
  %418 = vmatprep.subr.mxu0 0.0
  %419 = vmatpush1.msra.mxu0 0.0
  %420 = vmatprep.subr.mxu0 0.0
  %421 = vmatpush1.msra.mxu0 0.0
  %422 = vmatprep.subr.mxu0 0.0
  %423 = vmatpush1.msra.mxu0 0.0
  %424 = vmatprep.subr.mxu0 0.0
  %425 = vmatpush1.msra.mxu0 0.0
  %426 = vmatprep.subr.mxu0 0.0
  %427 = vmatpush1.msra.mxu0 0.0
  %428 = vmatprep.subr.mxu0 0.0
  %429 = vmatpush1.msra.mxu0 0.0
  %430 = vmatprep.subr.mxu0 0.0
  %431 = vmatpush1.msra.mxu0 0.0
  %432 = vmatprep.subr.mxu0 0.0
  %433 = vmatpush1.msra.mxu0 0.0
  %434 = vmatprep.subr.mxu0 0.0
  %435 = vmatpush1.msra.mxu0 0.0
  %436 = vmatprep.subr.mxu0 0.0
  %437 = vmatpush1.msra.mxu0 0.0
  %438 = vmatprep.subr.mxu0 0.0
  %439 = vmatpush1.msra.mxu0 0.0
  %440 = vmatprep.subr.mxu0 0.0
  %441 = vmatpush1.msra.mxu0 %v67
  %442 = vmatprep.subr.mxu0 0.0
  %443 = vmatpush1.msra.mxu0 %v66
  %444 = vmatprep.subr.mxu0 0.0
  %445 = vmatpush1.msra.mxu0 %v65
  %446 = vmatprep.subr.mxu0 0.0
  %447 = vmatpush1.msra.mxu0 %v64
  %448 = vmatprep.subr.mxu0 0.0
  %449 = vmatpush2.msra.mxu0 0.0
  %450 = vmatprep.subr.mxu0 0.0
  %451 = vmatpush2.msra.mxu0 0.0
  %452 = vmatprep.subr.mxu0 0.0
  %453 = vmatpush2.msra.mxu0 0.0
  %454 = vmatprep.subr.mxu0 0.0
  %455 = vmatpush2.msra.mxu0 0.0
  %456 = vmatprep.subr.mxu0 0.0
  %457 = vmatpush2.msra.mxu0 0.0
  %458 = vmatprep.subr.mxu0 0.0
  %459 = vmatpush2.msra.mxu0 0.0
  %460 = vmatprep.subr.mxu0 0.0
  %461 = vmatpush2.msra.mxu0 0.0
  %462 = vmatprep.subr.mxu0 0.0
  %463 = vmatpush2.msra.mxu0 0.0
  %464 = vmatprep.subr.mxu0 0.0
  %465 = vmatpush2.msra.mxu0 0.0
  %466 = vmatprep.subr.mxu0 0.0
  %467 = vmatpush2.msra.mxu0 0.0
  %468 = vmatprep.subr.mxu0 0.0
  %469 = vmatpush2.msra.mxu0 0.0
  %470 = vmatprep.subr.mxu0 0.0
  %471 = vmatpush2.msra.mxu0 0.0
  %472 = vmatprep.subr.mxu0 0.0
  %473 = vmatpush2.msra.mxu0 0.0
  %474 = vmatprep.subr.mxu0 0.0
  %475 = vmatpush2.msra.mxu0 0.0
  %476 = vmatprep.subr.mxu0 0.0
  %477 = vmatpush2.msra.mxu0 0.0
  %478 = vmatprep.subr.mxu0 0.0
  %479 = vmatpush2.msra.mxu0 0.0
  %480 = vmatprep.mubr.f32.mxu0 0.0
  %481 = vmatmul.mubr.f32.gmra.mxu0 %v414
  %v482 = vpop.f32.mrf.mxu0
  %v483 = vadd.f32 0.0, %v482
  %v484 = vpop.f32.mrf.mxu0
  %485 = vdwg.mxu0
  %v486 = vadd.f32 %v411, %v483
  %v487 = vxor.u32 %v486, 2147483648
  %v488 = vmul.f32 %v487, 1.442695
  %v489 = vpow.pop %v488
  %v490 = vadd.f32 %v489, 1.0
  %v491 = vrcp.pop %v490
  %v492 = vmul.f32 1.0, %v491
  %v493 = vtanh.pop %v486
  %v494 = vmul.f32 %v492, 0.0
  %496 = vrot.lane.b32.xlu0 %v493, 32
  %v497 = vpop.permute.xlu0 %496
  %v499 = vmul.f32 %v492, %v497
  %501 = vrot.lane.b32.xlu0 %v499, 32
  %v502 = vpop.permute.xlu0 %501
  %v504 = vadd.f32 %v494, %v502
  %v505 = vtanh.pop %v504
  %507 = vrot.lane.b32.xlu0 %v505, 32
  %v508 = vpop.permute.xlu0 %507
  %v510 = vmul.f32 %v492, %v508
  %512 = vrot.lane.b32.xlu0 %v510, 64
  %v513 = vpop.permute.xlu0 %512
  %515 = vst.msk [vmem:[#allocation3] sm:$0xff] %vm412, %v513
  %s516 = scalar_lea.vmem [#allocation2], 8
  %v517 = vld [vmem:[%s516] sm:$0xff]
  %v518 = vsel %vm412, %v513, 0
  %520 = vmatprep.subr.mxu0 0.0
  %521 = vmatpush1.msra.mxu0 0.0
  %522 = vmatprep.subr.mxu0 0.0
  %523 = vmatpush1.msra.mxu0 0.0
  %524 = vmatprep.subr.mxu0 0.0
  %525 = vmatpush1.msra.mxu0 0.0
  %526 = vmatprep.subr.mxu0 0.0
  %527 = vmatpush1.msra.mxu0 0.0
  %528 = vmatprep.subr.mxu0 0.0
  %529 = vmatpush1.msra.mxu0 0.0
  %530 = vmatprep.subr.mxu0 0.0
  %531 = vmatpush1.msra.mxu0 0.0
  %532 = vmatprep.subr.mxu0 0.0
  %533 = vmatpush1.msra.mxu0 0.0
  %534 = vmatprep.subr.mxu0 0.0
  %535 = vmatpush1.msra.mxu0 0.0
  %536 = vmatprep.subr.mxu0 0.0
  %537 = vmatpush1.msra.mxu0 0.0
  %538 = vmatprep.subr.mxu0 0.0
  %539 = vmatpush1.msra.mxu0 0.0
  %540 = vmatprep.subr.mxu0 0.0
  %541 = vmatpush1.msra.mxu0 0.0
  %542 = vmatprep.subr.mxu0 0.0
  %543 = vmatpush1.msra.mxu0 0.0
  %544 = vmatprep.subr.mxu0 0.0
  %545 = vmatpush1.msra.mxu0 %v67
  %546 = vmatprep.subr.mxu0 0.0
  %547 = vmatpush1.msra.mxu0 %v66
  %548 = vmatprep.subr.mxu0 0.0
  %549 = vmatpush1.msra.mxu0 %v65
  %550 = vmatprep.subr.mxu0 0.0
  %551 = vmatpush1.msra.mxu0 %v64
  %552 = vmatprep.subr.mxu0 0.0
  %553 = vmatpush2.msra.mxu0 0.0
  %554 = vmatprep.subr.mxu0 0.0
  %555 = vmatpush2.msra.mxu0 0.0
  %556 = vmatprep.subr.mxu0 0.0
  %557 = vmatpush2.msra.mxu0 0.0
  %558 = vmatprep.subr.mxu0 0.0
  %559 = vmatpush2.msra.mxu0 0.0
  %560 = vmatprep.subr.mxu0 0.0
  %561 = vmatpush2.msra.mxu0 0.0
  %562 = vmatprep.subr.mxu0 0.0
  %563 = vmatpush2.msra.mxu0 0.0
  %564 = vmatprep.subr.mxu0 0.0
  %565 = vmatpush2.msra.mxu0 0.0
  %566 = vmatprep.subr.mxu0 0.0
  %567 = vmatpush2.msra.mxu0 0.0
  %568 = vmatprep.subr.mxu0 0.0
  %569 = vmatpush2.msra.mxu0 0.0
  %570 = vmatprep.subr.mxu0 0.0
  %571 = vmatpush2.msra.mxu0 0.0
  %572 = vmatprep.subr.mxu0 0.0
  %573 = vmatpush2.msra.mxu0 0.0
  %574 = vmatprep.subr.mxu0 0.0
  %575 = vmatpush2.msra.mxu0 0.0
  %576 = vmatprep.subr.mxu0 0.0
  %577 = vmatpush2.msra.mxu0 0.0
  %578 = vmatprep.subr.mxu0 0.0
  %579 = vmatpush2.msra.mxu0 0.0
  %580 = vmatprep.subr.mxu0 0.0
  %581 = vmatpush2.msra.mxu0 0.0
  %582 = vmatprep.subr.mxu0 0.0
  %583 = vmatpush2.msra.mxu0 0.0
  %584 = vmatprep.mubr.f32.mxu0 0.0
  %585 = vmatmul.mubr.f32.gmra.mxu0 %v518
  %v586 = vpop.f32.mrf.mxu0
  %v587 = vadd.f32 0.0, %v586
  %v588 = vpop.f32.mrf.mxu0
  %589 = vdwg.mxu0
  %v590 = vadd.f32 %v517, %v587
  %v591 = vxor.u32 %v590, 2147483648
  %v592 = vmul.f32 %v591, 1.442695
  %v593 = vpow.pop %v592
  %v594 = vadd.f32 %v593, 1.0
  %v595 = vrcp.pop %v594
  %v596 = vmul.f32 1.0, %v595
  %v597 = vtanh.pop %v590
  %v598 = vmul.f32 %v596, %v504
  %600 = vrot.lane.b32.xlu0 %v597, 32
  %v601 = vpop.permute.xlu0 %600
  %v603 = vmul.f32 %v596, %v601
  %605 = vrot.lane.b32.xlu0 %v603, 32
  %v606 = vpop.permute.xlu0 %605
  %v608 = vadd.f32 %v598, %v606
  %v609 = vtanh.pop %v608
  %611 = vrot.lane.b32.xlu0 %v609, 32
  %v612 = vpop.permute.xlu0 %611
  %v614 = vmul.f32 %v596, %v612
  %616 = vrot.lane.b32.xlu0 %v614, 64
  %v617 = vpop.permute.xlu0 %616
  %s619 = scalar_lea.vmem [#allocation3], 8
  %620 = vst.msk [vmem:[%s619] sm:$0xff] %vm412, %v617
  %s621 = scalar_lea.vmem [#allocation2], 16
  %v622 = vld [vmem:[%s621] sm:$0xff]
  %v623 = vsel %vm412, %v617, 0
  %625 = vmatprep.subr.mxu0 0.0
  %626 = vmatpush1.msra.mxu0 0.0
  %627 = vmatprep.subr.mxu0 0.0
  %628 = vmatpush1.msra.mxu0 0.0
  %629 = vmatprep.subr.mxu0 0.0
  %630 = vmatpush1.msra.mxu0 0.0
  %631 = vmatprep.subr.mxu0 0.0
  %632 = vmatpush1.msra.mxu0 0.0
  %633 = vmatprep.subr.mxu0 0.0
  %634 = vmatpush1.msra.mxu0 0.0
  %635 = vmatprep.subr.mxu0 0.0
  %636 = vmatpush1.msra.mxu0 0.0
  %637 = vmatprep.subr.mxu0 0.0
  %638 = vmatpush1.msra.mxu0 0.0
  %639 = vmatprep.subr.mxu0 0.0
  %640 = vmatpush1.msra.mxu0 0.0
  %641 = vmatprep.subr.mxu0 0.0
  %642 = vmatpush1.msra.mxu0 0.0
  %643 = vmatprep.subr.mxu0 0.0
  %644 = vmatpush1.msra.mxu0 0.0
  %645 = vmatprep.subr.mxu0 0.0
  %646 = vmatpush1.msra.mxu0 0.0
  %647 = vmatprep.subr.mxu0 0.0
  %648 = vmatpush1.msra.mxu0 0.0
  %649 = vmatprep.subr.mxu0 0.0
  %650 = vmatpush1.msra.mxu0 %v67
  %651 = vmatprep.subr.mxu0 0.0
  %652 = vmatpush1.msra.mxu0 %v66
  %653 = vmatprep.subr.mxu0 0.0
  %654 = vmatpush1.msra.mxu0 %v65
  %655 = vmatprep.subr.mxu0 0.0
  %656 = vmatpush1.msra.mxu0 %v64
  %657 = vmatprep.subr.mxu0 0.0
  %658 = vmatpush2.msra.mxu0 0.0
  %659 = vmatprep.subr.mxu0 0.0
  %660 = vmatpush2.msra.mxu0 0.0
  %661 = vmatprep.subr.mxu0 0.0
  %662 = vmatpush2.msra.mxu0 0.0
  %663 = vmatprep.subr.mxu0 0.0
  %664 = vmatpush2.msra.mxu0 0.0
  %665 = vmatprep.subr.mxu0 0.0
  %666 = vmatpush2.msra.mxu0 0.0
  %667 = vmatprep.subr.mxu0 0.0
  %668 = vmatpush2.msra.mxu0 0.0
  %669 = vmatprep.subr.mxu0 0.0
  %670 = vmatpush2.msra.mxu0 0.0
  %671 = vmatprep.subr.mxu0 0.0
  %672 = vmatpush2.msra.mxu0 0.0
  %673 = vmatprep.subr.mxu0 0.0
  %674 = vmatpush2.msra.mxu0 0.0
  %675 = vmatprep.subr.mxu0 0.0
  %676 = vmatpush2.msra.mxu0 0.0
  %677 = vmatprep.subr.mxu0 0.0
  %678 = vmatpush2.msra.mxu0 0.0
  %679 = vmatprep.subr.mxu0 0.0
  %680 = vmatpush2.msra.mxu0 0.0
  %681 = vmatprep.subr.mxu0 0.0
  %682 = vmatpush2.msra.mxu0 0.0
  %683 = vmatprep.subr.mxu0 0.0
  %684 = vmatpush2.msra.mxu0 0.0
  %685 = vmatprep.subr.mxu0 0.0
  %686 = vmatpush2.msra.mxu0 0.0
  %687 = vmatprep.subr.mxu0 0.0
  %688 = vmatpush2.msra.mxu0 0.0
  %689 = vmatprep.mubr.f32.mxu0 0.0
  %690 = vmatmul.mubr.f32.gmra.mxu0 %v623
  %v691 = vpop.f32.mrf.mxu0
  %v692 = vadd.f32 0.0, %v691
  %v693 = vpop.f32.mrf.mxu0
  %694 = vdwg.mxu0
  %v695 = vadd.f32 %v622, %v692
  %v696 = vxor.u32 %v695, 2147483648
  %v697 = vmul.f32 %v696, 1.442695
  %v698 = vpow.pop %v697
  %v699 = vadd.f32 %v698, 1.0
  %v700 = vrcp.pop %v699
  %v701 = vmul.f32 1.0, %v700
  %v702 = vtanh.pop %v695
  %v703 = vmul.f32 %v701, %v608
  %705 = vrot.lane.b32.xlu0 %v702, 32
  %v706 = vpop.permute.xlu0 %705
  %v708 = vmul.f32 %v701, %v706
  %710 = vrot.lane.b32.xlu0 %v708, 32
  %v711 = vpop.permute.xlu0 %710
  %v713 = vadd.f32 %v703, %v711
  %v714 = vtanh.pop %v713
  %716 = vrot.lane.b32.xlu0 %v714, 32
  %v717 = vpop.permute.xlu0 %716
  %v719 = vmul.f32 %v701, %v717
  %721 = vrot.lane.b32.xlu0 %v719, 64
  %v722 = vpop.permute.xlu0 %721
  %s724 = scalar_lea.vmem [#allocation3], 16
  %725 = vst.msk [vmem:[%s724] sm:$0xff] %vm412, %v722
  %s726 = scalar_lea.vmem [#allocation2], 24
  %v727 = vld [vmem:[%s726] sm:$0xff]
  %v728 = vsel %vm412, %v722, 0
  %730 = vmatprep.subr.mxu0 0.0
  %731 = vmatpush1.msra.mxu0 0.0
  %732 = vmatprep.subr.mxu0 0.0
  %733 = vmatpush1.msra.mxu0 0.0
  %734 = vmatprep.subr.mxu0 0.0
  %735 = vmatpush1.msra.mxu0 0.0
  %736 = vmatprep.subr.mxu0 0.0
  %737 = vmatpush1.msra.mxu0 0.0
  %738 = vmatprep.subr.mxu0 0.0
  %739 = vmatpush1.msra.mxu0 0.0
  %740 = vmatprep.subr.mxu0 0.0
  %741 = vmatpush1.msra.mxu0 0.0
  %742 = vmatprep.subr.mxu0 0.0
  %743 = vmatpush1.msra.mxu0 0.0
  %744 = vmatprep.subr.mxu0 0.0
  %745 = vmatpush1.msra.mxu0 0.0
  %746 = vmatprep.subr.mxu0 0.0
  %747 = vmatpush1.msra.mxu0 0.0
  %748 = vmatprep.subr.mxu0 0.0
  %749 = vmatpush1.msra.mxu0 0.0
  %750 = vmatprep.subr.mxu0 0.0
  %751 = vmatpush1.msra.mxu0 0.0
  %752 = vmatprep.subr.mxu0 0.0
  %753 = vmatpush1.msra.mxu0 0.0
  %754 = vmatprep.subr.mxu0 0.0
  %755 = vmatpush1.msra.mxu0 %v67
  %756 = vmatprep.subr.mxu0 0.0
  %757 = vmatpush1.msra.mxu0 %v66
  %758 = vmatprep.subr.mxu0 0.0
  %759 = vmatpush1.msra.mxu0 %v65
  %760 = vmatprep.subr.mxu0 0.0
  %761 = vmatpush1.msra.mxu0 %v64
  %762 = vmatprep.subr.mxu0 0.0
  %763 = vmatpush2.msra.mxu0 0.0
  %764 = vmatprep.subr.mxu0 0.0
  %765 = vmatpush2.msra.mxu0 0.0
  %766 = vmatprep.subr.mxu0 0.0
  %767 = vmatpush2.msra.mxu0 0.0
  %768 = vmatprep.subr.mxu0 0.0
  %769 = vmatpush2.msra.mxu0 0.0
  %770 = vmatprep.subr.mxu0 0.0
  %771 = vmatpush2.msra.mxu0 0.0
  %772 = vmatprep.subr.mxu0 0.0
  %773 = vmatpush2.msra.mxu0 0.0
  %774 = vmatprep.subr.mxu0 0.0
  %775 = vmatpush2.msra.mxu0 0.0
  %776 = vmatprep.subr.mxu0 0.0
  %777 = vmatpush2.msra.mxu0 0.0
  %778 = vmatprep.subr.mxu0 0.0
  %779 = vmatpush2.msra.mxu0 0.0
  %780 = vmatprep.subr.mxu0 0.0
  %781 = vmatpush2.msra.mxu0 0.0
  %782 = vmatprep.subr.mxu0 0.0
  %783 = vmatpush2.msra.mxu0 0.0
  %784 = vmatprep.subr.mxu0 0.0
  %785 = vmatpush2.msra.mxu0 0.0
  %786 = vmatprep.subr.mxu0 0.0
  %787 = vmatpush2.msra.mxu0 0.0
  %788 = vmatprep.subr.mxu0 0.0
  %789 = vmatpush2.msra.mxu0 0.0
  %790 = vmatprep.subr.mxu0 0.0
  %791 = vmatpush2.msra.mxu0 0.0
  %792 = vmatprep.subr.mxu0 0.0
  %793 = vmatpush2.msra.mxu0 0.0
  %794 = vmatprep.mubr.f32.mxu0 0.0
  %795 = vmatmul.mubr.f32.gmra.mxu0 %v728
  %v796 = vpop.f32.mrf.mxu0
  %v797 = vadd.f32 0.0, %v796
  %v798 = vpop.f32.mrf.mxu0
  %799 = vdwg.mxu0
  %v800 = vadd.f32 %v727, %v797
  %v801 = vxor.u32 %v800, 2147483648
  %v802 = vmul.f32 %v801, 1.442695
  %v803 = vpow.pop %v802
  %v804 = vadd.f32 %v803, 1.0
  %v805 = vrcp.pop %v804
  %v806 = vmul.f32 1.0, %v805
  %v807 = vtanh.pop %v800
  %v808 = vmul.f32 %v806, %v713
  %810 = vrot.lane.b32.xlu0 %v807, 32
  %v811 = vpop.permute.xlu0 %810
  %v813 = vmul.f32 %v806, %v811
  %815 = vrot.lane.b32.xlu0 %v813, 32
  %v816 = vpop.permute.xlu0 %815
  %v818 = vadd.f32 %v808, %v816
  %v819 = vtanh.pop %v818
  %821 = vrot.lane.b32.xlu0 %v819, 32
  %v822 = vpop.permute.xlu0 %821
  %v824 = vmul.f32 %v806, %v822
  %826 = vrot.lane.b32.xlu0 %v824, 64
  %v827 = vpop.permute.xlu0 %826
  %s829 = scalar_lea.vmem [#allocation3], 24
  %830 = vst.msk [vmem:[%s829] sm:$0xff] %vm412, %v827
  %s831 = scalar_lea.vmem [#allocation2], 32
  %v832 = vld [vmem:[%s831] sm:$0xff]
  %v833 = vsel %vm412, %v827, 0
  %835 = vmatprep.subr.mxu0 0.0
  %836 = vmatpush1.msra.mxu0 0.0
  %837 = vmatprep.subr.mxu0 0.0
  %838 = vmatpush1.msra.mxu0 0.0
  %839 = vmatprep.subr.mxu0 0.0
  %840 = vmatpush1.msra.mxu0 0.0
  %841 = vmatprep.subr.mxu0 0.0
  %842 = vmatpush1.msra.mxu0 0.0
  %843 = vmatprep.subr.mxu0 0.0
  %844 = vmatpush1.msra.mxu0 0.0
  %845 = vmatprep.subr.mxu0 0.0
  %846 = vmatpush1.msra.mxu0 0.0
  %847 = vmatprep.subr.mxu0 0.0
  %848 = vmatpush1.msra.mxu0 0.0
  %849 = vmatprep.subr.mxu0 0.0
  %850 = vmatpush1.msra.mxu0 0.0
  %851 = vmatprep.subr.mxu0 0.0
  %852 = vmatpush1.msra.mxu0 0.0
  %853 = vmatprep.subr.mxu0 0.0
  %854 = vmatpush1.msra.mxu0 0.0
  %855 = vmatprep.subr.mxu0 0.0
  %856 = vmatpush1.msra.mxu0 0.0
  %857 = vmatprep.subr.mxu0 0.0
  %858 = vmatpush1.msra.mxu0 0.0
  %859 = vmatprep.subr.mxu0 0.0
  %860 = vmatpush1.msra.mxu0 %v67
  %861 = vmatprep.subr.mxu0 0.0
  %862 = vmatpush1.msra.mxu0 %v66
  %863 = vmatprep.subr.mxu0 0.0
  %864 = vmatpush1.msra.mxu0 %v65
  %865 = vmatprep.subr.mxu0 0.0
  %866 = vmatpush1.msra.mxu0 %v64
  %867 = vmatprep.subr.mxu0 0.0
  %868 = vmatpush2.msra.mxu0 0.0
  %869 = vmatprep.subr.mxu0 0.0
  %870 = vmatpush2.msra.mxu0 0.0
  %871 = vmatprep.subr.mxu0 0.0
  %872 = vmatpush2.msra.mxu0 0.0
  %873 = vmatprep.subr.mxu0 0.0
  %874 = vmatpush2.msra.mxu0 0.0
  %875 = vmatprep.subr.mxu0 0.0
  %876 = vmatpush2.msra.mxu0 0.0
  %877 = vmatprep.subr.mxu0 0.0
  %878 = vmatpush2.msra.mxu0 0.0
  %879 = vmatprep.subr.mxu0 0.0
  %880 = vmatpush2.msra.mxu0 0.0
  %881 = vmatprep.subr.mxu0 0.0
  %882 = vmatpush2.msra.mxu0 0.0
  %883 = vmatprep.subr.mxu0 0.0
  %884 = vmatpush2.msra.mxu0 0.0
  %885 = vmatprep.subr.mxu0 0.0
  %886 = vmatpush2.msra.mxu0 0.0
  %887 = vmatprep.subr.mxu0 0.0
  %888 = vmatpush2.msra.mxu0 0.0
  %889 = vmatprep.subr.mxu0 0.0
  %890 = vmatpush2.msra.mxu0 0.0
  %891 = vmatprep.subr.mxu0 0.0
  %892 = vmatpush2.msra.mxu0 0.0
  %893 = vmatprep.subr.mxu0 0.0
  %894 = vmatpush2.msra.mxu0 0.0
  %895 = vmatprep.subr.mxu0 0.0
  %896 = vmatpush2.msra.mxu0 0.0
  %897 = vmatprep.subr.mxu0 0.0
  %898 = vmatpush2.msra.mxu0 0.0
  %899 = vmatprep.mubr.f32.mxu0 0.0
  %900 = vmatmul.mubr.f32.gmra.mxu0 %v833
  %v901 = vpop.f32.mrf.mxu0
  %v902 = vadd.f32 0.0, %v901
  %v903 = vpop.f32.mrf.mxu0
  %904 = vdwg.mxu0
  %v905 = vadd.f32 %v832, %v902
  %v906 = vxor.u32 %v905, 2147483648
  %v907 = vmul.f32 %v906, 1.442695
  %v908 = vpow.pop %v907
  %v909 = vadd.f32 %v908, 1.0
  %v910 = vrcp.pop %v909
  %v911 = vmul.f32 1.0, %v910
  %v912 = vtanh.pop %v905
  %v913 = vmul.f32 %v911, %v818
  %915 = vrot.lane.b32.xlu0 %v912, 32
  %v916 = vpop.permute.xlu0 %915
  %v918 = vmul.f32 %v911, %v916
  %920 = vrot.lane.b32.xlu0 %v918, 32
  %v921 = vpop.permute.xlu0 %920
  %v923 = vadd.f32 %v913, %v921
  %v924 = vtanh.pop %v923
  %926 = vrot.lane.b32.xlu0 %v924, 32
  %v927 = vpop.permute.xlu0 %926
  %v929 = vmul.f32 %v911, %v927
  %931 = vrot.lane.b32.xlu0 %v929, 64
  %v932 = vpop.permute.xlu0 %931
  %s934 = scalar_lea.vmem [#allocation3], 32
  %935 = vst.msk [vmem:[%s934] sm:$0xff] %vm412, %v932
  %s936 = scalar_lea.vmem [#allocation2], 40
  %v937 = vld [vmem:[%s936] sm:$0xff]
  %v938 = vsel %vm412, %v932, 0
  %940 = vmatprep.subr.mxu0 0.0
  %941 = vmatpush1.msra.mxu0 0.0
  %942 = vmatprep.subr.mxu0 0.0
  %943 = vmatpush1.msra.mxu0 0.0
  %944 = vmatprep.subr.mxu0 0.0
  %945 = vmatpush1.msra.mxu0 0.0
  %946 = vmatprep.subr.mxu0 0.0
  %947 = vmatpush1.msra.mxu0 0.0
  %948 = vmatprep.subr.mxu0 0.0
  %949 = vmatpush1.msra.mxu0 0.0
  %950 = vmatprep.subr.mxu0 0.0
  %951 = vmatpush1.msra.mxu0 0.0
  %952 = vmatprep.subr.mxu0 0.0
  %953 = vmatpush1.msra.mxu0 0.0
  %954 = vmatprep.subr.mxu0 0.0
  %955 = vmatpush1.msra.mxu0 0.0
  %956 = vmatprep.subr.mxu0 0.0
  %957 = vmatpush1.msra.mxu0 0.0
  %958 = vmatprep.subr.mxu0 0.0
  %959 = vmatpush1.msra.mxu0 0.0
  %960 = vmatprep.subr.mxu0 0.0
  %961 = vmatpush1.msra.mxu0 0.0
  %962 = vmatprep.subr.mxu0 0.0
  %963 = vmatpush1.msra.mxu0 0.0
  %964 = vmatprep.subr.mxu0 0.0
  %965 = vmatpush1.msra.mxu0 %v67
  %966 = vmatprep.subr.mxu0 0.0
  %967 = vmatpush1.msra.mxu0 %v66
  %968 = vmatprep.subr.mxu0 0.0
  %969 = vmatpush1.msra.mxu0 %v65
  %970 = vmatprep.subr.mxu0 0.0
  %971 = vmatpush1.msra.mxu0 %v64
  %972 = vmatprep.subr.mxu0 0.0
  %973 = vmatpush2.msra.mxu0 0.0
  %974 = vmatprep.subr.mxu0 0.0
  %975 = vmatpush2.msra.mxu0 0.0
  %976 = vmatprep.subr.mxu0 0.0
  %977 = vmatpush2.msra.mxu0 0.0
  %978 = vmatprep.subr.mxu0 0.0
  %979 = vmatpush2.msra.mxu0 0.0
  %980 = vmatprep.subr.mxu0 0.0
  %981 = vmatpush2.msra.mxu0 0.0
  %982 = vmatprep.subr.mxu0 0.0
  %983 = vmatpush2.msra.mxu0 0.0
  %984 = vmatprep.subr.mxu0 0.0
  %985 = vmatpush2.msra.mxu0 0.0
  %986 = vmatprep.subr.mxu0 0.0
  %987 = vmatpush2.msra.mxu0 0.0
  %988 = vmatprep.subr.mxu0 0.0
  %989 = vmatpush2.msra.mxu0 0.0
  %990 = vmatprep.subr.mxu0 0.0
  %991 = vmatpush2.msra.mxu0 0.0
  %992 = vmatprep.subr.mxu0 0.0
  %993 = vmatpush2.msra.mxu0 0.0
  %994 = vmatprep.subr.mxu0 0.0
  %995 = vmatpush2.msra.mxu0 0.0
  %996 = vmatprep.subr.mxu0 0.0
  %997 = vmatpush2.msra.mxu0 0.0
  %998 = vmatprep.subr.mxu0 0.0
  %999 = vmatpush2.msra.mxu0 0.0
  %1000 = vmatprep.subr.mxu0 0.0
  %1001 = vmatpush2.msra.mxu0 0.0
  %1002 = vmatprep.subr.mxu0 0.0
  %1003 = vmatpush2.msra.mxu0 0.0
  %1004 = vmatprep.mubr.f32.mxu0 0.0
  %1005 = vmatmul.mubr.f32.gmra.mxu0 %v938
  %v1006 = vpop.f32.mrf.mxu0
  %v1007 = vadd.f32 0.0, %v1006
  %v1008 = vpop.f32.mrf.mxu0
  %1009 = vdwg.mxu0
  %v1010 = vadd.f32 %v937, %v1007
  %v1011 = vxor.u32 %v1010, 2147483648
  %v1012 = vmul.f32 %v1011, 1.442695
  %v1013 = vpow.pop %v1012
  %v1014 = vadd.f32 %v1013, 1.0
  %v1015 = vrcp.pop %v1014
  %v1016 = vmul.f32 1.0, %v1015
  %v1017 = vtanh.pop %v1010
  %v1018 = vmul.f32 %v1016, %v923
  %1020 = vrot.lane.b32.xlu0 %v1017, 32
  %v1021 = vpop.permute.xlu0 %1020
  %v1023 = vmul.f32 %v1016, %v1021
  %1025 = vrot.lane.b32.xlu0 %v1023, 32
  %v1026 = vpop.permute.xlu0 %1025
  %v1028 = vadd.f32 %v1018, %v1026
  %v1029 = vtanh.pop %v1028
  %1031 = vrot.lane.b32.xlu0 %v1029, 32
  %v1032 = vpop.permute.xlu0 %1031
  %v1034 = vmul.f32 %v1016, %v1032
  %1036 = vrot.lane.b32.xlu0 %v1034, 64
  %v1037 = vpop.permute.xlu0 %1036
  %s1039 = scalar_lea.vmem [#allocation3], 40
  %1040 = vst.msk [vmem:[%s1039] sm:$0xff] %vm412, %v1037
  %s1041 = scalar_lea.vmem [#allocation2], 48
  %v1042 = vld [vmem:[%s1041] sm:$0xff]
  %v1043 = vsel %vm412, %v1037, 0
  %1045 = vmatprep.subr.mxu0 0.0
  %1046 = vmatpush1.msra.mxu0 0.0
  %1047 = vmatprep.subr.mxu0 0.0
  %1048 = vmatpush1.msra.mxu0 0.0
  %1049 = vmatprep.subr.mxu0 0.0
  %1050 = vmatpush1.msra.mxu0 0.0
  %1051 = vmatprep.subr.mxu0 0.0
  %1052 = vmatpush1.msra.mxu0 0.0
  %1053 = vmatprep.subr.mxu0 0.0
  %1054 = vmatpush1.msra.mxu0 0.0
  %1055 = vmatprep.subr.mxu0 0.0
  %1056 = vmatpush1.msra.mxu0 0.0
  %1057 = vmatprep.subr.mxu0 0.0
  %1058 = vmatpush1.msra.mxu0 0.0
  %1059 = vmatprep.subr.mxu0 0.0
  %1060 = vmatpush1.msra.mxu0 0.0
  %1061 = vmatprep.subr.mxu0 0.0
  %1062 = vmatpush1.msra.mxu0 0.0
  %1063 = vmatprep.subr.mxu0 0.0
  %1064 = vmatpush1.msra.mxu0 0.0
  %1065 = vmatprep.subr.mxu0 0.0
  %1066 = vmatpush1.msra.mxu0 0.0
  %1067 = vmatprep.subr.mxu0 0.0
  %1068 = vmatpush1.msra.mxu0 0.0
  %1069 = vmatprep.subr.mxu0 0.0
  %1070 = vmatpush1.msra.mxu0 %v67
  %1071 = vmatprep.subr.mxu0 0.0
  %1072 = vmatpush1.msra.mxu0 %v66
  %1073 = vmatprep.subr.mxu0 0.0
  %1074 = vmatpush1.msra.mxu0 %v65
  %1075 = vmatprep.subr.mxu0 0.0
  %1076 = vmatpush1.msra.mxu0 %v64
  %1077 = vmatprep.subr.mxu0 0.0
  %1078 = vmatpush2.msra.mxu0 0.0
  %1079 = vmatprep.subr.mxu0 0.0
  %1080 = vmatpush2.msra.mxu0 0.0
  %1081 = vmatprep.subr.mxu0 0.0
  %1082 = vmatpush2.msra.mxu0 0.0
  %1083 = vmatprep.subr.mxu0 0.0
  %1084 = vmatpush2.msra.mxu0 0.0
  %1085 = vmatprep.subr.mxu0 0.0
  %1086 = vmatpush2.msra.mxu0 0.0
  %1087 = vmatprep.subr.mxu0 0.0
  %1088 = vmatpush2.msra.mxu0 0.0
  %1089 = vmatprep.subr.mxu0 0.0
  %1090 = vmatpush2.msra.mxu0 0.0
  %1091 = vmatprep.subr.mxu0 0.0
  %1092 = vmatpush2.msra.mxu0 0.0
  %1093 = vmatprep.subr.mxu0 0.0
  %1094 = vmatpush2.msra.mxu0 0.0
  %1095 = vmatprep.subr.mxu0 0.0
  %1096 = vmatpush2.msra.mxu0 0.0
  %1097 = vmatprep.subr.mxu0 0.0
  %1098 = vmatpush2.msra.mxu0 0.0
  %1099 = vmatprep.subr.mxu0 0.0
  %1100 = vmatpush2.msra.mxu0 0.0
  %1101 = vmatprep.subr.mxu0 0.0
  %1102 = vmatpush2.msra.mxu0 0.0
  %1103 = vmatprep.subr.mxu0 0.0
  %1104 = vmatpush2.msra.mxu0 0.0
  %1105 = vmatprep.subr.mxu0 0.0
  %1106 = vmatpush2.msra.mxu0 0.0
  %1107 = vmatprep.subr.mxu0 0.0
  %1108 = vmatpush2.msra.mxu0 0.0
  %1109 = vmatprep.mubr.f32.mxu0 0.0
  %1110 = vmatmul.mubr.f32.gmra.mxu0 %v1043
  %v1111 = vpop.f32.mrf.mxu0
  %v1112 = vadd.f32 0.0, %v1111
  %v1113 = vpop.f32.mrf.mxu0
  %1114 = vdwg.mxu0
  %v1115 = vadd.f32 %v1042, %v1112
  %v1116 = vxor.u32 %v1115, 2147483648
  %v1117 = vmul.f32 %v1116, 1.442695
  %v1118 = vpow.pop %v1117
  %v1119 = vadd.f32 %v1118, 1.0
  %v1120 = vrcp.pop %v1119
  %v1121 = vmul.f32 1.0, %v1120
  %v1122 = vtanh.pop %v1115
  %v1123 = vmul.f32 %v1121, %v1028
  %1125 = vrot.lane.b32.xlu0 %v1122, 32
  %v1126 = vpop.permute.xlu0 %1125
  %v1128 = vmul.f32 %v1121, %v1126
  %1130 = vrot.lane.b32.xlu0 %v1128, 32
  %v1131 = vpop.permute.xlu0 %1130
  %v1133 = vadd.f32 %v1123, %v1131
  %v1134 = vtanh.pop %v1133
  %1136 = vrot.lane.b32.xlu0 %v1134, 32
  %v1137 = vpop.permute.xlu0 %1136
  %v1139 = vmul.f32 %v1121, %v1137
  %1141 = vrot.lane.b32.xlu0 %v1139, 64
  %v1142 = vpop.permute.xlu0 %1141
  %s1144 = scalar_lea.vmem [#allocation3], 48
  %1145 = vst.msk [vmem:[%s1144] sm:$0xff] %vm412, %v1142
  %s1146 = scalar_lea.vmem [#allocation2], 56
  %v1147 = vld [vmem:[%s1146] sm:$0xff]
  %v1148 = vsel %vm412, %v1142, 0
  %1150 = vmatprep.subr.mxu0 0.0
  %1151 = vmatpush1.msra.mxu0 0.0
  %1152 = vmatprep.subr.mxu0 0.0
  %1153 = vmatpush1.msra.mxu0 0.0
  %1154 = vmatprep.subr.mxu0 0.0
  %1155 = vmatpush1.msra.mxu0 0.0
  %1156 = vmatprep.subr.mxu0 0.0
  %1157 = vmatpush1.msra.mxu0 0.0
  %1158 = vmatprep.subr.mxu0 0.0
  %1159 = vmatpush1.msra.mxu0 0.0
  %1160 = vmatprep.subr.mxu0 0.0
  %1161 = vmatpush1.msra.mxu0 0.0
  %1162 = vmatprep.subr.mxu0 0.0
  %1163 = vmatpush1.msra.mxu0 0.0
  %1164 = vmatprep.subr.mxu0 0.0
  %1165 = vmatpush1.msra.mxu0 0.0
  %1166 = vmatprep.subr.mxu0 0.0
  %1167 = vmatpush1.msra.mxu0 0.0
  %1168 = vmatprep.subr.mxu0 0.0
  %1169 = vmatpush1.msra.mxu0 0.0
  %1170 = vmatprep.subr.mxu0 0.0
  %1171 = vmatpush1.msra.mxu0 0.0
  %1172 = vmatprep.subr.mxu0 0.0
  %1173 = vmatpush1.msra.mxu0 0.0
  %1174 = vmatprep.subr.mxu0 0.0
  %1175 = vmatpush1.msra.mxu0 %v67
  %1176 = vmatprep.subr.mxu0 0.0
  %1177 = vmatpush1.msra.mxu0 %v66
  %1178 = vmatprep.subr.mxu0 0.0
  %1179 = vmatpush1.msra.mxu0 %v65
  %1180 = vmatprep.subr.mxu0 0.0
  %1181 = vmatpush1.msra.mxu0 %v64
  %1182 = vmatprep.subr.mxu0 0.0
  %1183 = vmatpush2.msra.mxu0 0.0
  %1184 = vmatprep.subr.mxu0 0.0
  %1185 = vmatpush2.msra.mxu0 0.0
  %1186 = vmatprep.subr.mxu0 0.0
  %1187 = vmatpush2.msra.mxu0 0.0
  %1188 = vmatprep.subr.mxu0 0.0
  %1189 = vmatpush2.msra.mxu0 0.0
  %1190 = vmatprep.subr.mxu0 0.0
  %1191 = vmatpush2.msra.mxu0 0.0
  %1192 = vmatprep.subr.mxu0 0.0
  %1193 = vmatpush2.msra.mxu0 0.0
  %1194 = vmatprep.subr.mxu0 0.0
  %1195 = vmatpush2.msra.mxu0 0.0
  %1196 = vmatprep.subr.mxu0 0.0
  %1197 = vmatpush2.msra.mxu0 0.0
  %1198 = vmatprep.subr.mxu0 0.0
  %1199 = vmatpush2.msra.mxu0 0.0
  %1200 = vmatprep.subr.mxu0 0.0
  %1201 = vmatpush2.msra.mxu0 0.0
  %1202 = vmatprep.subr.mxu0 0.0
  %1203 = vmatpush2.msra.mxu0 0.0
  %1204 = vmatprep.subr.mxu0 0.0
  %1205 = vmatpush2.msra.mxu0 0.0
  %1206 = vmatprep.subr.mxu0 0.0
  %1207 = vmatpush2.msra.mxu0 0.0
  %1208 = vmatprep.subr.mxu0 0.0
  %1209 = vmatpush2.msra.mxu0 0.0
  %1210 = vmatprep.subr.mxu0 0.0
  %1211 = vmatpush2.msra.mxu0 0.0
  %1212 = vmatprep.subr.mxu0 0.0
  %1213 = vmatpush2.msra.mxu0 0.0
  %1214 = vmatprep.mubr.f32.mxu0 0.0
  %1215 = vmatmul.mubr.f32.gmra.mxu0 %v1148
  %v1216 = vpop.f32.mrf.mxu0
  %v1217 = vadd.f32 0.0, %v1216
  %v1218 = vpop.f32.mrf.mxu0
  %1219 = vdwg.mxu0
  %v1220 = vadd.f32 %v1147, %v1217
  %v1221 = vxor.u32 %v1220, 2147483648
  %v1222 = vmul.f32 %v1221, 1.442695
  %v1223 = vpow.pop %v1222
  %v1224 = vadd.f32 %v1223, 1.0
  %v1225 = vrcp.pop %v1224
  %v1226 = vmul.f32 1.0, %v1225
  %v1227 = vtanh.pop %v1220
  %v1228 = vmul.f32 %v1226, %v1133
  %1230 = vrot.lane.b32.xlu0 %v1227, 32
  %v1231 = vpop.permute.xlu0 %1230
  %v1233 = vmul.f32 %v1226, %v1231
  %1235 = vrot.lane.b32.xlu0 %v1233, 32
  %v1236 = vpop.permute.xlu0 %1235
  %v1238 = vadd.f32 %v1228, %v1236
  %v1239 = vtanh.pop %v1238
  %1241 = vrot.lane.b32.xlu0 %v1239, 32
  %v1242 = vpop.permute.xlu0 %1241
  %v1244 = vmul.f32 %v1226, %v1242
  %1246 = vrot.lane.b32.xlu0 %v1244, 64
  %v1247 = vpop.permute.xlu0 %1246
  %s1249 = scalar_lea.vmem [#allocation3], 56
  %1250 = vst.msk [vmem:[%s1249] sm:$0xff] %vm412, %v1247
  %s1251 = scalar_lea.vmem [#allocation2], 64
  %v1252 = vld [vmem:[%s1251] sm:$0xff]
  %v1253 = vsel %vm412, %v1247, 0
  %1255 = vmatprep.subr.mxu0 0.0
  %1256 = vmatpush1.msra.mxu0 0.0
  %1257 = vmatprep.subr.mxu0 0.0
  %1258 = vmatpush1.msra.mxu0 0.0
  %1259 = vmatprep.subr.mxu0 0.0
  %1260 = vmatpush1.msra.mxu0 0.0
  %1261 = vmatprep.subr.mxu0 0.0
  %1262 = vmatpush1.msra.mxu0 0.0
  %1263 = vmatprep.subr.mxu0 0.0
  %1264 = vmatpush1.msra.mxu0 0.0
  %1265 = vmatprep.subr.mxu0 0.0
  %1266 = vmatpush1.msra.mxu0 0.0
  %1267 = vmatprep.subr.mxu0 0.0
  %1268 = vmatpush1.msra.mxu0 0.0
  %1269 = vmatprep.subr.mxu0 0.0
  %1270 = vmatpush1.msra.mxu0 0.0
  %1271 = vmatprep.subr.mxu0 0.0
  %1272 = vmatpush1.msra.mxu0 0.0
  %1273 = vmatprep.subr.mxu0 0.0
  %1274 = vmatpush1.msra.mxu0 0.0
  %1275 = vmatprep.subr.mxu0 0.0
  %1276 = vmatpush1.msra.mxu0 0.0
  %1277 = vmatprep.subr.mxu0 0.0
  %1278 = vmatpush1.msra.mxu0 0.0
  %1279 = vmatprep.subr.mxu0 0.0
  %1280 = vmatpush1.msra.mxu0 %v67
  %1281 = vmatprep.subr.mxu0 0.0
  %1282 = vmatpush1.msra.mxu0 %v66
  %1283 = vmatprep.subr.mxu0 0.0
  %1284 = vmatpush1.msra.mxu0 %v65
  %1285 = vmatprep.subr.mxu0 0.0
  %1286 = vmatpush1.msra.mxu0 %v64
  %1287 = vmatprep.subr.mxu0 0.0
  %1288 = vmatpush2.msra.mxu0 0.0
  %1289 = vmatprep.subr.mxu0 0.0
  %1290 = vmatpush2.msra.mxu0 0.0
  %1291 = vmatprep.subr.mxu0 0.0
  %1292 = vmatpush2.msra.mxu0 0.0
  %1293 = vmatprep.subr.mxu0 0.0
  %1294 = vmatpush2.msra.mxu0 0.0
  %1295 = vmatprep.subr.mxu0 0.0
  %1296 = vmatpush2.msra.mxu0 0.0
  %1297 = vmatprep.subr.mxu0 0.0
  %1298 = vmatpush2.msra.mxu0 0.0
  %1299 = vmatprep.subr.mxu0 0.0
  %1300 = vmatpush2.msra.mxu0 0.0
  %1301 = vmatprep.subr.mxu0 0.0
  %1302 = vmatpush2.msra.mxu0 0.0
  %1303 = vmatprep.subr.mxu0 0.0
  %1304 = vmatpush2.msra.mxu0 0.0
  %1305 = vmatprep.subr.mxu0 0.0
  %1306 = vmatpush2.msra.mxu0 0.0
  %1307 = vmatprep.subr.mxu0 0.0
  %1308 = vmatpush2.msra.mxu0 0.0
  %1309 = vmatprep.subr.mxu0 0.0
  %1310 = vmatpush2.msra.mxu0 0.0
  %1311 = vmatprep.subr.mxu0 0.0
  %1312 = vmatpush2.msra.mxu0 0.0
  %1313 = vmatprep.subr.mxu0 0.0
  %1314 = vmatpush2.msra.mxu0 0.0
  %1315 = vmatprep.subr.mxu0 0.0
  %1316 = vmatpush2.msra.mxu0 0.0
  %1317 = vmatprep.subr.mxu0 0.0
  %1318 = vmatpush2.msra.mxu0 0.0
  %1319 = vmatprep.mubr.f32.mxu0 0.0
  %1320 = vmatmul.mubr.f32.gmra.mxu0 %v1253
  %v1321 = vpop.f32.mrf.mxu0
  %v1322 = vadd.f32 0.0, %v1321
  %v1323 = vpop.f32.mrf.mxu0
  %1324 = vdwg.mxu0
  %v1325 = vadd.f32 %v1252, %v1322
  %v1326 = vxor.u32 %v1325, 2147483648
  %v1327 = vmul.f32 %v1326, 1.442695
  %v1328 = vpow.pop %v1327
  %v1329 = vadd.f32 %v1328, 1.0
  %v1330 = vrcp.pop %v1329
  %v1331 = vmul.f32 1.0, %v1330
  %v1332 = vtanh.pop %v1325
  %v1333 = vmul.f32 %v1331, %v1238
  %1335 = vrot.lane.b32.xlu0 %v1332, 32
  %v1336 = vpop.permute.xlu0 %1335
  %v1338 = vmul.f32 %v1331, %v1336
  %1340 = vrot.lane.b32.xlu0 %v1338, 32
  %v1341 = vpop.permute.xlu0 %1340
  %v1343 = vadd.f32 %v1333, %v1341
  %v1344 = vtanh.pop %v1343
  %1346 = vrot.lane.b32.xlu0 %v1344, 32
  %v1347 = vpop.permute.xlu0 %1346
  %v1349 = vmul.f32 %v1331, %v1347
  %1351 = vrot.lane.b32.xlu0 %v1349, 64
  %v1352 = vpop.permute.xlu0 %1351
  %s1354 = scalar_lea.vmem [#allocation3], 64
  %1355 = vst.msk [vmem:[%s1354] sm:$0xff] %vm412, %v1352
  %s1356 = scalar_lea.vmem [#allocation2], 72
  %v1357 = vld [vmem:[%s1356] sm:$0xff]
  %v1358 = vsel %vm412, %v1352, 0
  %1360 = vmatprep.subr.mxu0 0.0
  %1361 = vmatpush1.msra.mxu0 0.0
  %1362 = vmatprep.subr.mxu0 0.0
  %1363 = vmatpush1.msra.mxu0 0.0
  %1364 = vmatprep.subr.mxu0 0.0
  %1365 = vmatpush1.msra.mxu0 0.0
  %1366 = vmatprep.subr.mxu0 0.0
  %1367 = vmatpush1.msra.mxu0 0.0
  %1368 = vmatprep.subr.mxu0 0.0
  %1369 = vmatpush1.msra.mxu0 0.0
  %1370 = vmatprep.subr.mxu0 0.0
  %1371 = vmatpush1.msra.mxu0 0.0
  %1372 = vmatprep.subr.mxu0 0.0
  %1373 = vmatpush1.msra.mxu0 0.0
  %1374 = vmatprep.subr.mxu0 0.0
  %1375 = vmatpush1.msra.mxu0 0.0
  %1376 = vmatprep.subr.mxu0 0.0
  %1377 = vmatpush1.msra.mxu0 0.0
  %1378 = vmatprep.subr.mxu0 0.0
  %1379 = vmatpush1.msra.mxu0 0.0
  %1380 = vmatprep.subr.mxu0 0.0
  %1381 = vmatpush1.msra.mxu0 0.0
  %1382 = vmatprep.subr.mxu0 0.0
  %1383 = vmatpush1.msra.mxu0 0.0
  %1384 = vmatprep.subr.mxu0 0.0
  %1385 = vmatpush1.msra.mxu0 %v67
  %1386 = vmatprep.subr.mxu0 0.0
  %1387 = vmatpush1.msra.mxu0 %v66
  %1388 = vmatprep.subr.mxu0 0.0
  %1389 = vmatpush1.msra.mxu0 %v65
  %1390 = vmatprep.subr.mxu0 0.0
  %1391 = vmatpush1.msra.mxu0 %v64
  %1392 = vmatprep.subr.mxu0 0.0
  %1393 = vmatpush2.msra.mxu0 0.0
  %1394 = vmatprep.subr.mxu0 0.0
  %1395 = vmatpush2.msra.mxu0 0.0
  %1396 = vmatprep.subr.mxu0 0.0
  %1397 = vmatpush2.msra.mxu0 0.0
  %1398 = vmatprep.subr.mxu0 0.0
  %1399 = vmatpush2.msra.mxu0 0.0
  %1400 = vmatprep.subr.mxu0 0.0
  %1401 = vmatpush2.msra.mxu0 0.0
  %1402 = vmatprep.subr.mxu0 0.0
  %1403 = vmatpush2.msra.mxu0 0.0
  %1404 = vmatprep.subr.mxu0 0.0
  %1405 = vmatpush2.msra.mxu0 0.0
  %1406 = vmatprep.subr.mxu0 0.0
  %1407 = vmatpush2.msra.mxu0 0.0
  %1408 = vmatprep.subr.mxu0 0.0
  %1409 = vmatpush2.msra.mxu0 0.0
  %1410 = vmatprep.subr.mxu0 0.0
  %1411 = vmatpush2.msra.mxu0 0.0
  %1412 = vmatprep.subr.mxu0 0.0
  %1413 = vmatpush2.msra.mxu0 0.0
  %1414 = vmatprep.subr.mxu0 0.0
  %1415 = vmatpush2.msra.mxu0 0.0
  %1416 = vmatprep.subr.mxu0 0.0
  %1417 = vmatpush2.msra.mxu0 0.0
  %1418 = vmatprep.subr.mxu0 0.0
  %1419 = vmatpush2.msra.mxu0 0.0
  %1420 = vmatprep.subr.mxu0 0.0
  %1421 = vmatpush2.msra.mxu0 0.0
  %1422 = vmatprep.subr.mxu0 0.0
  %1423 = vmatpush2.msra.mxu0 0.0
  %1424 = vmatprep.mubr.f32.mxu0 0.0
  %1425 = vmatmul.mubr.f32.gmra.mxu0 %v1358
  %v1426 = vpop.f32.mrf.mxu0
  %v1427 = vadd.f32 0.0, %v1426
  %v1428 = vpop.f32.mrf.mxu0
  %1429 = vdwg.mxu0
  %v1430 = vadd.f32 %v1357, %v1427
  %v1431 = vxor.u32 %v1430, 2147483648
  %v1432 = vmul.f32 %v1431, 1.442695
  %v1433 = vpow.pop %v1432
  %v1434 = vadd.f32 %v1433, 1.0
  %v1435 = vrcp.pop %v1434
  %v1436 = vmul.f32 1.0, %v1435
  %v1437 = vtanh.pop %v1430
  %v1438 = vmul.f32 %v1436, %v1343
  %1440 = vrot.lane.b32.xlu0 %v1437, 32
  %v1441 = vpop.permute.xlu0 %1440
  %v1443 = vmul.f32 %v1436, %v1441
  %1445 = vrot.lane.b32.xlu0 %v1443, 32
  %v1446 = vpop.permute.xlu0 %1445
  %v1448 = vadd.f32 %v1438, %v1446
  %v1449 = vtanh.pop %v1448
  %1451 = vrot.lane.b32.xlu0 %v1449, 32
  %v1452 = vpop.permute.xlu0 %1451
  %v1454 = vmul.f32 %v1436, %v1452
  %1456 = vrot.lane.b32.xlu0 %v1454, 64
  %v1457 = vpop.permute.xlu0 %1456
  %s1459 = scalar_lea.vmem [#allocation3], 72
  %1460 = vst.msk [vmem:[%s1459] sm:$0xff] %vm412, %v1457
  %s1461 = scalar_lea.vmem [#allocation2], 80
  %v1462 = vld [vmem:[%s1461] sm:$0xff]
  %v1463 = vsel %vm412, %v1457, 0
  %1465 = vmatprep.subr.mxu0 0.0
  %1466 = vmatpush1.msra.mxu0 0.0
  %1467 = vmatprep.subr.mxu0 0.0
  %1468 = vmatpush1.msra.mxu0 0.0
  %1469 = vmatprep.subr.mxu0 0.0
  %1470 = vmatpush1.msra.mxu0 0.0
  %1471 = vmatprep.subr.mxu0 0.0
  %1472 = vmatpush1.msra.mxu0 0.0
  %1473 = vmatprep.subr.mxu0 0.0
  %1474 = vmatpush1.msra.mxu0 0.0
  %1475 = vmatprep.subr.mxu0 0.0
  %1476 = vmatpush1.msra.mxu0 0.0
  %1477 = vmatprep.subr.mxu0 0.0
  %1478 = vmatpush1.msra.mxu0 0.0
  %1479 = vmatprep.subr.mxu0 0.0
  %1480 = vmatpush1.msra.mxu0 0.0
  %1481 = vmatprep.subr.mxu0 0.0
  %1482 = vmatpush1.msra.mxu0 0.0
  %1483 = vmatprep.subr.mxu0 0.0
  %1484 = vmatpush1.msra.mxu0 0.0
  %1485 = vmatprep.subr.mxu0 0.0
  %1486 = vmatpush1.msra.mxu0 0.0
  %1487 = vmatprep.subr.mxu0 0.0
  %1488 = vmatpush1.msra.mxu0 0.0
  %1489 = vmatprep.subr.mxu0 0.0
  %1490 = vmatpush1.msra.mxu0 %v67
  %1491 = vmatprep.subr.mxu0 0.0
  %1492 = vmatpush1.msra.mxu0 %v66
  %1493 = vmatprep.subr.mxu0 0.0
  %1494 = vmatpush1.msra.mxu0 %v65
  %1495 = vmatprep.subr.mxu0 0.0
  %1496 = vmatpush1.msra.mxu0 %v64
  %1497 = vmatprep.subr.mxu0 0.0
  %1498 = vmatpush2.msra.mxu0 0.0
  %1499 = vmatprep.subr.mxu0 0.0
  %1500 = vmatpush2.msra.mxu0 0.0
  %1501 = vmatprep.subr.mxu0 0.0
  %1502 = vmatpush2.msra.mxu0 0.0
  %1503 = vmatprep.subr.mxu0 0.0
  %1504 = vmatpush2.msra.mxu0 0.0
  %1505 = vmatprep.subr.mxu0 0.0
  %1506 = vmatpush2.msra.mxu0 0.0
  %1507 = vmatprep.subr.mxu0 0.0
  %1508 = vmatpush2.msra.mxu0 0.0
  %1509 = vmatprep.subr.mxu0 0.0
  %1510 = vmatpush2.msra.mxu0 0.0
  %1511 = vmatprep.subr.mxu0 0.0
  %1512 = vmatpush2.msra.mxu0 0.0
  %1513 = vmatprep.subr.mxu0 0.0
  %1514 = vmatpush2.msra.mxu0 0.0
  %1515 = vmatprep.subr.mxu0 0.0
  %1516 = vmatpush2.msra.mxu0 0.0
  %1517 = vmatprep.subr.mxu0 0.0
  %1518 = vmatpush2.msra.mxu0 0.0
  %1519 = vmatprep.subr.mxu0 0.0
  %1520 = vmatpush2.msra.mxu0 0.0
  %1521 = vmatprep.subr.mxu0 0.0
  %1522 = vmatpush2.msra.mxu0 0.0
  %1523 = vmatprep.subr.mxu0 0.0
  %1524 = vmatpush2.msra.mxu0 0.0
  %1525 = vmatprep.subr.mxu0 0.0
  %1526 = vmatpush2.msra.mxu0 0.0
  %1527 = vmatprep.subr.mxu0 0.0
  %1528 = vmatpush2.msra.mxu0 0.0
  %1529 = vmatprep.mubr.f32.mxu0 0.0
  %1530 = vmatmul.mubr.f32.gmra.mxu0 %v1463
  %v1531 = vpop.f32.mrf.mxu0
  %v1532 = vadd.f32 0.0, %v1531
  %v1533 = vpop.f32.mrf.mxu0
  %1534 = vdwg.mxu0
  %v1535 = vadd.f32 %v1462, %v1532
  %v1536 = vxor.u32 %v1535, 2147483648
  %v1537 = vmul.f32 %v1536, 1.442695
  %v1538 = vpow.pop %v1537
  %v1539 = vadd.f32 %v1538, 1.0
  %v1540 = vrcp.pop %v1539
  %v1541 = vmul.f32 1.0, %v1540
  %v1542 = vtanh.pop %v1535
  %v1543 = vmul.f32 %v1541, %v1448
  %1545 = vrot.lane.b32.xlu0 %v1542, 32
  %v1546 = vpop.permute.xlu0 %1545
  %v1548 = vmul.f32 %v1541, %v1546
  %1550 = vrot.lane.b32.xlu0 %v1548, 32
  %v1551 = vpop.permute.xlu0 %1550
  %v1553 = vadd.f32 %v1543, %v1551
  %v1554 = vtanh.pop %v1553
  %1556 = vrot.lane.b32.xlu0 %v1554, 32
  %v1557 = vpop.permute.xlu0 %1556
  %v1559 = vmul.f32 %v1541, %v1557
  %1561 = vrot.lane.b32.xlu0 %v1559, 64
  %v1562 = vpop.permute.xlu0 %1561
  %s1564 = scalar_lea.vmem [#allocation3], 80
  %1565 = vst.msk [vmem:[%s1564] sm:$0xff] %vm412, %v1562
  %s1566 = scalar_lea.vmem [#allocation2], 88
  %v1567 = vld [vmem:[%s1566] sm:$0xff]
  %v1568 = vsel %vm412, %v1562, 0
  %1570 = vmatprep.subr.mxu0 0.0
  %1571 = vmatpush1.msra.mxu0 0.0
  %1572 = vmatprep.subr.mxu0 0.0
  %1573 = vmatpush1.msra.mxu0 0.0
  %1574 = vmatprep.subr.mxu0 0.0
  %1575 = vmatpush1.msra.mxu0 0.0
  %1576 = vmatprep.subr.mxu0 0.0
  %1577 = vmatpush1.msra.mxu0 0.0
  %1578 = vmatprep.subr.mxu0 0.0
  %1579 = vmatpush1.msra.mxu0 0.0
  %1580 = vmatprep.subr.mxu0 0.0
  %1581 = vmatpush1.msra.mxu0 0.0
  %1582 = vmatprep.subr.mxu0 0.0
  %1583 = vmatpush1.msra.mxu0 0.0
  %1584 = vmatprep.subr.mxu0 0.0
  %1585 = vmatpush1.msra.mxu0 0.0
  %1586 = vmatprep.subr.mxu0 0.0
  %1587 = vmatpush1.msra.mxu0 0.0
  %1588 = vmatprep.subr.mxu0 0.0
  %1589 = vmatpush1.msra.mxu0 0.0
  %1590 = vmatprep.subr.mxu0 0.0
  %1591 = vmatpush1.msra.mxu0 0.0
  %1592 = vmatprep.subr.mxu0 0.0
  %1593 = vmatpush1.msra.mxu0 0.0
  %1594 = vmatprep.subr.mxu0 0.0
  %1595 = vmatpush1.msra.mxu0 %v67
  %1596 = vmatprep.subr.mxu0 0.0
  %1597 = vmatpush1.msra.mxu0 %v66
  %1598 = vmatprep.subr.mxu0 0.0
  %1599 = vmatpush1.msra.mxu0 %v65
  %1600 = vmatprep.subr.mxu0 0.0
  %1601 = vmatpush1.msra.mxu0 %v64
  %1602 = vmatprep.subr.mxu0 0.0
  %1603 = vmatpush2.msra.mxu0 0.0
  %1604 = vmatprep.subr.mxu0 0.0
  %1605 = vmatpush2.msra.mxu0 0.0
  %1606 = vmatprep.subr.mxu0 0.0
  %1607 = vmatpush2.msra.mxu0 0.0
  %1608 = vmatprep.subr.mxu0 0.0
  %1609 = vmatpush2.msra.mxu0 0.0
  %1610 = vmatprep.subr.mxu0 0.0
  %1611 = vmatpush2.msra.mxu0 0.0
  %1612 = vmatprep.subr.mxu0 0.0
  %1613 = vmatpush2.msra.mxu0 0.0
  %1614 = vmatprep.subr.mxu0 0.0
  %1615 = vmatpush2.msra.mxu0 0.0
  %1616 = vmatprep.subr.mxu0 0.0
  %1617 = vmatpush2.msra.mxu0 0.0
  %1618 = vmatprep.subr.mxu0 0.0
  %1619 = vmatpush2.msra.mxu0 0.0
  %1620 = vmatprep.subr.mxu0 0.0
  %1621 = vmatpush2.msra.mxu0 0.0
  %1622 = vmatprep.subr.mxu0 0.0
  %1623 = vmatpush2.msra.mxu0 0.0
  %1624 = vmatprep.subr.mxu0 0.0
  %1625 = vmatpush2.msra.mxu0 0.0
  %1626 = vmatprep.subr.mxu0 0.0
  %1627 = vmatpush2.msra.mxu0 0.0
  %1628 = vmatprep.subr.mxu0 0.0
  %1629 = vmatpush2.msra.mxu0 0.0
  %1630 = vmatprep.subr.mxu0 0.0
  %1631 = vmatpush2.msra.mxu0 0.0
  %1632 = vmatprep.subr.mxu0 0.0
  %1633 = vmatpush2.msra.mxu0 0.0
  %1634 = vmatprep.mubr.f32.mxu0 0.0
  %1635 = vmatmul.mubr.f32.gmra.mxu0 %v1568
  %v1636 = vpop.f32.mrf.mxu0
  %v1637 = vadd.f32 0.0, %v1636
  %v1638 = vpop.f32.mrf.mxu0
  %1639 = vdwg.mxu0
  %v1640 = vadd.f32 %v1567, %v1637
  %v1641 = vxor.u32 %v1640, 2147483648
  %v1642 = vmul.f32 %v1641, 1.442695
  %v1643 = vpow.pop %v1642
  %v1644 = vadd.f32 %v1643, 1.0
  %v1645 = vrcp.pop %v1644
  %v1646 = vmul.f32 1.0, %v1645
  %v1647 = vtanh.pop %v1640
  %v1648 = vmul.f32 %v1646, %v1553
  %1650 = vrot.lane.b32.xlu0 %v1647, 32
  %v1651 = vpop.permute.xlu0 %1650
  %v1653 = vmul.f32 %v1646, %v1651
  %1655 = vrot.lane.b32.xlu0 %v1653, 32
  %v1656 = vpop.permute.xlu0 %1655
  %v1658 = vadd.f32 %v1648, %v1656
  %v1659 = vtanh.pop %v1658
  %1661 = vrot.lane.b32.xlu0 %v1659, 32
  %v1662 = vpop.permute.xlu0 %1661
  %v1664 = vmul.f32 %v1646, %v1662
  %1666 = vrot.lane.b32.xlu0 %v1664, 64
  %v1667 = vpop.permute.xlu0 %1666
  %s1669 = scalar_lea.vmem [#allocation3], 88
  %1670 = vst.msk [vmem:[%s1669] sm:$0xff] %vm412, %v1667
  %s1671 = scalar_lea.vmem [#allocation2], 96
  %v1672 = vld [vmem:[%s1671] sm:$0xff]
  %v1673 = vsel %vm412, %v1667, 0
  %1675 = vmatprep.subr.mxu0 0.0
  %1676 = vmatpush1.msra.mxu0 0.0
  %1677 = vmatprep.subr.mxu0 0.0
  %1678 = vmatpush1.msra.mxu0 0.0
  %1679 = vmatprep.subr.mxu0 0.0
  %1680 = vmatpush1.msra.mxu0 0.0
  %1681 = vmatprep.subr.mxu0 0.0
  %1682 = vmatpush1.msra.mxu0 0.0
  %1683 = vmatprep.subr.mxu0 0.0
  %1684 = vmatpush1.msra.mxu0 0.0
  %1685 = vmatprep.subr.mxu0 0.0
  %1686 = vmatpush1.msra.mxu0 0.0
  %1687 = vmatprep.subr.mxu0 0.0
  %1688 = vmatpush1.msra.mxu0 0.0
  %1689 = vmatprep.subr.mxu0 0.0
  %1690 = vmatpush1.msra.mxu0 0.0
  %1691 = vmatprep.subr.mxu0 0.0
  %1692 = vmatpush1.msra.mxu0 0.0
  %1693 = vmatprep.subr.mxu0 0.0
  %1694 = vmatpush1.msra.mxu0 0.0
  %1695 = vmatprep.subr.mxu0 0.0
  %1696 = vmatpush1.msra.mxu0 0.0
  %1697 = vmatprep.subr.mxu0 0.0
  %1698 = vmatpush1.msra.mxu0 0.0
  %1699 = vmatprep.subr.mxu0 0.0
  %1700 = vmatpush1.msra.mxu0 %v67
  %1701 = vmatprep.subr.mxu0 0.0
  %1702 = vmatpush1.msra.mxu0 %v66
  %1703 = vmatprep.subr.mxu0 0.0
  %1704 = vmatpush1.msra.mxu0 %v65
  %1705 = vmatprep.subr.mxu0 0.0
  %1706 = vmatpush1.msra.mxu0 %v64
  %1707 = vmatprep.subr.mxu0 0.0
  %1708 = vmatpush2.msra.mxu0 0.0
  %1709 = vmatprep.subr.mxu0 0.0
  %1710 = vmatpush2.msra.mxu0 0.0
  %1711 = vmatprep.subr.mxu0 0.0
  %1712 = vmatpush2.msra.mxu0 0.0
  %1713 = vmatprep.subr.mxu0 0.0
  %1714 = vmatpush2.msra.mxu0 0.0
  %1715 = vmatprep.subr.mxu0 0.0
  %1716 = vmatpush2.msra.mxu0 0.0
  %1717 = vmatprep.subr.mxu0 0.0
  %1718 = vmatpush2.msra.mxu0 0.0
  %1719 = vmatprep.subr.mxu0 0.0
  %1720 = vmatpush2.msra.mxu0 0.0
  %1721 = vmatprep.subr.mxu0 0.0
  %1722 = vmatpush2.msra.mxu0 0.0
  %1723 = vmatprep.subr.mxu0 0.0
  %1724 = vmatpush2.msra.mxu0 0.0
  %1725 = vmatprep.subr.mxu0 0.0
  %1726 = vmatpush2.msra.mxu0 0.0
  %1727 = vmatprep.subr.mxu0 0.0
  %1728 = vmatpush2.msra.mxu0 0.0
  %1729 = vmatprep.subr.mxu0 0.0
  %1730 = vmatpush2.msra.mxu0 0.0
  %1731 = vmatprep.subr.mxu0 0.0
  %1732 = vmatpush2.msra.mxu0 0.0
  %1733 = vmatprep.subr.mxu0 0.0
  %1734 = vmatpush2.msra.mxu0 0.0
  %1735 = vmatprep.subr.mxu0 0.0
  %1736 = vmatpush2.msra.mxu0 0.0
  %1737 = vmatprep.subr.mxu0 0.0
  %1738 = vmatpush2.msra.mxu0 0.0
  %1739 = vmatprep.mubr.f32.mxu0 0.0
  %1740 = vmatmul.mubr.f32.gmra.mxu0 %v1673
  %v1741 = vpop.f32.mrf.mxu0
  %v1742 = vadd.f32 0.0, %v1741
  %v1743 = vpop.f32.mrf.mxu0
  %1744 = vdwg.mxu0
  %v1745 = vadd.f32 %v1672, %v1742
  %v1746 = vxor.u32 %v1745, 2147483648
  %v1747 = vmul.f32 %v1746, 1.442695
  %v1748 = vpow.pop %v1747
  %v1749 = vadd.f32 %v1748, 1.0
  %v1750 = vrcp.pop %v1749
  %v1751 = vmul.f32 1.0, %v1750
  %v1752 = vtanh.pop %v1745
  %v1753 = vmul.f32 %v1751, %v1658
  %1755 = vrot.lane.b32.xlu0 %v1752, 32
  %v1756 = vpop.permute.xlu0 %1755
  %v1758 = vmul.f32 %v1751, %v1756
  %1760 = vrot.lane.b32.xlu0 %v1758, 32
  %v1761 = vpop.permute.xlu0 %1760
  %v1763 = vadd.f32 %v1753, %v1761
  %v1764 = vtanh.pop %v1763
  %1766 = vrot.lane.b32.xlu0 %v1764, 32
  %v1767 = vpop.permute.xlu0 %1766
  %v1769 = vmul.f32 %v1751, %v1767
  %1771 = vrot.lane.b32.xlu0 %v1769, 64
  %v1772 = vpop.permute.xlu0 %1771
  %s1774 = scalar_lea.vmem [#allocation3], 96
  %1775 = vst.msk [vmem:[%s1774] sm:$0xff] %vm412, %v1772
  %s1776 = scalar_lea.vmem [#allocation2], 104
  %v1777 = vld [vmem:[%s1776] sm:$0xff]
  %v1778 = vsel %vm412, %v1772, 0
  %1780 = vmatprep.subr.mxu0 0.0
  %1781 = vmatpush1.msra.mxu0 0.0
  %1782 = vmatprep.subr.mxu0 0.0
  %1783 = vmatpush1.msra.mxu0 0.0
  %1784 = vmatprep.subr.mxu0 0.0
  %1785 = vmatpush1.msra.mxu0 0.0
  %1786 = vmatprep.subr.mxu0 0.0
  %1787 = vmatpush1.msra.mxu0 0.0
  %1788 = vmatprep.subr.mxu0 0.0
  %1789 = vmatpush1.msra.mxu0 0.0
  %1790 = vmatprep.subr.mxu0 0.0
  %1791 = vmatpush1.msra.mxu0 0.0
  %1792 = vmatprep.subr.mxu0 0.0
  %1793 = vmatpush1.msra.mxu0 0.0
  %1794 = vmatprep.subr.mxu0 0.0
  %1795 = vmatpush1.msra.mxu0 0.0
  %1796 = vmatprep.subr.mxu0 0.0
  %1797 = vmatpush1.msra.mxu0 0.0
  %1798 = vmatprep.subr.mxu0 0.0
  %1799 = vmatpush1.msra.mxu0 0.0
  %1800 = vmatprep.subr.mxu0 0.0
  %1801 = vmatpush1.msra.mxu0 0.0
  %1802 = vmatprep.subr.mxu0 0.0
  %1803 = vmatpush1.msra.mxu0 0.0
  %1804 = vmatprep.subr.mxu0 0.0
  %1805 = vmatpush1.msra.mxu0 %v67
  %1806 = vmatprep.subr.mxu0 0.0
  %1807 = vmatpush1.msra.mxu0 %v66
  %1808 = vmatprep.subr.mxu0 0.0
  %1809 = vmatpush1.msra.mxu0 %v65
  %1810 = vmatprep.subr.mxu0 0.0
  %1811 = vmatpush1.msra.mxu0 %v64
  %1812 = vmatprep.subr.mxu0 0.0
  %1813 = vmatpush2.msra.mxu0 0.0
  %1814 = vmatprep.subr.mxu0 0.0
  %1815 = vmatpush2.msra.mxu0 0.0
  %1816 = vmatprep.subr.mxu0 0.0
  %1817 = vmatpush2.msra.mxu0 0.0
  %1818 = vmatprep.subr.mxu0 0.0
  %1819 = vmatpush2.msra.mxu0 0.0
  %1820 = vmatprep.subr.mxu0 0.0
  %1821 = vmatpush2.msra.mxu0 0.0
  %1822 = vmatprep.subr.mxu0 0.0
  %1823 = vmatpush2.msra.mxu0 0.0
  %1824 = vmatprep.subr.mxu0 0.0
  %1825 = vmatpush2.msra.mxu0 0.0
  %1826 = vmatprep.subr.mxu0 0.0
  %1827 = vmatpush2.msra.mxu0 0.0
  %1828 = vmatprep.subr.mxu0 0.0
  %1829 = vmatpush2.msra.mxu0 0.0
  %1830 = vmatprep.subr.mxu0 0.0
  %1831 = vmatpush2.msra.mxu0 0.0
  %1832 = vmatprep.subr.mxu0 0.0
  %1833 = vmatpush2.msra.mxu0 0.0
  %1834 = vmatprep.subr.mxu0 0.0
  %1835 = vmatpush2.msra.mxu0 0.0
  %1836 = vmatprep.subr.mxu0 0.0
  %1837 = vmatpush2.msra.mxu0 0.0
  %1838 = vmatprep.subr.mxu0 0.0
  %1839 = vmatpush2.msra.mxu0 0.0
  %1840 = vmatprep.subr.mxu0 0.0
  %1841 = vmatpush2.msra.mxu0 0.0
  %1842 = vmatprep.subr.mxu0 0.0
  %1843 = vmatpush2.msra.mxu0 0.0
  %1844 = vmatprep.mubr.f32.mxu0 0.0
  %1845 = vmatmul.mubr.f32.gmra.mxu0 %v1778
  %v1846 = vpop.f32.mrf.mxu0
  %v1847 = vadd.f32 0.0, %v1846
  %v1848 = vpop.f32.mrf.mxu0
  %1849 = vdwg.mxu0
  %v1850 = vadd.f32 %v1777, %v1847
  %v1851 = vxor.u32 %v1850, 2147483648
  %v1852 = vmul.f32 %v1851, 1.442695
  %v1853 = vpow.pop %v1852
  %v1854 = vadd.f32 %v1853, 1.0
  %v1855 = vrcp.pop %v1854
  %v1856 = vmul.f32 1.0, %v1855
  %v1857 = vtanh.pop %v1850
  %v1858 = vmul.f32 %v1856, %v1763
  %1860 = vrot.lane.b32.xlu0 %v1857, 32
  %v1861 = vpop.permute.xlu0 %1860
  %v1863 = vmul.f32 %v1856, %v1861
  %1865 = vrot.lane.b32.xlu0 %v1863, 32
  %v1866 = vpop.permute.xlu0 %1865
  %v1868 = vadd.f32 %v1858, %v1866
  %v1869 = vtanh.pop %v1868
  %1871 = vrot.lane.b32.xlu0 %v1869, 32
  %v1872 = vpop.permute.xlu0 %1871
  %v1874 = vmul.f32 %v1856, %v1872
  %1876 = vrot.lane.b32.xlu0 %v1874, 64
  %v1877 = vpop.permute.xlu0 %1876
  %s1879 = scalar_lea.vmem [#allocation3], 104
  %1880 = vst.msk [vmem:[%s1879] sm:$0xff] %vm412, %v1877
  %s1881 = scalar_lea.vmem [#allocation2], 112
  %v1882 = vld [vmem:[%s1881] sm:$0xff]
  %v1883 = vsel %vm412, %v1877, 0
  %1885 = vmatprep.subr.mxu0 0.0
  %1886 = vmatpush1.msra.mxu0 0.0
  %1887 = vmatprep.subr.mxu0 0.0
  %1888 = vmatpush1.msra.mxu0 0.0
  %1889 = vmatprep.subr.mxu0 0.0
  %1890 = vmatpush1.msra.mxu0 0.0
  %1891 = vmatprep.subr.mxu0 0.0
  %1892 = vmatpush1.msra.mxu0 0.0
  %1893 = vmatprep.subr.mxu0 0.0
  %1894 = vmatpush1.msra.mxu0 0.0
  %1895 = vmatprep.subr.mxu0 0.0
  %1896 = vmatpush1.msra.mxu0 0.0
  %1897 = vmatprep.subr.mxu0 0.0
  %1898 = vmatpush1.msra.mxu0 0.0
  %1899 = vmatprep.subr.mxu0 0.0
  %1900 = vmatpush1.msra.mxu0 0.0
  %1901 = vmatprep.subr.mxu0 0.0
  %1902 = vmatpush1.msra.mxu0 0.0
  %1903 = vmatprep.subr.mxu0 0.0
  %1904 = vmatpush1.msra.mxu0 0.0
  %1905 = vmatprep.subr.mxu0 0.0
  %1906 = vmatpush1.msra.mxu0 0.0
  %1907 = vmatprep.subr.mxu0 0.0
  %1908 = vmatpush1.msra.mxu0 0.0
  %1909 = vmatprep.subr.mxu0 0.0
  %1910 = vmatpush1.msra.mxu0 %v67
  %1911 = vmatprep.subr.mxu0 0.0
  %1912 = vmatpush1.msra.mxu0 %v66
  %1913 = vmatprep.subr.mxu0 0.0
  %1914 = vmatpush1.msra.mxu0 %v65
  %1915 = vmatprep.subr.mxu0 0.0
  %1916 = vmatpush1.msra.mxu0 %v64
  %1917 = vmatprep.subr.mxu0 0.0
  %1918 = vmatpush2.msra.mxu0 0.0
  %1919 = vmatprep.subr.mxu0 0.0
  %1920 = vmatpush2.msra.mxu0 0.0
  %1921 = vmatprep.subr.mxu0 0.0
  %1922 = vmatpush2.msra.mxu0 0.0
  %1923 = vmatprep.subr.mxu0 0.0
  %1924 = vmatpush2.msra.mxu0 0.0
  %1925 = vmatprep.subr.mxu0 0.0
  %1926 = vmatpush2.msra.mxu0 0.0
  %1927 = vmatprep.subr.mxu0 0.0
  %1928 = vmatpush2.msra.mxu0 0.0
  %1929 = vmatprep.subr.mxu0 0.0
  %1930 = vmatpush2.msra.mxu0 0.0
  %1931 = vmatprep.subr.mxu0 0.0
  %1932 = vmatpush2.msra.mxu0 0.0
  %1933 = vmatprep.subr.mxu0 0.0
  %1934 = vmatpush2.msra.mxu0 0.0
  %1935 = vmatprep.subr.mxu0 0.0
  %1936 = vmatpush2.msra.mxu0 0.0
  %1937 = vmatprep.subr.mxu0 0.0
  %1938 = vmatpush2.msra.mxu0 0.0
  %1939 = vmatprep.subr.mxu0 0.0
  %1940 = vmatpush2.msra.mxu0 0.0
  %1941 = vmatprep.subr.mxu0 0.0
  %1942 = vmatpush2.msra.mxu0 0.0
  %1943 = vmatprep.subr.mxu0 0.0
  %1944 = vmatpush2.msra.mxu0 0.0
  %1945 = vmatprep.subr.mxu0 0.0
  %1946 = vmatpush2.msra.mxu0 0.0
  %1947 = vmatprep.subr.mxu0 0.0
  %1948 = vmatpush2.msra.mxu0 0.0
  %1949 = vmatprep.mubr.f32.mxu0 0.0
  %1950 = vmatmul.mubr.f32.gmra.mxu0 %v1883
  %v1951 = vpop.f32.mrf.mxu0
  %v1952 = vadd.f32 0.0, %v1951
  %v1953 = vpop.f32.mrf.mxu0
  %1954 = vdwg.mxu0
  %v1955 = vadd.f32 %v1882, %v1952
  %v1956 = vxor.u32 %v1955, 2147483648
  %v1957 = vmul.f32 %v1956, 1.442695
  %v1958 = vpow.pop %v1957
  %v1959 = vadd.f32 %v1958, 1.0
  %v1960 = vrcp.pop %v1959
  %v1961 = vmul.f32 1.0, %v1960
  %v1962 = vtanh.pop %v1955
  %v1963 = vmul.f32 %v1961, %v1868
  %1965 = vrot.lane.b32.xlu0 %v1962, 32
  %v1966 = vpop.permute.xlu0 %1965
  %v1968 = vmul.f32 %v1961, %v1966
  %1970 = vrot.lane.b32.xlu0 %v1968, 32
  %v1971 = vpop.permute.xlu0 %1970
  %v1973 = vadd.f32 %v1963, %v1971
  %v1974 = vtanh.pop %v1973
  %1976 = vrot.lane.b32.xlu0 %v1974, 32
  %v1977 = vpop.permute.xlu0 %1976
  %v1979 = vmul.f32 %v1961, %v1977
  %1981 = vrot.lane.b32.xlu0 %v1979, 64
  %v1982 = vpop.permute.xlu0 %1981
  %s1984 = scalar_lea.vmem [#allocation3], 112
  %1985 = vst.msk [vmem:[%s1984] sm:$0xff] %vm412, %v1982
  %s1986 = scalar_lea.vmem [#allocation2], 120
  %v1987 = vld [vmem:[%s1986] sm:$0xff]
  %v1988 = vsel %vm412, %v1982, 0
  %1990 = vmatprep.subr.mxu0 0.0
  %1991 = vmatpush1.msra.mxu0 0.0
  %1992 = vmatprep.subr.mxu0 0.0
  %1993 = vmatpush1.msra.mxu0 0.0
  %1994 = vmatprep.subr.mxu0 0.0
  %1995 = vmatpush1.msra.mxu0 0.0
  %1996 = vmatprep.subr.mxu0 0.0
  %1997 = vmatpush1.msra.mxu0 0.0
  %1998 = vmatprep.subr.mxu0 0.0
  %1999 = vmatpush1.msra.mxu0 0.0
  %2000 = vmatprep.subr.mxu0 0.0
  %2001 = vmatpush1.msra.mxu0 0.0
  %2002 = vmatprep.subr.mxu0 0.0
  %2003 = vmatpush1.msra.mxu0 0.0
  %2004 = vmatprep.subr.mxu0 0.0
  %2005 = vmatpush1.msra.mxu0 0.0
  %2006 = vmatprep.subr.mxu0 0.0
  %2007 = vmatpush1.msra.mxu0 0.0
  %2008 = vmatprep.subr.mxu0 0.0
  %2009 = vmatpush1.msra.mxu0 0.0
  %2010 = vmatprep.subr.mxu0 0.0
  %2011 = vmatpush1.msra.mxu0 0.0
  %2012 = vmatprep.subr.mxu0 0.0
  %2013 = vmatpush1.msra.mxu0 0.0
  %2014 = vmatprep.subr.mxu0 0.0
  %2015 = vmatpush1.msra.mxu0 %v67
  %2016 = vmatprep.subr.mxu0 0.0
  %2017 = vmatpush1.msra.mxu0 %v66
  %2018 = vmatprep.subr.mxu0 0.0
  %2019 = vmatpush1.msra.mxu0 %v65
  %2020 = vmatprep.subr.mxu0 0.0
  %2021 = vmatpush1.msra.mxu0 %v64
  %2022 = vmatprep.subr.mxu0 0.0
  %2023 = vmatpush2.msra.mxu0 0.0
  %2024 = vmatprep.subr.mxu0 0.0
  %2025 = vmatpush2.msra.mxu0 0.0
  %2026 = vmatprep.subr.mxu0 0.0
  %2027 = vmatpush2.msra.mxu0 0.0
  %2028 = vmatprep.subr.mxu0 0.0
  %2029 = vmatpush2.msra.mxu0 0.0
  %2030 = vmatprep.subr.mxu0 0.0
  %2031 = vmatpush2.msra.mxu0 0.0
  %2032 = vmatprep.subr.mxu0 0.0
  %2033 = vmatpush2.msra.mxu0 0.0
  %2034 = vmatprep.subr.mxu0 0.0
  %2035 = vmatpush2.msra.mxu0 0.0
  %2036 = vmatprep.subr.mxu0 0.0
  %2037 = vmatpush2.msra.mxu0 0.0
  %2038 = vmatprep.subr.mxu0 0.0
  %2039 = vmatpush2.msra.mxu0 0.0
  %2040 = vmatprep.subr.mxu0 0.0
  %2041 = vmatpush2.msra.mxu0 0.0
  %2042 = vmatprep.subr.mxu0 0.0
  %2043 = vmatpush2.msra.mxu0 0.0
  %2044 = vmatprep.subr.mxu0 0.0
  %2045 = vmatpush2.msra.mxu0 0.0
  %2046 = vmatprep.subr.mxu0 0.0
  %2047 = vmatpush2.msra.mxu0 0.0
  %2048 = vmatprep.subr.mxu0 0.0
  %2049 = vmatpush2.msra.mxu0 0.0
  %2050 = vmatprep.subr.mxu0 0.0
  %2051 = vmatpush2.msra.mxu0 0.0
  %2052 = vmatprep.subr.mxu0 0.0
  %2053 = vmatpush2.msra.mxu0 0.0
  %2054 = vmatprep.mubr.f32.mxu0 0.0
  %2055 = vmatmul.mubr.f32.gmra.mxu0 %v1988
  %v2056 = vpop.f32.mrf.mxu0
  %v2057 = vadd.f32 0.0, %v2056
  %v2058 = vpop.f32.mrf.mxu0
  %2059 = vdwg.mxu0
  %v2060 = vadd.f32 %v1987, %v2057
  %v2061 = vxor.u32 %v2060, 2147483648
  %v2062 = vmul.f32 %v2061, 1.442695
  %v2063 = vpow.pop %v2062
  %v2064 = vadd.f32 %v2063, 1.0
  %v2065 = vrcp.pop %v2064
  %v2066 = vmul.f32 1.0, %v2065
  %v2067 = vtanh.pop %v2060
  %v2068 = vmul.f32 %v2066, %v1973
  %2070 = vrot.lane.b32.xlu0 %v2067, 32
  %v2071 = vpop.permute.xlu0 %2070
  %v2073 = vmul.f32 %v2066, %v2071
  %2075 = vrot.lane.b32.xlu0 %v2073, 32
  %v2076 = vpop.permute.xlu0 %2075
  %v2078 = vadd.f32 %v2068, %v2076
  %v2079 = vtanh.pop %v2078
  %2081 = vrot.lane.b32.xlu0 %v2079, 32
  %v2082 = vpop.permute.xlu0 %2081
  %v2084 = vmul.f32 %v2066, %v2082
  %2086 = vrot.lane.b32.xlu0 %v2084, 64
  %v2087 = vpop.permute.xlu0 %2086
  %s2089 = scalar_lea.vmem [#allocation3], 120
  %2090 = vst.msk [vmem:[%s2089] sm:$0xff] %vm412, %v2087
  %s2091 = scalar_lea.vmem [#allocation2], 128
  %v2092 = vld [vmem:[%s2091] sm:$0xff]
  %v2093 = vsel %vm412, %v2087, 0
  %2095 = vmatprep.subr.mxu0 0.0
  %2096 = vmatpush1.msra.mxu0 0.0
  %2097 = vmatprep.subr.mxu0 0.0
  %2098 = vmatpush1.msra.mxu0 0.0
  %2099 = vmatprep.subr.mxu0 0.0
  %2100 = vmatpush1.msra.mxu0 0.0
  %2101 = vmatprep.subr.mxu0 0.0
  %2102 = vmatpush1.msra.mxu0 0.0
  %2103 = vmatprep.subr.mxu0 0.0
  %2104 = vmatpush1.msra.mxu0 0.0
  %2105 = vmatprep.subr.mxu0 0.0
  %2106 = vmatpush1.msra.mxu0 0.0
  %2107 = vmatprep.subr.mxu0 0.0
  %2108 = vmatpush1.msra.mxu0 0.0
  %2109 = vmatprep.subr.mxu0 0.0
  %2110 = vmatpush1.msra.mxu0 0.0
  %2111 = vmatprep.subr.mxu0 0.0
  %2112 = vmatpush1.msra.mxu0 0.0
  %2113 = vmatprep.subr.mxu0 0.0
  %2114 = vmatpush1.msra.mxu0 0.0
  %2115 = vmatprep.subr.mxu0 0.0
  %2116 = vmatpush1.msra.mxu0 0.0
  %2117 = vmatprep.subr.mxu0 0.0
  %2118 = vmatpush1.msra.mxu0 0.0
  %2119 = vmatprep.subr.mxu0 0.0
  %2120 = vmatpush1.msra.mxu0 %v67
  %2121 = vmatprep.subr.mxu0 0.0
  %2122 = vmatpush1.msra.mxu0 %v66
  %2123 = vmatprep.subr.mxu0 0.0
  %2124 = vmatpush1.msra.mxu0 %v65
  %2125 = vmatprep.subr.mxu0 0.0
  %2126 = vmatpush1.msra.mxu0 %v64
  %2127 = vmatprep.subr.mxu0 0.0
  %2128 = vmatpush2.msra.mxu0 0.0
  %2129 = vmatprep.subr.mxu0 0.0
  %2130 = vmatpush2.msra.mxu0 0.0
  %2131 = vmatprep.subr.mxu0 0.0
  %2132 = vmatpush2.msra.mxu0 0.0
  %2133 = vmatprep.subr.mxu0 0.0
  %2134 = vmatpush2.msra.mxu0 0.0
  %2135 = vmatprep.subr.mxu0 0.0
  %2136 = vmatpush2.msra.mxu0 0.0
  %2137 = vmatprep.subr.mxu0 0.0
  %2138 = vmatpush2.msra.mxu0 0.0
  %2139 = vmatprep.subr.mxu0 0.0
  %2140 = vmatpush2.msra.mxu0 0.0
  %2141 = vmatprep.subr.mxu0 0.0
  %2142 = vmatpush2.msra.mxu0 0.0
  %2143 = vmatprep.subr.mxu0 0.0
  %2144 = vmatpush2.msra.mxu0 0.0
  %2145 = vmatprep.subr.mxu0 0.0
  %2146 = vmatpush2.msra.mxu0 0.0
  %2147 = vmatprep.subr.mxu0 0.0
  %2148 = vmatpush2.msra.mxu0 0.0
  %2149 = vmatprep.subr.mxu0 0.0
  %2150 = vmatpush2.msra.mxu0 0.0
  %2151 = vmatprep.subr.mxu0 0.0
  %2152 = vmatpush2.msra.mxu0 0.0
  %2153 = vmatprep.subr.mxu0 0.0
  %2154 = vmatpush2.msra.mxu0 0.0
  %2155 = vmatprep.subr.mxu0 0.0
  %2156 = vmatpush2.msra.mxu0 0.0
  %2157 = vmatprep.subr.mxu0 0.0
  %2158 = vmatpush2.msra.mxu0 0.0
  %2159 = vmatprep.mubr.f32.mxu0 0.0
  %2160 = vmatmul.mubr.f32.gmra.mxu0 %v2093
  %v2161 = vpop.f32.mrf.mxu0
  %v2162 = vadd.f32 0.0, %v2161
  %v2163 = vpop.f32.mrf.mxu0
  %2164 = vdwg.mxu0
  %v2165 = vadd.f32 %v2092, %v2162
  %v2166 = vxor.u32 %v2165, 2147483648
  %v2167 = vmul.f32 %v2166, 1.442695
  %v2168 = vpow.pop %v2167
  %v2169 = vadd.f32 %v2168, 1.0
  %v2170 = vrcp.pop %v2169
  %v2171 = vmul.f32 1.0, %v2170
  %v2172 = vtanh.pop %v2165
  %v2173 = vmul.f32 %v2171, %v2078
  %2175 = vrot.lane.b32.xlu0 %v2172, 32
  %v2176 = vpop.permute.xlu0 %2175
  %v2178 = vmul.f32 %v2171, %v2176
  %2180 = vrot.lane.b32.xlu0 %v2178, 32
  %v2181 = vpop.permute.xlu0 %2180
  %v2183 = vadd.f32 %v2173, %v2181
  %v2184 = vtanh.pop %v2183
  %2186 = vrot.lane.b32.xlu0 %v2184, 32
  %v2187 = vpop.permute.xlu0 %2186
  %v2189 = vmul.f32 %v2171, %v2187
  %2191 = vrot.lane.b32.xlu0 %v2189, 64
  %v2192 = vpop.permute.xlu0 %2191
  %s2194 = scalar_lea.vmem [#allocation3], 128
  %2195 = vst.msk [vmem:[%s2194] sm:$0xff] %vm412, %v2192
  %s2196 = scalar_lea.vmem [#allocation2], 136
  %v2197 = vld [vmem:[%s2196] sm:$0xff]
  %v2198 = vsel %vm412, %v2192, 0
  %2200 = vmatprep.subr.mxu0 0.0
  %2201 = vmatpush1.msra.mxu0 0.0
  %2202 = vmatprep.subr.mxu0 0.0
  %2203 = vmatpush1.msra.mxu0 0.0
  %2204 = vmatprep.subr.mxu0 0.0
  %2205 = vmatpush1.msra.mxu0 0.0
  %2206 = vmatprep.subr.mxu0 0.0
  %2207 = vmatpush1.msra.mxu0 0.0
  %2208 = vmatprep.subr.mxu0 0.0
  %2209 = vmatpush1.msra.mxu0 0.0
  %2210 = vmatprep.subr.mxu0 0.0
  %2211 = vmatpush1.msra.mxu0 0.0
  %2212 = vmatprep.subr.mxu0 0.0
  %2213 = vmatpush1.msra.mxu0 0.0
  %2214 = vmatprep.subr.mxu0 0.0
  %2215 = vmatpush1.msra.mxu0 0.0
  %2216 = vmatprep.subr.mxu0 0.0
  %2217 = vmatpush1.msra.mxu0 0.0
  %2218 = vmatprep.subr.mxu0 0.0
  %2219 = vmatpush1.msra.mxu0 0.0
  %2220 = vmatprep.subr.mxu0 0.0
  %2221 = vmatpush1.msra.mxu0 0.0
  %2222 = vmatprep.subr.mxu0 0.0
  %2223 = vmatpush1.msra.mxu0 0.0
  %2224 = vmatprep.subr.mxu0 0.0
  %2225 = vmatpush1.msra.mxu0 %v67
  %2226 = vmatprep.subr.mxu0 0.0
  %2227 = vmatpush1.msra.mxu0 %v66
  %2228 = vmatprep.subr.mxu0 0.0
  %2229 = vmatpush1.msra.mxu0 %v65
  %2230 = vmatprep.subr.mxu0 0.0
  %2231 = vmatpush1.msra.mxu0 %v64
  %2232 = vmatprep.subr.mxu0 0.0
  %2233 = vmatpush2.msra.mxu0 0.0
  %2234 = vmatprep.subr.mxu0 0.0
  %2235 = vmatpush2.msra.mxu0 0.0
  %2236 = vmatprep.subr.mxu0 0.0
  %2237 = vmatpush2.msra.mxu0 0.0
  %2238 = vmatprep.subr.mxu0 0.0
  %2239 = vmatpush2.msra.mxu0 0.0
  %2240 = vmatprep.subr.mxu0 0.0
  %2241 = vmatpush2.msra.mxu0 0.0
  %2242 = vmatprep.subr.mxu0 0.0
  %2243 = vmatpush2.msra.mxu0 0.0
  %2244 = vmatprep.subr.mxu0 0.0
  %2245 = vmatpush2.msra.mxu0 0.0
  %2246 = vmatprep.subr.mxu0 0.0
  %2247 = vmatpush2.msra.mxu0 0.0
  %2248 = vmatprep.subr.mxu0 0.0
  %2249 = vmatpush2.msra.mxu0 0.0
  %2250 = vmatprep.subr.mxu0 0.0
  %2251 = vmatpush2.msra.mxu0 0.0
  %2252 = vmatprep.subr.mxu0 0.0
  %2253 = vmatpush2.msra.mxu0 0.0
  %2254 = vmatprep.subr.mxu0 0.0
  %2255 = vmatpush2.msra.mxu0 0.0
  %2256 = vmatprep.subr.mxu0 0.0
  %2257 = vmatpush2.msra.mxu0 0.0
  %2258 = vmatprep.subr.mxu0 0.0
  %2259 = vmatpush2.msra.mxu0 0.0
  %2260 = vmatprep.subr.mxu0 0.0
  %2261 = vmatpush2.msra.mxu0 0.0
  %2262 = vmatprep.subr.mxu0 0.0
  %2263 = vmatpush2.msra.mxu0 0.0
  %2264 = vmatprep.mubr.f32.mxu0 0.0
  %2265 = vmatmul.mubr.f32.gmra.mxu0 %v2198
  %v2266 = vpop.f32.mrf.mxu0
  %v2267 = vadd.f32 0.0, %v2266
  %v2268 = vpop.f32.mrf.mxu0
  %2269 = vdwg.mxu0
  %v2270 = vadd.f32 %v2197, %v2267
  %v2271 = vxor.u32 %v2270, 2147483648
  %v2272 = vmul.f32 %v2271, 1.442695
  %v2273 = vpow.pop %v2272
  %v2274 = vadd.f32 %v2273, 1.0
  %v2275 = vrcp.pop %v2274
  %v2276 = vmul.f32 1.0, %v2275
  %v2277 = vtanh.pop %v2270
  %v2278 = vmul.f32 %v2276, %v2183
  %2280 = vrot.lane.b32.xlu0 %v2277, 32
  %v2281 = vpop.permute.xlu0 %2280
  %v2283 = vmul.f32 %v2276, %v2281
  %2285 = vrot.lane.b32.xlu0 %v2283, 32
  %v2286 = vpop.permute.xlu0 %2285
  %v2288 = vadd.f32 %v2278, %v2286
  %v2289 = vtanh.pop %v2288
  %2291 = vrot.lane.b32.xlu0 %v2289, 32
  %v2292 = vpop.permute.xlu0 %2291
  %v2294 = vmul.f32 %v2276, %v2292
  %2296 = vrot.lane.b32.xlu0 %v2294, 64
  %v2297 = vpop.permute.xlu0 %2296
  %s2299 = scalar_lea.vmem [#allocation3], 136
  %2300 = vst.msk [vmem:[%s2299] sm:$0xff] %vm412, %v2297
  %s2301 = scalar_lea.vmem [#allocation2], 144
  %v2302 = vld [vmem:[%s2301] sm:$0xff]
  %v2303 = vsel %vm412, %v2297, 0
  %2305 = vmatprep.subr.mxu0 0.0
  %2306 = vmatpush1.msra.mxu0 0.0
  %2307 = vmatprep.subr.mxu0 0.0
  %2308 = vmatpush1.msra.mxu0 0.0
  %2309 = vmatprep.subr.mxu0 0.0
  %2310 = vmatpush1.msra.mxu0 0.0
  %2311 = vmatprep.subr.mxu0 0.0
  %2312 = vmatpush1.msra.mxu0 0.0
  %2313 = vmatprep.subr.mxu0 0.0
  %2314 = vmatpush1.msra.mxu0 0.0
  %2315 = vmatprep.subr.mxu0 0.0
  %2316 = vmatpush1.msra.mxu0 0.0
  %2317 = vmatprep.subr.mxu0 0.0
  %2318 = vmatpush1.msra.mxu0 0.0
  %2319 = vmatprep.subr.mxu0 0.0
  %2320 = vmatpush1.msra.mxu0 0.0
  %2321 = vmatprep.subr.mxu0 0.0
  %2322 = vmatpush1.msra.mxu0 0.0
  %2323 = vmatprep.subr.mxu0 0.0
  %2324 = vmatpush1.msra.mxu0 0.0
  %2325 = vmatprep.subr.mxu0 0.0
  %2326 = vmatpush1.msra.mxu0 0.0
  %2327 = vmatprep.subr.mxu0 0.0
  %2328 = vmatpush1.msra.mxu0 0.0
  %2329 = vmatprep.subr.mxu0 0.0
  %2330 = vmatpush1.msra.mxu0 %v67
  %2331 = vmatprep.subr.mxu0 0.0
  %2332 = vmatpush1.msra.mxu0 %v66
  %2333 = vmatprep.subr.mxu0 0.0
  %2334 = vmatpush1.msra.mxu0 %v65
  %2335 = vmatprep.subr.mxu0 0.0
  %2336 = vmatpush1.msra.mxu0 %v64
  %2337 = vmatprep.subr.mxu0 0.0
  %2338 = vmatpush2.msra.mxu0 0.0
  %2339 = vmatprep.subr.mxu0 0.0
  %2340 = vmatpush2.msra.mxu0 0.0
  %2341 = vmatprep.subr.mxu0 0.0
  %2342 = vmatpush2.msra.mxu0 0.0
  %2343 = vmatprep.subr.mxu0 0.0
  %2344 = vmatpush2.msra.mxu0 0.0
  %2345 = vmatprep.subr.mxu0 0.0
  %2346 = vmatpush2.msra.mxu0 0.0
  %2347 = vmatprep.subr.mxu0 0.0
  %2348 = vmatpush2.msra.mxu0 0.0
  %2349 = vmatprep.subr.mxu0 0.0
  %2350 = vmatpush2.msra.mxu0 0.0
  %2351 = vmatprep.subr.mxu0 0.0
  %2352 = vmatpush2.msra.mxu0 0.0
  %2353 = vmatprep.subr.mxu0 0.0
  %2354 = vmatpush2.msra.mxu0 0.0
  %2355 = vmatprep.subr.mxu0 0.0
  %2356 = vmatpush2.msra.mxu0 0.0
  %2357 = vmatprep.subr.mxu0 0.0
  %2358 = vmatpush2.msra.mxu0 0.0
  %2359 = vmatprep.subr.mxu0 0.0
  %2360 = vmatpush2.msra.mxu0 0.0
  %2361 = vmatprep.subr.mxu0 0.0
  %2362 = vmatpush2.msra.mxu0 0.0
  %2363 = vmatprep.subr.mxu0 0.0
  %2364 = vmatpush2.msra.mxu0 0.0
  %2365 = vmatprep.subr.mxu0 0.0
  %2366 = vmatpush2.msra.mxu0 0.0
  %2367 = vmatprep.subr.mxu0 0.0
  %2368 = vmatpush2.msra.mxu0 0.0
  %2369 = vmatprep.mubr.f32.mxu0 0.0
  %2370 = vmatmul.mubr.f32.gmra.mxu0 %v2303
  %v2371 = vpop.f32.mrf.mxu0
  %v2372 = vadd.f32 0.0, %v2371
  %v2373 = vpop.f32.mrf.mxu0
  %2374 = vdwg.mxu0
  %v2375 = vadd.f32 %v2302, %v2372
  %v2376 = vxor.u32 %v2375, 2147483648
  %v2377 = vmul.f32 %v2376, 1.442695
  %v2378 = vpow.pop %v2377
  %v2379 = vadd.f32 %v2378, 1.0
  %v2380 = vrcp.pop %v2379
  %v2381 = vmul.f32 1.0, %v2380
  %v2382 = vtanh.pop %v2375
  %v2383 = vmul.f32 %v2381, %v2288
  %2385 = vrot.lane.b32.xlu0 %v2382, 32
  %v2386 = vpop.permute.xlu0 %2385
  %v2388 = vmul.f32 %v2381, %v2386
  %2390 = vrot.lane.b32.xlu0 %v2388, 32
  %v2391 = vpop.permute.xlu0 %2390
  %v2393 = vadd.f32 %v2383, %v2391
  %v2394 = vtanh.pop %v2393
  %2396 = vrot.lane.b32.xlu0 %v2394, 32
  %v2397 = vpop.permute.xlu0 %2396
  %v2399 = vmul.f32 %v2381, %v2397
  %2401 = vrot.lane.b32.xlu0 %v2399, 64
  %v2402 = vpop.permute.xlu0 %2401
  %s2404 = scalar_lea.vmem [#allocation3], 144
  %2405 = vst.msk [vmem:[%s2404] sm:$0xff] %vm412, %v2402
  %s2406 = scalar_lea.vmem [#allocation2], 152
  %v2407 = vld [vmem:[%s2406] sm:$0xff]
  %v2408 = vsel %vm412, %v2402, 0
  %2410 = vmatprep.subr.mxu0 0.0
  %2411 = vmatpush1.msra.mxu0 0.0
  %2412 = vmatprep.subr.mxu0 0.0
  %2413 = vmatpush1.msra.mxu0 0.0
  %2414 = vmatprep.subr.mxu0 0.0
  %2415 = vmatpush1.msra.mxu0 0.0
  %2416 = vmatprep.subr.mxu0 0.0
  %2417 = vmatpush1.msra.mxu0 0.0
  %2418 = vmatprep.subr.mxu0 0.0
  %2419 = vmatpush1.msra.mxu0 0.0
  %2420 = vmatprep.subr.mxu0 0.0
  %2421 = vmatpush1.msra.mxu0 0.0
  %2422 = vmatprep.subr.mxu0 0.0
  %2423 = vmatpush1.msra.mxu0 0.0
  %2424 = vmatprep.subr.mxu0 0.0
  %2425 = vmatpush1.msra.mxu0 0.0
  %2426 = vmatprep.subr.mxu0 0.0
  %2427 = vmatpush1.msra.mxu0 0.0
  %2428 = vmatprep.subr.mxu0 0.0
  %2429 = vmatpush1.msra.mxu0 0.0
  %2430 = vmatprep.subr.mxu0 0.0
  %2431 = vmatpush1.msra.mxu0 0.0
  %2432 = vmatprep.subr.mxu0 0.0
  %2433 = vmatpush1.msra.mxu0 0.0
  %2434 = vmatprep.subr.mxu0 0.0
  %2435 = vmatpush1.msra.mxu0 %v67
  %2436 = vmatprep.subr.mxu0 0.0
  %2437 = vmatpush1.msra.mxu0 %v66
  %2438 = vmatprep.subr.mxu0 0.0
  %2439 = vmatpush1.msra.mxu0 %v65
  %2440 = vmatprep.subr.mxu0 0.0
  %2441 = vmatpush1.msra.mxu0 %v64
  %2442 = vmatprep.subr.mxu0 0.0
  %2443 = vmatpush2.msra.mxu0 0.0
  %2444 = vmatprep.subr.mxu0 0.0
  %2445 = vmatpush2.msra.mxu0 0.0
  %2446 = vmatprep.subr.mxu0 0.0
  %2447 = vmatpush2.msra.mxu0 0.0
  %2448 = vmatprep.subr.mxu0 0.0
  %2449 = vmatpush2.msra.mxu0 0.0
  %2450 = vmatprep.subr.mxu0 0.0
  %2451 = vmatpush2.msra.mxu0 0.0
  %2452 = vmatprep.subr.mxu0 0.0
  %2453 = vmatpush2.msra.mxu0 0.0
  %2454 = vmatprep.subr.mxu0 0.0
  %2455 = vmatpush2.msra.mxu0 0.0
  %2456 = vmatprep.subr.mxu0 0.0
  %2457 = vmatpush2.msra.mxu0 0.0
  %2458 = vmatprep.subr.mxu0 0.0
  %2459 = vmatpush2.msra.mxu0 0.0
  %2460 = vmatprep.subr.mxu0 0.0
  %2461 = vmatpush2.msra.mxu0 0.0
  %2462 = vmatprep.subr.mxu0 0.0
  %2463 = vmatpush2.msra.mxu0 0.0
  %2464 = vmatprep.subr.mxu0 0.0
  %2465 = vmatpush2.msra.mxu0 0.0
  %2466 = vmatprep.subr.mxu0 0.0
  %2467 = vmatpush2.msra.mxu0 0.0
  %2468 = vmatprep.subr.mxu0 0.0
  %2469 = vmatpush2.msra.mxu0 0.0
  %2470 = vmatprep.subr.mxu0 0.0
  %2471 = vmatpush2.msra.mxu0 0.0
  %2472 = vmatprep.subr.mxu0 0.0
  %2473 = vmatpush2.msra.mxu0 0.0
  %2474 = vmatprep.mubr.f32.mxu0 0.0
  %2475 = vmatmul.mubr.f32.gmra.mxu0 %v2408
  %v2476 = vpop.f32.mrf.mxu0
  %v2477 = vadd.f32 0.0, %v2476
  %v2478 = vpop.f32.mrf.mxu0
  %2479 = vdwg.mxu0
  %v2480 = vadd.f32 %v2407, %v2477
  %v2481 = vxor.u32 %v2480, 2147483648
  %v2482 = vmul.f32 %v2481, 1.442695
  %v2483 = vpow.pop %v2482
  %v2484 = vadd.f32 %v2483, 1.0
  %v2485 = vrcp.pop %v2484
  %v2486 = vmul.f32 1.0, %v2485
  %v2487 = vtanh.pop %v2480
  %v2488 = vmul.f32 %v2486, %v2393
  %2490 = vrot.lane.b32.xlu0 %v2487, 32
  %v2491 = vpop.permute.xlu0 %2490
  %v2493 = vmul.f32 %v2486, %v2491
  %2495 = vrot.lane.b32.xlu0 %v2493, 32
  %v2496 = vpop.permute.xlu0 %2495
  %v2498 = vadd.f32 %v2488, %v2496
  %v2499 = vtanh.pop %v2498
  %2501 = vrot.lane.b32.xlu0 %v2499, 32
  %v2502 = vpop.permute.xlu0 %2501
  %v2504 = vmul.f32 %v2486, %v2502
  %2506 = vrot.lane.b32.xlu0 %v2504, 64
  %v2507 = vpop.permute.xlu0 %2506
  %s2509 = scalar_lea.vmem [#allocation3], 152
  %2510 = vst.msk [vmem:[%s2509] sm:$0xff] %vm412, %v2507
  %s2511 = scalar_lea.vmem [#allocation2], 160
  %v2512 = vld [vmem:[%s2511] sm:$0xff]
  %v2513 = vsel %vm412, %v2507, 0
  %2515 = vmatprep.subr.mxu0 0.0
  %2516 = vmatpush1.msra.mxu0 0.0
  %2517 = vmatprep.subr.mxu0 0.0
  %2518 = vmatpush1.msra.mxu0 0.0
  %2519 = vmatprep.subr.mxu0 0.0
  %2520 = vmatpush1.msra.mxu0 0.0
  %2521 = vmatprep.subr.mxu0 0.0
  %2522 = vmatpush1.msra.mxu0 0.0
  %2523 = vmatprep.subr.mxu0 0.0
  %2524 = vmatpush1.msra.mxu0 0.0
  %2525 = vmatprep.subr.mxu0 0.0
  %2526 = vmatpush1.msra.mxu0 0.0
  %2527 = vmatprep.subr.mxu0 0.0
  %2528 = vmatpush1.msra.mxu0 0.0
  %2529 = vmatprep.subr.mxu0 0.0
  %2530 = vmatpush1.msra.mxu0 0.0
  %2531 = vmatprep.subr.mxu0 0.0
  %2532 = vmatpush1.msra.mxu0 0.0
  %2533 = vmatprep.subr.mxu0 0.0
  %2534 = vmatpush1.msra.mxu0 0.0
  %2535 = vmatprep.subr.mxu0 0.0
  %2536 = vmatpush1.msra.mxu0 0.0
  %2537 = vmatprep.subr.mxu0 0.0
  %2538 = vmatpush1.msra.mxu0 0.0
  %2539 = vmatprep.subr.mxu0 0.0
  %2540 = vmatpush1.msra.mxu0 %v67
  %2541 = vmatprep.subr.mxu0 0.0
  %2542 = vmatpush1.msra.mxu0 %v66
  %2543 = vmatprep.subr.mxu0 0.0
  %2544 = vmatpush1.msra.mxu0 %v65
  %2545 = vmatprep.subr.mxu0 0.0
  %2546 = vmatpush1.msra.mxu0 %v64
  %2547 = vmatprep.subr.mxu0 0.0
  %2548 = vmatpush2.msra.mxu0 0.0
  %2549 = vmatprep.subr.mxu0 0.0
  %2550 = vmatpush2.msra.mxu0 0.0
  %2551 = vmatprep.subr.mxu0 0.0
  %2552 = vmatpush2.msra.mxu0 0.0
  %2553 = vmatprep.subr.mxu0 0.0
  %2554 = vmatpush2.msra.mxu0 0.0
  %2555 = vmatprep.subr.mxu0 0.0
  %2556 = vmatpush2.msra.mxu0 0.0
  %2557 = vmatprep.subr.mxu0 0.0
  %2558 = vmatpush2.msra.mxu0 0.0
  %2559 = vmatprep.subr.mxu0 0.0
  %2560 = vmatpush2.msra.mxu0 0.0
  %2561 = vmatprep.subr.mxu0 0.0
  %2562 = vmatpush2.msra.mxu0 0.0
  %2563 = vmatprep.subr.mxu0 0.0
  %2564 = vmatpush2.msra.mxu0 0.0
  %2565 = vmatprep.subr.mxu0 0.0
  %2566 = vmatpush2.msra.mxu0 0.0
  %2567 = vmatprep.subr.mxu0 0.0
  %2568 = vmatpush2.msra.mxu0 0.0
  %2569 = vmatprep.subr.mxu0 0.0
  %2570 = vmatpush2.msra.mxu0 0.0
  %2571 = vmatprep.subr.mxu0 0.0
  %2572 = vmatpush2.msra.mxu0 0.0
  %2573 = vmatprep.subr.mxu0 0.0
  %2574 = vmatpush2.msra.mxu0 0.0
  %2575 = vmatprep.subr.mxu0 0.0
  %2576 = vmatpush2.msra.mxu0 0.0
  %2577 = vmatprep.subr.mxu0 0.0
  %2578 = vmatpush2.msra.mxu0 0.0
  %2579 = vmatprep.mubr.f32.mxu0 0.0
  %2580 = vmatmul.mubr.f32.gmra.mxu0 %v2513
  %v2581 = vpop.f32.mrf.mxu0
  %v2582 = vadd.f32 0.0, %v2581
  %v2583 = vpop.f32.mrf.mxu0
  %2584 = vdwg.mxu0
  %v2585 = vadd.f32 %v2512, %v2582
  %v2586 = vxor.u32 %v2585, 2147483648
  %v2587 = vmul.f32 %v2586, 1.442695
  %v2588 = vpow.pop %v2587
  %v2589 = vadd.f32 %v2588, 1.0
  %v2590 = vrcp.pop %v2589
  %v2591 = vmul.f32 1.0, %v2590
  %v2592 = vtanh.pop %v2585
  %v2593 = vmul.f32 %v2591, %v2498
  %2595 = vrot.lane.b32.xlu0 %v2592, 32
  %v2596 = vpop.permute.xlu0 %2595
  %v2598 = vmul.f32 %v2591, %v2596
  %2600 = vrot.lane.b32.xlu0 %v2598, 32
  %v2601 = vpop.permute.xlu0 %2600
  %v2603 = vadd.f32 %v2593, %v2601
  %v2604 = vtanh.pop %v2603
  %2606 = vrot.lane.b32.xlu0 %v2604, 32
  %v2607 = vpop.permute.xlu0 %2606
  %v2609 = vmul.f32 %v2591, %v2607
  %2611 = vrot.lane.b32.xlu0 %v2609, 64
  %v2612 = vpop.permute.xlu0 %2611
  %s2614 = scalar_lea.vmem [#allocation3], 160
  %2615 = vst.msk [vmem:[%s2614] sm:$0xff] %vm412, %v2612
  %s2616 = scalar_lea.vmem [#allocation2], 168
  %v2617 = vld [vmem:[%s2616] sm:$0xff]
  %v2618 = vsel %vm412, %v2612, 0
  %2620 = vmatprep.subr.mxu0 0.0
  %2621 = vmatpush1.msra.mxu0 0.0
  %2622 = vmatprep.subr.mxu0 0.0
  %2623 = vmatpush1.msra.mxu0 0.0
  %2624 = vmatprep.subr.mxu0 0.0
  %2625 = vmatpush1.msra.mxu0 0.0
  %2626 = vmatprep.subr.mxu0 0.0
  %2627 = vmatpush1.msra.mxu0 0.0
  %2628 = vmatprep.subr.mxu0 0.0
  %2629 = vmatpush1.msra.mxu0 0.0
  %2630 = vmatprep.subr.mxu0 0.0
  %2631 = vmatpush1.msra.mxu0 0.0
  %2632 = vmatprep.subr.mxu0 0.0
  %2633 = vmatpush1.msra.mxu0 0.0
  %2634 = vmatprep.subr.mxu0 0.0
  %2635 = vmatpush1.msra.mxu0 0.0
  %2636 = vmatprep.subr.mxu0 0.0
  %2637 = vmatpush1.msra.mxu0 0.0
  %2638 = vmatprep.subr.mxu0 0.0
  %2639 = vmatpush1.msra.mxu0 0.0
  %2640 = vmatprep.subr.mxu0 0.0
  %2641 = vmatpush1.msra.mxu0 0.0
  %2642 = vmatprep.subr.mxu0 0.0
  %2643 = vmatpush1.msra.mxu0 0.0
  %2644 = vmatprep.subr.mxu0 0.0
  %2645 = vmatpush1.msra.mxu0 %v67
  %2646 = vmatprep.subr.mxu0 0.0
  %2647 = vmatpush1.msra.mxu0 %v66
  %2648 = vmatprep.subr.mxu0 0.0
  %2649 = vmatpush1.msra.mxu0 %v65
  %2650 = vmatprep.subr.mxu0 0.0
  %2651 = vmatpush1.msra.mxu0 %v64
  %2652 = vmatprep.subr.mxu0 0.0
  %2653 = vmatpush2.msra.mxu0 0.0
  %2654 = vmatprep.subr.mxu0 0.0
  %2655 = vmatpush2.msra.mxu0 0.0
  %2656 = vmatprep.subr.mxu0 0.0
  %2657 = vmatpush2.msra.mxu0 0.0
  %2658 = vmatprep.subr.mxu0 0.0
  %2659 = vmatpush2.msra.mxu0 0.0
  %2660 = vmatprep.subr.mxu0 0.0
  %2661 = vmatpush2.msra.mxu0 0.0
  %2662 = vmatprep.subr.mxu0 0.0
  %2663 = vmatpush2.msra.mxu0 0.0
  %2664 = vmatprep.subr.mxu0 0.0
  %2665 = vmatpush2.msra.mxu0 0.0
  %2666 = vmatprep.subr.mxu0 0.0
  %2667 = vmatpush2.msra.mxu0 0.0
  %2668 = vmatprep.subr.mxu0 0.0
  %2669 = vmatpush2.msra.mxu0 0.0
  %2670 = vmatprep.subr.mxu0 0.0
  %2671 = vmatpush2.msra.mxu0 0.0
  %2672 = vmatprep.subr.mxu0 0.0
  %2673 = vmatpush2.msra.mxu0 0.0
  %2674 = vmatprep.subr.mxu0 0.0
  %2675 = vmatpush2.msra.mxu0 0.0
  %2676 = vmatprep.subr.mxu0 0.0
  %2677 = vmatpush2.msra.mxu0 0.0
  %2678 = vmatprep.subr.mxu0 0.0
  %2679 = vmatpush2.msra.mxu0 0.0
  %2680 = vmatprep.subr.mxu0 0.0
  %2681 = vmatpush2.msra.mxu0 0.0
  %2682 = vmatprep.subr.mxu0 0.0
  %2683 = vmatpush2.msra.mxu0 0.0
  %2684 = vmatprep.mubr.f32.mxu0 0.0
  %2685 = vmatmul.mubr.f32.gmra.mxu0 %v2618
  %v2686 = vpop.f32.mrf.mxu0
  %v2687 = vadd.f32 0.0, %v2686
  %v2688 = vpop.f32.mrf.mxu0
  %2689 = vdwg.mxu0
  %v2690 = vadd.f32 %v2617, %v2687
  %v2691 = vxor.u32 %v2690, 2147483648
  %v2692 = vmul.f32 %v2691, 1.442695
  %v2693 = vpow.pop %v2692
  %v2694 = vadd.f32 %v2693, 1.0
  %v2695 = vrcp.pop %v2694
  %v2696 = vmul.f32 1.0, %v2695
  %v2697 = vtanh.pop %v2690
  %v2698 = vmul.f32 %v2696, %v2603
  %2700 = vrot.lane.b32.xlu0 %v2697, 32
  %v2701 = vpop.permute.xlu0 %2700
  %v2703 = vmul.f32 %v2696, %v2701
  %2705 = vrot.lane.b32.xlu0 %v2703, 32
  %v2706 = vpop.permute.xlu0 %2705
  %v2708 = vadd.f32 %v2698, %v2706
  %v2709 = vtanh.pop %v2708
  %2711 = vrot.lane.b32.xlu0 %v2709, 32
  %v2712 = vpop.permute.xlu0 %2711
  %v2714 = vmul.f32 %v2696, %v2712
  %2716 = vrot.lane.b32.xlu0 %v2714, 64
  %v2717 = vpop.permute.xlu0 %2716
  %s2719 = scalar_lea.vmem [#allocation3], 168
  %2720 = vst.msk [vmem:[%s2719] sm:$0xff] %vm412, %v2717
  %s2721 = scalar_lea.vmem [#allocation2], 176
  %v2722 = vld [vmem:[%s2721] sm:$0xff]
  %v2723 = vsel %vm412, %v2717, 0
  %2725 = vmatprep.subr.mxu0 0.0
  %2726 = vmatpush1.msra.mxu0 0.0
  %2727 = vmatprep.subr.mxu0 0.0
  %2728 = vmatpush1.msra.mxu0 0.0
  %2729 = vmatprep.subr.mxu0 0.0
  %2730 = vmatpush1.msra.mxu0 0.0
  %2731 = vmatprep.subr.mxu0 0.0
  %2732 = vmatpush1.msra.mxu0 0.0
  %2733 = vmatprep.subr.mxu0 0.0
  %2734 = vmatpush1.msra.mxu0 0.0
  %2735 = vmatprep.subr.mxu0 0.0
  %2736 = vmatpush1.msra.mxu0 0.0
  %2737 = vmatprep.subr.mxu0 0.0
  %2738 = vmatpush1.msra.mxu0 0.0
  %2739 = vmatprep.subr.mxu0 0.0
  %2740 = vmatpush1.msra.mxu0 0.0
  %2741 = vmatprep.subr.mxu0 0.0
  %2742 = vmatpush1.msra.mxu0 0.0
  %2743 = vmatprep.subr.mxu0 0.0
  %2744 = vmatpush1.msra.mxu0 0.0
  %2745 = vmatprep.subr.mxu0 0.0
  %2746 = vmatpush1.msra.mxu0 0.0
  %2747 = vmatprep.subr.mxu0 0.0
  %2748 = vmatpush1.msra.mxu0 0.0
  %2749 = vmatprep.subr.mxu0 0.0
  %2750 = vmatpush1.msra.mxu0 %v67
  %2751 = vmatprep.subr.mxu0 0.0
  %2752 = vmatpush1.msra.mxu0 %v66
  %2753 = vmatprep.subr.mxu0 0.0
  %2754 = vmatpush1.msra.mxu0 %v65
  %2755 = vmatprep.subr.mxu0 0.0
  %2756 = vmatpush1.msra.mxu0 %v64
  %2757 = vmatprep.subr.mxu0 0.0
  %2758 = vmatpush2.msra.mxu0 0.0
  %2759 = vmatprep.subr.mxu0 0.0
  %2760 = vmatpush2.msra.mxu0 0.0
  %2761 = vmatprep.subr.mxu0 0.0
  %2762 = vmatpush2.msra.mxu0 0.0
  %2763 = vmatprep.subr.mxu0 0.0
  %2764 = vmatpush2.msra.mxu0 0.0
  %2765 = vmatprep.subr.mxu0 0.0
  %2766 = vmatpush2.msra.mxu0 0.0
  %2767 = vmatprep.subr.mxu0 0.0
  %2768 = vmatpush2.msra.mxu0 0.0
  %2769 = vmatprep.subr.mxu0 0.0
  %2770 = vmatpush2.msra.mxu0 0.0
  %2771 = vmatprep.subr.mxu0 0.0
  %2772 = vmatpush2.msra.mxu0 0.0
  %2773 = vmatprep.subr.mxu0 0.0
  %2774 = vmatpush2.msra.mxu0 0.0
  %2775 = vmatprep.subr.mxu0 0.0
  %2776 = vmatpush2.msra.mxu0 0.0
  %2777 = vmatprep.subr.mxu0 0.0
  %2778 = vmatpush2.msra.mxu0 0.0
  %2779 = vmatprep.subr.mxu0 0.0
  %2780 = vmatpush2.msra.mxu0 0.0
  %2781 = vmatprep.subr.mxu0 0.0
  %2782 = vmatpush2.msra.mxu0 0.0
  %2783 = vmatprep.subr.mxu0 0.0
  %2784 = vmatpush2.msra.mxu0 0.0
  %2785 = vmatprep.subr.mxu0 0.0
  %2786 = vmatpush2.msra.mxu0 0.0
  %2787 = vmatprep.subr.mxu0 0.0
  %2788 = vmatpush2.msra.mxu0 0.0
  %2789 = vmatprep.mubr.f32.mxu0 0.0
  %2790 = vmatmul.mubr.f32.gmra.mxu0 %v2723
  %v2791 = vpop.f32.mrf.mxu0
  %v2792 = vadd.f32 0.0, %v2791
  %v2793 = vpop.f32.mrf.mxu0
  %2794 = vdwg.mxu0
  %v2795 = vadd.f32 %v2722, %v2792
  %v2796 = vxor.u32 %v2795, 2147483648
  %v2797 = vmul.f32 %v2796, 1.442695
  %v2798 = vpow.pop %v2797
  %v2799 = vadd.f32 %v2798, 1.0
  %v2800 = vrcp.pop %v2799
  %v2801 = vmul.f32 1.0, %v2800
  %v2802 = vtanh.pop %v2795
  %v2803 = vmul.f32 %v2801, %v2708
  %2805 = vrot.lane.b32.xlu0 %v2802, 32
  %v2806 = vpop.permute.xlu0 %2805
  %v2808 = vmul.f32 %v2801, %v2806
  %2810 = vrot.lane.b32.xlu0 %v2808, 32
  %v2811 = vpop.permute.xlu0 %2810
  %v2813 = vadd.f32 %v2803, %v2811
  %v2814 = vtanh.pop %v2813
  %2816 = vrot.lane.b32.xlu0 %v2814, 32
  %v2817 = vpop.permute.xlu0 %2816
  %v2819 = vmul.f32 %v2801, %v2817
  %2821 = vrot.lane.b32.xlu0 %v2819, 64
  %v2822 = vpop.permute.xlu0 %2821
  %s2824 = scalar_lea.vmem [#allocation3], 176
  %2825 = vst.msk [vmem:[%s2824] sm:$0xff] %vm412, %v2822
  %s2826 = scalar_lea.vmem [#allocation2], 184
  %v2827 = vld [vmem:[%s2826] sm:$0xff]
  %v2828 = vsel %vm412, %v2822, 0
  %2830 = vmatprep.subr.mxu0 0.0
  %2831 = vmatpush1.msra.mxu0 0.0
  %2832 = vmatprep.subr.mxu0 0.0
  %2833 = vmatpush1.msra.mxu0 0.0
  %2834 = vmatprep.subr.mxu0 0.0
  %2835 = vmatpush1.msra.mxu0 0.0
  %2836 = vmatprep.subr.mxu0 0.0
  %2837 = vmatpush1.msra.mxu0 0.0
  %2838 = vmatprep.subr.mxu0 0.0
  %2839 = vmatpush1.msra.mxu0 0.0
  %2840 = vmatprep.subr.mxu0 0.0
  %2841 = vmatpush1.msra.mxu0 0.0
  %2842 = vmatprep.subr.mxu0 0.0
  %2843 = vmatpush1.msra.mxu0 0.0
  %2844 = vmatprep.subr.mxu0 0.0
  %2845 = vmatpush1.msra.mxu0 0.0
  %2846 = vmatprep.subr.mxu0 0.0
  %2847 = vmatpush1.msra.mxu0 0.0
  %2848 = vmatprep.subr.mxu0 0.0
  %2849 = vmatpush1.msra.mxu0 0.0
  %2850 = vmatprep.subr.mxu0 0.0
  %2851 = vmatpush1.msra.mxu0 0.0
  %2852 = vmatprep.subr.mxu0 0.0
  %2853 = vmatpush1.msra.mxu0 0.0
  %2854 = vmatprep.subr.mxu0 0.0
  %2855 = vmatpush1.msra.mxu0 %v67
  %2856 = vmatprep.subr.mxu0 0.0
  %2857 = vmatpush1.msra.mxu0 %v66
  %2858 = vmatprep.subr.mxu0 0.0
  %2859 = vmatpush1.msra.mxu0 %v65
  %2860 = vmatprep.subr.mxu0 0.0
  %2861 = vmatpush1.msra.mxu0 %v64
  %2862 = vmatprep.subr.mxu0 0.0
  %2863 = vmatpush2.msra.mxu0 0.0
  %2864 = vmatprep.subr.mxu0 0.0
  %2865 = vmatpush2.msra.mxu0 0.0
  %2866 = vmatprep.subr.mxu0 0.0
  %2867 = vmatpush2.msra.mxu0 0.0
  %2868 = vmatprep.subr.mxu0 0.0
  %2869 = vmatpush2.msra.mxu0 0.0
  %2870 = vmatprep.subr.mxu0 0.0
  %2871 = vmatpush2.msra.mxu0 0.0
  %2872 = vmatprep.subr.mxu0 0.0
  %2873 = vmatpush2.msra.mxu0 0.0
  %2874 = vmatprep.subr.mxu0 0.0
  %2875 = vmatpush2.msra.mxu0 0.0
  %2876 = vmatprep.subr.mxu0 0.0
  %2877 = vmatpush2.msra.mxu0 0.0
  %2878 = vmatprep.subr.mxu0 0.0
  %2879 = vmatpush2.msra.mxu0 0.0
  %2880 = vmatprep.subr.mxu0 0.0
  %2881 = vmatpush2.msra.mxu0 0.0
  %2882 = vmatprep.subr.mxu0 0.0
  %2883 = vmatpush2.msra.mxu0 0.0
  %2884 = vmatprep.subr.mxu0 0.0
  %2885 = vmatpush2.msra.mxu0 0.0
  %2886 = vmatprep.subr.mxu0 0.0
  %2887 = vmatpush2.msra.mxu0 0.0
  %2888 = vmatprep.subr.mxu0 0.0
  %2889 = vmatpush2.msra.mxu0 0.0
  %2890 = vmatprep.subr.mxu0 0.0
  %2891 = vmatpush2.msra.mxu0 0.0
  %2892 = vmatprep.subr.mxu0 0.0
  %2893 = vmatpush2.msra.mxu0 0.0
  %2894 = vmatprep.mubr.f32.mxu0 0.0
  %2895 = vmatmul.mubr.f32.gmra.mxu0 %v2828
  %v2896 = vpop.f32.mrf.mxu0
  %v2897 = vadd.f32 0.0, %v2896
  %v2898 = vpop.f32.mrf.mxu0
  %2899 = vdwg.mxu0
  %v2900 = vadd.f32 %v2827, %v2897
  %v2901 = vxor.u32 %v2900, 2147483648
  %v2902 = vmul.f32 %v2901, 1.442695
  %v2903 = vpow.pop %v2902
  %v2904 = vadd.f32 %v2903, 1.0
  %v2905 = vrcp.pop %v2904
  %v2906 = vmul.f32 1.0, %v2905
  %v2907 = vtanh.pop %v2900
  %v2908 = vmul.f32 %v2906, %v2813
  %2910 = vrot.lane.b32.xlu0 %v2907, 32
  %v2911 = vpop.permute.xlu0 %2910
  %v2913 = vmul.f32 %v2906, %v2911
  %2915 = vrot.lane.b32.xlu0 %v2913, 32
  %v2916 = vpop.permute.xlu0 %2915
  %v2918 = vadd.f32 %v2908, %v2916
  %v2919 = vtanh.pop %v2918
  %2921 = vrot.lane.b32.xlu0 %v2919, 32
  %v2922 = vpop.permute.xlu0 %2921
  %v2924 = vmul.f32 %v2906, %v2922
  %2926 = vrot.lane.b32.xlu0 %v2924, 64
  %v2927 = vpop.permute.xlu0 %2926
  %s2929 = scalar_lea.vmem [#allocation3], 184
  %2930 = vst.msk [vmem:[%s2929] sm:$0xff] %vm412, %v2927
  %s2931 = scalar_lea.vmem [#allocation2], 192
  %v2932 = vld [vmem:[%s2931] sm:$0xff]
  %v2933 = vsel %vm412, %v2927, 0
  %2935 = vmatprep.subr.mxu0 0.0
  %2936 = vmatpush1.msra.mxu0 0.0
  %2937 = vmatprep.subr.mxu0 0.0
  %2938 = vmatpush1.msra.mxu0 0.0
  %2939 = vmatprep.subr.mxu0 0.0
  %2940 = vmatpush1.msra.mxu0 0.0
  %2941 = vmatprep.subr.mxu0 0.0
  %2942 = vmatpush1.msra.mxu0 0.0
  %2943 = vmatprep.subr.mxu0 0.0
  %2944 = vmatpush1.msra.mxu0 0.0
  %2945 = vmatprep.subr.mxu0 0.0
  %2946 = vmatpush1.msra.mxu0 0.0
  %2947 = vmatprep.subr.mxu0 0.0
  %2948 = vmatpush1.msra.mxu0 0.0
  %2949 = vmatprep.subr.mxu0 0.0
  %2950 = vmatpush1.msra.mxu0 0.0
  %2951 = vmatprep.subr.mxu0 0.0
  %2952 = vmatpush1.msra.mxu0 0.0
  %2953 = vmatprep.subr.mxu0 0.0
  %2954 = vmatpush1.msra.mxu0 0.0
  %2955 = vmatprep.subr.mxu0 0.0
  %2956 = vmatpush1.msra.mxu0 0.0
  %2957 = vmatprep.subr.mxu0 0.0
  %2958 = vmatpush1.msra.mxu0 0.0
  %2959 = vmatprep.subr.mxu0 0.0
  %2960 = vmatpush1.msra.mxu0 %v67
  %2961 = vmatprep.subr.mxu0 0.0
  %2962 = vmatpush1.msra.mxu0 %v66
  %2963 = vmatprep.subr.mxu0 0.0
  %2964 = vmatpush1.msra.mxu0 %v65
  %2965 = vmatprep.subr.mxu0 0.0
  %2966 = vmatpush1.msra.mxu0 %v64
  %2967 = vmatprep.subr.mxu0 0.0
  %2968 = vmatpush2.msra.mxu0 0.0
  %2969 = vmatprep.subr.mxu0 0.0
  %2970 = vmatpush2.msra.mxu0 0.0
  %2971 = vmatprep.subr.mxu0 0.0
  %2972 = vmatpush2.msra.mxu0 0.0
  %2973 = vmatprep.subr.mxu0 0.0
  %2974 = vmatpush2.msra.mxu0 0.0
  %2975 = vmatprep.subr.mxu0 0.0
  %2976 = vmatpush2.msra.mxu0 0.0
  %2977 = vmatprep.subr.mxu0 0.0
  %2978 = vmatpush2.msra.mxu0 0.0
  %2979 = vmatprep.subr.mxu0 0.0
  %2980 = vmatpush2.msra.mxu0 0.0
  %2981 = vmatprep.subr.mxu0 0.0
  %2982 = vmatpush2.msra.mxu0 0.0
  %2983 = vmatprep.subr.mxu0 0.0
  %2984 = vmatpush2.msra.mxu0 0.0
  %2985 = vmatprep.subr.mxu0 0.0
  %2986 = vmatpush2.msra.mxu0 0.0
  %2987 = vmatprep.subr.mxu0 0.0
  %2988 = vmatpush2.msra.mxu0 0.0
  %2989 = vmatprep.subr.mxu0 0.0
  %2990 = vmatpush2.msra.mxu0 0.0
  %2991 = vmatprep.subr.mxu0 0.0
  %2992 = vmatpush2.msra.mxu0 0.0
  %2993 = vmatprep.subr.mxu0 0.0
  %2994 = vmatpush2.msra.mxu0 0.0
  %2995 = vmatprep.subr.mxu0 0.0
  %2996 = vmatpush2.msra.mxu0 0.0
  %2997 = vmatprep.subr.mxu0 0.0
  %2998 = vmatpush2.msra.mxu0 0.0
  %2999 = vmatprep.mubr.f32.mxu0 0.0
  %3000 = vmatmul.mubr.f32.gmra.mxu0 %v2933
  %v3001 = vpop.f32.mrf.mxu0
  %v3002 = vadd.f32 0.0, %v3001
  %v3003 = vpop.f32.mrf.mxu0
  %3004 = vdwg.mxu0
  %v3005 = vadd.f32 %v2932, %v3002
  %v3006 = vxor.u32 %v3005, 2147483648
  %v3007 = vmul.f32 %v3006, 1.442695
  %v3008 = vpow.pop %v3007
  %v3009 = vadd.f32 %v3008, 1.0
  %v3010 = vrcp.pop %v3009
  %v3011 = vmul.f32 1.0, %v3010
  %v3012 = vtanh.pop %v3005
  %v3013 = vmul.f32 %v3011, %v2918
  %3015 = vrot.lane.b32.xlu0 %v3012, 32
  %v3016 = vpop.permute.xlu0 %3015
  %v3018 = vmul.f32 %v3011, %v3016
  %3020 = vrot.lane.b32.xlu0 %v3018, 32
  %v3021 = vpop.permute.xlu0 %3020
  %v3023 = vadd.f32 %v3013, %v3021
  %v3024 = vtanh.pop %v3023
  %3026 = vrot.lane.b32.xlu0 %v3024, 32
  %v3027 = vpop.permute.xlu0 %3026
  %v3029 = vmul.f32 %v3011, %v3027
  %3031 = vrot.lane.b32.xlu0 %v3029, 64
  %v3032 = vpop.permute.xlu0 %3031
  %s3034 = scalar_lea.vmem [#allocation3], 192
  %3035 = vst.msk [vmem:[%s3034] sm:$0xff] %vm412, %v3032
  %s3036 = scalar_lea.vmem [#allocation2], 200
  %v3037 = vld [vmem:[%s3036] sm:$0xff]
  %v3038 = vsel %vm412, %v3032, 0
  %3040 = vmatprep.subr.mxu0 0.0
  %3041 = vmatpush1.msra.mxu0 0.0
  %3042 = vmatprep.subr.mxu0 0.0
  %3043 = vmatpush1.msra.mxu0 0.0
  %3044 = vmatprep.subr.mxu0 0.0
  %3045 = vmatpush1.msra.mxu0 0.0
  %3046 = vmatprep.subr.mxu0 0.0
  %3047 = vmatpush1.msra.mxu0 0.0
  %3048 = vmatprep.subr.mxu0 0.0
  %3049 = vmatpush1.msra.mxu0 0.0
  %3050 = vmatprep.subr.mxu0 0.0
  %3051 = vmatpush1.msra.mxu0 0.0
  %3052 = vmatprep.subr.mxu0 0.0
  %3053 = vmatpush1.msra.mxu0 0.0
  %3054 = vmatprep.subr.mxu0 0.0
  %3055 = vmatpush1.msra.mxu0 0.0
  %3056 = vmatprep.subr.mxu0 0.0
  %3057 = vmatpush1.msra.mxu0 0.0
  %3058 = vmatprep.subr.mxu0 0.0
  %3059 = vmatpush1.msra.mxu0 0.0
  %3060 = vmatprep.subr.mxu0 0.0
  %3061 = vmatpush1.msra.mxu0 0.0
  %3062 = vmatprep.subr.mxu0 0.0
  %3063 = vmatpush1.msra.mxu0 0.0
  %3064 = vmatprep.subr.mxu0 0.0
  %3065 = vmatpush1.msra.mxu0 %v67
  %3066 = vmatprep.subr.mxu0 0.0
  %3067 = vmatpush1.msra.mxu0 %v66
  %3068 = vmatprep.subr.mxu0 0.0
  %3069 = vmatpush1.msra.mxu0 %v65
  %3070 = vmatprep.subr.mxu0 0.0
  %3071 = vmatpush1.msra.mxu0 %v64
  %3072 = vmatprep.subr.mxu0 0.0
  %3073 = vmatpush2.msra.mxu0 0.0
  %3074 = vmatprep.subr.mxu0 0.0
  %3075 = vmatpush2.msra.mxu0 0.0
  %3076 = vmatprep.subr.mxu0 0.0
  %3077 = vmatpush2.msra.mxu0 0.0
  %3078 = vmatprep.subr.mxu0 0.0
  %3079 = vmatpush2.msra.mxu0 0.0
  %3080 = vmatprep.subr.mxu0 0.0
  %3081 = vmatpush2.msra.mxu0 0.0
  %3082 = vmatprep.subr.mxu0 0.0
  %3083 = vmatpush2.msra.mxu0 0.0
  %3084 = vmatprep.subr.mxu0 0.0
  %3085 = vmatpush2.msra.mxu0 0.0
  %3086 = vmatprep.subr.mxu0 0.0
  %3087 = vmatpush2.msra.mxu0 0.0
  %3088 = vmatprep.subr.mxu0 0.0
  %3089 = vmatpush2.msra.mxu0 0.0
  %3090 = vmatprep.subr.mxu0 0.0
  %3091 = vmatpush2.msra.mxu0 0.0
  %3092 = vmatprep.subr.mxu0 0.0
  %3093 = vmatpush2.msra.mxu0 0.0
  %3094 = vmatprep.subr.mxu0 0.0
  %3095 = vmatpush2.msra.mxu0 0.0
  %3096 = vmatprep.subr.mxu0 0.0
  %3097 = vmatpush2.msra.mxu0 0.0
  %3098 = vmatprep.subr.mxu0 0.0
  %3099 = vmatpush2.msra.mxu0 0.0
  %3100 = vmatprep.subr.mxu0 0.0
  %3101 = vmatpush2.msra.mxu0 0.0
  %3102 = vmatprep.subr.mxu0 0.0
  %3103 = vmatpush2.msra.mxu0 0.0
  %3104 = vmatprep.mubr.f32.mxu0 0.0
  %3105 = vmatmul.mubr.f32.gmra.mxu0 %v3038
  %v3106 = vpop.f32.mrf.mxu0
  %v3107 = vadd.f32 0.0, %v3106
  %v3108 = vpop.f32.mrf.mxu0
  %3109 = vdwg.mxu0
  %v3110 = vadd.f32 %v3037, %v3107
  %v3111 = vxor.u32 %v3110, 2147483648
  %v3112 = vmul.f32 %v3111, 1.442695
  %v3113 = vpow.pop %v3112
  %v3114 = vadd.f32 %v3113, 1.0
  %v3115 = vrcp.pop %v3114
  %v3116 = vmul.f32 1.0, %v3115
  %v3117 = vtanh.pop %v3110
  %v3118 = vmul.f32 %v3116, %v3023
  %3120 = vrot.lane.b32.xlu0 %v3117, 32
  %v3121 = vpop.permute.xlu0 %3120
  %v3123 = vmul.f32 %v3116, %v3121
  %3125 = vrot.lane.b32.xlu0 %v3123, 32
  %v3126 = vpop.permute.xlu0 %3125
  %v3128 = vadd.f32 %v3118, %v3126
  %v3129 = vtanh.pop %v3128
  %3131 = vrot.lane.b32.xlu0 %v3129, 32
  %v3132 = vpop.permute.xlu0 %3131
  %v3134 = vmul.f32 %v3116, %v3132
  %3136 = vrot.lane.b32.xlu0 %v3134, 64
  %v3137 = vpop.permute.xlu0 %3136
  %s3139 = scalar_lea.vmem [#allocation3], 200
  %3140 = vst.msk [vmem:[%s3139] sm:$0xff] %vm412, %v3137
  %s3141 = scalar_lea.vmem [#allocation2], 208
  %v3142 = vld [vmem:[%s3141] sm:$0xff]
  %v3143 = vsel %vm412, %v3137, 0
  %3145 = vmatprep.subr.mxu0 0.0
  %3146 = vmatpush1.msra.mxu0 0.0
  %3147 = vmatprep.subr.mxu0 0.0
  %3148 = vmatpush1.msra.mxu0 0.0
  %3149 = vmatprep.subr.mxu0 0.0
  %3150 = vmatpush1.msra.mxu0 0.0
  %3151 = vmatprep.subr.mxu0 0.0
  %3152 = vmatpush1.msra.mxu0 0.0
  %3153 = vmatprep.subr.mxu0 0.0
  %3154 = vmatpush1.msra.mxu0 0.0
  %3155 = vmatprep.subr.mxu0 0.0
  %3156 = vmatpush1.msra.mxu0 0.0
  %3157 = vmatprep.subr.mxu0 0.0
  %3158 = vmatpush1.msra.mxu0 0.0
  %3159 = vmatprep.subr.mxu0 0.0
  %3160 = vmatpush1.msra.mxu0 0.0
  %3161 = vmatprep.subr.mxu0 0.0
  %3162 = vmatpush1.msra.mxu0 0.0
  %3163 = vmatprep.subr.mxu0 0.0
  %3164 = vmatpush1.msra.mxu0 0.0
  %3165 = vmatprep.subr.mxu0 0.0
  %3166 = vmatpush1.msra.mxu0 0.0
  %3167 = vmatprep.subr.mxu0 0.0
  %3168 = vmatpush1.msra.mxu0 0.0
  %3169 = vmatprep.subr.mxu0 0.0
  %3170 = vmatpush1.msra.mxu0 %v67
  %3171 = vmatprep.subr.mxu0 0.0
  %3172 = vmatpush1.msra.mxu0 %v66
  %3173 = vmatprep.subr.mxu0 0.0
  %3174 = vmatpush1.msra.mxu0 %v65
  %3175 = vmatprep.subr.mxu0 0.0
  %3176 = vmatpush1.msra.mxu0 %v64
  %3177 = vmatprep.subr.mxu0 0.0
  %3178 = vmatpush2.msra.mxu0 0.0
  %3179 = vmatprep.subr.mxu0 0.0
  %3180 = vmatpush2.msra.mxu0 0.0
  %3181 = vmatprep.subr.mxu0 0.0
  %3182 = vmatpush2.msra.mxu0 0.0
  %3183 = vmatprep.subr.mxu0 0.0
  %3184 = vmatpush2.msra.mxu0 0.0
  %3185 = vmatprep.subr.mxu0 0.0
  %3186 = vmatpush2.msra.mxu0 0.0
  %3187 = vmatprep.subr.mxu0 0.0
  %3188 = vmatpush2.msra.mxu0 0.0
  %3189 = vmatprep.subr.mxu0 0.0
  %3190 = vmatpush2.msra.mxu0 0.0
  %3191 = vmatprep.subr.mxu0 0.0
  %3192 = vmatpush2.msra.mxu0 0.0
  %3193 = vmatprep.subr.mxu0 0.0
  %3194 = vmatpush2.msra.mxu0 0.0
  %3195 = vmatprep.subr.mxu0 0.0
  %3196 = vmatpush2.msra.mxu0 0.0
  %3197 = vmatprep.subr.mxu0 0.0
  %3198 = vmatpush2.msra.mxu0 0.0
  %3199 = vmatprep.subr.mxu0 0.0
  %3200 = vmatpush2.msra.mxu0 0.0
  %3201 = vmatprep.subr.mxu0 0.0
  %3202 = vmatpush2.msra.mxu0 0.0
  %3203 = vmatprep.subr.mxu0 0.0
  %3204 = vmatpush2.msra.mxu0 0.0
  %3205 = vmatprep.subr.mxu0 0.0
  %3206 = vmatpush2.msra.mxu0 0.0
  %3207 = vmatprep.subr.mxu0 0.0
  %3208 = vmatpush2.msra.mxu0 0.0
  %3209 = vmatprep.mubr.f32.mxu0 0.0
  %3210 = vmatmul.mubr.f32.gmra.mxu0 %v3143
  %v3211 = vpop.f32.mrf.mxu0
  %v3212 = vadd.f32 0.0, %v3211
  %v3213 = vpop.f32.mrf.mxu0
  %3214 = vdwg.mxu0
  %v3215 = vadd.f32 %v3142, %v3212
  %v3216 = vxor.u32 %v3215, 2147483648
  %v3217 = vmul.f32 %v3216, 1.442695
  %v3218 = vpow.pop %v3217
  %v3219 = vadd.f32 %v3218, 1.0
  %v3220 = vrcp.pop %v3219
  %v3221 = vmul.f32 1.0, %v3220
  %v3222 = vtanh.pop %v3215
  %v3223 = vmul.f32 %v3221, %v3128
  %3225 = vrot.lane.b32.xlu0 %v3222, 32
  %v3226 = vpop.permute.xlu0 %3225
  %v3228 = vmul.f32 %v3221, %v3226
  %3230 = vrot.lane.b32.xlu0 %v3228, 32
  %v3231 = vpop.permute.xlu0 %3230
  %v3233 = vadd.f32 %v3223, %v3231
  %v3234 = vtanh.pop %v3233
  %3236 = vrot.lane.b32.xlu0 %v3234, 32
  %v3237 = vpop.permute.xlu0 %3236
  %v3239 = vmul.f32 %v3221, %v3237
  %3241 = vrot.lane.b32.xlu0 %v3239, 64
  %v3242 = vpop.permute.xlu0 %3241
  %s3244 = scalar_lea.vmem [#allocation3], 208
  %3245 = vst.msk [vmem:[%s3244] sm:$0xff] %vm412, %v3242
  %s3246 = scalar_lea.vmem [#allocation2], 216
  %v3247 = vld [vmem:[%s3246] sm:$0xff]
  %v3248 = vsel %vm412, %v3242, 0
  %3250 = vmatprep.subr.mxu0 0.0
  %3251 = vmatpush1.msra.mxu0 0.0
  %3252 = vmatprep.subr.mxu0 0.0
  %3253 = vmatpush1.msra.mxu0 0.0
  %3254 = vmatprep.subr.mxu0 0.0
  %3255 = vmatpush1.msra.mxu0 0.0
  %3256 = vmatprep.subr.mxu0 0.0
  %3257 = vmatpush1.msra.mxu0 0.0
  %3258 = vmatprep.subr.mxu0 0.0
  %3259 = vmatpush1.msra.mxu0 0.0
  %3260 = vmatprep.subr.mxu0 0.0
  %3261 = vmatpush1.msra.mxu0 0.0
  %3262 = vmatprep.subr.mxu0 0.0
  %3263 = vmatpush1.msra.mxu0 0.0
  %3264 = vmatprep.subr.mxu0 0.0
  %3265 = vmatpush1.msra.mxu0 0.0
  %3266 = vmatprep.subr.mxu0 0.0
  %3267 = vmatpush1.msra.mxu0 0.0
  %3268 = vmatprep.subr.mxu0 0.0
  %3269 = vmatpush1.msra.mxu0 0.0
  %3270 = vmatprep.subr.mxu0 0.0
  %3271 = vmatpush1.msra.mxu0 0.0
  %3272 = vmatprep.subr.mxu0 0.0
  %3273 = vmatpush1.msra.mxu0 0.0
  %3274 = vmatprep.subr.mxu0 0.0
  %3275 = vmatpush1.msra.mxu0 %v67
  %3276 = vmatprep.subr.mxu0 0.0
  %3277 = vmatpush1.msra.mxu0 %v66
  %3278 = vmatprep.subr.mxu0 0.0
  %3279 = vmatpush1.msra.mxu0 %v65
  %3280 = vmatprep.subr.mxu0 0.0
  %3281 = vmatpush1.msra.mxu0 %v64
  %3282 = vmatprep.subr.mxu0 0.0
  %3283 = vmatpush2.msra.mxu0 0.0
  %3284 = vmatprep.subr.mxu0 0.0
  %3285 = vmatpush2.msra.mxu0 0.0
  %3286 = vmatprep.subr.mxu0 0.0
  %3287 = vmatpush2.msra.mxu0 0.0
  %3288 = vmatprep.subr.mxu0 0.0
  %3289 = vmatpush2.msra.mxu0 0.0
  %3290 = vmatprep.subr.mxu0 0.0
  %3291 = vmatpush2.msra.mxu0 0.0
  %3292 = vmatprep.subr.mxu0 0.0
  %3293 = vmatpush2.msra.mxu0 0.0
  %3294 = vmatprep.subr.mxu0 0.0
  %3295 = vmatpush2.msra.mxu0 0.0
  %3296 = vmatprep.subr.mxu0 0.0
  %3297 = vmatpush2.msra.mxu0 0.0
  %3298 = vmatprep.subr.mxu0 0.0
  %3299 = vmatpush2.msra.mxu0 0.0
  %3300 = vmatprep.subr.mxu0 0.0
  %3301 = vmatpush2.msra.mxu0 0.0
  %3302 = vmatprep.subr.mxu0 0.0
  %3303 = vmatpush2.msra.mxu0 0.0
  %3304 = vmatprep.subr.mxu0 0.0
  %3305 = vmatpush2.msra.mxu0 0.0
  %3306 = vmatprep.subr.mxu0 0.0
  %3307 = vmatpush2.msra.mxu0 0.0
  %3308 = vmatprep.subr.mxu0 0.0
  %3309 = vmatpush2.msra.mxu0 0.0
  %3310 = vmatprep.subr.mxu0 0.0
  %3311 = vmatpush2.msra.mxu0 0.0
  %3312 = vmatprep.subr.mxu0 0.0
  %3313 = vmatpush2.msra.mxu0 0.0
  %3314 = vmatprep.mubr.f32.mxu0 0.0
  %3315 = vmatmul.mubr.f32.gmra.mxu0 %v3248
  %v3316 = vpop.f32.mrf.mxu0
  %v3317 = vadd.f32 0.0, %v3316
  %v3318 = vpop.f32.mrf.mxu0
  %3319 = vdwg.mxu0
  %v3320 = vadd.f32 %v3247, %v3317
  %v3321 = vxor.u32 %v3320, 2147483648
  %v3322 = vmul.f32 %v3321, 1.442695
  %v3323 = vpow.pop %v3322
  %v3324 = vadd.f32 %v3323, 1.0
  %v3325 = vrcp.pop %v3324
  %v3326 = vmul.f32 1.0, %v3325
  %v3327 = vtanh.pop %v3320
  %v3328 = vmul.f32 %v3326, %v3233
  %3330 = vrot.lane.b32.xlu0 %v3327, 32
  %v3331 = vpop.permute.xlu0 %3330
  %v3333 = vmul.f32 %v3326, %v3331
  %3335 = vrot.lane.b32.xlu0 %v3333, 32
  %v3336 = vpop.permute.xlu0 %3335
  %v3338 = vadd.f32 %v3328, %v3336
  %v3339 = vtanh.pop %v3338
  %3341 = vrot.lane.b32.xlu0 %v3339, 32
  %v3342 = vpop.permute.xlu0 %3341
  %v3344 = vmul.f32 %v3326, %v3342
  %3346 = vrot.lane.b32.xlu0 %v3344, 64
  %v3347 = vpop.permute.xlu0 %3346
  %s3349 = scalar_lea.vmem [#allocation3], 216
  %3350 = vst.msk [vmem:[%s3349] sm:$0xff] %vm412, %v3347
  %s3351 = scalar_lea.vmem [#allocation2], 224
  %v3352 = vld [vmem:[%s3351] sm:$0xff]
  %v3353 = vsel %vm412, %v3347, 0
  %3355 = vmatprep.subr.mxu0 0.0
  %3356 = vmatpush1.msra.mxu0 0.0
  %3357 = vmatprep.subr.mxu0 0.0
  %3358 = vmatpush1.msra.mxu0 0.0
  %3359 = vmatprep.subr.mxu0 0.0
  %3360 = vmatpush1.msra.mxu0 0.0
  %3361 = vmatprep.subr.mxu0 0.0
  %3362 = vmatpush1.msra.mxu0 0.0
  %3363 = vmatprep.subr.mxu0 0.0
  %3364 = vmatpush1.msra.mxu0 0.0
  %3365 = vmatprep.subr.mxu0 0.0
  %3366 = vmatpush1.msra.mxu0 0.0
  %3367 = vmatprep.subr.mxu0 0.0
  %3368 = vmatpush1.msra.mxu0 0.0
  %3369 = vmatprep.subr.mxu0 0.0
  %3370 = vmatpush1.msra.mxu0 0.0
  %3371 = vmatprep.subr.mxu0 0.0
  %3372 = vmatpush1.msra.mxu0 0.0
  %3373 = vmatprep.subr.mxu0 0.0
  %3374 = vmatpush1.msra.mxu0 0.0
  %3375 = vmatprep.subr.mxu0 0.0
  %3376 = vmatpush1.msra.mxu0 0.0
  %3377 = vmatprep.subr.mxu0 0.0
  %3378 = vmatpush1.msra.mxu0 0.0
  %3379 = vmatprep.subr.mxu0 0.0
  %3380 = vmatpush1.msra.mxu0 %v67
  %3381 = vmatprep.subr.mxu0 0.0
  %3382 = vmatpush1.msra.mxu0 %v66
  %3383 = vmatprep.subr.mxu0 0.0
  %3384 = vmatpush1.msra.mxu0 %v65
  %3385 = vmatprep.subr.mxu0 0.0
  %3386 = vmatpush1.msra.mxu0 %v64
  %3387 = vmatprep.subr.mxu0 0.0
  %3388 = vmatpush2.msra.mxu0 0.0
  %3389 = vmatprep.subr.mxu0 0.0
  %3390 = vmatpush2.msra.mxu0 0.0
  %3391 = vmatprep.subr.mxu0 0.0
  %3392 = vmatpush2.msra.mxu0 0.0
  %3393 = vmatprep.subr.mxu0 0.0
  %3394 = vmatpush2.msra.mxu0 0.0
  %3395 = vmatprep.subr.mxu0 0.0
  %3396 = vmatpush2.msra.mxu0 0.0
  %3397 = vmatprep.subr.mxu0 0.0
  %3398 = vmatpush2.msra.mxu0 0.0
  %3399 = vmatprep.subr.mxu0 0.0
  %3400 = vmatpush2.msra.mxu0 0.0
  %3401 = vmatprep.subr.mxu0 0.0
  %3402 = vmatpush2.msra.mxu0 0.0
  %3403 = vmatprep.subr.mxu0 0.0
  %3404 = vmatpush2.msra.mxu0 0.0
  %3405 = vmatprep.subr.mxu0 0.0
  %3406 = vmatpush2.msra.mxu0 0.0
  %3407 = vmatprep.subr.mxu0 0.0
  %3408 = vmatpush2.msra.mxu0 0.0
  %3409 = vmatprep.subr.mxu0 0.0
  %3410 = vmatpush2.msra.mxu0 0.0
  %3411 = vmatprep.subr.mxu0 0.0
  %3412 = vmatpush2.msra.mxu0 0.0
  %3413 = vmatprep.subr.mxu0 0.0
  %3414 = vmatpush2.msra.mxu0 0.0
  %3415 = vmatprep.subr.mxu0 0.0
  %3416 = vmatpush2.msra.mxu0 0.0
  %3417 = vmatprep.subr.mxu0 0.0
  %3418 = vmatpush2.msra.mxu0 0.0
  %3419 = vmatprep.mubr.f32.mxu0 0.0
  %3420 = vmatmul.mubr.f32.gmra.mxu0 %v3353
  %v3421 = vpop.f32.mrf.mxu0
  %v3422 = vadd.f32 0.0, %v3421
  %v3423 = vpop.f32.mrf.mxu0
  %3424 = vdwg.mxu0
  %v3425 = vadd.f32 %v3352, %v3422
  %v3426 = vxor.u32 %v3425, 2147483648
  %v3427 = vmul.f32 %v3426, 1.442695
  %v3428 = vpow.pop %v3427
  %v3429 = vadd.f32 %v3428, 1.0
  %v3430 = vrcp.pop %v3429
  %v3431 = vmul.f32 1.0, %v3430
  %v3432 = vtanh.pop %v3425
  %v3433 = vmul.f32 %v3431, %v3338
  %3435 = vrot.lane.b32.xlu0 %v3432, 32
  %v3436 = vpop.permute.xlu0 %3435
  %v3438 = vmul.f32 %v3431, %v3436
  %3440 = vrot.lane.b32.xlu0 %v3438, 32
  %v3441 = vpop.permute.xlu0 %3440
  %v3443 = vadd.f32 %v3433, %v3441
  %v3444 = vtanh.pop %v3443
  %3446 = vrot.lane.b32.xlu0 %v3444, 32
  %v3447 = vpop.permute.xlu0 %3446
  %v3449 = vmul.f32 %v3431, %v3447
  %3451 = vrot.lane.b32.xlu0 %v3449, 64
  %v3452 = vpop.permute.xlu0 %3451
  %s3454 = scalar_lea.vmem [#allocation3], 224
  %3455 = vst.msk [vmem:[%s3454] sm:$0xff] %vm412, %v3452
  %s3456 = scalar_lea.vmem [#allocation2], 232
  %v3457 = vld [vmem:[%s3456] sm:$0xff]
  %v3458 = vsel %vm412, %v3452, 0
  %3460 = vmatprep.subr.mxu0 0.0
  %3461 = vmatpush1.msra.mxu0 0.0
  %3462 = vmatprep.subr.mxu0 0.0
  %3463 = vmatpush1.msra.mxu0 0.0
  %3464 = vmatprep.subr.mxu0 0.0
  %3465 = vmatpush1.msra.mxu0 0.0
  %3466 = vmatprep.subr.mxu0 0.0
  %3467 = vmatpush1.msra.mxu0 0.0
  %3468 = vmatprep.subr.mxu0 0.0
  %3469 = vmatpush1.msra.mxu0 0.0
  %3470 = vmatprep.subr.mxu0 0.0
  %3471 = vmatpush1.msra.mxu0 0.0
  %3472 = vmatprep.subr.mxu0 0.0
  %3473 = vmatpush1.msra.mxu0 0.0
  %3474 = vmatprep.subr.mxu0 0.0
  %3475 = vmatpush1.msra.mxu0 0.0
  %3476 = vmatprep.subr.mxu0 0.0
  %3477 = vmatpush1.msra.mxu0 0.0
  %3478 = vmatprep.subr.mxu0 0.0
  %3479 = vmatpush1.msra.mxu0 0.0
  %3480 = vmatprep.subr.mxu0 0.0
  %3481 = vmatpush1.msra.mxu0 0.0
  %3482 = vmatprep.subr.mxu0 0.0
  %3483 = vmatpush1.msra.mxu0 0.0
  %3484 = vmatprep.subr.mxu0 0.0
  %3485 = vmatpush1.msra.mxu0 %v67
  %3486 = vmatprep.subr.mxu0 0.0
  %3487 = vmatpush1.msra.mxu0 %v66
  %3488 = vmatprep.subr.mxu0 0.0
  %3489 = vmatpush1.msra.mxu0 %v65
  %3490 = vmatprep.subr.mxu0 0.0
  %3491 = vmatpush1.msra.mxu0 %v64
  %3492 = vmatprep.subr.mxu0 0.0
  %3493 = vmatpush2.msra.mxu0 0.0
  %3494 = vmatprep.subr.mxu0 0.0
  %3495 = vmatpush2.msra.mxu0 0.0
  %3496 = vmatprep.subr.mxu0 0.0
  %3497 = vmatpush2.msra.mxu0 0.0
  %3498 = vmatprep.subr.mxu0 0.0
  %3499 = vmatpush2.msra.mxu0 0.0
  %3500 = vmatprep.subr.mxu0 0.0
  %3501 = vmatpush2.msra.mxu0 0.0
  %3502 = vmatprep.subr.mxu0 0.0
  %3503 = vmatpush2.msra.mxu0 0.0
  %3504 = vmatprep.subr.mxu0 0.0
  %3505 = vmatpush2.msra.mxu0 0.0
  %3506 = vmatprep.subr.mxu0 0.0
  %3507 = vmatpush2.msra.mxu0 0.0
  %3508 = vmatprep.subr.mxu0 0.0
  %3509 = vmatpush2.msra.mxu0 0.0
  %3510 = vmatprep.subr.mxu0 0.0
  %3511 = vmatpush2.msra.mxu0 0.0
  %3512 = vmatprep.subr.mxu0 0.0
  %3513 = vmatpush2.msra.mxu0 0.0
  %3514 = vmatprep.subr.mxu0 0.0
  %3515 = vmatpush2.msra.mxu0 0.0
  %3516 = vmatprep.subr.mxu0 0.0
  %3517 = vmatpush2.msra.mxu0 0.0
  %3518 = vmatprep.subr.mxu0 0.0
  %3519 = vmatpush2.msra.mxu0 0.0
  %3520 = vmatprep.subr.mxu0 0.0
  %3521 = vmatpush2.msra.mxu0 0.0
  %3522 = vmatprep.subr.mxu0 0.0
  %3523 = vmatpush2.msra.mxu0 0.0
  %3524 = vmatprep.mubr.f32.mxu0 0.0
  %3525 = vmatmul.mubr.f32.gmra.mxu0 %v3458
  %v3526 = vpop.f32.mrf.mxu0
  %v3527 = vadd.f32 0.0, %v3526
  %v3528 = vpop.f32.mrf.mxu0
  %3529 = vdwg.mxu0
  %v3530 = vadd.f32 %v3457, %v3527
  %v3531 = vxor.u32 %v3530, 2147483648
  %v3532 = vmul.f32 %v3531, 1.442695
  %v3533 = vpow.pop %v3532
  %v3534 = vadd.f32 %v3533, 1.0
  %v3535 = vrcp.pop %v3534
  %v3536 = vmul.f32 1.0, %v3535
  %v3537 = vtanh.pop %v3530
  %v3538 = vmul.f32 %v3536, %v3443
  %3540 = vrot.lane.b32.xlu0 %v3537, 32
  %v3541 = vpop.permute.xlu0 %3540
  %v3543 = vmul.f32 %v3536, %v3541
  %3545 = vrot.lane.b32.xlu0 %v3543, 32
  %v3546 = vpop.permute.xlu0 %3545
  %v3548 = vadd.f32 %v3538, %v3546
  %v3549 = vtanh.pop %v3548
  %3551 = vrot.lane.b32.xlu0 %v3549, 32
  %v3552 = vpop.permute.xlu0 %3551
  %v3554 = vmul.f32 %v3536, %v3552
  %3556 = vrot.lane.b32.xlu0 %v3554, 64
  %v3557 = vpop.permute.xlu0 %3556
  %s3559 = scalar_lea.vmem [#allocation3], 232
  %3560 = vst.msk [vmem:[%s3559] sm:$0xff] %vm412, %v3557
  %v3561 = vld [vmem:[#allocation3] sm:$0xff]
  %v3562 = vld [vmem:[#allocation3 + $0x8] sm:$0xff]
  %v3563 = vld [vmem:[#allocation3 + $0x10] sm:$0xff]
  %v3564 = vld [vmem:[#allocation3 + $0x18] sm:$0xff]
  %v3565 = vld [vmem:[#allocation3 + $0x20] sm:$0xff]
  %v3566 = vld [vmem:[#allocation3 + $0x28] sm:$0xff]
  %v3567 = vld [vmem:[#allocation3 + $0x30] sm:$0xff]
  %v3568 = vld [vmem:[#allocation3 + $0x38] sm:$0xff]
  %v3569 = vld [vmem:[#allocation3 + $0x40] sm:$0xff]
  %v3570 = vld [vmem:[#allocation3 + $0x48] sm:$0xff]
  %v3571 = vld [vmem:[#allocation3 + $0x50] sm:$0xff]
  %v3572 = vld [vmem:[#allocation3 + $0x58] sm:$0xff]
  %v3573 = vld [vmem:[#allocation3 + $0x60] sm:$0xff]
  %v3574 = vld [vmem:[#allocation3 + $0x68] sm:$0xff]
  %v3575 = vld [vmem:[#allocation3 + $0x70] sm:$0xff]
  %v3576 = vld [vmem:[#allocation3 + $0x78] sm:$0xff]
  %v3577 = vld [vmem:[#allocation3 + $0x80] sm:$0xff]
  %v3578 = vld [vmem:[#allocation3 + $0x88] sm:$0xff]
  %v3579 = vld [vmem:[#allocation3 + $0x90] sm:$0xff]
  %v3580 = vld [vmem:[#allocation3 + $0x98] sm:$0xff]
  %v3581 = vld [vmem:[#allocation3 + $0xa0] sm:$0xff]
  %v3582 = vld [vmem:[#allocation3 + $0xa8] sm:$0xff]
  %v3583 = vld [vmem:[#allocation3 + $0xb0] sm:$0xff]
  %v3584 = vld [vmem:[#allocation3 + $0xb8] sm:$0xff]
  %v3585 = vld [vmem:[#allocation3 + $0xc0] sm:$0xff]
  %v3586 = vld [vmem:[#allocation3 + $0xc8] sm:$0xff]
  %v3587 = vld [vmem:[#allocation3 + $0xd0] sm:$0xff]
  %v3588 = vld [vmem:[#allocation3 + $0xd8] sm:$0xff]
  %v3589 = vld [vmem:[#allocation3 + $0xe0] sm:$0xff]
  %v3590 = vld [vmem:[#allocation3 + $0xe8] sm:$0xff]
  %v3591 = vld [vmem:[%s4] sm:$0xff]
  %v3592 = vld [vmem:[%s4 + $0x8] sm:$0xff]
  %v3593 = vld [vmem:[%s4 + $0x10] sm:$0xff]
  %v3594 = vld [vmem:[%s4 + $0x18] sm:$0xff]
  %v3595 = vld [vmem:[%s5] sm:$0xff]
  %v3596 = vld [vmem:[%s5 + $0x8] sm:$0xff]
  %v3597 = vld [vmem:[%s5 + $0x10] sm:$0xff]
  %v3598 = vld [vmem:[%s5 + $0x18] sm:$0xff]
  %v3599 = vld [vmem:[%s6] sm:$0x1]
  %v3601 = vlaneseq
  %v3602 = vshrl.u32 %v3601, 7
  %v3603 = vsub.s32 0, %v3602
  %v3604 = vrot.slane %v3599, %v3603
  %v3607 = vsel %vm412, %v3561, 0
  %v3610 = vsel %vm412, %v3562, 0
  %v3613 = vsel %vm412, %v3563, 0
  %v3616 = vsel %vm412, %v3564, 0
  %v3619 = vsel %vm412, %v3565, 0
  %v3622 = vsel %vm412, %v3566, 0
  %v3625 = vsel %vm412, %v3567, 0
  %v3628 = vsel %vm412, %v3568, 0
  %v3631 = vsel %vm412, %v3569, 0
  %v3634 = vsel %vm412, %v3570, 0
  %v3637 = vsel %vm412, %v3571, 0
  %v3640 = vsel %vm412, %v3572, 0
  %v3643 = vsel %vm412, %v3573, 0
  %v3646 = vsel %vm412, %v3574, 0
  %v3649 = vsel %vm412, %v3575, 0
  %v3652 = vsel %vm412, %v3576, 0
  %v3655 = vsel %vm412, %v3577, 0
  %v3658 = vsel %vm412, %v3578, 0
  %v3661 = vsel %vm412, %v3579, 0
  %v3664 = vsel %vm412, %v3580, 0
  %v3667 = vsel %vm412, %v3581, 0
  %v3670 = vsel %vm412, %v3582, 0
  %v3673 = vsel %vm412, %v3583, 0
  %v3676 = vsel %vm412, %v3584, 0
  %v3679 = vsel %vm412, %v3585, 0
  %v3682 = vsel %vm412, %v3586, 0
  %v3685 = vsel %vm412, %v3587, 0
  %v3688 = vsel %vm412, %v3588, 0
  %v3691 = vsel %vm412, %v3589, 0
  %v3694 = vsel %vm412, %v3590, 0
  %3696 = vmatprep.subr.mxu0 0.0
  %3697 = vmatpush1.msra.mxu0 0.0
  %3698 = vmatprep.subr.mxu0 0.0
  %3699 = vmatpush1.msra.mxu0 0.0
  %3700 = vmatprep.subr.mxu0 0.0
  %3701 = vmatpush1.msra.mxu0 0.0
  %3702 = vmatprep.subr.mxu0 0.0
  %3703 = vmatpush1.msra.mxu0 0.0
  %3704 = vmatprep.subr.mxu0 0.0
  %3705 = vmatpush1.msra.mxu0 0.0
  %3706 = vmatprep.subr.mxu0 0.0
  %3707 = vmatpush1.msra.mxu0 0.0
  %3708 = vmatprep.subr.mxu0 0.0
  %3709 = vmatpush1.msra.mxu0 0.0
  %3710 = vmatprep.subr.mxu0 0.0
  %3711 = vmatpush1.msra.mxu0 0.0
  %3712 = vmatprep.subr.mxu0 0.0
  %3713 = vmatpush1.msra.mxu0 0.0
  %3714 = vmatprep.subr.mxu0 0.0
  %3715 = vmatpush1.msra.mxu0 0.0
  %3716 = vmatprep.subr.mxu0 0.0
  %3717 = vmatpush1.msra.mxu0 0.0
  %3718 = vmatprep.subr.mxu0 0.0
  %3719 = vmatpush1.msra.mxu0 0.0
  %3720 = vmatprep.subr.mxu0 0.0
  %3721 = vmatpush1.msra.mxu0 %v3594
  %3722 = vmatprep.subr.mxu0 0.0
  %3723 = vmatpush1.msra.mxu0 %v3593
  %3724 = vmatprep.subr.mxu0 0.0
  %3725 = vmatpush1.msra.mxu0 %v3592
  %3726 = vmatprep.subr.mxu0 0.0
  %3727 = vmatpush1.msra.mxu0 %v3591
  %3728 = vmatprep.subr.mxu0 0.0
  %3729 = vmatpush2.msra.mxu0 0.0
  %3730 = vmatprep.subr.mxu0 0.0
  %3731 = vmatpush2.msra.mxu0 0.0
  %3732 = vmatprep.subr.mxu0 0.0
  %3733 = vmatpush2.msra.mxu0 0.0
  %3734 = vmatprep.subr.mxu0 0.0
  %3735 = vmatpush2.msra.mxu0 0.0
  %3736 = vmatprep.subr.mxu0 0.0
  %3737 = vmatpush2.msra.mxu0 0.0
  %3738 = vmatprep.subr.mxu0 0.0
  %3739 = vmatpush2.msra.mxu0 0.0
  %3740 = vmatprep.subr.mxu0 0.0
  %3741 = vmatpush2.msra.mxu0 0.0
  %3742 = vmatprep.subr.mxu0 0.0
  %3743 = vmatpush2.msra.mxu0 0.0
  %3744 = vmatprep.subr.mxu0 0.0
  %3745 = vmatpush2.msra.mxu0 0.0
  %3746 = vmatprep.subr.mxu0 0.0
  %3747 = vmatpush2.msra.mxu0 0.0
  %3748 = vmatprep.subr.mxu0 0.0
  %3749 = vmatpush2.msra.mxu0 0.0
  %3750 = vmatprep.subr.mxu0 0.0
  %3751 = vmatpush2.msra.mxu0 0.0
  %3752 = vmatprep.subr.mxu0 0.0
  %3753 = vmatpush2.msra.mxu0 0.0
  %3754 = vmatprep.subr.mxu0 0.0
  %3755 = vmatpush2.msra.mxu0 0.0
  %3756 = vmatprep.subr.mxu0 0.0
  %3757 = vmatpush2.msra.mxu0 0.0
  %3758 = vmatprep.subr.mxu0 0.0
  %3759 = vmatpush2.msra.mxu0 0.0
  %3760 = vmatprep.mubr.f32.mxu0 0.0
  %3761 = vmatmul.mubr.f32.gmra.mxu0 %v3607
  %v3762 = vpop.f32.mrf.mxu0
  %v3763 = vadd.f32 %v3604, %v3762
  %v3764 = vpop.f32.mrf.mxu0
  %3765 = vmatprep.mubr.f32.mxu0 0.0
  %3766 = vmatmul.mubr.f32.gmra.mxu0 %v3610
  %v3767 = vpop.f32.mrf.mxu0
  %v3768 = vadd.f32 %v3604, %v3767
  %v3769 = vpop.f32.mrf.mxu0
  %3770 = vmatprep.mubr.f32.mxu0 0.0
  %3771 = vmatmul.mubr.f32.gmra.mxu0 %v3613
  %v3772 = vpop.f32.mrf.mxu0
  %v3773 = vadd.f32 %v3604, %v3772
  %v3774 = vpop.f32.mrf.mxu0
  %3775 = vmatprep.mubr.f32.mxu0 0.0
  %3776 = vmatmul.mubr.f32.gmra.mxu0 %v3616
  %v3777 = vpop.f32.mrf.mxu0
  %v3778 = vadd.f32 %v3604, %v3777
  %v3779 = vpop.f32.mrf.mxu0
  %3780 = vmatprep.mubr.f32.mxu0 0.0
  %3781 = vmatmul.mubr.f32.gmra.mxu0 %v3619
  %v3782 = vpop.f32.mrf.mxu0
  %v3783 = vadd.f32 %v3604, %v3782
  %v3784 = vpop.f32.mrf.mxu0
  %3785 = vmatprep.mubr.f32.mxu0 0.0
  %3786 = vmatmul.mubr.f32.gmra.mxu0 %v3622
  %v3787 = vpop.f32.mrf.mxu0
  %v3788 = vadd.f32 %v3604, %v3787
  %v3789 = vpop.f32.mrf.mxu0
  %3790 = vmatprep.mubr.f32.mxu0 0.0
  %3791 = vmatmul.mubr.f32.gmra.mxu0 %v3625
  %v3792 = vpop.f32.mrf.mxu0
  %v3793 = vadd.f32 %v3604, %v3792
  %v3794 = vpop.f32.mrf.mxu0
  %3795 = vmatprep.mubr.f32.mxu0 0.0
  %3796 = vmatmul.mubr.f32.gmra.mxu0 %v3628
  %v3797 = vpop.f32.mrf.mxu0
  %v3798 = vadd.f32 %v3604, %v3797
  %v3799 = vpop.f32.mrf.mxu0
  %3800 = vmatprep.mubr.f32.mxu0 0.0
  %3801 = vmatmul.mubr.f32.gmra.mxu0 %v3631
  %v3802 = vpop.f32.mrf.mxu0
  %v3803 = vadd.f32 %v3604, %v3802
  %v3804 = vpop.f32.mrf.mxu0
  %3805 = vmatprep.mubr.f32.mxu0 0.0
  %3806 = vmatmul.mubr.f32.gmra.mxu0 %v3634
  %v3807 = vpop.f32.mrf.mxu0
  %v3808 = vadd.f32 %v3604, %v3807
  %v3809 = vpop.f32.mrf.mxu0
  %3810 = vmatprep.mubr.f32.mxu0 0.0
  %3811 = vmatmul.mubr.f32.gmra.mxu0 %v3637
  %v3812 = vpop.f32.mrf.mxu0
  %v3813 = vadd.f32 %v3604, %v3812
  %v3814 = vpop.f32.mrf.mxu0
  %3815 = vmatprep.mubr.f32.mxu0 0.0
  %3816 = vmatmul.mubr.f32.gmra.mxu0 %v3640
  %v3817 = vpop.f32.mrf.mxu0
  %v3818 = vadd.f32 %v3604, %v3817
  %v3819 = vpop.f32.mrf.mxu0
  %3820 = vmatprep.mubr.f32.mxu0 0.0
  %3821 = vmatmul.mubr.f32.gmra.mxu0 %v3643
  %v3822 = vpop.f32.mrf.mxu0
  %v3823 = vadd.f32 %v3604, %v3822
  %v3824 = vpop.f32.mrf.mxu0
  %3825 = vmatprep.mubr.f32.mxu0 0.0
  %3826 = vmatmul.mubr.f32.gmra.mxu0 %v3646
  %v3827 = vpop.f32.mrf.mxu0
  %v3828 = vadd.f32 %v3604, %v3827
  %v3829 = vpop.f32.mrf.mxu0
  %3830 = vmatprep.mubr.f32.mxu0 0.0
  %3831 = vmatmul.mubr.f32.gmra.mxu0 %v3649
  %v3832 = vpop.f32.mrf.mxu0
  %v3833 = vadd.f32 %v3604, %v3832
  %v3834 = vpop.f32.mrf.mxu0
  %3835 = vmatprep.mubr.f32.mxu0 0.0
  %3836 = vmatmul.mubr.f32.gmra.mxu0 %v3652
  %v3837 = vpop.f32.mrf.mxu0
  %v3838 = vadd.f32 %v3604, %v3837
  %v3839 = vpop.f32.mrf.mxu0
  %3840 = vmatprep.mubr.f32.mxu0 0.0
  %3841 = vmatmul.mubr.f32.gmra.mxu0 %v3655
  %v3842 = vpop.f32.mrf.mxu0
  %v3843 = vadd.f32 %v3604, %v3842
  %v3844 = vpop.f32.mrf.mxu0
  %3845 = vmatprep.mubr.f32.mxu0 0.0
  %3846 = vmatmul.mubr.f32.gmra.mxu0 %v3658
  %v3847 = vpop.f32.mrf.mxu0
  %v3848 = vadd.f32 %v3604, %v3847
  %v3849 = vpop.f32.mrf.mxu0
  %3850 = vmatprep.mubr.f32.mxu0 0.0
  %3851 = vmatmul.mubr.f32.gmra.mxu0 %v3661
  %v3852 = vpop.f32.mrf.mxu0
  %v3853 = vadd.f32 %v3604, %v3852
  %v3854 = vpop.f32.mrf.mxu0
  %3855 = vmatprep.mubr.f32.mxu0 0.0
  %3856 = vmatmul.mubr.f32.gmra.mxu0 %v3664
  %v3857 = vpop.f32.mrf.mxu0
  %v3858 = vadd.f32 %v3604, %v3857
  %v3859 = vpop.f32.mrf.mxu0
  %3860 = vmatprep.mubr.f32.mxu0 0.0
  %3861 = vmatmul.mubr.f32.gmra.mxu0 %v3667
  %v3862 = vpop.f32.mrf.mxu0
  %v3863 = vadd.f32 %v3604, %v3862
  %v3864 = vpop.f32.mrf.mxu0
  %3865 = vmatprep.mubr.f32.mxu0 0.0
  %3866 = vmatmul.mubr.f32.gmra.mxu0 %v3670
  %v3867 = vpop.f32.mrf.mxu0
  %v3868 = vadd.f32 %v3604, %v3867
  %v3869 = vpop.f32.mrf.mxu0
  %3870 = vmatprep.mubr.f32.mxu0 0.0
  %3871 = vmatmul.mubr.f32.gmra.mxu0 %v3673
  %v3872 = vpop.f32.mrf.mxu0
  %v3873 = vadd.f32 %v3604, %v3872
  %v3874 = vpop.f32.mrf.mxu0
  %3875 = vmatprep.mubr.f32.mxu0 0.0
  %3876 = vmatmul.mubr.f32.gmra.mxu0 %v3676
  %v3877 = vpop.f32.mrf.mxu0
  %v3878 = vadd.f32 %v3604, %v3877
  %v3879 = vpop.f32.mrf.mxu0
  %3880 = vmatprep.mubr.f32.mxu0 0.0
  %3881 = vmatmul.mubr.f32.gmra.mxu0 %v3679
  %v3882 = vpop.f32.mrf.mxu0
  %v3883 = vadd.f32 %v3604, %v3882
  %v3884 = vpop.f32.mrf.mxu0
  %3885 = vmatprep.mubr.f32.mxu0 0.0
  %3886 = vmatmul.mubr.f32.gmra.mxu0 %v3682
  %v3887 = vpop.f32.mrf.mxu0
  %v3888 = vadd.f32 %v3604, %v3887
  %v3889 = vpop.f32.mrf.mxu0
  %3890 = vmatprep.mubr.f32.mxu0 0.0
  %3891 = vmatmul.mubr.f32.gmra.mxu0 %v3685
  %v3892 = vpop.f32.mrf.mxu0
  %v3893 = vadd.f32 %v3604, %v3892
  %v3894 = vpop.f32.mrf.mxu0
  %3895 = vmatprep.mubr.f32.mxu0 0.0
  %3896 = vmatmul.mubr.f32.gmra.mxu0 %v3688
  %v3897 = vpop.f32.mrf.mxu0
  %v3898 = vadd.f32 %v3604, %v3897
  %v3899 = vpop.f32.mrf.mxu0
  %3900 = vmatprep.mubr.f32.mxu0 0.0
  %3901 = vmatmul.mubr.f32.gmra.mxu0 %v3691
  %v3902 = vpop.f32.mrf.mxu0
  %v3903 = vadd.f32 %v3604, %v3902
  %v3904 = vpop.f32.mrf.mxu0
  %3905 = vmatprep.mubr.f32.mxu0 0.0
  %3906 = vmatmul.mubr.f32.gmra.mxu0 %v3694
  %v3907 = vpop.f32.mrf.mxu0
  %v3908 = vadd.f32 %v3604, %v3907
  %v3909 = vpop.f32.mrf.mxu0
  %3910 = vdwg.mxu0
  %3911 = vst [vmem:[#allocation4] sm:$0xff] %v3763
  %3912 = vst [vmem:[#allocation4 + $0x8] sm:$0xff] %v3768
  %3913 = vst [vmem:[#allocation4 + $0x10] sm:$0xff] %v3773
  %3914 = vst [vmem:[#allocation4 + $0x18] sm:$0xff] %v3778
  %3915 = vst [vmem:[#allocation4 + $0x20] sm:$0xff] %v3783
  %3916 = vst [vmem:[#allocation4 + $0x28] sm:$0xff] %v3788
  %3917 = vst [vmem:[#allocation4 + $0x30] sm:$0xff] %v3793
  %3918 = vst [vmem:[#allocation4 + $0x38] sm:$0xff] %v3798
  %3919 = vst [vmem:[#allocation4 + $0x40] sm:$0xff] %v3803
  %3920 = vst [vmem:[#allocation4 + $0x48] sm:$0xff] %v3808
  %3921 = vst [vmem:[#allocation4 + $0x50] sm:$0xff] %v3813
  %3922 = vst [vmem:[#allocation4 + $0x58] sm:$0xff] %v3818
  %3923 = vst [vmem:[#allocation4 + $0x60] sm:$0xff] %v3823
  %3924 = vst [vmem:[#allocation4 + $0x68] sm:$0xff] %v3828
  %3925 = vst [vmem:[#allocation4 + $0x70] sm:$0xff] %v3833
  %3926 = vst [vmem:[#allocation4 + $0x78] sm:$0xff] %v3838
  %3927 = vst [vmem:[#allocation4 + $0x80] sm:$0xff] %v3843
  %3928 = vst [vmem:[#allocation4 + $0x88] sm:$0xff] %v3848
  %3929 = vst [vmem:[#allocation4 + $0x90] sm:$0xff] %v3853
  %3930 = vst [vmem:[#allocation4 + $0x98] sm:$0xff] %v3858
  %3931 = vst [vmem:[#allocation4 + $0xa0] sm:$0xff] %v3863
  %3932 = vst [vmem:[#allocation4 + $0xa8] sm:$0xff] %v3868
  %3933 = vst [vmem:[#allocation4 + $0xb0] sm:$0xff] %v3873
  %3934 = vst [vmem:[#allocation4 + $0xb8] sm:$0xff] %v3878
  %3935 = vst [vmem:[#allocation4 + $0xc0] sm:$0xff] %v3883
  %3936 = vst [vmem:[#allocation4 + $0xc8] sm:$0xff] %v3888
  %3937 = vst [vmem:[#allocation4 + $0xd0] sm:$0xff] %v3893
  %3938 = vst [vmem:[#allocation4 + $0xd8] sm:$0xff] %v3898
  %3939 = vst [vmem:[#allocation4 + $0xe0] sm:$0xff] %v3903
  %3940 = vst [vmem:[#allocation4 + $0xe8] sm:$0xff] %v3908
  %v3941 = vld [vmem:[#allocation4] sm:$0xff]
  %3942 = vmatprep.subr.mxu0 0.0
  %3943 = vmatpush1.msra.mxu0 0.0
  %3944 = vmatprep.subr.mxu0 0.0
  %3945 = vmatpush1.msra.mxu0 0.0
  %3946 = vmatprep.subr.mxu0 0.0
  %3947 = vmatpush1.msra.mxu0 0.0
  %3948 = vmatprep.subr.mxu0 0.0
  %3949 = vmatpush1.msra.mxu0 0.0
  %3950 = vmatprep.subr.mxu0 0.0
  %3951 = vmatpush1.msra.mxu0 0.0
  %3952 = vmatprep.subr.mxu0 0.0
  %3953 = vmatpush1.msra.mxu0 0.0
  %3954 = vmatprep.subr.mxu0 0.0
  %3955 = vmatpush1.msra.mxu0 0.0
  %3956 = vmatprep.subr.mxu0 0.0
  %3957 = vmatpush1.msra.mxu0 0.0
  %3958 = vmatprep.subr.mxu0 0.0
  %3959 = vmatpush1.msra.mxu0 0.0
  %3960 = vmatprep.subr.mxu0 0.0
  %3961 = vmatpush1.msra.mxu0 0.0
  %3962 = vmatprep.subr.mxu0 0.0
  %3963 = vmatpush1.msra.mxu0 0.0
  %3964 = vmatprep.subr.mxu0 0.0
  %3965 = vmatpush1.msra.mxu0 0.0
  %3966 = vmatprep.subr.mxu0 0.0
  %3967 = vmatpush1.msra.mxu0 %v3598
  %3968 = vmatprep.subr.mxu0 0.0
  %3969 = vmatpush1.msra.mxu0 %v3597
  %3970 = vmatprep.subr.mxu0 0.0
  %3971 = vmatpush1.msra.mxu0 %v3596
  %3972 = vmatprep.subr.mxu0 0.0
  %3973 = vmatpush1.msra.mxu0 %v3595
  %3974 = vmatprep.subr.mxu0 0.0
  %3975 = vmatpush2.msra.mxu0 0.0
  %3976 = vmatprep.subr.mxu0 0.0
  %3977 = vmatpush2.msra.mxu0 0.0
  %3978 = vmatprep.subr.mxu0 0.0
  %3979 = vmatpush2.msra.mxu0 0.0
  %3980 = vmatprep.subr.mxu0 0.0
  %3981 = vmatpush2.msra.mxu0 0.0
  %3982 = vmatprep.subr.mxu0 0.0
  %3983 = vmatpush2.msra.mxu0 0.0
  %3984 = vmatprep.subr.mxu0 0.0
  %3985 = vmatpush2.msra.mxu0 0.0
  %3986 = vmatprep.subr.mxu0 0.0
  %3987 = vmatpush2.msra.mxu0 0.0
  %3988 = vmatprep.subr.mxu0 0.0
  %3989 = vmatpush2.msra.mxu0 0.0
  %3990 = vmatprep.subr.mxu0 0.0
  %3991 = vmatpush2.msra.mxu0 0.0
  %3992 = vmatprep.subr.mxu0 0.0
  %3993 = vmatpush2.msra.mxu0 0.0
  %3994 = vmatprep.subr.mxu0 0.0
  %3995 = vmatpush2.msra.mxu0 0.0
  %3996 = vmatprep.subr.mxu0 0.0
  %3997 = vmatpush2.msra.mxu0 0.0
  %3998 = vmatprep.subr.mxu0 0.0
  %3999 = vmatpush2.msra.mxu0 0.0
  %4000 = vmatprep.subr.mxu0 0.0
  %4001 = vmatpush2.msra.mxu0 0.0
  %4002 = vmatprep.subr.mxu0 0.0
  %4003 = vmatpush2.msra.mxu0 0.0
  %4004 = vmatprep.subr.mxu0 0.0
  %4005 = vmatpush2.msra.mxu0 0.0
  %4006 = vmatprep.mubr.f32.mxu0 0.0
  %4007 = vmatmul.mubr.f32.gmra.mxu0 %v414
  %v4008 = vpop.f32.mrf.mxu0
  %v4009 = vadd.f32 0.0, %v4008
  %v4010 = vpop.f32.mrf.mxu0
  %4011 = vdwg.mxu0
  %v4012 = vadd.f32 %v3941, %v4009
  %v4013 = vxor.u32 %v4012, 2147483648
  %v4014 = vmul.f32 %v4013, 1.442695
  %v4015 = vpow.pop %v4014
  %v4016 = vadd.f32 %v4015, 1.0
  %v4017 = vrcp.pop %v4016
  %v4018 = vmul.f32 1.0, %v4017
  %v4019 = vtanh.pop %v4012
  %v4020 = vmul.f32 %v4018, 0.0
  %4022 = vrot.lane.b32.xlu0 %v4019, 32
  %v4023 = vpop.permute.xlu0 %4022
  %v4025 = vmul.f32 %v4018, %v4023
  %4027 = vrot.lane.b32.xlu0 %v4025, 32
  %v4028 = vpop.permute.xlu0 %4027
  %v4030 = vadd.f32 %v4020, %v4028
  %v4031 = vtanh.pop %v4030
  %4033 = vrot.lane.b32.xlu0 %v4031, 32
  %v4034 = vpop.permute.xlu0 %4033
  %v4036 = vmul.f32 %v4018, %v4034
  %4038 = vrot.lane.b32.xlu0 %v4036, 64
  %v4039 = vpop.permute.xlu0 %4038
  %4041 = vst.msk [vmem:[#allocation5] sm:$0xff] %vm412, %v4039
  %s4042 = scalar_lea.vmem [#allocation4], 8
  %v4043 = vld [vmem:[%s4042] sm:$0xff]
  %v4044 = vsel %vm412, %v4039, 0
  %4046 = vmatprep.subr.mxu0 0.0
  %4047 = vmatpush1.msra.mxu0 0.0
  %4048 = vmatprep.subr.mxu0 0.0
  %4049 = vmatpush1.msra.mxu0 0.0
  %4050 = vmatprep.subr.mxu0 0.0
  %4051 = vmatpush1.msra.mxu0 0.0
  %4052 = vmatprep.subr.mxu0 0.0
  %4053 = vmatpush1.msra.mxu0 0.0
  %4054 = vmatprep.subr.mxu0 0.0
  %4055 = vmatpush1.msra.mxu0 0.0
  %4056 = vmatprep.subr.mxu0 0.0
  %4057 = vmatpush1.msra.mxu0 0.0
  %4058 = vmatprep.subr.mxu0 0.0
  %4059 = vmatpush1.msra.mxu0 0.0
  %4060 = vmatprep.subr.mxu0 0.0
  %4061 = vmatpush1.msra.mxu0 0.0
  %4062 = vmatprep.subr.mxu0 0.0
  %4063 = vmatpush1.msra.mxu0 0.0
  %4064 = vmatprep.subr.mxu0 0.0
  %4065 = vmatpush1.msra.mxu0 0.0
  %4066 = vmatprep.subr.mxu0 0.0
  %4067 = vmatpush1.msra.mxu0 0.0
  %4068 = vmatprep.subr.mxu0 0.0
  %4069 = vmatpush1.msra.mxu0 0.0
  %4070 = vmatprep.subr.mxu0 0.0
  %4071 = vmatpush1.msra.mxu0 %v3598
  %4072 = vmatprep.subr.mxu0 0.0
  %4073 = vmatpush1.msra.mxu0 %v3597
  %4074 = vmatprep.subr.mxu0 0.0
  %4075 = vmatpush1.msra.mxu0 %v3596
  %4076 = vmatprep.subr.mxu0 0.0
  %4077 = vmatpush1.msra.mxu0 %v3595
  %4078 = vmatprep.subr.mxu0 0.0
  %4079 = vmatpush2.msra.mxu0 0.0
  %4080 = vmatprep.subr.mxu0 0.0
  %4081 = vmatpush2.msra.mxu0 0.0
  %4082 = vmatprep.subr.mxu0 0.0
  %4083 = vmatpush2.msra.mxu0 0.0
  %4084 = vmatprep.subr.mxu0 0.0
  %4085 = vmatpush2.msra.mxu0 0.0
  %4086 = vmatprep.subr.mxu0 0.0
  %4087 = vmatpush2.msra.mxu0 0.0
  %4088 = vmatprep.subr.mxu0 0.0
  %4089 = vmatpush2.msra.mxu0 0.0
  %4090 = vmatprep.subr.mxu0 0.0
  %4091 = vmatpush2.msra.mxu0 0.0
  %4092 = vmatprep.subr.mxu0 0.0
  %4093 = vmatpush2.msra.mxu0 0.0
  %4094 = vmatprep.subr.mxu0 0.0
  %4095 = vmatpush2.msra.mxu0 0.0
  %4096 = vmatprep.subr.mxu0 0.0
  %4097 = vmatpush2.msra.mxu0 0.0
  %4098 = vmatprep.subr.mxu0 0.0
  %4099 = vmatpush2.msra.mxu0 0.0
  %4100 = vmatprep.subr.mxu0 0.0
  %4101 = vmatpush2.msra.mxu0 0.0
  %4102 = vmatprep.subr.mxu0 0.0
  %4103 = vmatpush2.msra.mxu0 0.0
  %4104 = vmatprep.subr.mxu0 0.0
  %4105 = vmatpush2.msra.mxu0 0.0
  %4106 = vmatprep.subr.mxu0 0.0
  %4107 = vmatpush2.msra.mxu0 0.0
  %4108 = vmatprep.subr.mxu0 0.0
  %4109 = vmatpush2.msra.mxu0 0.0
  %4110 = vmatprep.mubr.f32.mxu0 0.0
  %4111 = vmatmul.mubr.f32.gmra.mxu0 %v4044
  %v4112 = vpop.f32.mrf.mxu0
  %v4113 = vadd.f32 0.0, %v4112
  %v4114 = vpop.f32.mrf.mxu0
  %4115 = vdwg.mxu0
  %v4116 = vadd.f32 %v4043, %v4113
  %v4117 = vxor.u32 %v4116, 2147483648
  %v4118 = vmul.f32 %v4117, 1.442695
  %v4119 = vpow.pop %v4118
  %v4120 = vadd.f32 %v4119, 1.0
  %v4121 = vrcp.pop %v4120
  %v4122 = vmul.f32 1.0, %v4121
  %v4123 = vtanh.pop %v4116
  %v4124 = vmul.f32 %v4122, %v4030
  %4126 = vrot.lane.b32.xlu0 %v4123, 32
  %v4127 = vpop.permute.xlu0 %4126
  %v4129 = vmul.f32 %v4122, %v4127
  %4131 = vrot.lane.b32.xlu0 %v4129, 32
  %v4132 = vpop.permute.xlu0 %4131
  %v4134 = vadd.f32 %v4124, %v4132
  %v4135 = vtanh.pop %v4134
  %4137 = vrot.lane.b32.xlu0 %v4135, 32
  %v4138 = vpop.permute.xlu0 %4137
  %v4140 = vmul.f32 %v4122, %v4138
  %4142 = vrot.lane.b32.xlu0 %v4140, 64
  %v4143 = vpop.permute.xlu0 %4142
  %s4145 = scalar_lea.vmem [#allocation5], 8
  %4146 = vst.msk [vmem:[%s4145] sm:$0xff] %vm412, %v4143
  %s4147 = scalar_lea.vmem [#allocation4], 16
  %v4148 = vld [vmem:[%s4147] sm:$0xff]
  %v4149 = vsel %vm412, %v4143, 0
  %4151 = vmatprep.subr.mxu0 0.0
  %4152 = vmatpush1.msra.mxu0 0.0
  %4153 = vmatprep.subr.mxu0 0.0
  %4154 = vmatpush1.msra.mxu0 0.0
  %4155 = vmatprep.subr.mxu0 0.0
  %4156 = vmatpush1.msra.mxu0 0.0
  %4157 = vmatprep.subr.mxu0 0.0
  %4158 = vmatpush1.msra.mxu0 0.0
  %4159 = vmatprep.subr.mxu0 0.0
  %4160 = vmatpush1.msra.mxu0 0.0
  %4161 = vmatprep.subr.mxu0 0.0
  %4162 = vmatpush1.msra.mxu0 0.0
  %4163 = vmatprep.subr.mxu0 0.0
  %4164 = vmatpush1.msra.mxu0 0.0
  %4165 = vmatprep.subr.mxu0 0.0
  %4166 = vmatpush1.msra.mxu0 0.0
  %4167 = vmatprep.subr.mxu0 0.0
  %4168 = vmatpush1.msra.mxu0 0.0
  %4169 = vmatprep.subr.mxu0 0.0
  %4170 = vmatpush1.msra.mxu0 0.0
  %4171 = vmatprep.subr.mxu0 0.0
  %4172 = vmatpush1.msra.mxu0 0.0
  %4173 = vmatprep.subr.mxu0 0.0
  %4174 = vmatpush1.msra.mxu0 0.0
  %4175 = vmatprep.subr.mxu0 0.0
  %4176 = vmatpush1.msra.mxu0 %v3598
  %4177 = vmatprep.subr.mxu0 0.0
  %4178 = vmatpush1.msra.mxu0 %v3597
  %4179 = vmatprep.subr.mxu0 0.0
  %4180 = vmatpush1.msra.mxu0 %v3596
  %4181 = vmatprep.subr.mxu0 0.0
  %4182 = vmatpush1.msra.mxu0 %v3595
  %4183 = vmatprep.subr.mxu0 0.0
  %4184 = vmatpush2.msra.mxu0 0.0
  %4185 = vmatprep.subr.mxu0 0.0
  %4186 = vmatpush2.msra.mxu0 0.0
  %4187 = vmatprep.subr.mxu0 0.0
  %4188 = vmatpush2.msra.mxu0 0.0
  %4189 = vmatprep.subr.mxu0 0.0
  %4190 = vmatpush2.msra.mxu0 0.0
  %4191 = vmatprep.subr.mxu0 0.0
  %4192 = vmatpush2.msra.mxu0 0.0
  %4193 = vmatprep.subr.mxu0 0.0
  %4194 = vmatpush2.msra.mxu0 0.0
  %4195 = vmatprep.subr.mxu0 0.0
  %4196 = vmatpush2.msra.mxu0 0.0
  %4197 = vmatprep.subr.mxu0 0.0
  %4198 = vmatpush2.msra.mxu0 0.0
  %4199 = vmatprep.subr.mxu0 0.0
  %4200 = vmatpush2.msra.mxu0 0.0
  %4201 = vmatprep.subr.mxu0 0.0
  %4202 = vmatpush2.msra.mxu0 0.0
  %4203 = vmatprep.subr.mxu0 0.0
  %4204 = vmatpush2.msra.mxu0 0.0
  %4205 = vmatprep.subr.mxu0 0.0
  %4206 = vmatpush2.msra.mxu0 0.0
  %4207 = vmatprep.subr.mxu0 0.0
  %4208 = vmatpush2.msra.mxu0 0.0
  %4209 = vmatprep.subr.mxu0 0.0
  %4210 = vmatpush2.msra.mxu0 0.0
  %4211 = vmatprep.subr.mxu0 0.0
  %4212 = vmatpush2.msra.mxu0 0.0
  %4213 = vmatprep.subr.mxu0 0.0
  %4214 = vmatpush2.msra.mxu0 0.0
  %4215 = vmatprep.mubr.f32.mxu0 0.0
  %4216 = vmatmul.mubr.f32.gmra.mxu0 %v4149
  %v4217 = vpop.f32.mrf.mxu0
  %v4218 = vadd.f32 0.0, %v4217
  %v4219 = vpop.f32.mrf.mxu0
  %4220 = vdwg.mxu0
  %v4221 = vadd.f32 %v4148, %v4218
  %v4222 = vxor.u32 %v4221, 2147483648
  %v4223 = vmul.f32 %v4222, 1.442695
  %v4224 = vpow.pop %v4223
  %v4225 = vadd.f32 %v4224, 1.0
  %v4226 = vrcp.pop %v4225
  %v4227 = vmul.f32 1.0, %v4226
  %v4228 = vtanh.pop %v4221
  %v4229 = vmul.f32 %v4227, %v4134
  %4231 = vrot.lane.b32.xlu0 %v4228, 32
  %v4232 = vpop.permute.xlu0 %4231
  %v4234 = vmul.f32 %v4227, %v4232
  %4236 = vrot.lane.b32.xlu0 %v4234, 32
  %v4237 = vpop.permute.xlu0 %4236
  %v4239 = vadd.f32 %v4229, %v4237
  %v4240 = vtanh.pop %v4239
  %4242 = vrot.lane.b32.xlu0 %v4240, 32
  %v4243 = vpop.permute.xlu0 %4242
  %v4245 = vmul.f32 %v4227, %v4243
  %4247 = vrot.lane.b32.xlu0 %v4245, 64
  %v4248 = vpop.permute.xlu0 %4247
  %s4250 = scalar_lea.vmem [#allocation5], 16
  %4251 = vst.msk [vmem:[%s4250] sm:$0xff] %vm412, %v4248
  %s4252 = scalar_lea.vmem [#allocation4], 24
  %v4253 = vld [vmem:[%s4252] sm:$0xff]
  %v4254 = vsel %vm412, %v4248, 0
  %4256 = vmatprep.subr.mxu0 0.0
  %4257 = vmatpush1.msra.mxu0 0.0
  %4258 = vmatprep.subr.mxu0 0.0
  %4259 = vmatpush1.msra.mxu0 0.0
  %4260 = vmatprep.subr.mxu0 0.0
  %4261 = vmatpush1.msra.mxu0 0.0
  %4262 = vmatprep.subr.mxu0 0.0
  %4263 = vmatpush1.msra.mxu0 0.0
  %4264 = vmatprep.subr.mxu0 0.0
  %4265 = vmatpush1.msra.mxu0 0.0
  %4266 = vmatprep.subr.mxu0 0.0
  %4267 = vmatpush1.msra.mxu0 0.0
  %4268 = vmatprep.subr.mxu0 0.0
  %4269 = vmatpush1.msra.mxu0 0.0
  %4270 = vmatprep.subr.mxu0 0.0
  %4271 = vmatpush1.msra.mxu0 0.0
  %4272 = vmatprep.subr.mxu0 0.0
  %4273 = vmatpush1.msra.mxu0 0.0
  %4274 = vmatprep.subr.mxu0 0.0
  %4275 = vmatpush1.msra.mxu0 0.0
  %4276 = vmatprep.subr.mxu0 0.0
  %4277 = vmatpush1.msra.mxu0 0.0
  %4278 = vmatprep.subr.mxu0 0.0
  %4279 = vmatpush1.msra.mxu0 0.0
  %4280 = vmatprep.subr.mxu0 0.0
  %4281 = vmatpush1.msra.mxu0 %v3598
  %4282 = vmatprep.subr.mxu0 0.0
  %4283 = vmatpush1.msra.mxu0 %v3597
  %4284 = vmatprep.subr.mxu0 0.0
  %4285 = vmatpush1.msra.mxu0 %v3596
  %4286 = vmatprep.subr.mxu0 0.0
  %4287 = vmatpush1.msra.mxu0 %v3595
  %4288 = vmatprep.subr.mxu0 0.0
  %4289 = vmatpush2.msra.mxu0 0.0
  %4290 = vmatprep.subr.mxu0 0.0
  %4291 = vmatpush2.msra.mxu0 0.0
  %4292 = vmatprep.subr.mxu0 0.0
  %4293 = vmatpush2.msra.mxu0 0.0
  %4294 = vmatprep.subr.mxu0 0.0
  %4295 = vmatpush2.msra.mxu0 0.0
  %4296 = vmatprep.subr.mxu0 0.0
  %4297 = vmatpush2.msra.mxu0 0.0
  %4298 = vmatprep.subr.mxu0 0.0
  %4299 = vmatpush2.msra.mxu0 0.0
  %4300 = vmatprep.subr.mxu0 0.0
  %4301 = vmatpush2.msra.mxu0 0.0
  %4302 = vmatprep.subr.mxu0 0.0
  %4303 = vmatpush2.msra.mxu0 0.0
  %4304 = vmatprep.subr.mxu0 0.0
  %4305 = vmatpush2.msra.mxu0 0.0
  %4306 = vmatprep.subr.mxu0 0.0
  %4307 = vmatpush2.msra.mxu0 0.0
  %4308 = vmatprep.subr.mxu0 0.0
  %4309 = vmatpush2.msra.mxu0 0.0
  %4310 = vmatprep.subr.mxu0 0.0
  %4311 = vmatpush2.msra.mxu0 0.0
  %4312 = vmatprep.subr.mxu0 0.0
  %4313 = vmatpush2.msra.mxu0 0.0
  %4314 = vmatprep.subr.mxu0 0.0
  %4315 = vmatpush2.msra.mxu0 0.0
  %4316 = vmatprep.subr.mxu0 0.0
  %4317 = vmatpush2.msra.mxu0 0.0
  %4318 = vmatprep.subr.mxu0 0.0
  %4319 = vmatpush2.msra.mxu0 0.0
  %4320 = vmatprep.mubr.f32.mxu0 0.0
  %4321 = vmatmul.mubr.f32.gmra.mxu0 %v4254
  %v4322 = vpop.f32.mrf.mxu0
  %v4323 = vadd.f32 0.0, %v4322
  %v4324 = vpop.f32.mrf.mxu0
  %4325 = vdwg.mxu0
  %v4326 = vadd.f32 %v4253, %v4323
  %v4327 = vxor.u32 %v4326, 2147483648
  %v4328 = vmul.f32 %v4327, 1.442695
  %v4329 = vpow.pop %v4328
  %v4330 = vadd.f32 %v4329, 1.0
  %v4331 = vrcp.pop %v4330
  %v4332 = vmul.f32 1.0, %v4331
  %v4333 = vtanh.pop %v4326
  %v4334 = vmul.f32 %v4332, %v4239
  %4336 = vrot.lane.b32.xlu0 %v4333, 32
  %v4337 = vpop.permute.xlu0 %4336
  %v4339 = vmul.f32 %v4332, %v4337
  %4341 = vrot.lane.b32.xlu0 %v4339, 32
  %v4342 = vpop.permute.xlu0 %4341
  %v4344 = vadd.f32 %v4334, %v4342
  %v4345 = vtanh.pop %v4344
  %4347 = vrot.lane.b32.xlu0 %v4345, 32
  %v4348 = vpop.permute.xlu0 %4347
  %v4350 = vmul.f32 %v4332, %v4348
  %4352 = vrot.lane.b32.xlu0 %v4350, 64
  %v4353 = vpop.permute.xlu0 %4352
  %s4355 = scalar_lea.vmem [#allocation5], 24
  %4356 = vst.msk [vmem:[%s4355] sm:$0xff] %vm412, %v4353
  %s4357 = scalar_lea.vmem [#allocation4], 32
  %v4358 = vld [vmem:[%s4357] sm:$0xff]
  %v4359 = vsel %vm412, %v4353, 0
  %4361 = vmatprep.subr.mxu0 0.0
  %4362 = vmatpush1.msra.mxu0 0.0
  %4363 = vmatprep.subr.mxu0 0.0
  %4364 = vmatpush1.msra.mxu0 0.0
  %4365 = vmatprep.subr.mxu0 0.0
  %4366 = vmatpush1.msra.mxu0 0.0
  %4367 = vmatprep.subr.mxu0 0.0
  %4368 = vmatpush1.msra.mxu0 0.0
  %4369 = vmatprep.subr.mxu0 0.0
  %4370 = vmatpush1.msra.mxu0 0.0
  %4371 = vmatprep.subr.mxu0 0.0
  %4372 = vmatpush1.msra.mxu0 0.0
  %4373 = vmatprep.subr.mxu0 0.0
  %4374 = vmatpush1.msra.mxu0 0.0
  %4375 = vmatprep.subr.mxu0 0.0
  %4376 = vmatpush1.msra.mxu0 0.0
  %4377 = vmatprep.subr.mxu0 0.0
  %4378 = vmatpush1.msra.mxu0 0.0
  %4379 = vmatprep.subr.mxu0 0.0
  %4380 = vmatpush1.msra.mxu0 0.0
  %4381 = vmatprep.subr.mxu0 0.0
  %4382 = vmatpush1.msra.mxu0 0.0
  %4383 = vmatprep.subr.mxu0 0.0
  %4384 = vmatpush1.msra.mxu0 0.0
  %4385 = vmatprep.subr.mxu0 0.0
  %4386 = vmatpush1.msra.mxu0 %v3598
  %4387 = vmatprep.subr.mxu0 0.0
  %4388 = vmatpush1.msra.mxu0 %v3597
  %4389 = vmatprep.subr.mxu0 0.0
  %4390 = vmatpush1.msra.mxu0 %v3596
  %4391 = vmatprep.subr.mxu0 0.0
  %4392 = vmatpush1.msra.mxu0 %v3595
  %4393 = vmatprep.subr.mxu0 0.0
  %4394 = vmatpush2.msra.mxu0 0.0
  %4395 = vmatprep.subr.mxu0 0.0
  %4396 = vmatpush2.msra.mxu0 0.0
  %4397 = vmatprep.subr.mxu0 0.0
  %4398 = vmatpush2.msra.mxu0 0.0
  %4399 = vmatprep.subr.mxu0 0.0
  %4400 = vmatpush2.msra.mxu0 0.0
  %4401 = vmatprep.subr.mxu0 0.0
  %4402 = vmatpush2.msra.mxu0 0.0
  %4403 = vmatprep.subr.mxu0 0.0
  %4404 = vmatpush2.msra.mxu0 0.0
  %4405 = vmatprep.subr.mxu0 0.0
  %4406 = vmatpush2.msra.mxu0 0.0
  %4407 = vmatprep.subr.mxu0 0.0
  %4408 = vmatpush2.msra.mxu0 0.0
  %4409 = vmatprep.subr.mxu0 0.0
  %4410 = vmatpush2.msra.mxu0 0.0
  %4411 = vmatprep.subr.mxu0 0.0
  %4412 = vmatpush2.msra.mxu0 0.0
  %4413 = vmatprep.subr.mxu0 0.0
  %4414 = vmatpush2.msra.mxu0 0.0
  %4415 = vmatprep.subr.mxu0 0.0
  %4416 = vmatpush2.msra.mxu0 0.0
  %4417 = vmatprep.subr.mxu0 0.0
  %4418 = vmatpush2.msra.mxu0 0.0
  %4419 = vmatprep.subr.mxu0 0.0
  %4420 = vmatpush2.msra.mxu0 0.0
  %4421 = vmatprep.subr.mxu0 0.0
  %4422 = vmatpush2.msra.mxu0 0.0
  %4423 = vmatprep.subr.mxu0 0.0
  %4424 = vmatpush2.msra.mxu0 0.0
  %4425 = vmatprep.mubr.f32.mxu0 0.0
  %4426 = vmatmul.mubr.f32.gmra.mxu0 %v4359
  %v4427 = vpop.f32.mrf.mxu0
  %v4428 = vadd.f32 0.0, %v4427
  %v4429 = vpop.f32.mrf.mxu0
  %4430 = vdwg.mxu0
  %v4431 = vadd.f32 %v4358, %v4428
  %v4432 = vxor.u32 %v4431, 2147483648
  %v4433 = vmul.f32 %v4432, 1.442695
  %v4434 = vpow.pop %v4433
  %v4435 = vadd.f32 %v4434, 1.0
  %v4436 = vrcp.pop %v4435
  %v4437 = vmul.f32 1.0, %v4436
  %v4438 = vtanh.pop %v4431
  %v4439 = vmul.f32 %v4437, %v4344
  %4441 = vrot.lane.b32.xlu0 %v4438, 32
  %v4442 = vpop.permute.xlu0 %4441
  %v4444 = vmul.f32 %v4437, %v4442
  %4446 = vrot.lane.b32.xlu0 %v4444, 32
  %v4447 = vpop.permute.xlu0 %4446
  %v4449 = vadd.f32 %v4439, %v4447
  %v4450 = vtanh.pop %v4449
  %4452 = vrot.lane.b32.xlu0 %v4450, 32
  %v4453 = vpop.permute.xlu0 %4452
  %v4455 = vmul.f32 %v4437, %v4453
  %4457 = vrot.lane.b32.xlu0 %v4455, 64
  %v4458 = vpop.permute.xlu0 %4457
  %s4460 = scalar_lea.vmem [#allocation5], 32
  %4461 = vst.msk [vmem:[%s4460] sm:$0xff] %vm412, %v4458
  %s4462 = scalar_lea.vmem [#allocation4], 40
  %v4463 = vld [vmem:[%s4462] sm:$0xff]
  %v4464 = vsel %vm412, %v4458, 0
  %4466 = vmatprep.subr.mxu0 0.0
  %4467 = vmatpush1.msra.mxu0 0.0
  %4468 = vmatprep.subr.mxu0 0.0
  %4469 = vmatpush1.msra.mxu0 0.0
  %4470 = vmatprep.subr.mxu0 0.0
  %4471 = vmatpush1.msra.mxu0 0.0
  %4472 = vmatprep.subr.mxu0 0.0
  %4473 = vmatpush1.msra.mxu0 0.0
  %4474 = vmatprep.subr.mxu0 0.0
  %4475 = vmatpush1.msra.mxu0 0.0
  %4476 = vmatprep.subr.mxu0 0.0
  %4477 = vmatpush1.msra.mxu0 0.0
  %4478 = vmatprep.subr.mxu0 0.0
  %4479 = vmatpush1.msra.mxu0 0.0
  %4480 = vmatprep.subr.mxu0 0.0
  %4481 = vmatpush1.msra.mxu0 0.0
  %4482 = vmatprep.subr.mxu0 0.0
  %4483 = vmatpush1.msra.mxu0 0.0
  %4484 = vmatprep.subr.mxu0 0.0
  %4485 = vmatpush1.msra.mxu0 0.0
  %4486 = vmatprep.subr.mxu0 0.0
  %4487 = vmatpush1.msra.mxu0 0.0
  %4488 = vmatprep.subr.mxu0 0.0
  %4489 = vmatpush1.msra.mxu0 0.0
  %4490 = vmatprep.subr.mxu0 0.0
  %4491 = vmatpush1.msra.mxu0 %v3598
  %4492 = vmatprep.subr.mxu0 0.0
  %4493 = vmatpush1.msra.mxu0 %v3597
  %4494 = vmatprep.subr.mxu0 0.0
  %4495 = vmatpush1.msra.mxu0 %v3596
  %4496 = vmatprep.subr.mxu0 0.0
  %4497 = vmatpush1.msra.mxu0 %v3595
  %4498 = vmatprep.subr.mxu0 0.0
  %4499 = vmatpush2.msra.mxu0 0.0
  %4500 = vmatprep.subr.mxu0 0.0
  %4501 = vmatpush2.msra.mxu0 0.0
  %4502 = vmatprep.subr.mxu0 0.0
  %4503 = vmatpush2.msra.mxu0 0.0
  %4504 = vmatprep.subr.mxu0 0.0
  %4505 = vmatpush2.msra.mxu0 0.0
  %4506 = vmatprep.subr.mxu0 0.0
  %4507 = vmatpush2.msra.mxu0 0.0
  %4508 = vmatprep.subr.mxu0 0.0
  %4509 = vmatpush2.msra.mxu0 0.0
  %4510 = vmatprep.subr.mxu0 0.0
  %4511 = vmatpush2.msra.mxu0 0.0
  %4512 = vmatprep.subr.mxu0 0.0
  %4513 = vmatpush2.msra.mxu0 0.0
  %4514 = vmatprep.subr.mxu0 0.0
  %4515 = vmatpush2.msra.mxu0 0.0
  %4516 = vmatprep.subr.mxu0 0.0
  %4517 = vmatpush2.msra.mxu0 0.0
  %4518 = vmatprep.subr.mxu0 0.0
  %4519 = vmatpush2.msra.mxu0 0.0
  %4520 = vmatprep.subr.mxu0 0.0
  %4521 = vmatpush2.msra.mxu0 0.0
  %4522 = vmatprep.subr.mxu0 0.0
  %4523 = vmatpush2.msra.mxu0 0.0
  %4524 = vmatprep.subr.mxu0 0.0
  %4525 = vmatpush2.msra.mxu0 0.0
  %4526 = vmatprep.subr.mxu0 0.0
  %4527 = vmatpush2.msra.mxu0 0.0
  %4528 = vmatprep.subr.mxu0 0.0
  %4529 = vmatpush2.msra.mxu0 0.0
  %4530 = vmatprep.mubr.f32.mxu0 0.0
  %4531 = vmatmul.mubr.f32.gmra.mxu0 %v4464
  %v4532 = vpop.f32.mrf.mxu0
  %v4533 = vadd.f32 0.0, %v4532
  %v4534 = vpop.f32.mrf.mxu0
  %4535 = vdwg.mxu0
  %v4536 = vadd.f32 %v4463, %v4533
  %v4537 = vxor.u32 %v4536, 2147483648
  %v4538 = vmul.f32 %v4537, 1.442695
  %v4539 = vpow.pop %v4538
  %v4540 = vadd.f32 %v4539, 1.0
  %v4541 = vrcp.pop %v4540
  %v4542 = vmul.f32 1.0, %v4541
  %v4543 = vtanh.pop %v4536
  %v4544 = vmul.f32 %v4542, %v4449
  %4546 = vrot.lane.b32.xlu0 %v4543, 32
  %v4547 = vpop.permute.xlu0 %4546
  %v4549 = vmul.f32 %v4542, %v4547
  %4551 = vrot.lane.b32.xlu0 %v4549, 32
  %v4552 = vpop.permute.xlu0 %4551
  %v4554 = vadd.f32 %v4544, %v4552
  %v4555 = vtanh.pop %v4554
  %4557 = vrot.lane.b32.xlu0 %v4555, 32
  %v4558 = vpop.permute.xlu0 %4557
  %v4560 = vmul.f32 %v4542, %v4558
  %4562 = vrot.lane.b32.xlu0 %v4560, 64
  %v4563 = vpop.permute.xlu0 %4562
  %s4565 = scalar_lea.vmem [#allocation5], 40
  %4566 = vst.msk [vmem:[%s4565] sm:$0xff] %vm412, %v4563
  %s4567 = scalar_lea.vmem [#allocation4], 48
  %v4568 = vld [vmem:[%s4567] sm:$0xff]
  %v4569 = vsel %vm412, %v4563, 0
  %4571 = vmatprep.subr.mxu0 0.0
  %4572 = vmatpush1.msra.mxu0 0.0
  %4573 = vmatprep.subr.mxu0 0.0
  %4574 = vmatpush1.msra.mxu0 0.0
  %4575 = vmatprep.subr.mxu0 0.0
  %4576 = vmatpush1.msra.mxu0 0.0
  %4577 = vmatprep.subr.mxu0 0.0
  %4578 = vmatpush1.msra.mxu0 0.0
  %4579 = vmatprep.subr.mxu0 0.0
  %4580 = vmatpush1.msra.mxu0 0.0
  %4581 = vmatprep.subr.mxu0 0.0
  %4582 = vmatpush1.msra.mxu0 0.0
  %4583 = vmatprep.subr.mxu0 0.0
  %4584 = vmatpush1.msra.mxu0 0.0
  %4585 = vmatprep.subr.mxu0 0.0
  %4586 = vmatpush1.msra.mxu0 0.0
  %4587 = vmatprep.subr.mxu0 0.0
  %4588 = vmatpush1.msra.mxu0 0.0
  %4589 = vmatprep.subr.mxu0 0.0
  %4590 = vmatpush1.msra.mxu0 0.0
  %4591 = vmatprep.subr.mxu0 0.0
  %4592 = vmatpush1.msra.mxu0 0.0
  %4593 = vmatprep.subr.mxu0 0.0
  %4594 = vmatpush1.msra.mxu0 0.0
  %4595 = vmatprep.subr.mxu0 0.0
  %4596 = vmatpush1.msra.mxu0 %v3598
  %4597 = vmatprep.subr.mxu0 0.0
  %4598 = vmatpush1.msra.mxu0 %v3597
  %4599 = vmatprep.subr.mxu0 0.0
  %4600 = vmatpush1.msra.mxu0 %v3596
  %4601 = vmatprep.subr.mxu0 0.0
  %4602 = vmatpush1.msra.mxu0 %v3595
  %4603 = vmatprep.subr.mxu0 0.0
  %4604 = vmatpush2.msra.mxu0 0.0
  %4605 = vmatprep.subr.mxu0 0.0
  %4606 = vmatpush2.msra.mxu0 0.0
  %4607 = vmatprep.subr.mxu0 0.0
  %4608 = vmatpush2.msra.mxu0 0.0
  %4609 = vmatprep.subr.mxu0 0.0
  %4610 = vmatpush2.msra.mxu0 0.0
  %4611 = vmatprep.subr.mxu0 0.0
  %4612 = vmatpush2.msra.mxu0 0.0
  %4613 = vmatprep.subr.mxu0 0.0
  %4614 = vmatpush2.msra.mxu0 0.0
  %4615 = vmatprep.subr.mxu0 0.0
  %4616 = vmatpush2.msra.mxu0 0.0
  %4617 = vmatprep.subr.mxu0 0.0
  %4618 = vmatpush2.msra.mxu0 0.0
  %4619 = vmatprep.subr.mxu0 0.0
  %4620 = vmatpush2.msra.mxu0 0.0
  %4621 = vmatprep.subr.mxu0 0.0
  %4622 = vmatpush2.msra.mxu0 0.0
  %4623 = vmatprep.subr.mxu0 0.0
  %4624 = vmatpush2.msra.mxu0 0.0
  %4625 = vmatprep.subr.mxu0 0.0
  %4626 = vmatpush2.msra.mxu0 0.0
  %4627 = vmatprep.subr.mxu0 0.0
  %4628 = vmatpush2.msra.mxu0 0.0
  %4629 = vmatprep.subr.mxu0 0.0
  %4630 = vmatpush2.msra.mxu0 0.0
  %4631 = vmatprep.subr.mxu0 0.0
  %4632 = vmatpush2.msra.mxu0 0.0
  %4633 = vmatprep.subr.mxu0 0.0
  %4634 = vmatpush2.msra.mxu0 0.0
  %4635 = vmatprep.mubr.f32.mxu0 0.0
  %4636 = vmatmul.mubr.f32.gmra.mxu0 %v4569
  %v4637 = vpop.f32.mrf.mxu0
  %v4638 = vadd.f32 0.0, %v4637
  %v4639 = vpop.f32.mrf.mxu0
  %4640 = vdwg.mxu0
  %v4641 = vadd.f32 %v4568, %v4638
  %v4642 = vxor.u32 %v4641, 2147483648
  %v4643 = vmul.f32 %v4642, 1.442695
  %v4644 = vpow.pop %v4643
  %v4645 = vadd.f32 %v4644, 1.0
  %v4646 = vrcp.pop %v4645
  %v4647 = vmul.f32 1.0, %v4646
  %v4648 = vtanh.pop %v4641
  %v4649 = vmul.f32 %v4647, %v4554
  %4651 = vrot.lane.b32.xlu0 %v4648, 32
  %v4652 = vpop.permute.xlu0 %4651
  %v4654 = vmul.f32 %v4647, %v4652
  %4656 = vrot.lane.b32.xlu0 %v4654, 32
  %v4657 = vpop.permute.xlu0 %4656
  %v4659 = vadd.f32 %v4649, %v4657
  %v4660 = vtanh.pop %v4659
  %4662 = vrot.lane.b32.xlu0 %v4660, 32
  %v4663 = vpop.permute.xlu0 %4662
  %v4665 = vmul.f32 %v4647, %v4663
  %4667 = vrot.lane.b32.xlu0 %v4665, 64
  %v4668 = vpop.permute.xlu0 %4667
  %s4670 = scalar_lea.vmem [#allocation5], 48
  %4671 = vst.msk [vmem:[%s4670] sm:$0xff] %vm412, %v4668
  %s4672 = scalar_lea.vmem [#allocation4], 56
  %v4673 = vld [vmem:[%s4672] sm:$0xff]
  %v4674 = vsel %vm412, %v4668, 0
  %4676 = vmatprep.subr.mxu0 0.0
  %4677 = vmatpush1.msra.mxu0 0.0
  %4678 = vmatprep.subr.mxu0 0.0
  %4679 = vmatpush1.msra.mxu0 0.0
  %4680 = vmatprep.subr.mxu0 0.0
  %4681 = vmatpush1.msra.mxu0 0.0
  %4682 = vmatprep.subr.mxu0 0.0
  %4683 = vmatpush1.msra.mxu0 0.0
  %4684 = vmatprep.subr.mxu0 0.0
  %4685 = vmatpush1.msra.mxu0 0.0
  %4686 = vmatprep.subr.mxu0 0.0
  %4687 = vmatpush1.msra.mxu0 0.0
  %4688 = vmatprep.subr.mxu0 0.0
  %4689 = vmatpush1.msra.mxu0 0.0
  %4690 = vmatprep.subr.mxu0 0.0
  %4691 = vmatpush1.msra.mxu0 0.0
  %4692 = vmatprep.subr.mxu0 0.0
  %4693 = vmatpush1.msra.mxu0 0.0
  %4694 = vmatprep.subr.mxu0 0.0
  %4695 = vmatpush1.msra.mxu0 0.0
  %4696 = vmatprep.subr.mxu0 0.0
  %4697 = vmatpush1.msra.mxu0 0.0
  %4698 = vmatprep.subr.mxu0 0.0
  %4699 = vmatpush1.msra.mxu0 0.0
  %4700 = vmatprep.subr.mxu0 0.0
  %4701 = vmatpush1.msra.mxu0 %v3598
  %4702 = vmatprep.subr.mxu0 0.0
  %4703 = vmatpush1.msra.mxu0 %v3597
  %4704 = vmatprep.subr.mxu0 0.0
  %4705 = vmatpush1.msra.mxu0 %v3596
  %4706 = vmatprep.subr.mxu0 0.0
  %4707 = vmatpush1.msra.mxu0 %v3595
  %4708 = vmatprep.subr.mxu0 0.0
  %4709 = vmatpush2.msra.mxu0 0.0
  %4710 = vmatprep.subr.mxu0 0.0
  %4711 = vmatpush2.msra.mxu0 0.0
  %4712 = vmatprep.subr.mxu0 0.0
  %4713 = vmatpush2.msra.mxu0 0.0
  %4714 = vmatprep.subr.mxu0 0.0
  %4715 = vmatpush2.msra.mxu0 0.0
  %4716 = vmatprep.subr.mxu0 0.0
  %4717 = vmatpush2.msra.mxu0 0.0
  %4718 = vmatprep.subr.mxu0 0.0
  %4719 = vmatpush2.msra.mxu0 0.0
  %4720 = vmatprep.subr.mxu0 0.0
  %4721 = vmatpush2.msra.mxu0 0.0
  %4722 = vmatprep.subr.mxu0 0.0
  %4723 = vmatpush2.msra.mxu0 0.0
  %4724 = vmatprep.subr.mxu0 0.0
  %4725 = vmatpush2.msra.mxu0 0.0
  %4726 = vmatprep.subr.mxu0 0.0
  %4727 = vmatpush2.msra.mxu0 0.0
  %4728 = vmatprep.subr.mxu0 0.0
  %4729 = vmatpush2.msra.mxu0 0.0
  %4730 = vmatprep.subr.mxu0 0.0
  %4731 = vmatpush2.msra.mxu0 0.0
  %4732 = vmatprep.subr.mxu0 0.0
  %4733 = vmatpush2.msra.mxu0 0.0
  %4734 = vmatprep.subr.mxu0 0.0
  %4735 = vmatpush2.msra.mxu0 0.0
  %4736 = vmatprep.subr.mxu0 0.0
  %4737 = vmatpush2.msra.mxu0 0.0
  %4738 = vmatprep.subr.mxu0 0.0
  %4739 = vmatpush2.msra.mxu0 0.0
  %4740 = vmatprep.mubr.f32.mxu0 0.0
  %4741 = vmatmul.mubr.f32.gmra.mxu0 %v4674
  %v4742 = vpop.f32.mrf.mxu0
  %v4743 = vadd.f32 0.0, %v4742
  %v4744 = vpop.f32.mrf.mxu0
  %4745 = vdwg.mxu0
  %v4746 = vadd.f32 %v4673, %v4743
  %v4747 = vxor.u32 %v4746, 2147483648
  %v4748 = vmul.f32 %v4747, 1.442695
  %v4749 = vpow.pop %v4748
  %v4750 = vadd.f32 %v4749, 1.0
  %v4751 = vrcp.pop %v4750
  %v4752 = vmul.f32 1.0, %v4751
  %v4753 = vtanh.pop %v4746
  %v4754 = vmul.f32 %v4752, %v4659
  %4756 = vrot.lane.b32.xlu0 %v4753, 32
  %v4757 = vpop.permute.xlu0 %4756
  %v4759 = vmul.f32 %v4752, %v4757
  %4761 = vrot.lane.b32.xlu0 %v4759, 32
  %v4762 = vpop.permute.xlu0 %4761
  %v4764 = vadd.f32 %v4754, %v4762
  %v4765 = vtanh.pop %v4764
  %4767 = vrot.lane.b32.xlu0 %v4765, 32
  %v4768 = vpop.permute.xlu0 %4767
  %v4770 = vmul.f32 %v4752, %v4768
  %4772 = vrot.lane.b32.xlu0 %v4770, 64
  %v4773 = vpop.permute.xlu0 %4772
  %s4775 = scalar_lea.vmem [#allocation5], 56
  %4776 = vst.msk [vmem:[%s4775] sm:$0xff] %vm412, %v4773
  %s4777 = scalar_lea.vmem [#allocation4], 64
  %v4778 = vld [vmem:[%s4777] sm:$0xff]
  %v4779 = vsel %vm412, %v4773, 0
  %4781 = vmatprep.subr.mxu0 0.0
  %4782 = vmatpush1.msra.mxu0 0.0
  %4783 = vmatprep.subr.mxu0 0.0
  %4784 = vmatpush1.msra.mxu0 0.0
  %4785 = vmatprep.subr.mxu0 0.0
  %4786 = vmatpush1.msra.mxu0 0.0
  %4787 = vmatprep.subr.mxu0 0.0
  %4788 = vmatpush1.msra.mxu0 0.0
  %4789 = vmatprep.subr.mxu0 0.0
  %4790 = vmatpush1.msra.mxu0 0.0
  %4791 = vmatprep.subr.mxu0 0.0
  %4792 = vmatpush1.msra.mxu0 0.0
  %4793 = vmatprep.subr.mxu0 0.0
  %4794 = vmatpush1.msra.mxu0 0.0
  %4795 = vmatprep.subr.mxu0 0.0
  %4796 = vmatpush1.msra.mxu0 0.0
  %4797 = vmatprep.subr.mxu0 0.0
  %4798 = vmatpush1.msra.mxu0 0.0
  %4799 = vmatprep.subr.mxu0 0.0
  %4800 = vmatpush1.msra.mxu0 0.0
  %4801 = vmatprep.subr.mxu0 0.0
  %4802 = vmatpush1.msra.mxu0 0.0
  %4803 = vmatprep.subr.mxu0 0.0
  %4804 = vmatpush1.msra.mxu0 0.0
  %4805 = vmatprep.subr.mxu0 0.0
  %4806 = vmatpush1.msra.mxu0 %v3598
  %4807 = vmatprep.subr.mxu0 0.0
  %4808 = vmatpush1.msra.mxu0 %v3597
  %4809 = vmatprep.subr.mxu0 0.0
  %4810 = vmatpush1.msra.mxu0 %v3596
  %4811 = vmatprep.subr.mxu0 0.0
  %4812 = vmatpush1.msra.mxu0 %v3595
  %4813 = vmatprep.subr.mxu0 0.0
  %4814 = vmatpush2.msra.mxu0 0.0
  %4815 = vmatprep.subr.mxu0 0.0
  %4816 = vmatpush2.msra.mxu0 0.0
  %4817 = vmatprep.subr.mxu0 0.0
  %4818 = vmatpush2.msra.mxu0 0.0
  %4819 = vmatprep.subr.mxu0 0.0
  %4820 = vmatpush2.msra.mxu0 0.0
  %4821 = vmatprep.subr.mxu0 0.0
  %4822 = vmatpush2.msra.mxu0 0.0
  %4823 = vmatprep.subr.mxu0 0.0
  %4824 = vmatpush2.msra.mxu0 0.0
  %4825 = vmatprep.subr.mxu0 0.0
  %4826 = vmatpush2.msra.mxu0 0.0
  %4827 = vmatprep.subr.mxu0 0.0
  %4828 = vmatpush2.msra.mxu0 0.0
  %4829 = vmatprep.subr.mxu0 0.0
  %4830 = vmatpush2.msra.mxu0 0.0
  %4831 = vmatprep.subr.mxu0 0.0
  %4832 = vmatpush2.msra.mxu0 0.0
  %4833 = vmatprep.subr.mxu0 0.0
  %4834 = vmatpush2.msra.mxu0 0.0
  %4835 = vmatprep.subr.mxu0 0.0
  %4836 = vmatpush2.msra.mxu0 0.0
  %4837 = vmatprep.subr.mxu0 0.0
  %4838 = vmatpush2.msra.mxu0 0.0
  %4839 = vmatprep.subr.mxu0 0.0
  %4840 = vmatpush2.msra.mxu0 0.0
  %4841 = vmatprep.subr.mxu0 0.0
  %4842 = vmatpush2.msra.mxu0 0.0
  %4843 = vmatprep.subr.mxu0 0.0
  %4844 = vmatpush2.msra.mxu0 0.0
  %4845 = vmatprep.mubr.f32.mxu0 0.0
  %4846 = vmatmul.mubr.f32.gmra.mxu0 %v4779
  %v4847 = vpop.f32.mrf.mxu0
  %v4848 = vadd.f32 0.0, %v4847
  %v4849 = vpop.f32.mrf.mxu0
  %4850 = vdwg.mxu0
  %v4851 = vadd.f32 %v4778, %v4848
  %v4852 = vxor.u32 %v4851, 2147483648
  %v4853 = vmul.f32 %v4852, 1.442695
  %v4854 = vpow.pop %v4853
  %v4855 = vadd.f32 %v4854, 1.0
  %v4856 = vrcp.pop %v4855
  %v4857 = vmul.f32 1.0, %v4856
  %v4858 = vtanh.pop %v4851
  %v4859 = vmul.f32 %v4857, %v4764
  %4861 = vrot.lane.b32.xlu0 %v4858, 32
  %v4862 = vpop.permute.xlu0 %4861
  %v4864 = vmul.f32 %v4857, %v4862
  %4866 = vrot.lane.b32.xlu0 %v4864, 32
  %v4867 = vpop.permute.xlu0 %4866
  %v4869 = vadd.f32 %v4859, %v4867
  %v4870 = vtanh.pop %v4869
  %4872 = vrot.lane.b32.xlu0 %v4870, 32
  %v4873 = vpop.permute.xlu0 %4872
  %v4875 = vmul.f32 %v4857, %v4873
  %4877 = vrot.lane.b32.xlu0 %v4875, 64
  %v4878 = vpop.permute.xlu0 %4877
  %s4880 = scalar_lea.vmem [#allocation5], 64
  %4881 = vst.msk [vmem:[%s4880] sm:$0xff] %vm412, %v4878
  %s4882 = scalar_lea.vmem [#allocation4], 72
  %v4883 = vld [vmem:[%s4882] sm:$0xff]
  %v4884 = vsel %vm412, %v4878, 0
  %4886 = vmatprep.subr.mxu0 0.0
  %4887 = vmatpush1.msra.mxu0 0.0
  %4888 = vmatprep.subr.mxu0 0.0
  %4889 = vmatpush1.msra.mxu0 0.0
  %4890 = vmatprep.subr.mxu0 0.0
  %4891 = vmatpush1.msra.mxu0 0.0
  %4892 = vmatprep.subr.mxu0 0.0
  %4893 = vmatpush1.msra.mxu0 0.0
  %4894 = vmatprep.subr.mxu0 0.0
  %4895 = vmatpush1.msra.mxu0 0.0
  %4896 = vmatprep.subr.mxu0 0.0
  %4897 = vmatpush1.msra.mxu0 0.0
  %4898 = vmatprep.subr.mxu0 0.0
  %4899 = vmatpush1.msra.mxu0 0.0
  %4900 = vmatprep.subr.mxu0 0.0
  %4901 = vmatpush1.msra.mxu0 0.0
  %4902 = vmatprep.subr.mxu0 0.0
  %4903 = vmatpush1.msra.mxu0 0.0
  %4904 = vmatprep.subr.mxu0 0.0
  %4905 = vmatpush1.msra.mxu0 0.0
  %4906 = vmatprep.subr.mxu0 0.0
  %4907 = vmatpush1.msra.mxu0 0.0
  %4908 = vmatprep.subr.mxu0 0.0
  %4909 = vmatpush1.msra.mxu0 0.0
  %4910 = vmatprep.subr.mxu0 0.0
  %4911 = vmatpush1.msra.mxu0 %v3598
  %4912 = vmatprep.subr.mxu0 0.0
  %4913 = vmatpush1.msra.mxu0 %v3597
  %4914 = vmatprep.subr.mxu0 0.0
  %4915 = vmatpush1.msra.mxu0 %v3596
  %4916 = vmatprep.subr.mxu0 0.0
  %4917 = vmatpush1.msra.mxu0 %v3595
  %4918 = vmatprep.subr.mxu0 0.0
  %4919 = vmatpush2.msra.mxu0 0.0
  %4920 = vmatprep.subr.mxu0 0.0
  %4921 = vmatpush2.msra.mxu0 0.0
  %4922 = vmatprep.subr.mxu0 0.0
  %4923 = vmatpush2.msra.mxu0 0.0
  %4924 = vmatprep.subr.mxu0 0.0
  %4925 = vmatpush2.msra.mxu0 0.0
  %4926 = vmatprep.subr.mxu0 0.0
  %4927 = vmatpush2.msra.mxu0 0.0
  %4928 = vmatprep.subr.mxu0 0.0
  %4929 = vmatpush2.msra.mxu0 0.0
  %4930 = vmatprep.subr.mxu0 0.0
  %4931 = vmatpush2.msra.mxu0 0.0
  %4932 = vmatprep.subr.mxu0 0.0
  %4933 = vmatpush2.msra.mxu0 0.0
  %4934 = vmatprep.subr.mxu0 0.0
  %4935 = vmatpush2.msra.mxu0 0.0
  %4936 = vmatprep.subr.mxu0 0.0
  %4937 = vmatpush2.msra.mxu0 0.0
  %4938 = vmatprep.subr.mxu0 0.0
  %4939 = vmatpush2.msra.mxu0 0.0
  %4940 = vmatprep.subr.mxu0 0.0
  %4941 = vmatpush2.msra.mxu0 0.0
  %4942 = vmatprep.subr.mxu0 0.0
  %4943 = vmatpush2.msra.mxu0 0.0
  %4944 = vmatprep.subr.mxu0 0.0
  %4945 = vmatpush2.msra.mxu0 0.0
  %4946 = vmatprep.subr.mxu0 0.0
  %4947 = vmatpush2.msra.mxu0 0.0
  %4948 = vmatprep.subr.mxu0 0.0
  %4949 = vmatpush2.msra.mxu0 0.0
  %4950 = vmatprep.mubr.f32.mxu0 0.0
  %4951 = vmatmul.mubr.f32.gmra.mxu0 %v4884
  %v4952 = vpop.f32.mrf.mxu0
  %v4953 = vadd.f32 0.0, %v4952
  %v4954 = vpop.f32.mrf.mxu0
  %4955 = vdwg.mxu0
  %v4956 = vadd.f32 %v4883, %v4953
  %v4957 = vxor.u32 %v4956, 2147483648
  %v4958 = vmul.f32 %v4957, 1.442695
  %v4959 = vpow.pop %v4958
  %v4960 = vadd.f32 %v4959, 1.0
  %v4961 = vrcp.pop %v4960
  %v4962 = vmul.f32 1.0, %v4961
  %v4963 = vtanh.pop %v4956
  %v4964 = vmul.f32 %v4962, %v4869
  %4966 = vrot.lane.b32.xlu0 %v4963, 32
  %v4967 = vpop.permute.xlu0 %4966
  %v4969 = vmul.f32 %v4962, %v4967
  %4971 = vrot.lane.b32.xlu0 %v4969, 32
  %v4972 = vpop.permute.xlu0 %4971
  %v4974 = vadd.f32 %v4964, %v4972
  %v4975 = vtanh.pop %v4974
  %4977 = vrot.lane.b32.xlu0 %v4975, 32
  %v4978 = vpop.permute.xlu0 %4977
  %v4980 = vmul.f32 %v4962, %v4978
  %4982 = vrot.lane.b32.xlu0 %v4980, 64
  %v4983 = vpop.permute.xlu0 %4982
  %s4985 = scalar_lea.vmem [#allocation5], 72
  %4986 = vst.msk [vmem:[%s4985] sm:$0xff] %vm412, %v4983
  %s4987 = scalar_lea.vmem [#allocation4], 80
  %v4988 = vld [vmem:[%s4987] sm:$0xff]
  %v4989 = vsel %vm412, %v4983, 0
  %4991 = vmatprep.subr.mxu0 0.0
  %4992 = vmatpush1.msra.mxu0 0.0
  %4993 = vmatprep.subr.mxu0 0.0
  %4994 = vmatpush1.msra.mxu0 0.0
  %4995 = vmatprep.subr.mxu0 0.0
  %4996 = vmatpush1.msra.mxu0 0.0
  %4997 = vmatprep.subr.mxu0 0.0
  %4998 = vmatpush1.msra.mxu0 0.0
  %4999 = vmatprep.subr.mxu0 0.0
  %5000 = vmatpush1.msra.mxu0 0.0
  %5001 = vmatprep.subr.mxu0 0.0
  %5002 = vmatpush1.msra.mxu0 0.0
  %5003 = vmatprep.subr.mxu0 0.0
  %5004 = vmatpush1.msra.mxu0 0.0
  %5005 = vmatprep.subr.mxu0 0.0
  %5006 = vmatpush1.msra.mxu0 0.0
  %5007 = vmatprep.subr.mxu0 0.0
  %5008 = vmatpush1.msra.mxu0 0.0
  %5009 = vmatprep.subr.mxu0 0.0
  %5010 = vmatpush1.msra.mxu0 0.0
  %5011 = vmatprep.subr.mxu0 0.0
  %5012 = vmatpush1.msra.mxu0 0.0
  %5013 = vmatprep.subr.mxu0 0.0
  %5014 = vmatpush1.msra.mxu0 0.0
  %5015 = vmatprep.subr.mxu0 0.0
  %5016 = vmatpush1.msra.mxu0 %v3598
  %5017 = vmatprep.subr.mxu0 0.0
  %5018 = vmatpush1.msra.mxu0 %v3597
  %5019 = vmatprep.subr.mxu0 0.0
  %5020 = vmatpush1.msra.mxu0 %v3596
  %5021 = vmatprep.subr.mxu0 0.0
  %5022 = vmatpush1.msra.mxu0 %v3595
  %5023 = vmatprep.subr.mxu0 0.0
  %5024 = vmatpush2.msra.mxu0 0.0
  %5025 = vmatprep.subr.mxu0 0.0
  %5026 = vmatpush2.msra.mxu0 0.0
  %5027 = vmatprep.subr.mxu0 0.0
  %5028 = vmatpush2.msra.mxu0 0.0
  %5029 = vmatprep.subr.mxu0 0.0
  %5030 = vmatpush2.msra.mxu0 0.0
  %5031 = vmatprep.subr.mxu0 0.0
  %5032 = vmatpush2.msra.mxu0 0.0
  %5033 = vmatprep.subr.mxu0 0.0
  %5034 = vmatpush2.msra.mxu0 0.0
  %5035 = vmatprep.subr.mxu0 0.0
  %5036 = vmatpush2.msra.mxu0 0.0
  %5037 = vmatprep.subr.mxu0 0.0
  %5038 = vmatpush2.msra.mxu0 0.0
  %5039 = vmatprep.subr.mxu0 0.0
  %5040 = vmatpush2.msra.mxu0 0.0
  %5041 = vmatprep.subr.mxu0 0.0
  %5042 = vmatpush2.msra.mxu0 0.0
  %5043 = vmatprep.subr.mxu0 0.0
  %5044 = vmatpush2.msra.mxu0 0.0
  %5045 = vmatprep.subr.mxu0 0.0
  %5046 = vmatpush2.msra.mxu0 0.0
  %5047 = vmatprep.subr.mxu0 0.0
  %5048 = vmatpush2.msra.mxu0 0.0
  %5049 = vmatprep.subr.mxu0 0.0
  %5050 = vmatpush2.msra.mxu0 0.0
  %5051 = vmatprep.subr.mxu0 0.0
  %5052 = vmatpush2.msra.mxu0 0.0
  %5053 = vmatprep.subr.mxu0 0.0
  %5054 = vmatpush2.msra.mxu0 0.0
  %5055 = vmatprep.mubr.f32.mxu0 0.0
  %5056 = vmatmul.mubr.f32.gmra.mxu0 %v4989
  %v5057 = vpop.f32.mrf.mxu0
  %v5058 = vadd.f32 0.0, %v5057
  %v5059 = vpop.f32.mrf.mxu0
  %5060 = vdwg.mxu0
  %v5061 = vadd.f32 %v4988, %v5058
  %v5062 = vxor.u32 %v5061, 2147483648
  %v5063 = vmul.f32 %v5062, 1.442695
  %v5064 = vpow.pop %v5063
  %v5065 = vadd.f32 %v5064, 1.0
  %v5066 = vrcp.pop %v5065
  %v5067 = vmul.f32 1.0, %v5066
  %v5068 = vtanh.pop %v5061
  %v5069 = vmul.f32 %v5067, %v4974
  %5071 = vrot.lane.b32.xlu0 %v5068, 32
  %v5072 = vpop.permute.xlu0 %5071
  %v5074 = vmul.f32 %v5067, %v5072
  %5076 = vrot.lane.b32.xlu0 %v5074, 32
  %v5077 = vpop.permute.xlu0 %5076
  %v5079 = vadd.f32 %v5069, %v5077
  %v5080 = vtanh.pop %v5079
  %5082 = vrot.lane.b32.xlu0 %v5080, 32
  %v5083 = vpop.permute.xlu0 %5082
  %v5085 = vmul.f32 %v5067, %v5083
  %5087 = vrot.lane.b32.xlu0 %v5085, 64
  %v5088 = vpop.permute.xlu0 %5087
  %s5090 = scalar_lea.vmem [#allocation5], 80
  %5091 = vst.msk [vmem:[%s5090] sm:$0xff] %vm412, %v5088
  %s5092 = scalar_lea.vmem [#allocation4], 88
  %v5093 = vld [vmem:[%s5092] sm:$0xff]
  %v5094 = vsel %vm412, %v5088, 0
  %5096 = vmatprep.subr.mxu0 0.0
  %5097 = vmatpush1.msra.mxu0 0.0
  %5098 = vmatprep.subr.mxu0 0.0
  %5099 = vmatpush1.msra.mxu0 0.0
  %5100 = vmatprep.subr.mxu0 0.0
  %5101 = vmatpush1.msra.mxu0 0.0
  %5102 = vmatprep.subr.mxu0 0.0
  %5103 = vmatpush1.msra.mxu0 0.0
  %5104 = vmatprep.subr.mxu0 0.0
  %5105 = vmatpush1.msra.mxu0 0.0
  %5106 = vmatprep.subr.mxu0 0.0
  %5107 = vmatpush1.msra.mxu0 0.0
  %5108 = vmatprep.subr.mxu0 0.0
  %5109 = vmatpush1.msra.mxu0 0.0
  %5110 = vmatprep.subr.mxu0 0.0
  %5111 = vmatpush1.msra.mxu0 0.0
  %5112 = vmatprep.subr.mxu0 0.0
  %5113 = vmatpush1.msra.mxu0 0.0
  %5114 = vmatprep.subr.mxu0 0.0
  %5115 = vmatpush1.msra.mxu0 0.0
  %5116 = vmatprep.subr.mxu0 0.0
  %5117 = vmatpush1.msra.mxu0 0.0
  %5118 = vmatprep.subr.mxu0 0.0
  %5119 = vmatpush1.msra.mxu0 0.0
  %5120 = vmatprep.subr.mxu0 0.0
  %5121 = vmatpush1.msra.mxu0 %v3598
  %5122 = vmatprep.subr.mxu0 0.0
  %5123 = vmatpush1.msra.mxu0 %v3597
  %5124 = vmatprep.subr.mxu0 0.0
  %5125 = vmatpush1.msra.mxu0 %v3596
  %5126 = vmatprep.subr.mxu0 0.0
  %5127 = vmatpush1.msra.mxu0 %v3595
  %5128 = vmatprep.subr.mxu0 0.0
  %5129 = vmatpush2.msra.mxu0 0.0
  %5130 = vmatprep.subr.mxu0 0.0
  %5131 = vmatpush2.msra.mxu0 0.0
  %5132 = vmatprep.subr.mxu0 0.0
  %5133 = vmatpush2.msra.mxu0 0.0
  %5134 = vmatprep.subr.mxu0 0.0
  %5135 = vmatpush2.msra.mxu0 0.0
  %5136 = vmatprep.subr.mxu0 0.0
  %5137 = vmatpush2.msra.mxu0 0.0
  %5138 = vmatprep.subr.mxu0 0.0
  %5139 = vmatpush2.msra.mxu0 0.0
  %5140 = vmatprep.subr.mxu0 0.0
  %5141 = vmatpush2.msra.mxu0 0.0
  %5142 = vmatprep.subr.mxu0 0.0
  %5143 = vmatpush2.msra.mxu0 0.0
  %5144 = vmatprep.subr.mxu0 0.0
  %5145 = vmatpush2.msra.mxu0 0.0
  %5146 = vmatprep.subr.mxu0 0.0
  %5147 = vmatpush2.msra.mxu0 0.0
  %5148 = vmatprep.subr.mxu0 0.0
  %5149 = vmatpush2.msra.mxu0 0.0
  %5150 = vmatprep.subr.mxu0 0.0
  %5151 = vmatpush2.msra.mxu0 0.0
  %5152 = vmatprep.subr.mxu0 0.0
  %5153 = vmatpush2.msra.mxu0 0.0
  %5154 = vmatprep.subr.mxu0 0.0
  %5155 = vmatpush2.msra.mxu0 0.0
  %5156 = vmatprep.subr.mxu0 0.0
  %5157 = vmatpush2.msra.mxu0 0.0
  %5158 = vmatprep.subr.mxu0 0.0
  %5159 = vmatpush2.msra.mxu0 0.0
  %5160 = vmatprep.mubr.f32.mxu0 0.0
  %5161 = vmatmul.mubr.f32.gmra.mxu0 %v5094
  %v5162 = vpop.f32.mrf.mxu0
  %v5163 = vadd.f32 0.0, %v5162
  %v5164 = vpop.f32.mrf.mxu0
  %5165 = vdwg.mxu0
  %v5166 = vadd.f32 %v5093, %v5163
  %v5167 = vxor.u32 %v5166, 2147483648
  %v5168 = vmul.f32 %v5167, 1.442695
  %v5169 = vpow.pop %v5168
  %v5170 = vadd.f32 %v5169, 1.0
  %v5171 = vrcp.pop %v5170
  %v5172 = vmul.f32 1.0, %v5171
  %v5173 = vtanh.pop %v5166
  %v5174 = vmul.f32 %v5172, %v5079
  %5176 = vrot.lane.b32.xlu0 %v5173, 32
  %v5177 = vpop.permute.xlu0 %5176
  %v5179 = vmul.f32 %v5172, %v5177
  %5181 = vrot.lane.b32.xlu0 %v5179, 32
  %v5182 = vpop.permute.xlu0 %5181
  %v5184 = vadd.f32 %v5174, %v5182
  %v5185 = vtanh.pop %v5184
  %5187 = vrot.lane.b32.xlu0 %v5185, 32
  %v5188 = vpop.permute.xlu0 %5187
  %v5190 = vmul.f32 %v5172, %v5188
  %5192 = vrot.lane.b32.xlu0 %v5190, 64
  %v5193 = vpop.permute.xlu0 %5192
  %s5195 = scalar_lea.vmem [#allocation5], 88
  %5196 = vst.msk [vmem:[%s5195] sm:$0xff] %vm412, %v5193
  %s5197 = scalar_lea.vmem [#allocation4], 96
  %v5198 = vld [vmem:[%s5197] sm:$0xff]
  %v5199 = vsel %vm412, %v5193, 0
  %5201 = vmatprep.subr.mxu0 0.0
  %5202 = vmatpush1.msra.mxu0 0.0
  %5203 = vmatprep.subr.mxu0 0.0
  %5204 = vmatpush1.msra.mxu0 0.0
  %5205 = vmatprep.subr.mxu0 0.0
  %5206 = vmatpush1.msra.mxu0 0.0
  %5207 = vmatprep.subr.mxu0 0.0
  %5208 = vmatpush1.msra.mxu0 0.0
  %5209 = vmatprep.subr.mxu0 0.0
  %5210 = vmatpush1.msra.mxu0 0.0
  %5211 = vmatprep.subr.mxu0 0.0
  %5212 = vmatpush1.msra.mxu0 0.0
  %5213 = vmatprep.subr.mxu0 0.0
  %5214 = vmatpush1.msra.mxu0 0.0
  %5215 = vmatprep.subr.mxu0 0.0
  %5216 = vmatpush1.msra.mxu0 0.0
  %5217 = vmatprep.subr.mxu0 0.0
  %5218 = vmatpush1.msra.mxu0 0.0
  %5219 = vmatprep.subr.mxu0 0.0
  %5220 = vmatpush1.msra.mxu0 0.0
  %5221 = vmatprep.subr.mxu0 0.0
  %5222 = vmatpush1.msra.mxu0 0.0
  %5223 = vmatprep.subr.mxu0 0.0
  %5224 = vmatpush1.msra.mxu0 0.0
  %5225 = vmatprep.subr.mxu0 0.0
  %5226 = vmatpush1.msra.mxu0 %v3598
  %5227 = vmatprep.subr.mxu0 0.0
  %5228 = vmatpush1.msra.mxu0 %v3597
  %5229 = vmatprep.subr.mxu0 0.0
  %5230 = vmatpush1.msra.mxu0 %v3596
  %5231 = vmatprep.subr.mxu0 0.0
  %5232 = vmatpush1.msra.mxu0 %v3595
  %5233 = vmatprep.subr.mxu0 0.0
  %5234 = vmatpush2.msra.mxu0 0.0
  %5235 = vmatprep.subr.mxu0 0.0
  %5236 = vmatpush2.msra.mxu0 0.0
  %5237 = vmatprep.subr.mxu0 0.0
  %5238 = vmatpush2.msra.mxu0 0.0
  %5239 = vmatprep.subr.mxu0 0.0
  %5240 = vmatpush2.msra.mxu0 0.0
  %5241 = vmatprep.subr.mxu0 0.0
  %5242 = vmatpush2.msra.mxu0 0.0
  %5243 = vmatprep.subr.mxu0 0.0
  %5244 = vmatpush2.msra.mxu0 0.0
  %5245 = vmatprep.subr.mxu0 0.0
  %5246 = vmatpush2.msra.mxu0 0.0
  %5247 = vmatprep.subr.mxu0 0.0
  %5248 = vmatpush2.msra.mxu0 0.0
  %5249 = vmatprep.subr.mxu0 0.0
  %5250 = vmatpush2.msra.mxu0 0.0
  %5251 = vmatprep.subr.mxu0 0.0
  %5252 = vmatpush2.msra.mxu0 0.0
  %5253 = vmatprep.subr.mxu0 0.0
  %5254 = vmatpush2.msra.mxu0 0.0
  %5255 = vmatprep.subr.mxu0 0.0
  %5256 = vmatpush2.msra.mxu0 0.0
  %5257 = vmatprep.subr.mxu0 0.0
  %5258 = vmatpush2.msra.mxu0 0.0
  %5259 = vmatprep.subr.mxu0 0.0
  %5260 = vmatpush2.msra.mxu0 0.0
  %5261 = vmatprep.subr.mxu0 0.0
  %5262 = vmatpush2.msra.mxu0 0.0
  %5263 = vmatprep.subr.mxu0 0.0
  %5264 = vmatpush2.msra.mxu0 0.0
  %5265 = vmatprep.mubr.f32.mxu0 0.0
  %5266 = vmatmul.mubr.f32.gmra.mxu0 %v5199
  %v5267 = vpop.f32.mrf.mxu0
  %v5268 = vadd.f32 0.0, %v5267
  %v5269 = vpop.f32.mrf.mxu0
  %5270 = vdwg.mxu0
  %v5271 = vadd.f32 %v5198, %v5268
  %v5272 = vxor.u32 %v5271, 2147483648
  %v5273 = vmul.f32 %v5272, 1.442695
  %v5274 = vpow.pop %v5273
  %v5275 = vadd.f32 %v5274, 1.0
  %v5276 = vrcp.pop %v5275
  %v5277 = vmul.f32 1.0, %v5276
  %v5278 = vtanh.pop %v5271
  %v5279 = vmul.f32 %v5277, %v5184
  %5281 = vrot.lane.b32.xlu0 %v5278, 32
  %v5282 = vpop.permute.xlu0 %5281
  %v5284 = vmul.f32 %v5277, %v5282
  %5286 = vrot.lane.b32.xlu0 %v5284, 32
  %v5287 = vpop.permute.xlu0 %5286
  %v5289 = vadd.f32 %v5279, %v5287
  %v5290 = vtanh.pop %v5289
  %5292 = vrot.lane.b32.xlu0 %v5290, 32
  %v5293 = vpop.permute.xlu0 %5292
  %v5295 = vmul.f32 %v5277, %v5293
  %5297 = vrot.lane.b32.xlu0 %v5295, 64
  %v5298 = vpop.permute.xlu0 %5297
  %s5300 = scalar_lea.vmem [#allocation5], 96
  %5301 = vst.msk [vmem:[%s5300] sm:$0xff] %vm412, %v5298
  %s5302 = scalar_lea.vmem [#allocation4], 104
  %v5303 = vld [vmem:[%s5302] sm:$0xff]
  %v5304 = vsel %vm412, %v5298, 0
  %5306 = vmatprep.subr.mxu0 0.0
  %5307 = vmatpush1.msra.mxu0 0.0
  %5308 = vmatprep.subr.mxu0 0.0
  %5309 = vmatpush1.msra.mxu0 0.0
  %5310 = vmatprep.subr.mxu0 0.0
  %5311 = vmatpush1.msra.mxu0 0.0
  %5312 = vmatprep.subr.mxu0 0.0
  %5313 = vmatpush1.msra.mxu0 0.0
  %5314 = vmatprep.subr.mxu0 0.0
  %5315 = vmatpush1.msra.mxu0 0.0
  %5316 = vmatprep.subr.mxu0 0.0
  %5317 = vmatpush1.msra.mxu0 0.0
  %5318 = vmatprep.subr.mxu0 0.0
  %5319 = vmatpush1.msra.mxu0 0.0
  %5320 = vmatprep.subr.mxu0 0.0
  %5321 = vmatpush1.msra.mxu0 0.0
  %5322 = vmatprep.subr.mxu0 0.0
  %5323 = vmatpush1.msra.mxu0 0.0
  %5324 = vmatprep.subr.mxu0 0.0
  %5325 = vmatpush1.msra.mxu0 0.0
  %5326 = vmatprep.subr.mxu0 0.0
  %5327 = vmatpush1.msra.mxu0 0.0
  %5328 = vmatprep.subr.mxu0 0.0
  %5329 = vmatpush1.msra.mxu0 0.0
  %5330 = vmatprep.subr.mxu0 0.0
  %5331 = vmatpush1.msra.mxu0 %v3598
  %5332 = vmatprep.subr.mxu0 0.0
  %5333 = vmatpush1.msra.mxu0 %v3597
  %5334 = vmatprep.subr.mxu0 0.0
  %5335 = vmatpush1.msra.mxu0 %v3596
  %5336 = vmatprep.subr.mxu0 0.0
  %5337 = vmatpush1.msra.mxu0 %v3595
  %5338 = vmatprep.subr.mxu0 0.0
  %5339 = vmatpush2.msra.mxu0 0.0
  %5340 = vmatprep.subr.mxu0 0.0
  %5341 = vmatpush2.msra.mxu0 0.0
  %5342 = vmatprep.subr.mxu0 0.0
  %5343 = vmatpush2.msra.mxu0 0.0
  %5344 = vmatprep.subr.mxu0 0.0
  %5345 = vmatpush2.msra.mxu0 0.0
  %5346 = vmatprep.subr.mxu0 0.0
  %5347 = vmatpush2.msra.mxu0 0.0
  %5348 = vmatprep.subr.mxu0 0.0
  %5349 = vmatpush2.msra.mxu0 0.0
  %5350 = vmatprep.subr.mxu0 0.0
  %5351 = vmatpush2.msra.mxu0 0.0
  %5352 = vmatprep.subr.mxu0 0.0
  %5353 = vmatpush2.msra.mxu0 0.0
  %5354 = vmatprep.subr.mxu0 0.0
  %5355 = vmatpush2.msra.mxu0 0.0
  %5356 = vmatprep.subr.mxu0 0.0
  %5357 = vmatpush2.msra.mxu0 0.0
  %5358 = vmatprep.subr.mxu0 0.0
  %5359 = vmatpush2.msra.mxu0 0.0
  %5360 = vmatprep.subr.mxu0 0.0
  %5361 = vmatpush2.msra.mxu0 0.0
  %5362 = vmatprep.subr.mxu0 0.0
  %5363 = vmatpush2.msra.mxu0 0.0
  %5364 = vmatprep.subr.mxu0 0.0
  %5365 = vmatpush2.msra.mxu0 0.0
  %5366 = vmatprep.subr.mxu0 0.0
  %5367 = vmatpush2.msra.mxu0 0.0
  %5368 = vmatprep.subr.mxu0 0.0
  %5369 = vmatpush2.msra.mxu0 0.0
  %5370 = vmatprep.mubr.f32.mxu0 0.0
  %5371 = vmatmul.mubr.f32.gmra.mxu0 %v5304
  %v5372 = vpop.f32.mrf.mxu0
  %v5373 = vadd.f32 0.0, %v5372
  %v5374 = vpop.f32.mrf.mxu0
  %5375 = vdwg.mxu0
  %v5376 = vadd.f32 %v5303, %v5373
  %v5377 = vxor.u32 %v5376, 2147483648
  %v5378 = vmul.f32 %v5377, 1.442695
  %v5379 = vpow.pop %v5378
  %v5380 = vadd.f32 %v5379, 1.0
  %v5381 = vrcp.pop %v5380
  %v5382 = vmul.f32 1.0, %v5381
  %v5383 = vtanh.pop %v5376
  %v5384 = vmul.f32 %v5382, %v5289
  %5386 = vrot.lane.b32.xlu0 %v5383, 32
  %v5387 = vpop.permute.xlu0 %5386
  %v5389 = vmul.f32 %v5382, %v5387
  %5391 = vrot.lane.b32.xlu0 %v5389, 32
  %v5392 = vpop.permute.xlu0 %5391
  %v5394 = vadd.f32 %v5384, %v5392
  %v5395 = vtanh.pop %v5394
  %5397 = vrot.lane.b32.xlu0 %v5395, 32
  %v5398 = vpop.permute.xlu0 %5397
  %v5400 = vmul.f32 %v5382, %v5398
  %5402 = vrot.lane.b32.xlu0 %v5400, 64
  %v5403 = vpop.permute.xlu0 %5402
  %s5405 = scalar_lea.vmem [#allocation5], 104
  %5406 = vst.msk [vmem:[%s5405] sm:$0xff] %vm412, %v5403
  %s5407 = scalar_lea.vmem [#allocation4], 112
  %v5408 = vld [vmem:[%s5407] sm:$0xff]
  %v5409 = vsel %vm412, %v5403, 0
  %5411 = vmatprep.subr.mxu0 0.0
  %5412 = vmatpush1.msra.mxu0 0.0
  %5413 = vmatprep.subr.mxu0 0.0
  %5414 = vmatpush1.msra.mxu0 0.0
  %5415 = vmatprep.subr.mxu0 0.0
  %5416 = vmatpush1.msra.mxu0 0.0
  %5417 = vmatprep.subr.mxu0 0.0
  %5418 = vmatpush1.msra.mxu0 0.0
  %5419 = vmatprep.subr.mxu0 0.0
  %5420 = vmatpush1.msra.mxu0 0.0
  %5421 = vmatprep.subr.mxu0 0.0
  %5422 = vmatpush1.msra.mxu0 0.0
  %5423 = vmatprep.subr.mxu0 0.0
  %5424 = vmatpush1.msra.mxu0 0.0
  %5425 = vmatprep.subr.mxu0 0.0
  %5426 = vmatpush1.msra.mxu0 0.0
  %5427 = vmatprep.subr.mxu0 0.0
  %5428 = vmatpush1.msra.mxu0 0.0
  %5429 = vmatprep.subr.mxu0 0.0
  %5430 = vmatpush1.msra.mxu0 0.0
  %5431 = vmatprep.subr.mxu0 0.0
  %5432 = vmatpush1.msra.mxu0 0.0
  %5433 = vmatprep.subr.mxu0 0.0
  %5434 = vmatpush1.msra.mxu0 0.0
  %5435 = vmatprep.subr.mxu0 0.0
  %5436 = vmatpush1.msra.mxu0 %v3598
  %5437 = vmatprep.subr.mxu0 0.0
  %5438 = vmatpush1.msra.mxu0 %v3597
  %5439 = vmatprep.subr.mxu0 0.0
  %5440 = vmatpush1.msra.mxu0 %v3596
  %5441 = vmatprep.subr.mxu0 0.0
  %5442 = vmatpush1.msra.mxu0 %v3595
  %5443 = vmatprep.subr.mxu0 0.0
  %5444 = vmatpush2.msra.mxu0 0.0
  %5445 = vmatprep.subr.mxu0 0.0
  %5446 = vmatpush2.msra.mxu0 0.0
  %5447 = vmatprep.subr.mxu0 0.0
  %5448 = vmatpush2.msra.mxu0 0.0
  %5449 = vmatprep.subr.mxu0 0.0
  %5450 = vmatpush2.msra.mxu0 0.0
  %5451 = vmatprep.subr.mxu0 0.0
  %5452 = vmatpush2.msra.mxu0 0.0
  %5453 = vmatprep.subr.mxu0 0.0
  %5454 = vmatpush2.msra.mxu0 0.0
  %5455 = vmatprep.subr.mxu0 0.0
  %5456 = vmatpush2.msra.mxu0 0.0
  %5457 = vmatprep.subr.mxu0 0.0
  %5458 = vmatpush2.msra.mxu0 0.0
  %5459 = vmatprep.subr.mxu0 0.0
  %5460 = vmatpush2.msra.mxu0 0.0
  %5461 = vmatprep.subr.mxu0 0.0
  %5462 = vmatpush2.msra.mxu0 0.0
  %5463 = vmatprep.subr.mxu0 0.0
  %5464 = vmatpush2.msra.mxu0 0.0
  %5465 = vmatprep.subr.mxu0 0.0
  %5466 = vmatpush2.msra.mxu0 0.0
  %5467 = vmatprep.subr.mxu0 0.0
  %5468 = vmatpush2.msra.mxu0 0.0
  %5469 = vmatprep.subr.mxu0 0.0
  %5470 = vmatpush2.msra.mxu0 0.0
  %5471 = vmatprep.subr.mxu0 0.0
  %5472 = vmatpush2.msra.mxu0 0.0
  %5473 = vmatprep.subr.mxu0 0.0
  %5474 = vmatpush2.msra.mxu0 0.0
  %5475 = vmatprep.mubr.f32.mxu0 0.0
  %5476 = vmatmul.mubr.f32.gmra.mxu0 %v5409
  %v5477 = vpop.f32.mrf.mxu0
  %v5478 = vadd.f32 0.0, %v5477
  %v5479 = vpop.f32.mrf.mxu0
  %5480 = vdwg.mxu0
  %v5481 = vadd.f32 %v5408, %v5478
  %v5482 = vxor.u32 %v5481, 2147483648
  %v5483 = vmul.f32 %v5482, 1.442695
  %v5484 = vpow.pop %v5483
  %v5485 = vadd.f32 %v5484, 1.0
  %v5486 = vrcp.pop %v5485
  %v5487 = vmul.f32 1.0, %v5486
  %v5488 = vtanh.pop %v5481
  %v5489 = vmul.f32 %v5487, %v5394
  %5491 = vrot.lane.b32.xlu0 %v5488, 32
  %v5492 = vpop.permute.xlu0 %5491
  %v5494 = vmul.f32 %v5487, %v5492
  %5496 = vrot.lane.b32.xlu0 %v5494, 32
  %v5497 = vpop.permute.xlu0 %5496
  %v5499 = vadd.f32 %v5489, %v5497
  %v5500 = vtanh.pop %v5499
  %5502 = vrot.lane.b32.xlu0 %v5500, 32
  %v5503 = vpop.permute.xlu0 %5502
  %v5505 = vmul.f32 %v5487, %v5503
  %5507 = vrot.lane.b32.xlu0 %v5505, 64
  %v5508 = vpop.permute.xlu0 %5507
  %s5510 = scalar_lea.vmem [#allocation5], 112
  %5511 = vst.msk [vmem:[%s5510] sm:$0xff] %vm412, %v5508
  %s5512 = scalar_lea.vmem [#allocation4], 120
  %v5513 = vld [vmem:[%s5512] sm:$0xff]
  %v5514 = vsel %vm412, %v5508, 0
  %5516 = vmatprep.subr.mxu0 0.0
  %5517 = vmatpush1.msra.mxu0 0.0
  %5518 = vmatprep.subr.mxu0 0.0
  %5519 = vmatpush1.msra.mxu0 0.0
  %5520 = vmatprep.subr.mxu0 0.0
  %5521 = vmatpush1.msra.mxu0 0.0
  %5522 = vmatprep.subr.mxu0 0.0
  %5523 = vmatpush1.msra.mxu0 0.0
  %5524 = vmatprep.subr.mxu0 0.0
  %5525 = vmatpush1.msra.mxu0 0.0
  %5526 = vmatprep.subr.mxu0 0.0
  %5527 = vmatpush1.msra.mxu0 0.0
  %5528 = vmatprep.subr.mxu0 0.0
  %5529 = vmatpush1.msra.mxu0 0.0
  %5530 = vmatprep.subr.mxu0 0.0
  %5531 = vmatpush1.msra.mxu0 0.0
  %5532 = vmatprep.subr.mxu0 0.0
  %5533 = vmatpush1.msra.mxu0 0.0
  %5534 = vmatprep.subr.mxu0 0.0
  %5535 = vmatpush1.msra.mxu0 0.0
  %5536 = vmatprep.subr.mxu0 0.0
  %5537 = vmatpush1.msra.mxu0 0.0
  %5538 = vmatprep.subr.mxu0 0.0
  %5539 = vmatpush1.msra.mxu0 0.0
  %5540 = vmatprep.subr.mxu0 0.0
  %5541 = vmatpush1.msra.mxu0 %v3598
  %5542 = vmatprep.subr.mxu0 0.0
  %5543 = vmatpush1.msra.mxu0 %v3597
  %5544 = vmatprep.subr.mxu0 0.0
  %5545 = vmatpush1.msra.mxu0 %v3596
  %5546 = vmatprep.subr.mxu0 0.0
  %5547 = vmatpush1.msra.mxu0 %v3595
  %5548 = vmatprep.subr.mxu0 0.0
  %5549 = vmatpush2.msra.mxu0 0.0
  %5550 = vmatprep.subr.mxu0 0.0
  %5551 = vmatpush2.msra.mxu0 0.0
  %5552 = vmatprep.subr.mxu0 0.0
  %5553 = vmatpush2.msra.mxu0 0.0
  %5554 = vmatprep.subr.mxu0 0.0
  %5555 = vmatpush2.msra.mxu0 0.0
  %5556 = vmatprep.subr.mxu0 0.0
  %5557 = vmatpush2.msra.mxu0 0.0
  %5558 = vmatprep.subr.mxu0 0.0
  %5559 = vmatpush2.msra.mxu0 0.0
  %5560 = vmatprep.subr.mxu0 0.0
  %5561 = vmatpush2.msra.mxu0 0.0
  %5562 = vmatprep.subr.mxu0 0.0
  %5563 = vmatpush2.msra.mxu0 0.0
  %5564 = vmatprep.subr.mxu0 0.0
  %5565 = vmatpush2.msra.mxu0 0.0
  %5566 = vmatprep.subr.mxu0 0.0
  %5567 = vmatpush2.msra.mxu0 0.0
  %5568 = vmatprep.subr.mxu0 0.0
  %5569 = vmatpush2.msra.mxu0 0.0
  %5570 = vmatprep.subr.mxu0 0.0
  %5571 = vmatpush2.msra.mxu0 0.0
  %5572 = vmatprep.subr.mxu0 0.0
  %5573 = vmatpush2.msra.mxu0 0.0
  %5574 = vmatprep.subr.mxu0 0.0
  %5575 = vmatpush2.msra.mxu0 0.0
  %5576 = vmatprep.subr.mxu0 0.0
  %5577 = vmatpush2.msra.mxu0 0.0
  %5578 = vmatprep.subr.mxu0 0.0
  %5579 = vmatpush2.msra.mxu0 0.0
  %5580 = vmatprep.mubr.f32.mxu0 0.0
  %5581 = vmatmul.mubr.f32.gmra.mxu0 %v5514
  %v5582 = vpop.f32.mrf.mxu0
  %v5583 = vadd.f32 0.0, %v5582
  %v5584 = vpop.f32.mrf.mxu0
  %5585 = vdwg.mxu0
  %v5586 = vadd.f32 %v5513, %v5583
  %v5587 = vxor.u32 %v5586, 2147483648
  %v5588 = vmul.f32 %v5587, 1.442695
  %v5589 = vpow.pop %v5588
  %v5590 = vadd.f32 %v5589, 1.0
  %v5591 = vrcp.pop %v5590
  %v5592 = vmul.f32 1.0, %v5591
  %v5593 = vtanh.pop %v5586
  %v5594 = vmul.f32 %v5592, %v5499
  %5596 = vrot.lane.b32.xlu0 %v5593, 32
  %v5597 = vpop.permute.xlu0 %5596
  %v5599 = vmul.f32 %v5592, %v5597
  %5601 = vrot.lane.b32.xlu0 %v5599, 32
  %v5602 = vpop.permute.xlu0 %5601
  %v5604 = vadd.f32 %v5594, %v5602
  %v5605 = vtanh.pop %v5604
  %5607 = vrot.lane.b32.xlu0 %v5605, 32
  %v5608 = vpop.permute.xlu0 %5607
  %v5610 = vmul.f32 %v5592, %v5608
  %5612 = vrot.lane.b32.xlu0 %v5610, 64
  %v5613 = vpop.permute.xlu0 %5612
  %s5615 = scalar_lea.vmem [#allocation5], 120
  %5616 = vst.msk [vmem:[%s5615] sm:$0xff] %vm412, %v5613
  %s5617 = scalar_lea.vmem [#allocation4], 128
  %v5618 = vld [vmem:[%s5617] sm:$0xff]
  %v5619 = vsel %vm412, %v5613, 0
  %5621 = vmatprep.subr.mxu0 0.0
  %5622 = vmatpush1.msra.mxu0 0.0
  %5623 = vmatprep.subr.mxu0 0.0
  %5624 = vmatpush1.msra.mxu0 0.0
  %5625 = vmatprep.subr.mxu0 0.0
  %5626 = vmatpush1.msra.mxu0 0.0
  %5627 = vmatprep.subr.mxu0 0.0
  %5628 = vmatpush1.msra.mxu0 0.0
  %5629 = vmatprep.subr.mxu0 0.0
  %5630 = vmatpush1.msra.mxu0 0.0
  %5631 = vmatprep.subr.mxu0 0.0
  %5632 = vmatpush1.msra.mxu0 0.0
  %5633 = vmatprep.subr.mxu0 0.0
  %5634 = vmatpush1.msra.mxu0 0.0
  %5635 = vmatprep.subr.mxu0 0.0
  %5636 = vmatpush1.msra.mxu0 0.0
  %5637 = vmatprep.subr.mxu0 0.0
  %5638 = vmatpush1.msra.mxu0 0.0
  %5639 = vmatprep.subr.mxu0 0.0
  %5640 = vmatpush1.msra.mxu0 0.0
  %5641 = vmatprep.subr.mxu0 0.0
  %5642 = vmatpush1.msra.mxu0 0.0
  %5643 = vmatprep.subr.mxu0 0.0
  %5644 = vmatpush1.msra.mxu0 0.0
  %5645 = vmatprep.subr.mxu0 0.0
  %5646 = vmatpush1.msra.mxu0 %v3598
  %5647 = vmatprep.subr.mxu0 0.0
  %5648 = vmatpush1.msra.mxu0 %v3597
  %5649 = vmatprep.subr.mxu0 0.0
  %5650 = vmatpush1.msra.mxu0 %v3596
  %5651 = vmatprep.subr.mxu0 0.0
  %5652 = vmatpush1.msra.mxu0 %v3595
  %5653 = vmatprep.subr.mxu0 0.0
  %5654 = vmatpush2.msra.mxu0 0.0
  %5655 = vmatprep.subr.mxu0 0.0
  %5656 = vmatpush2.msra.mxu0 0.0
  %5657 = vmatprep.subr.mxu0 0.0
  %5658 = vmatpush2.msra.mxu0 0.0
  %5659 = vmatprep.subr.mxu0 0.0
  %5660 = vmatpush2.msra.mxu0 0.0
  %5661 = vmatprep.subr.mxu0 0.0
  %5662 = vmatpush2.msra.mxu0 0.0
  %5663 = vmatprep.subr.mxu0 0.0
  %5664 = vmatpush2.msra.mxu0 0.0
  %5665 = vmatprep.subr.mxu0 0.0
  %5666 = vmatpush2.msra.mxu0 0.0
  %5667 = vmatprep.subr.mxu0 0.0
  %5668 = vmatpush2.msra.mxu0 0.0
  %5669 = vmatprep.subr.mxu0 0.0
  %5670 = vmatpush2.msra.mxu0 0.0
  %5671 = vmatprep.subr.mxu0 0.0
  %5672 = vmatpush2.msra.mxu0 0.0
  %5673 = vmatprep.subr.mxu0 0.0
  %5674 = vmatpush2.msra.mxu0 0.0
  %5675 = vmatprep.subr.mxu0 0.0
  %5676 = vmatpush2.msra.mxu0 0.0
  %5677 = vmatprep.subr.mxu0 0.0
  %5678 = vmatpush2.msra.mxu0 0.0
  %5679 = vmatprep.subr.mxu0 0.0
  %5680 = vmatpush2.msra.mxu0 0.0
  %5681 = vmatprep.subr.mxu0 0.0
  %5682 = vmatpush2.msra.mxu0 0.0
  %5683 = vmatprep.subr.mxu0 0.0
  %5684 = vmatpush2.msra.mxu0 0.0
  %5685 = vmatprep.mubr.f32.mxu0 0.0
  %5686 = vmatmul.mubr.f32.gmra.mxu0 %v5619
  %v5687 = vpop.f32.mrf.mxu0
  %v5688 = vadd.f32 0.0, %v5687
  %v5689 = vpop.f32.mrf.mxu0
  %5690 = vdwg.mxu0
  %v5691 = vadd.f32 %v5618, %v5688
  %v5692 = vxor.u32 %v5691, 2147483648
  %v5693 = vmul.f32 %v5692, 1.442695
  %v5694 = vpow.pop %v5693
  %v5695 = vadd.f32 %v5694, 1.0
  %v5696 = vrcp.pop %v5695
  %v5697 = vmul.f32 1.0, %v5696
  %v5698 = vtanh.pop %v5691
  %v5699 = vmul.f32 %v5697, %v5604
  %5701 = vrot.lane.b32.xlu0 %v5698, 32
  %v5702 = vpop.permute.xlu0 %5701
  %v5704 = vmul.f32 %v5697, %v5702
  %5706 = vrot.lane.b32.xlu0 %v5704, 32
  %v5707 = vpop.permute.xlu0 %5706
  %v5709 = vadd.f32 %v5699, %v5707
  %v5710 = vtanh.pop %v5709
  %5712 = vrot.lane.b32.xlu0 %v5710, 32
  %v5713 = vpop.permute.xlu0 %5712
  %v5715 = vmul.f32 %v5697, %v5713
  %5717 = vrot.lane.b32.xlu0 %v5715, 64
  %v5718 = vpop.permute.xlu0 %5717
  %s5720 = scalar_lea.vmem [#allocation5], 128
  %5721 = vst.msk [vmem:[%s5720] sm:$0xff] %vm412, %v5718
  %s5722 = scalar_lea.vmem [#allocation4], 136
  %v5723 = vld [vmem:[%s5722] sm:$0xff]
  %v5724 = vsel %vm412, %v5718, 0
  %5726 = vmatprep.subr.mxu0 0.0
  %5727 = vmatpush1.msra.mxu0 0.0
  %5728 = vmatprep.subr.mxu0 0.0
  %5729 = vmatpush1.msra.mxu0 0.0
  %5730 = vmatprep.subr.mxu0 0.0
  %5731 = vmatpush1.msra.mxu0 0.0
  %5732 = vmatprep.subr.mxu0 0.0
  %5733 = vmatpush1.msra.mxu0 0.0
  %5734 = vmatprep.subr.mxu0 0.0
  %5735 = vmatpush1.msra.mxu0 0.0
  %5736 = vmatprep.subr.mxu0 0.0
  %5737 = vmatpush1.msra.mxu0 0.0
  %5738 = vmatprep.subr.mxu0 0.0
  %5739 = vmatpush1.msra.mxu0 0.0
  %5740 = vmatprep.subr.mxu0 0.0
  %5741 = vmatpush1.msra.mxu0 0.0
  %5742 = vmatprep.subr.mxu0 0.0
  %5743 = vmatpush1.msra.mxu0 0.0
  %5744 = vmatprep.subr.mxu0 0.0
  %5745 = vmatpush1.msra.mxu0 0.0
  %5746 = vmatprep.subr.mxu0 0.0
  %5747 = vmatpush1.msra.mxu0 0.0
  %5748 = vmatprep.subr.mxu0 0.0
  %5749 = vmatpush1.msra.mxu0 0.0
  %5750 = vmatprep.subr.mxu0 0.0
  %5751 = vmatpush1.msra.mxu0 %v3598
  %5752 = vmatprep.subr.mxu0 0.0
  %5753 = vmatpush1.msra.mxu0 %v3597
  %5754 = vmatprep.subr.mxu0 0.0
  %5755 = vmatpush1.msra.mxu0 %v3596
  %5756 = vmatprep.subr.mxu0 0.0
  %5757 = vmatpush1.msra.mxu0 %v3595
  %5758 = vmatprep.subr.mxu0 0.0
  %5759 = vmatpush2.msra.mxu0 0.0
  %5760 = vmatprep.subr.mxu0 0.0
  %5761 = vmatpush2.msra.mxu0 0.0
  %5762 = vmatprep.subr.mxu0 0.0
  %5763 = vmatpush2.msra.mxu0 0.0
  %5764 = vmatprep.subr.mxu0 0.0
  %5765 = vmatpush2.msra.mxu0 0.0
  %5766 = vmatprep.subr.mxu0 0.0
  %5767 = vmatpush2.msra.mxu0 0.0
  %5768 = vmatprep.subr.mxu0 0.0
  %5769 = vmatpush2.msra.mxu0 0.0
  %5770 = vmatprep.subr.mxu0 0.0
  %5771 = vmatpush2.msra.mxu0 0.0
  %5772 = vmatprep.subr.mxu0 0.0
  %5773 = vmatpush2.msra.mxu0 0.0
  %5774 = vmatprep.subr.mxu0 0.0
  %5775 = vmatpush2.msra.mxu0 0.0
  %5776 = vmatprep.subr.mxu0 0.0
  %5777 = vmatpush2.msra.mxu0 0.0
  %5778 = vmatprep.subr.mxu0 0.0
  %5779 = vmatpush2.msra.mxu0 0.0
  %5780 = vmatprep.subr.mxu0 0.0
  %5781 = vmatpush2.msra.mxu0 0.0
  %5782 = vmatprep.subr.mxu0 0.0
  %5783 = vmatpush2.msra.mxu0 0.0
  %5784 = vmatprep.subr.mxu0 0.0
  %5785 = vmatpush2.msra.mxu0 0.0
  %5786 = vmatprep.subr.mxu0 0.0
  %5787 = vmatpush2.msra.mxu0 0.0
  %5788 = vmatprep.subr.mxu0 0.0
  %5789 = vmatpush2.msra.mxu0 0.0
  %5790 = vmatprep.mubr.f32.mxu0 0.0
  %5791 = vmatmul.mubr.f32.gmra.mxu0 %v5724
  %v5792 = vpop.f32.mrf.mxu0
  %v5793 = vadd.f32 0.0, %v5792
  %v5794 = vpop.f32.mrf.mxu0
  %5795 = vdwg.mxu0
  %v5796 = vadd.f32 %v5723, %v5793
  %v5797 = vxor.u32 %v5796, 2147483648
  %v5798 = vmul.f32 %v5797, 1.442695
  %v5799 = vpow.pop %v5798
  %v5800 = vadd.f32 %v5799, 1.0
  %v5801 = vrcp.pop %v5800
  %v5802 = vmul.f32 1.0, %v5801
  %v5803 = vtanh.pop %v5796
  %v5804 = vmul.f32 %v5802, %v5709
  %5806 = vrot.lane.b32.xlu0 %v5803, 32
  %v5807 = vpop.permute.xlu0 %5806
  %v5809 = vmul.f32 %v5802, %v5807
  %5811 = vrot.lane.b32.xlu0 %v5809, 32
  %v5812 = vpop.permute.xlu0 %5811
  %v5814 = vadd.f32 %v5804, %v5812
  %v5815 = vtanh.pop %v5814
  %5817 = vrot.lane.b32.xlu0 %v5815, 32
  %v5818 = vpop.permute.xlu0 %5817
  %v5820 = vmul.f32 %v5802, %v5818
  %5822 = vrot.lane.b32.xlu0 %v5820, 64
  %v5823 = vpop.permute.xlu0 %5822
  %s5825 = scalar_lea.vmem [#allocation5], 136
  %5826 = vst.msk [vmem:[%s5825] sm:$0xff] %vm412, %v5823
  %s5827 = scalar_lea.vmem [#allocation4], 144
  %v5828 = vld [vmem:[%s5827] sm:$0xff]
  %v5829 = vsel %vm412, %v5823, 0
  %5831 = vmatprep.subr.mxu0 0.0
  %5832 = vmatpush1.msra.mxu0 0.0
  %5833 = vmatprep.subr.mxu0 0.0
  %5834 = vmatpush1.msra.mxu0 0.0
  %5835 = vmatprep.subr.mxu0 0.0
  %5836 = vmatpush1.msra.mxu0 0.0
  %5837 = vmatprep.subr.mxu0 0.0
  %5838 = vmatpush1.msra.mxu0 0.0
  %5839 = vmatprep.subr.mxu0 0.0
  %5840 = vmatpush1.msra.mxu0 0.0
  %5841 = vmatprep.subr.mxu0 0.0
  %5842 = vmatpush1.msra.mxu0 0.0
  %5843 = vmatprep.subr.mxu0 0.0
  %5844 = vmatpush1.msra.mxu0 0.0
  %5845 = vmatprep.subr.mxu0 0.0
  %5846 = vmatpush1.msra.mxu0 0.0
  %5847 = vmatprep.subr.mxu0 0.0
  %5848 = vmatpush1.msra.mxu0 0.0
  %5849 = vmatprep.subr.mxu0 0.0
  %5850 = vmatpush1.msra.mxu0 0.0
  %5851 = vmatprep.subr.mxu0 0.0
  %5852 = vmatpush1.msra.mxu0 0.0
  %5853 = vmatprep.subr.mxu0 0.0
  %5854 = vmatpush1.msra.mxu0 0.0
  %5855 = vmatprep.subr.mxu0 0.0
  %5856 = vmatpush1.msra.mxu0 %v3598
  %5857 = vmatprep.subr.mxu0 0.0
  %5858 = vmatpush1.msra.mxu0 %v3597
  %5859 = vmatprep.subr.mxu0 0.0
  %5860 = vmatpush1.msra.mxu0 %v3596
  %5861 = vmatprep.subr.mxu0 0.0
  %5862 = vmatpush1.msra.mxu0 %v3595
  %5863 = vmatprep.subr.mxu0 0.0
  %5864 = vmatpush2.msra.mxu0 0.0
  %5865 = vmatprep.subr.mxu0 0.0
  %5866 = vmatpush2.msra.mxu0 0.0
  %5867 = vmatprep.subr.mxu0 0.0
  %5868 = vmatpush2.msra.mxu0 0.0
  %5869 = vmatprep.subr.mxu0 0.0
  %5870 = vmatpush2.msra.mxu0 0.0
  %5871 = vmatprep.subr.mxu0 0.0
  %5872 = vmatpush2.msra.mxu0 0.0
  %5873 = vmatprep.subr.mxu0 0.0
  %5874 = vmatpush2.msra.mxu0 0.0
  %5875 = vmatprep.subr.mxu0 0.0
  %5876 = vmatpush2.msra.mxu0 0.0
  %5877 = vmatprep.subr.mxu0 0.0
  %5878 = vmatpush2.msra.mxu0 0.0
  %5879 = vmatprep.subr.mxu0 0.0
  %5880 = vmatpush2.msra.mxu0 0.0
  %5881 = vmatprep.subr.mxu0 0.0
  %5882 = vmatpush2.msra.mxu0 0.0
  %5883 = vmatprep.subr.mxu0 0.0
  %5884 = vmatpush2.msra.mxu0 0.0
  %5885 = vmatprep.subr.mxu0 0.0
  %5886 = vmatpush2.msra.mxu0 0.0
  %5887 = vmatprep.subr.mxu0 0.0
  %5888 = vmatpush2.msra.mxu0 0.0
  %5889 = vmatprep.subr.mxu0 0.0
  %5890 = vmatpush2.msra.mxu0 0.0
  %5891 = vmatprep.subr.mxu0 0.0
  %5892 = vmatpush2.msra.mxu0 0.0
  %5893 = vmatprep.subr.mxu0 0.0
  %5894 = vmatpush2.msra.mxu0 0.0
  %5895 = vmatprep.mubr.f32.mxu0 0.0
  %5896 = vmatmul.mubr.f32.gmra.mxu0 %v5829
  %v5897 = vpop.f32.mrf.mxu0
  %v5898 = vadd.f32 0.0, %v5897
  %v5899 = vpop.f32.mrf.mxu0
  %5900 = vdwg.mxu0
  %v5901 = vadd.f32 %v5828, %v5898
  %v5902 = vxor.u32 %v5901, 2147483648
  %v5903 = vmul.f32 %v5902, 1.442695
  %v5904 = vpow.pop %v5903
  %v5905 = vadd.f32 %v5904, 1.0
  %v5906 = vrcp.pop %v5905
  %v5907 = vmul.f32 1.0, %v5906
  %v5908 = vtanh.pop %v5901
  %v5909 = vmul.f32 %v5907, %v5814
  %5911 = vrot.lane.b32.xlu0 %v5908, 32
  %v5912 = vpop.permute.xlu0 %5911
  %v5914 = vmul.f32 %v5907, %v5912
  %5916 = vrot.lane.b32.xlu0 %v5914, 32
  %v5917 = vpop.permute.xlu0 %5916
  %v5919 = vadd.f32 %v5909, %v5917
  %v5920 = vtanh.pop %v5919
  %5922 = vrot.lane.b32.xlu0 %v5920, 32
  %v5923 = vpop.permute.xlu0 %5922
  %v5925 = vmul.f32 %v5907, %v5923
  %5927 = vrot.lane.b32.xlu0 %v5925, 64
  %v5928 = vpop.permute.xlu0 %5927
  %s5930 = scalar_lea.vmem [#allocation5], 144
  %5931 = vst.msk [vmem:[%s5930] sm:$0xff] %vm412, %v5928
  %s5932 = scalar_lea.vmem [#allocation4], 152
  %v5933 = vld [vmem:[%s5932] sm:$0xff]
  %v5934 = vsel %vm412, %v5928, 0
  %5936 = vmatprep.subr.mxu0 0.0
  %5937 = vmatpush1.msra.mxu0 0.0
  %5938 = vmatprep.subr.mxu0 0.0
  %5939 = vmatpush1.msra.mxu0 0.0
  %5940 = vmatprep.subr.mxu0 0.0
  %5941 = vmatpush1.msra.mxu0 0.0
  %5942 = vmatprep.subr.mxu0 0.0
  %5943 = vmatpush1.msra.mxu0 0.0
  %5944 = vmatprep.subr.mxu0 0.0
  %5945 = vmatpush1.msra.mxu0 0.0
  %5946 = vmatprep.subr.mxu0 0.0
  %5947 = vmatpush1.msra.mxu0 0.0
  %5948 = vmatprep.subr.mxu0 0.0
  %5949 = vmatpush1.msra.mxu0 0.0
  %5950 = vmatprep.subr.mxu0 0.0
  %5951 = vmatpush1.msra.mxu0 0.0
  %5952 = vmatprep.subr.mxu0 0.0
  %5953 = vmatpush1.msra.mxu0 0.0
  %5954 = vmatprep.subr.mxu0 0.0
  %5955 = vmatpush1.msra.mxu0 0.0
  %5956 = vmatprep.subr.mxu0 0.0
  %5957 = vmatpush1.msra.mxu0 0.0
  %5958 = vmatprep.subr.mxu0 0.0
  %5959 = vmatpush1.msra.mxu0 0.0
  %5960 = vmatprep.subr.mxu0 0.0
  %5961 = vmatpush1.msra.mxu0 %v3598
  %5962 = vmatprep.subr.mxu0 0.0
  %5963 = vmatpush1.msra.mxu0 %v3597
  %5964 = vmatprep.subr.mxu0 0.0
  %5965 = vmatpush1.msra.mxu0 %v3596
  %5966 = vmatprep.subr.mxu0 0.0
  %5967 = vmatpush1.msra.mxu0 %v3595
  %5968 = vmatprep.subr.mxu0 0.0
  %5969 = vmatpush2.msra.mxu0 0.0
  %5970 = vmatprep.subr.mxu0 0.0
  %5971 = vmatpush2.msra.mxu0 0.0
  %5972 = vmatprep.subr.mxu0 0.0
  %5973 = vmatpush2.msra.mxu0 0.0
  %5974 = vmatprep.subr.mxu0 0.0
  %5975 = vmatpush2.msra.mxu0 0.0
  %5976 = vmatprep.subr.mxu0 0.0
  %5977 = vmatpush2.msra.mxu0 0.0
  %5978 = vmatprep.subr.mxu0 0.0
  %5979 = vmatpush2.msra.mxu0 0.0
  %5980 = vmatprep.subr.mxu0 0.0
  %5981 = vmatpush2.msra.mxu0 0.0
  %5982 = vmatprep.subr.mxu0 0.0
  %5983 = vmatpush2.msra.mxu0 0.0
  %5984 = vmatprep.subr.mxu0 0.0
  %5985 = vmatpush2.msra.mxu0 0.0
  %5986 = vmatprep.subr.mxu0 0.0
  %5987 = vmatpush2.msra.mxu0 0.0
  %5988 = vmatprep.subr.mxu0 0.0
  %5989 = vmatpush2.msra.mxu0 0.0
  %5990 = vmatprep.subr.mxu0 0.0
  %5991 = vmatpush2.msra.mxu0 0.0
  %5992 = vmatprep.subr.mxu0 0.0
  %5993 = vmatpush2.msra.mxu0 0.0
  %5994 = vmatprep.subr.mxu0 0.0
  %5995 = vmatpush2.msra.mxu0 0.0
  %5996 = vmatprep.subr.mxu0 0.0
  %5997 = vmatpush2.msra.mxu0 0.0
  %5998 = vmatprep.subr.mxu0 0.0
  %5999 = vmatpush2.msra.mxu0 0.0
  %6000 = vmatprep.mubr.f32.mxu0 0.0
  %6001 = vmatmul.mubr.f32.gmra.mxu0 %v5934
  %v6002 = vpop.f32.mrf.mxu0
  %v6003 = vadd.f32 0.0, %v6002
  %v6004 = vpop.f32.mrf.mxu0
  %6005 = vdwg.mxu0
  %v6006 = vadd.f32 %v5933, %v6003
  %v6007 = vxor.u32 %v6006, 2147483648
  %v6008 = vmul.f32 %v6007, 1.442695
  %v6009 = vpow.pop %v6008
  %v6010 = vadd.f32 %v6009, 1.0
  %v6011 = vrcp.pop %v6010
  %v6012 = vmul.f32 1.0, %v6011
  %v6013 = vtanh.pop %v6006
  %v6014 = vmul.f32 %v6012, %v5919
  %6016 = vrot.lane.b32.xlu0 %v6013, 32
  %v6017 = vpop.permute.xlu0 %6016
  %v6019 = vmul.f32 %v6012, %v6017
  %6021 = vrot.lane.b32.xlu0 %v6019, 32
  %v6022 = vpop.permute.xlu0 %6021
  %v6024 = vadd.f32 %v6014, %v6022
  %v6025 = vtanh.pop %v6024
  %6027 = vrot.lane.b32.xlu0 %v6025, 32
  %v6028 = vpop.permute.xlu0 %6027
  %v6030 = vmul.f32 %v6012, %v6028
  %6032 = vrot.lane.b32.xlu0 %v6030, 64
  %v6033 = vpop.permute.xlu0 %6032
  %s6035 = scalar_lea.vmem [#allocation5], 152
  %6036 = vst.msk [vmem:[%s6035] sm:$0xff] %vm412, %v6033
  %s6037 = scalar_lea.vmem [#allocation4], 160
  %v6038 = vld [vmem:[%s6037] sm:$0xff]
  %v6039 = vsel %vm412, %v6033, 0
  %6041 = vmatprep.subr.mxu0 0.0
  %6042 = vmatpush1.msra.mxu0 0.0
  %6043 = vmatprep.subr.mxu0 0.0
  %6044 = vmatpush1.msra.mxu0 0.0
  %6045 = vmatprep.subr.mxu0 0.0
  %6046 = vmatpush1.msra.mxu0 0.0
  %6047 = vmatprep.subr.mxu0 0.0
  %6048 = vmatpush1.msra.mxu0 0.0
  %6049 = vmatprep.subr.mxu0 0.0
  %6050 = vmatpush1.msra.mxu0 0.0
  %6051 = vmatprep.subr.mxu0 0.0
  %6052 = vmatpush1.msra.mxu0 0.0
  %6053 = vmatprep.subr.mxu0 0.0
  %6054 = vmatpush1.msra.mxu0 0.0
  %6055 = vmatprep.subr.mxu0 0.0
  %6056 = vmatpush1.msra.mxu0 0.0
  %6057 = vmatprep.subr.mxu0 0.0
  %6058 = vmatpush1.msra.mxu0 0.0
  %6059 = vmatprep.subr.mxu0 0.0
  %6060 = vmatpush1.msra.mxu0 0.0
  %6061 = vmatprep.subr.mxu0 0.0
  %6062 = vmatpush1.msra.mxu0 0.0
  %6063 = vmatprep.subr.mxu0 0.0
  %6064 = vmatpush1.msra.mxu0 0.0
  %6065 = vmatprep.subr.mxu0 0.0
  %6066 = vmatpush1.msra.mxu0 %v3598
  %6067 = vmatprep.subr.mxu0 0.0
  %6068 = vmatpush1.msra.mxu0 %v3597
  %6069 = vmatprep.subr.mxu0 0.0
  %6070 = vmatpush1.msra.mxu0 %v3596
  %6071 = vmatprep.subr.mxu0 0.0
  %6072 = vmatpush1.msra.mxu0 %v3595
  %6073 = vmatprep.subr.mxu0 0.0
  %6074 = vmatpush2.msra.mxu0 0.0
  %6075 = vmatprep.subr.mxu0 0.0
  %6076 = vmatpush2.msra.mxu0 0.0
  %6077 = vmatprep.subr.mxu0 0.0
  %6078 = vmatpush2.msra.mxu0 0.0
  %6079 = vmatprep.subr.mxu0 0.0
  %6080 = vmatpush2.msra.mxu0 0.0
  %6081 = vmatprep.subr.mxu0 0.0
  %6082 = vmatpush2.msra.mxu0 0.0
  %6083 = vmatprep.subr.mxu0 0.0
  %6084 = vmatpush2.msra.mxu0 0.0
  %6085 = vmatprep.subr.mxu0 0.0
  %6086 = vmatpush2.msra.mxu0 0.0
  %6087 = vmatprep.subr.mxu0 0.0
  %6088 = vmatpush2.msra.mxu0 0.0
  %6089 = vmatprep.subr.mxu0 0.0
  %6090 = vmatpush2.msra.mxu0 0.0
  %6091 = vmatprep.subr.mxu0 0.0
  %6092 = vmatpush2.msra.mxu0 0.0
  %6093 = vmatprep.subr.mxu0 0.0
  %6094 = vmatpush2.msra.mxu0 0.0
  %6095 = vmatprep.subr.mxu0 0.0
  %6096 = vmatpush2.msra.mxu0 0.0
  %6097 = vmatprep.subr.mxu0 0.0
  %6098 = vmatpush2.msra.mxu0 0.0
  %6099 = vmatprep.subr.mxu0 0.0
  %6100 = vmatpush2.msra.mxu0 0.0
  %6101 = vmatprep.subr.mxu0 0.0
  %6102 = vmatpush2.msra.mxu0 0.0
  %6103 = vmatprep.subr.mxu0 0.0
  %6104 = vmatpush2.msra.mxu0 0.0
  %6105 = vmatprep.mubr.f32.mxu0 0.0
  %6106 = vmatmul.mubr.f32.gmra.mxu0 %v6039
  %v6107 = vpop.f32.mrf.mxu0
  %v6108 = vadd.f32 0.0, %v6107
  %v6109 = vpop.f32.mrf.mxu0
  %6110 = vdwg.mxu0
  %v6111 = vadd.f32 %v6038, %v6108
  %v6112 = vxor.u32 %v6111, 2147483648
  %v6113 = vmul.f32 %v6112, 1.442695
  %v6114 = vpow.pop %v6113
  %v6115 = vadd.f32 %v6114, 1.0
  %v6116 = vrcp.pop %v6115
  %v6117 = vmul.f32 1.0, %v6116
  %v6118 = vtanh.pop %v6111
  %v6119 = vmul.f32 %v6117, %v6024
  %6121 = vrot.lane.b32.xlu0 %v6118, 32
  %v6122 = vpop.permute.xlu0 %6121
  %v6124 = vmul.f32 %v6117, %v6122
  %6126 = vrot.lane.b32.xlu0 %v6124, 32
  %v6127 = vpop.permute.xlu0 %6126
  %v6129 = vadd.f32 %v6119, %v6127
  %v6130 = vtanh.pop %v6129
  %6132 = vrot.lane.b32.xlu0 %v6130, 32
  %v6133 = vpop.permute.xlu0 %6132
  %v6135 = vmul.f32 %v6117, %v6133
  %6137 = vrot.lane.b32.xlu0 %v6135, 64
  %v6138 = vpop.permute.xlu0 %6137
  %s6140 = scalar_lea.vmem [#allocation5], 160
  %6141 = vst.msk [vmem:[%s6140] sm:$0xff] %vm412, %v6138
  %s6142 = scalar_lea.vmem [#allocation4], 168
  %v6143 = vld [vmem:[%s6142] sm:$0xff]
  %v6144 = vsel %vm412, %v6138, 0
  %6146 = vmatprep.subr.mxu0 0.0
  %6147 = vmatpush1.msra.mxu0 0.0
  %6148 = vmatprep.subr.mxu0 0.0
  %6149 = vmatpush1.msra.mxu0 0.0
  %6150 = vmatprep.subr.mxu0 0.0
  %6151 = vmatpush1.msra.mxu0 0.0
  %6152 = vmatprep.subr.mxu0 0.0
  %6153 = vmatpush1.msra.mxu0 0.0
  %6154 = vmatprep.subr.mxu0 0.0
  %6155 = vmatpush1.msra.mxu0 0.0
  %6156 = vmatprep.subr.mxu0 0.0
  %6157 = vmatpush1.msra.mxu0 0.0
  %6158 = vmatprep.subr.mxu0 0.0
  %6159 = vmatpush1.msra.mxu0 0.0
  %6160 = vmatprep.subr.mxu0 0.0
  %6161 = vmatpush1.msra.mxu0 0.0
  %6162 = vmatprep.subr.mxu0 0.0
  %6163 = vmatpush1.msra.mxu0 0.0
  %6164 = vmatprep.subr.mxu0 0.0
  %6165 = vmatpush1.msra.mxu0 0.0
  %6166 = vmatprep.subr.mxu0 0.0
  %6167 = vmatpush1.msra.mxu0 0.0
  %6168 = vmatprep.subr.mxu0 0.0
  %6169 = vmatpush1.msra.mxu0 0.0
  %6170 = vmatprep.subr.mxu0 0.0
  %6171 = vmatpush1.msra.mxu0 %v3598
  %6172 = vmatprep.subr.mxu0 0.0
  %6173 = vmatpush1.msra.mxu0 %v3597
  %6174 = vmatprep.subr.mxu0 0.0
  %6175 = vmatpush1.msra.mxu0 %v3596
  %6176 = vmatprep.subr.mxu0 0.0
  %6177 = vmatpush1.msra.mxu0 %v3595
  %6178 = vmatprep.subr.mxu0 0.0
  %6179 = vmatpush2.msra.mxu0 0.0
  %6180 = vmatprep.subr.mxu0 0.0
  %6181 = vmatpush2.msra.mxu0 0.0
  %6182 = vmatprep.subr.mxu0 0.0
  %6183 = vmatpush2.msra.mxu0 0.0
  %6184 = vmatprep.subr.mxu0 0.0
  %6185 = vmatpush2.msra.mxu0 0.0
  %6186 = vmatprep.subr.mxu0 0.0
  %6187 = vmatpush2.msra.mxu0 0.0
  %6188 = vmatprep.subr.mxu0 0.0
  %6189 = vmatpush2.msra.mxu0 0.0
  %6190 = vmatprep.subr.mxu0 0.0
  %6191 = vmatpush2.msra.mxu0 0.0
  %6192 = vmatprep.subr.mxu0 0.0
  %6193 = vmatpush2.msra.mxu0 0.0
  %6194 = vmatprep.subr.mxu0 0.0
  %6195 = vmatpush2.msra.mxu0 0.0
  %6196 = vmatprep.subr.mxu0 0.0
  %6197 = vmatpush2.msra.mxu0 0.0
  %6198 = vmatprep.subr.mxu0 0.0
  %6199 = vmatpush2.msra.mxu0 0.0
  %6200 = vmatprep.subr.mxu0 0.0
  %6201 = vmatpush2.msra.mxu0 0.0
  %6202 = vmatprep.subr.mxu0 0.0
  %6203 = vmatpush2.msra.mxu0 0.0
  %6204 = vmatprep.subr.mxu0 0.0
  %6205 = vmatpush2.msra.mxu0 0.0
  %6206 = vmatprep.subr.mxu0 0.0
  %6207 = vmatpush2.msra.mxu0 0.0
  %6208 = vmatprep.subr.mxu0 0.0
  %6209 = vmatpush2.msra.mxu0 0.0
  %6210 = vmatprep.mubr.f32.mxu0 0.0
  %6211 = vmatmul.mubr.f32.gmra.mxu0 %v6144
  %v6212 = vpop.f32.mrf.mxu0
  %v6213 = vadd.f32 0.0, %v6212
  %v6214 = vpop.f32.mrf.mxu0
  %6215 = vdwg.mxu0
  %v6216 = vadd.f32 %v6143, %v6213
  %v6217 = vxor.u32 %v6216, 2147483648
  %v6218 = vmul.f32 %v6217, 1.442695
  %v6219 = vpow.pop %v6218
  %v6220 = vadd.f32 %v6219, 1.0
  %v6221 = vrcp.pop %v6220
  %v6222 = vmul.f32 1.0, %v6221
  %v6223 = vtanh.pop %v6216
  %v6224 = vmul.f32 %v6222, %v6129
  %6226 = vrot.lane.b32.xlu0 %v6223, 32
  %v6227 = vpop.permute.xlu0 %6226
  %v6229 = vmul.f32 %v6222, %v6227
  %6231 = vrot.lane.b32.xlu0 %v6229, 32
  %v6232 = vpop.permute.xlu0 %6231
  %v6234 = vadd.f32 %v6224, %v6232
  %v6235 = vtanh.pop %v6234
  %6237 = vrot.lane.b32.xlu0 %v6235, 32
  %v6238 = vpop.permute.xlu0 %6237
  %v6240 = vmul.f32 %v6222, %v6238
  %6242 = vrot.lane.b32.xlu0 %v6240, 64
  %v6243 = vpop.permute.xlu0 %6242
  %s6245 = scalar_lea.vmem [#allocation5], 168
  %6246 = vst.msk [vmem:[%s6245] sm:$0xff] %vm412, %v6243
  %s6247 = scalar_lea.vmem [#allocation4], 176
  %v6248 = vld [vmem:[%s6247] sm:$0xff]
  %v6249 = vsel %vm412, %v6243, 0
  %6251 = vmatprep.subr.mxu0 0.0
  %6252 = vmatpush1.msra.mxu0 0.0
  %6253 = vmatprep.subr.mxu0 0.0
  %6254 = vmatpush1.msra.mxu0 0.0
  %6255 = vmatprep.subr.mxu0 0.0
  %6256 = vmatpush1.msra.mxu0 0.0
  %6257 = vmatprep.subr.mxu0 0.0
  %6258 = vmatpush1.msra.mxu0 0.0
  %6259 = vmatprep.subr.mxu0 0.0
  %6260 = vmatpush1.msra.mxu0 0.0
  %6261 = vmatprep.subr.mxu0 0.0
  %6262 = vmatpush1.msra.mxu0 0.0
  %6263 = vmatprep.subr.mxu0 0.0
  %6264 = vmatpush1.msra.mxu0 0.0
  %6265 = vmatprep.subr.mxu0 0.0
  %6266 = vmatpush1.msra.mxu0 0.0
  %6267 = vmatprep.subr.mxu0 0.0
  %6268 = vmatpush1.msra.mxu0 0.0
  %6269 = vmatprep.subr.mxu0 0.0
  %6270 = vmatpush1.msra.mxu0 0.0
  %6271 = vmatprep.subr.mxu0 0.0
  %6272 = vmatpush1.msra.mxu0 0.0
  %6273 = vmatprep.subr.mxu0 0.0
  %6274 = vmatpush1.msra.mxu0 0.0
  %6275 = vmatprep.subr.mxu0 0.0
  %6276 = vmatpush1.msra.mxu0 %v3598
  %6277 = vmatprep.subr.mxu0 0.0
  %6278 = vmatpush1.msra.mxu0 %v3597
  %6279 = vmatprep.subr.mxu0 0.0
  %6280 = vmatpush1.msra.mxu0 %v3596
  %6281 = vmatprep.subr.mxu0 0.0
  %6282 = vmatpush1.msra.mxu0 %v3595
  %6283 = vmatprep.subr.mxu0 0.0
  %6284 = vmatpush2.msra.mxu0 0.0
  %6285 = vmatprep.subr.mxu0 0.0
  %6286 = vmatpush2.msra.mxu0 0.0
  %6287 = vmatprep.subr.mxu0 0.0
  %6288 = vmatpush2.msra.mxu0 0.0
  %6289 = vmatprep.subr.mxu0 0.0
  %6290 = vmatpush2.msra.mxu0 0.0
  %6291 = vmatprep.subr.mxu0 0.0
  %6292 = vmatpush2.msra.mxu0 0.0
  %6293 = vmatprep.subr.mxu0 0.0
  %6294 = vmatpush2.msra.mxu0 0.0
  %6295 = vmatprep.subr.mxu0 0.0
  %6296 = vmatpush2.msra.mxu0 0.0
  %6297 = vmatprep.subr.mxu0 0.0
  %6298 = vmatpush2.msra.mxu0 0.0
  %6299 = vmatprep.subr.mxu0 0.0
  %6300 = vmatpush2.msra.mxu0 0.0
  %6301 = vmatprep.subr.mxu0 0.0
  %6302 = vmatpush2.msra.mxu0 0.0
  %6303 = vmatprep.subr.mxu0 0.0
  %6304 = vmatpush2.msra.mxu0 0.0
  %6305 = vmatprep.subr.mxu0 0.0
  %6306 = vmatpush2.msra.mxu0 0.0
  %6307 = vmatprep.subr.mxu0 0.0
  %6308 = vmatpush2.msra.mxu0 0.0
  %6309 = vmatprep.subr.mxu0 0.0
  %6310 = vmatpush2.msra.mxu0 0.0
  %6311 = vmatprep.subr.mxu0 0.0
  %6312 = vmatpush2.msra.mxu0 0.0
  %6313 = vmatprep.subr.mxu0 0.0
  %6314 = vmatpush2.msra.mxu0 0.0
  %6315 = vmatprep.mubr.f32.mxu0 0.0
  %6316 = vmatmul.mubr.f32.gmra.mxu0 %v6249
  %v6317 = vpop.f32.mrf.mxu0
  %v6318 = vadd.f32 0.0, %v6317
  %v6319 = vpop.f32.mrf.mxu0
  %6320 = vdwg.mxu0
  %v6321 = vadd.f32 %v6248, %v6318
  %v6322 = vxor.u32 %v6321, 2147483648
  %v6323 = vmul.f32 %v6322, 1.442695
  %v6324 = vpow.pop %v6323
  %v6325 = vadd.f32 %v6324, 1.0
  %v6326 = vrcp.pop %v6325
  %v6327 = vmul.f32 1.0, %v6326
  %v6328 = vtanh.pop %v6321
  %v6329 = vmul.f32 %v6327, %v6234
  %6331 = vrot.lane.b32.xlu0 %v6328, 32
  %v6332 = vpop.permute.xlu0 %6331
  %v6334 = vmul.f32 %v6327, %v6332
  %6336 = vrot.lane.b32.xlu0 %v6334, 32
  %v6337 = vpop.permute.xlu0 %6336
  %v6339 = vadd.f32 %v6329, %v6337
  %v6340 = vtanh.pop %v6339
  %6342 = vrot.lane.b32.xlu0 %v6340, 32
  %v6343 = vpop.permute.xlu0 %6342
  %v6345 = vmul.f32 %v6327, %v6343
  %6347 = vrot.lane.b32.xlu0 %v6345, 64
  %v6348 = vpop.permute.xlu0 %6347
  %s6350 = scalar_lea.vmem [#allocation5], 176
  %6351 = vst.msk [vmem:[%s6350] sm:$0xff] %vm412, %v6348
  %s6352 = scalar_lea.vmem [#allocation4], 184
  %v6353 = vld [vmem:[%s6352] sm:$0xff]
  %v6354 = vsel %vm412, %v6348, 0
  %6356 = vmatprep.subr.mxu0 0.0
  %6357 = vmatpush1.msra.mxu0 0.0
  %6358 = vmatprep.subr.mxu0 0.0
  %6359 = vmatpush1.msra.mxu0 0.0
  %6360 = vmatprep.subr.mxu0 0.0
  %6361 = vmatpush1.msra.mxu0 0.0
  %6362 = vmatprep.subr.mxu0 0.0
  %6363 = vmatpush1.msra.mxu0 0.0
  %6364 = vmatprep.subr.mxu0 0.0
  %6365 = vmatpush1.msra.mxu0 0.0
  %6366 = vmatprep.subr.mxu0 0.0
  %6367 = vmatpush1.msra.mxu0 0.0
  %6368 = vmatprep.subr.mxu0 0.0
  %6369 = vmatpush1.msra.mxu0 0.0
  %6370 = vmatprep.subr.mxu0 0.0
  %6371 = vmatpush1.msra.mxu0 0.0
  %6372 = vmatprep.subr.mxu0 0.0
  %6373 = vmatpush1.msra.mxu0 0.0
  %6374 = vmatprep.subr.mxu0 0.0
  %6375 = vmatpush1.msra.mxu0 0.0
  %6376 = vmatprep.subr.mxu0 0.0
  %6377 = vmatpush1.msra.mxu0 0.0
  %6378 = vmatprep.subr.mxu0 0.0
  %6379 = vmatpush1.msra.mxu0 0.0
  %6380 = vmatprep.subr.mxu0 0.0
  %6381 = vmatpush1.msra.mxu0 %v3598
  %6382 = vmatprep.subr.mxu0 0.0
  %6383 = vmatpush1.msra.mxu0 %v3597
  %6384 = vmatprep.subr.mxu0 0.0
  %6385 = vmatpush1.msra.mxu0 %v3596
  %6386 = vmatprep.subr.mxu0 0.0
  %6387 = vmatpush1.msra.mxu0 %v3595
  %6388 = vmatprep.subr.mxu0 0.0
  %6389 = vmatpush2.msra.mxu0 0.0
  %6390 = vmatprep.subr.mxu0 0.0
  %6391 = vmatpush2.msra.mxu0 0.0
  %6392 = vmatprep.subr.mxu0 0.0
  %6393 = vmatpush2.msra.mxu0 0.0
  %6394 = vmatprep.subr.mxu0 0.0
  %6395 = vmatpush2.msra.mxu0 0.0
  %6396 = vmatprep.subr.mxu0 0.0
  %6397 = vmatpush2.msra.mxu0 0.0
  %6398 = vmatprep.subr.mxu0 0.0
  %6399 = vmatpush2.msra.mxu0 0.0
  %6400 = vmatprep.subr.mxu0 0.0
  %6401 = vmatpush2.msra.mxu0 0.0
  %6402 = vmatprep.subr.mxu0 0.0
  %6403 = vmatpush2.msra.mxu0 0.0
  %6404 = vmatprep.subr.mxu0 0.0
  %6405 = vmatpush2.msra.mxu0 0.0
  %6406 = vmatprep.subr.mxu0 0.0
  %6407 = vmatpush2.msra.mxu0 0.0
  %6408 = vmatprep.subr.mxu0 0.0
  %6409 = vmatpush2.msra.mxu0 0.0
  %6410 = vmatprep.subr.mxu0 0.0
  %6411 = vmatpush2.msra.mxu0 0.0
  %6412 = vmatprep.subr.mxu0 0.0
  %6413 = vmatpush2.msra.mxu0 0.0
  %6414 = vmatprep.subr.mxu0 0.0
  %6415 = vmatpush2.msra.mxu0 0.0
  %6416 = vmatprep.subr.mxu0 0.0
  %6417 = vmatpush2.msra.mxu0 0.0
  %6418 = vmatprep.subr.mxu0 0.0
  %6419 = vmatpush2.msra.mxu0 0.0
  %6420 = vmatprep.mubr.f32.mxu0 0.0
  %6421 = vmatmul.mubr.f32.gmra.mxu0 %v6354
  %v6422 = vpop.f32.mrf.mxu0
  %v6423 = vadd.f32 0.0, %v6422
  %v6424 = vpop.f32.mrf.mxu0
  %6425 = vdwg.mxu0
  %v6426 = vadd.f32 %v6353, %v6423
  %v6427 = vxor.u32 %v6426, 2147483648
  %v6428 = vmul.f32 %v6427, 1.442695
  %v6429 = vpow.pop %v6428
  %v6430 = vadd.f32 %v6429, 1.0
  %v6431 = vrcp.pop %v6430
  %v6432 = vmul.f32 1.0, %v6431
  %v6433 = vtanh.pop %v6426
  %v6434 = vmul.f32 %v6432, %v6339
  %6436 = vrot.lane.b32.xlu0 %v6433, 32
  %v6437 = vpop.permute.xlu0 %6436
  %v6439 = vmul.f32 %v6432, %v6437
  %6441 = vrot.lane.b32.xlu0 %v6439, 32
  %v6442 = vpop.permute.xlu0 %6441
  %v6444 = vadd.f32 %v6434, %v6442
  %v6445 = vtanh.pop %v6444
  %6447 = vrot.lane.b32.xlu0 %v6445, 32
  %v6448 = vpop.permute.xlu0 %6447
  %v6450 = vmul.f32 %v6432, %v6448
  %6452 = vrot.lane.b32.xlu0 %v6450, 64
  %v6453 = vpop.permute.xlu0 %6452
  %s6455 = scalar_lea.vmem [#allocation5], 184
  %6456 = vst.msk [vmem:[%s6455] sm:$0xff] %vm412, %v6453
  %s6457 = scalar_lea.vmem [#allocation4], 192
  %v6458 = vld [vmem:[%s6457] sm:$0xff]
  %v6459 = vsel %vm412, %v6453, 0
  %6461 = vmatprep.subr.mxu0 0.0
  %6462 = vmatpush1.msra.mxu0 0.0
  %6463 = vmatprep.subr.mxu0 0.0
  %6464 = vmatpush1.msra.mxu0 0.0
  %6465 = vmatprep.subr.mxu0 0.0
  %6466 = vmatpush1.msra.mxu0 0.0
  %6467 = vmatprep.subr.mxu0 0.0
  %6468 = vmatpush1.msra.mxu0 0.0
  %6469 = vmatprep.subr.mxu0 0.0
  %6470 = vmatpush1.msra.mxu0 0.0
  %6471 = vmatprep.subr.mxu0 0.0
  %6472 = vmatpush1.msra.mxu0 0.0
  %6473 = vmatprep.subr.mxu0 0.0
  %6474 = vmatpush1.msra.mxu0 0.0
  %6475 = vmatprep.subr.mxu0 0.0
  %6476 = vmatpush1.msra.mxu0 0.0
  %6477 = vmatprep.subr.mxu0 0.0
  %6478 = vmatpush1.msra.mxu0 0.0
  %6479 = vmatprep.subr.mxu0 0.0
  %6480 = vmatpush1.msra.mxu0 0.0
  %6481 = vmatprep.subr.mxu0 0.0
  %6482 = vmatpush1.msra.mxu0 0.0
  %6483 = vmatprep.subr.mxu0 0.0
  %6484 = vmatpush1.msra.mxu0 0.0
  %6485 = vmatprep.subr.mxu0 0.0
  %6486 = vmatpush1.msra.mxu0 %v3598
  %6487 = vmatprep.subr.mxu0 0.0
  %6488 = vmatpush1.msra.mxu0 %v3597
  %6489 = vmatprep.subr.mxu0 0.0
  %6490 = vmatpush1.msra.mxu0 %v3596
  %6491 = vmatprep.subr.mxu0 0.0
  %6492 = vmatpush1.msra.mxu0 %v3595
  %6493 = vmatprep.subr.mxu0 0.0
  %6494 = vmatpush2.msra.mxu0 0.0
  %6495 = vmatprep.subr.mxu0 0.0
  %6496 = vmatpush2.msra.mxu0 0.0
  %6497 = vmatprep.subr.mxu0 0.0
  %6498 = vmatpush2.msra.mxu0 0.0
  %6499 = vmatprep.subr.mxu0 0.0
  %6500 = vmatpush2.msra.mxu0 0.0
  %6501 = vmatprep.subr.mxu0 0.0
  %6502 = vmatpush2.msra.mxu0 0.0
  %6503 = vmatprep.subr.mxu0 0.0
  %6504 = vmatpush2.msra.mxu0 0.0
  %6505 = vmatprep.subr.mxu0 0.0
  %6506 = vmatpush2.msra.mxu0 0.0
  %6507 = vmatprep.subr.mxu0 0.0
  %6508 = vmatpush2.msra.mxu0 0.0
  %6509 = vmatprep.subr.mxu0 0.0
  %6510 = vmatpush2.msra.mxu0 0.0
  %6511 = vmatprep.subr.mxu0 0.0
  %6512 = vmatpush2.msra.mxu0 0.0
  %6513 = vmatprep.subr.mxu0 0.0
  %6514 = vmatpush2.msra.mxu0 0.0
  %6515 = vmatprep.subr.mxu0 0.0
  %6516 = vmatpush2.msra.mxu0 0.0
  %6517 = vmatprep.subr.mxu0 0.0
  %6518 = vmatpush2.msra.mxu0 0.0
  %6519 = vmatprep.subr.mxu0 0.0
  %6520 = vmatpush2.msra.mxu0 0.0
  %6521 = vmatprep.subr.mxu0 0.0
  %6522 = vmatpush2.msra.mxu0 0.0
  %6523 = vmatprep.subr.mxu0 0.0
  %6524 = vmatpush2.msra.mxu0 0.0
  %6525 = vmatprep.mubr.f32.mxu0 0.0
  %6526 = vmatmul.mubr.f32.gmra.mxu0 %v6459
  %v6527 = vpop.f32.mrf.mxu0
  %v6528 = vadd.f32 0.0, %v6527
  %v6529 = vpop.f32.mrf.mxu0
  %6530 = vdwg.mxu0
  %v6531 = vadd.f32 %v6458, %v6528
  %v6532 = vxor.u32 %v6531, 2147483648
  %v6533 = vmul.f32 %v6532, 1.442695
  %v6534 = vpow.pop %v6533
  %v6535 = vadd.f32 %v6534, 1.0
  %v6536 = vrcp.pop %v6535
  %v6537 = vmul.f32 1.0, %v6536
  %v6538 = vtanh.pop %v6531
  %v6539 = vmul.f32 %v6537, %v6444
  %6541 = vrot.lane.b32.xlu0 %v6538, 32
  %v6542 = vpop.permute.xlu0 %6541
  %v6544 = vmul.f32 %v6537, %v6542
  %6546 = vrot.lane.b32.xlu0 %v6544, 32
  %v6547 = vpop.permute.xlu0 %6546
  %v6549 = vadd.f32 %v6539, %v6547
  %v6550 = vtanh.pop %v6549
  %6552 = vrot.lane.b32.xlu0 %v6550, 32
  %v6553 = vpop.permute.xlu0 %6552
  %v6555 = vmul.f32 %v6537, %v6553
  %6557 = vrot.lane.b32.xlu0 %v6555, 64
  %v6558 = vpop.permute.xlu0 %6557
  %s6560 = scalar_lea.vmem [#allocation5], 192
  %6561 = vst.msk [vmem:[%s6560] sm:$0xff] %vm412, %v6558
  %s6562 = scalar_lea.vmem [#allocation4], 200
  %v6563 = vld [vmem:[%s6562] sm:$0xff]
  %v6564 = vsel %vm412, %v6558, 0
  %6566 = vmatprep.subr.mxu0 0.0
  %6567 = vmatpush1.msra.mxu0 0.0
  %6568 = vmatprep.subr.mxu0 0.0
  %6569 = vmatpush1.msra.mxu0 0.0
  %6570 = vmatprep.subr.mxu0 0.0
  %6571 = vmatpush1.msra.mxu0 0.0
  %6572 = vmatprep.subr.mxu0 0.0
  %6573 = vmatpush1.msra.mxu0 0.0
  %6574 = vmatprep.subr.mxu0 0.0
  %6575 = vmatpush1.msra.mxu0 0.0
  %6576 = vmatprep.subr.mxu0 0.0
  %6577 = vmatpush1.msra.mxu0 0.0
  %6578 = vmatprep.subr.mxu0 0.0
  %6579 = vmatpush1.msra.mxu0 0.0
  %6580 = vmatprep.subr.mxu0 0.0
  %6581 = vmatpush1.msra.mxu0 0.0
  %6582 = vmatprep.subr.mxu0 0.0
  %6583 = vmatpush1.msra.mxu0 0.0
  %6584 = vmatprep.subr.mxu0 0.0
  %6585 = vmatpush1.msra.mxu0 0.0
  %6586 = vmatprep.subr.mxu0 0.0
  %6587 = vmatpush1.msra.mxu0 0.0
  %6588 = vmatprep.subr.mxu0 0.0
  %6589 = vmatpush1.msra.mxu0 0.0
  %6590 = vmatprep.subr.mxu0 0.0
  %6591 = vmatpush1.msra.mxu0 %v3598
  %6592 = vmatprep.subr.mxu0 0.0
  %6593 = vmatpush1.msra.mxu0 %v3597
  %6594 = vmatprep.subr.mxu0 0.0
  %6595 = vmatpush1.msra.mxu0 %v3596
  %6596 = vmatprep.subr.mxu0 0.0
  %6597 = vmatpush1.msra.mxu0 %v3595
  %6598 = vmatprep.subr.mxu0 0.0
  %6599 = vmatpush2.msra.mxu0 0.0
  %6600 = vmatprep.subr.mxu0 0.0
  %6601 = vmatpush2.msra.mxu0 0.0
  %6602 = vmatprep.subr.mxu0 0.0
  %6603 = vmatpush2.msra.mxu0 0.0
  %6604 = vmatprep.subr.mxu0 0.0
  %6605 = vmatpush2.msra.mxu0 0.0
  %6606 = vmatprep.subr.mxu0 0.0
  %6607 = vmatpush2.msra.mxu0 0.0
  %6608 = vmatprep.subr.mxu0 0.0
  %6609 = vmatpush2.msra.mxu0 0.0
  %6610 = vmatprep.subr.mxu0 0.0
  %6611 = vmatpush2.msra.mxu0 0.0
  %6612 = vmatprep.subr.mxu0 0.0
  %6613 = vmatpush2.msra.mxu0 0.0
  %6614 = vmatprep.subr.mxu0 0.0
  %6615 = vmatpush2.msra.mxu0 0.0
  %6616 = vmatprep.subr.mxu0 0.0
  %6617 = vmatpush2.msra.mxu0 0.0
  %6618 = vmatprep.subr.mxu0 0.0
  %6619 = vmatpush2.msra.mxu0 0.0
  %6620 = vmatprep.subr.mxu0 0.0
  %6621 = vmatpush2.msra.mxu0 0.0
  %6622 = vmatprep.subr.mxu0 0.0
  %6623 = vmatpush2.msra.mxu0 0.0
  %6624 = vmatprep.subr.mxu0 0.0
  %6625 = vmatpush2.msra.mxu0 0.0
  %6626 = vmatprep.subr.mxu0 0.0
  %6627 = vmatpush2.msra.mxu0 0.0
  %6628 = vmatprep.subr.mxu0 0.0
  %6629 = vmatpush2.msra.mxu0 0.0
  %6630 = vmatprep.mubr.f32.mxu0 0.0
  %6631 = vmatmul.mubr.f32.gmra.mxu0 %v6564
  %v6632 = vpop.f32.mrf.mxu0
  %v6633 = vadd.f32 0.0, %v6632
  %v6634 = vpop.f32.mrf.mxu0
  %6635 = vdwg.mxu0
  %v6636 = vadd.f32 %v6563, %v6633
  %v6637 = vxor.u32 %v6636, 2147483648
  %v6638 = vmul.f32 %v6637, 1.442695
  %v6639 = vpow.pop %v6638
  %v6640 = vadd.f32 %v6639, 1.0
  %v6641 = vrcp.pop %v6640
  %v6642 = vmul.f32 1.0, %v6641
  %v6643 = vtanh.pop %v6636
  %v6644 = vmul.f32 %v6642, %v6549
  %6646 = vrot.lane.b32.xlu0 %v6643, 32
  %v6647 = vpop.permute.xlu0 %6646
  %v6649 = vmul.f32 %v6642, %v6647
  %6651 = vrot.lane.b32.xlu0 %v6649, 32
  %v6652 = vpop.permute.xlu0 %6651
  %v6654 = vadd.f32 %v6644, %v6652
  %v6655 = vtanh.pop %v6654
  %6657 = vrot.lane.b32.xlu0 %v6655, 32
  %v6658 = vpop.permute.xlu0 %6657
  %v6660 = vmul.f32 %v6642, %v6658
  %6662 = vrot.lane.b32.xlu0 %v6660, 64
  %v6663 = vpop.permute.xlu0 %6662
  %s6665 = scalar_lea.vmem [#allocation5], 200
  %6666 = vst.msk [vmem:[%s6665] sm:$0xff] %vm412, %v6663
  %s6667 = scalar_lea.vmem [#allocation4], 208
  %v6668 = vld [vmem:[%s6667] sm:$0xff]
  %v6669 = vsel %vm412, %v6663, 0
  %6671 = vmatprep.subr.mxu0 0.0
  %6672 = vmatpush1.msra.mxu0 0.0
  %6673 = vmatprep.subr.mxu0 0.0
  %6674 = vmatpush1.msra.mxu0 0.0
  %6675 = vmatprep.subr.mxu0 0.0
  %6676 = vmatpush1.msra.mxu0 0.0
  %6677 = vmatprep.subr.mxu0 0.0
  %6678 = vmatpush1.msra.mxu0 0.0
  %6679 = vmatprep.subr.mxu0 0.0
  %6680 = vmatpush1.msra.mxu0 0.0
  %6681 = vmatprep.subr.mxu0 0.0
  %6682 = vmatpush1.msra.mxu0 0.0
  %6683 = vmatprep.subr.mxu0 0.0
  %6684 = vmatpush1.msra.mxu0 0.0
  %6685 = vmatprep.subr.mxu0 0.0
  %6686 = vmatpush1.msra.mxu0 0.0
  %6687 = vmatprep.subr.mxu0 0.0
  %6688 = vmatpush1.msra.mxu0 0.0
  %6689 = vmatprep.subr.mxu0 0.0
  %6690 = vmatpush1.msra.mxu0 0.0
  %6691 = vmatprep.subr.mxu0 0.0
  %6692 = vmatpush1.msra.mxu0 0.0
  %6693 = vmatprep.subr.mxu0 0.0
  %6694 = vmatpush1.msra.mxu0 0.0
  %6695 = vmatprep.subr.mxu0 0.0
  %6696 = vmatpush1.msra.mxu0 %v3598
  %6697 = vmatprep.subr.mxu0 0.0
  %6698 = vmatpush1.msra.mxu0 %v3597
  %6699 = vmatprep.subr.mxu0 0.0
  %6700 = vmatpush1.msra.mxu0 %v3596
  %6701 = vmatprep.subr.mxu0 0.0
  %6702 = vmatpush1.msra.mxu0 %v3595
  %6703 = vmatprep.subr.mxu0 0.0
  %6704 = vmatpush2.msra.mxu0 0.0
  %6705 = vmatprep.subr.mxu0 0.0
  %6706 = vmatpush2.msra.mxu0 0.0
  %6707 = vmatprep.subr.mxu0 0.0
  %6708 = vmatpush2.msra.mxu0 0.0
  %6709 = vmatprep.subr.mxu0 0.0
  %6710 = vmatpush2.msra.mxu0 0.0
  %6711 = vmatprep.subr.mxu0 0.0
  %6712 = vmatpush2.msra.mxu0 0.0
  %6713 = vmatprep.subr.mxu0 0.0
  %6714 = vmatpush2.msra.mxu0 0.0
  %6715 = vmatprep.subr.mxu0 0.0
  %6716 = vmatpush2.msra.mxu0 0.0
  %6717 = vmatprep.subr.mxu0 0.0
  %6718 = vmatpush2.msra.mxu0 0.0
  %6719 = vmatprep.subr.mxu0 0.0
  %6720 = vmatpush2.msra.mxu0 0.0
  %6721 = vmatprep.subr.mxu0 0.0
  %6722 = vmatpush2.msra.mxu0 0.0
  %6723 = vmatprep.subr.mxu0 0.0
  %6724 = vmatpush2.msra.mxu0 0.0
  %6725 = vmatprep.subr.mxu0 0.0
  %6726 = vmatpush2.msra.mxu0 0.0
  %6727 = vmatprep.subr.mxu0 0.0
  %6728 = vmatpush2.msra.mxu0 0.0
  %6729 = vmatprep.subr.mxu0 0.0
  %6730 = vmatpush2.msra.mxu0 0.0
  %6731 = vmatprep.subr.mxu0 0.0
  %6732 = vmatpush2.msra.mxu0 0.0
  %6733 = vmatprep.subr.mxu0 0.0
  %6734 = vmatpush2.msra.mxu0 0.0
  %6735 = vmatprep.mubr.f32.mxu0 0.0
  %6736 = vmatmul.mubr.f32.gmra.mxu0 %v6669
  %v6737 = vpop.f32.mrf.mxu0
  %v6738 = vadd.f32 0.0, %v6737
  %v6739 = vpop.f32.mrf.mxu0
  %6740 = vdwg.mxu0
  %v6741 = vadd.f32 %v6668, %v6738
  %v6742 = vxor.u32 %v6741, 2147483648
  %v6743 = vmul.f32 %v6742, 1.442695
  %v6744 = vpow.pop %v6743
  %v6745 = vadd.f32 %v6744, 1.0
  %v6746 = vrcp.pop %v6745
  %v6747 = vmul.f32 1.0, %v6746
  %v6748 = vtanh.pop %v6741
  %v6749 = vmul.f32 %v6747, %v6654
  %6751 = vrot.lane.b32.xlu0 %v6748, 32
  %v6752 = vpop.permute.xlu0 %6751
  %v6754 = vmul.f32 %v6747, %v6752
  %6756 = vrot.lane.b32.xlu0 %v6754, 32
  %v6757 = vpop.permute.xlu0 %6756
  %v6759 = vadd.f32 %v6749, %v6757
  %v6760 = vtanh.pop %v6759
  %6762 = vrot.lane.b32.xlu0 %v6760, 32
  %v6763 = vpop.permute.xlu0 %6762
  %v6765 = vmul.f32 %v6747, %v6763
  %6767 = vrot.lane.b32.xlu0 %v6765, 64
  %v6768 = vpop.permute.xlu0 %6767
  %s6770 = scalar_lea.vmem [#allocation5], 208
  %6771 = vst.msk [vmem:[%s6770] sm:$0xff] %vm412, %v6768
  %s6772 = scalar_lea.vmem [#allocation4], 216
  %v6773 = vld [vmem:[%s6772] sm:$0xff]
  %v6774 = vsel %vm412, %v6768, 0
  %6776 = vmatprep.subr.mxu0 0.0
  %6777 = vmatpush1.msra.mxu0 0.0
  %6778 = vmatprep.subr.mxu0 0.0
  %6779 = vmatpush1.msra.mxu0 0.0
  %6780 = vmatprep.subr.mxu0 0.0
  %6781 = vmatpush1.msra.mxu0 0.0
  %6782 = vmatprep.subr.mxu0 0.0
  %6783 = vmatpush1.msra.mxu0 0.0
  %6784 = vmatprep.subr.mxu0 0.0
  %6785 = vmatpush1.msra.mxu0 0.0
  %6786 = vmatprep.subr.mxu0 0.0
  %6787 = vmatpush1.msra.mxu0 0.0
  %6788 = vmatprep.subr.mxu0 0.0
  %6789 = vmatpush1.msra.mxu0 0.0
  %6790 = vmatprep.subr.mxu0 0.0
  %6791 = vmatpush1.msra.mxu0 0.0
  %6792 = vmatprep.subr.mxu0 0.0
  %6793 = vmatpush1.msra.mxu0 0.0
  %6794 = vmatprep.subr.mxu0 0.0
  %6795 = vmatpush1.msra.mxu0 0.0
  %6796 = vmatprep.subr.mxu0 0.0
  %6797 = vmatpush1.msra.mxu0 0.0
  %6798 = vmatprep.subr.mxu0 0.0
  %6799 = vmatpush1.msra.mxu0 0.0
  %6800 = vmatprep.subr.mxu0 0.0
  %6801 = vmatpush1.msra.mxu0 %v3598
  %6802 = vmatprep.subr.mxu0 0.0
  %6803 = vmatpush1.msra.mxu0 %v3597
  %6804 = vmatprep.subr.mxu0 0.0
  %6805 = vmatpush1.msra.mxu0 %v3596
  %6806 = vmatprep.subr.mxu0 0.0
  %6807 = vmatpush1.msra.mxu0 %v3595
  %6808 = vmatprep.subr.mxu0 0.0
  %6809 = vmatpush2.msra.mxu0 0.0
  %6810 = vmatprep.subr.mxu0 0.0
  %6811 = vmatpush2.msra.mxu0 0.0
  %6812 = vmatprep.subr.mxu0 0.0
  %6813 = vmatpush2.msra.mxu0 0.0
  %6814 = vmatprep.subr.mxu0 0.0
  %6815 = vmatpush2.msra.mxu0 0.0
  %6816 = vmatprep.subr.mxu0 0.0
  %6817 = vmatpush2.msra.mxu0 0.0
  %6818 = vmatprep.subr.mxu0 0.0
  %6819 = vmatpush2.msra.mxu0 0.0
  %6820 = vmatprep.subr.mxu0 0.0
  %6821 = vmatpush2.msra.mxu0 0.0
  %6822 = vmatprep.subr.mxu0 0.0
  %6823 = vmatpush2.msra.mxu0 0.0
  %6824 = vmatprep.subr.mxu0 0.0
  %6825 = vmatpush2.msra.mxu0 0.0
  %6826 = vmatprep.subr.mxu0 0.0
  %6827 = vmatpush2.msra.mxu0 0.0
  %6828 = vmatprep.subr.mxu0 0.0
  %6829 = vmatpush2.msra.mxu0 0.0
  %6830 = vmatprep.subr.mxu0 0.0
  %6831 = vmatpush2.msra.mxu0 0.0
  %6832 = vmatprep.subr.mxu0 0.0
  %6833 = vmatpush2.msra.mxu0 0.0
  %6834 = vmatprep.subr.mxu0 0.0
  %6835 = vmatpush2.msra.mxu0 0.0
  %6836 = vmatprep.subr.mxu0 0.0
  %6837 = vmatpush2.msra.mxu0 0.0
  %6838 = vmatprep.subr.mxu0 0.0
  %6839 = vmatpush2.msra.mxu0 0.0
  %6840 = vmatprep.mubr.f32.mxu0 0.0
  %6841 = vmatmul.mubr.f32.gmra.mxu0 %v6774
  %v6842 = vpop.f32.mrf.mxu0
  %v6843 = vadd.f32 0.0, %v6842
  %v6844 = vpop.f32.mrf.mxu0
  %6845 = vdwg.mxu0
  %v6846 = vadd.f32 %v6773, %v6843
  %v6847 = vxor.u32 %v6846, 2147483648
  %v6848 = vmul.f32 %v6847, 1.442695
  %v6849 = vpow.pop %v6848
  %v6850 = vadd.f32 %v6849, 1.0
  %v6851 = vrcp.pop %v6850
  %v6852 = vmul.f32 1.0, %v6851
  %v6853 = vtanh.pop %v6846
  %v6854 = vmul.f32 %v6852, %v6759
  %6856 = vrot.lane.b32.xlu0 %v6853, 32
  %v6857 = vpop.permute.xlu0 %6856
  %v6859 = vmul.f32 %v6852, %v6857
  %6861 = vrot.lane.b32.xlu0 %v6859, 32
  %v6862 = vpop.permute.xlu0 %6861
  %v6864 = vadd.f32 %v6854, %v6862
  %v6865 = vtanh.pop %v6864
  %6867 = vrot.lane.b32.xlu0 %v6865, 32
  %v6868 = vpop.permute.xlu0 %6867
  %v6870 = vmul.f32 %v6852, %v6868
  %6872 = vrot.lane.b32.xlu0 %v6870, 64
  %v6873 = vpop.permute.xlu0 %6872
  %s6875 = scalar_lea.vmem [#allocation5], 216
  %6876 = vst.msk [vmem:[%s6875] sm:$0xff] %vm412, %v6873
  %s6877 = scalar_lea.vmem [#allocation4], 224
  %v6878 = vld [vmem:[%s6877] sm:$0xff]
  %v6879 = vsel %vm412, %v6873, 0
  %6881 = vmatprep.subr.mxu0 0.0
  %6882 = vmatpush1.msra.mxu0 0.0
  %6883 = vmatprep.subr.mxu0 0.0
  %6884 = vmatpush1.msra.mxu0 0.0
  %6885 = vmatprep.subr.mxu0 0.0
  %6886 = vmatpush1.msra.mxu0 0.0
  %6887 = vmatprep.subr.mxu0 0.0
  %6888 = vmatpush1.msra.mxu0 0.0
  %6889 = vmatprep.subr.mxu0 0.0
  %6890 = vmatpush1.msra.mxu0 0.0
  %6891 = vmatprep.subr.mxu0 0.0
  %6892 = vmatpush1.msra.mxu0 0.0
  %6893 = vmatprep.subr.mxu0 0.0
  %6894 = vmatpush1.msra.mxu0 0.0
  %6895 = vmatprep.subr.mxu0 0.0
  %6896 = vmatpush1.msra.mxu0 0.0
  %6897 = vmatprep.subr.mxu0 0.0
  %6898 = vmatpush1.msra.mxu0 0.0
  %6899 = vmatprep.subr.mxu0 0.0
  %6900 = vmatpush1.msra.mxu0 0.0
  %6901 = vmatprep.subr.mxu0 0.0
  %6902 = vmatpush1.msra.mxu0 0.0
  %6903 = vmatprep.subr.mxu0 0.0
  %6904 = vmatpush1.msra.mxu0 0.0
  %6905 = vmatprep.subr.mxu0 0.0
  %6906 = vmatpush1.msra.mxu0 %v3598
  %6907 = vmatprep.subr.mxu0 0.0
  %6908 = vmatpush1.msra.mxu0 %v3597
  %6909 = vmatprep.subr.mxu0 0.0
  %6910 = vmatpush1.msra.mxu0 %v3596
  %6911 = vmatprep.subr.mxu0 0.0
  %6912 = vmatpush1.msra.mxu0 %v3595
  %6913 = vmatprep.subr.mxu0 0.0
  %6914 = vmatpush2.msra.mxu0 0.0
  %6915 = vmatprep.subr.mxu0 0.0
  %6916 = vmatpush2.msra.mxu0 0.0
  %6917 = vmatprep.subr.mxu0 0.0
  %6918 = vmatpush2.msra.mxu0 0.0
  %6919 = vmatprep.subr.mxu0 0.0
  %6920 = vmatpush2.msra.mxu0 0.0
  %6921 = vmatprep.subr.mxu0 0.0
  %6922 = vmatpush2.msra.mxu0 0.0
  %6923 = vmatprep.subr.mxu0 0.0
  %6924 = vmatpush2.msra.mxu0 0.0
  %6925 = vmatprep.subr.mxu0 0.0
  %6926 = vmatpush2.msra.mxu0 0.0
  %6927 = vmatprep.subr.mxu0 0.0
  %6928 = vmatpush2.msra.mxu0 0.0
  %6929 = vmatprep.subr.mxu0 0.0
  %6930 = vmatpush2.msra.mxu0 0.0
  %6931 = vmatprep.subr.mxu0 0.0
  %6932 = vmatpush2.msra.mxu0 0.0
  %6933 = vmatprep.subr.mxu0 0.0
  %6934 = vmatpush2.msra.mxu0 0.0
  %6935 = vmatprep.subr.mxu0 0.0
  %6936 = vmatpush2.msra.mxu0 0.0
  %6937 = vmatprep.subr.mxu0 0.0
  %6938 = vmatpush2.msra.mxu0 0.0
  %6939 = vmatprep.subr.mxu0 0.0
  %6940 = vmatpush2.msra.mxu0 0.0
  %6941 = vmatprep.subr.mxu0 0.0
  %6942 = vmatpush2.msra.mxu0 0.0
  %6943 = vmatprep.subr.mxu0 0.0
  %6944 = vmatpush2.msra.mxu0 0.0
  %6945 = vmatprep.mubr.f32.mxu0 0.0
  %6946 = vmatmul.mubr.f32.gmra.mxu0 %v6879
  %v6947 = vpop.f32.mrf.mxu0
  %v6948 = vadd.f32 0.0, %v6947
  %v6949 = vpop.f32.mrf.mxu0
  %6950 = vdwg.mxu0
  %v6951 = vadd.f32 %v6878, %v6948
  %v6952 = vxor.u32 %v6951, 2147483648
  %v6953 = vmul.f32 %v6952, 1.442695
  %v6954 = vpow.pop %v6953
  %v6955 = vadd.f32 %v6954, 1.0
  %v6956 = vrcp.pop %v6955
  %v6957 = vmul.f32 1.0, %v6956
  %v6958 = vtanh.pop %v6951
  %v6959 = vmul.f32 %v6957, %v6864
  %6961 = vrot.lane.b32.xlu0 %v6958, 32
  %v6962 = vpop.permute.xlu0 %6961
  %v6964 = vmul.f32 %v6957, %v6962
  %6966 = vrot.lane.b32.xlu0 %v6964, 32
  %v6967 = vpop.permute.xlu0 %6966
  %v6969 = vadd.f32 %v6959, %v6967
  %v6970 = vtanh.pop %v6969
  %6972 = vrot.lane.b32.xlu0 %v6970, 32
  %v6973 = vpop.permute.xlu0 %6972
  %v6975 = vmul.f32 %v6957, %v6973
  %6977 = vrot.lane.b32.xlu0 %v6975, 64
  %v6978 = vpop.permute.xlu0 %6977
  %s6980 = scalar_lea.vmem [#allocation5], 224
  %6981 = vst.msk [vmem:[%s6980] sm:$0xff] %vm412, %v6978
  %s6982 = scalar_lea.vmem [#allocation4], 232
  %v6983 = vld [vmem:[%s6982] sm:$0xff]
  %v6984 = vsel %vm412, %v6978, 0
  %6986 = vmatprep.subr.mxu0 0.0
  %6987 = vmatpush1.msra.mxu0 0.0
  %6988 = vmatprep.subr.mxu0 0.0
  %6989 = vmatpush1.msra.mxu0 0.0
  %6990 = vmatprep.subr.mxu0 0.0
  %6991 = vmatpush1.msra.mxu0 0.0
  %6992 = vmatprep.subr.mxu0 0.0
  %6993 = vmatpush1.msra.mxu0 0.0
  %6994 = vmatprep.subr.mxu0 0.0
  %6995 = vmatpush1.msra.mxu0 0.0
  %6996 = vmatprep.subr.mxu0 0.0
  %6997 = vmatpush1.msra.mxu0 0.0
  %6998 = vmatprep.subr.mxu0 0.0
  %6999 = vmatpush1.msra.mxu0 0.0
  %7000 = vmatprep.subr.mxu0 0.0
  %7001 = vmatpush1.msra.mxu0 0.0
  %7002 = vmatprep.subr.mxu0 0.0
  %7003 = vmatpush1.msra.mxu0 0.0
  %7004 = vmatprep.subr.mxu0 0.0
  %7005 = vmatpush1.msra.mxu0 0.0
  %7006 = vmatprep.subr.mxu0 0.0
  %7007 = vmatpush1.msra.mxu0 0.0
  %7008 = vmatprep.subr.mxu0 0.0
  %7009 = vmatpush1.msra.mxu0 0.0
  %7010 = vmatprep.subr.mxu0 0.0
  %7011 = vmatpush1.msra.mxu0 %v3598
  %7012 = vmatprep.subr.mxu0 0.0
  %7013 = vmatpush1.msra.mxu0 %v3597
  %7014 = vmatprep.subr.mxu0 0.0
  %7015 = vmatpush1.msra.mxu0 %v3596
  %7016 = vmatprep.subr.mxu0 0.0
  %7017 = vmatpush1.msra.mxu0 %v3595
  %7018 = vmatprep.subr.mxu0 0.0
  %7019 = vmatpush2.msra.mxu0 0.0
  %7020 = vmatprep.subr.mxu0 0.0
  %7021 = vmatpush2.msra.mxu0 0.0
  %7022 = vmatprep.subr.mxu0 0.0
  %7023 = vmatpush2.msra.mxu0 0.0
  %7024 = vmatprep.subr.mxu0 0.0
  %7025 = vmatpush2.msra.mxu0 0.0
  %7026 = vmatprep.subr.mxu0 0.0
  %7027 = vmatpush2.msra.mxu0 0.0
  %7028 = vmatprep.subr.mxu0 0.0
  %7029 = vmatpush2.msra.mxu0 0.0
  %7030 = vmatprep.subr.mxu0 0.0
  %7031 = vmatpush2.msra.mxu0 0.0
  %7032 = vmatprep.subr.mxu0 0.0
  %7033 = vmatpush2.msra.mxu0 0.0
  %7034 = vmatprep.subr.mxu0 0.0
  %7035 = vmatpush2.msra.mxu0 0.0
  %7036 = vmatprep.subr.mxu0 0.0
  %7037 = vmatpush2.msra.mxu0 0.0
  %7038 = vmatprep.subr.mxu0 0.0
  %7039 = vmatpush2.msra.mxu0 0.0
  %7040 = vmatprep.subr.mxu0 0.0
  %7041 = vmatpush2.msra.mxu0 0.0
  %7042 = vmatprep.subr.mxu0 0.0
  %7043 = vmatpush2.msra.mxu0 0.0
  %7044 = vmatprep.subr.mxu0 0.0
  %7045 = vmatpush2.msra.mxu0 0.0
  %7046 = vmatprep.subr.mxu0 0.0
  %7047 = vmatpush2.msra.mxu0 0.0
  %7048 = vmatprep.subr.mxu0 0.0
  %7049 = vmatpush2.msra.mxu0 0.0
  %7050 = vmatprep.mubr.f32.mxu0 0.0
  %7051 = vmatmul.mubr.f32.gmra.mxu0 %v6984
  %v7052 = vpop.f32.mrf.mxu0
  %v7053 = vadd.f32 0.0, %v7052
  %v7054 = vpop.f32.mrf.mxu0
  %7055 = vdwg.mxu0
  %v7056 = vadd.f32 %v6983, %v7053
  %v7057 = vxor.u32 %v7056, 2147483648
  %v7058 = vmul.f32 %v7057, 1.442695
  %v7059 = vpow.pop %v7058
  %v7060 = vadd.f32 %v7059, 1.0
  %v7061 = vrcp.pop %v7060
  %v7062 = vmul.f32 1.0, %v7061
  %v7063 = vtanh.pop %v7056
  %v7064 = vmul.f32 %v7062, %v6969
  %7066 = vrot.lane.b32.xlu0 %v7063, 32
  %v7067 = vpop.permute.xlu0 %7066
  %v7069 = vmul.f32 %v7062, %v7067
  %7071 = vrot.lane.b32.xlu0 %v7069, 32
  %v7072 = vpop.permute.xlu0 %7071
  %v7074 = vadd.f32 %v7064, %v7072
  %v7075 = vtanh.pop %v7074
  %7077 = vrot.lane.b32.xlu0 %v7075, 32
  %v7078 = vpop.permute.xlu0 %7077
  %v7080 = vmul.f32 %v7062, %v7078
  %7082 = vrot.lane.b32.xlu0 %v7080, 64
  %v7083 = vpop.permute.xlu0 %7082
  %s7085 = scalar_lea.vmem [#allocation5], 232
  %7086 = vst.msk [vmem:[%s7085] sm:$0xff] %vm412, %v7083
  %v7087 = vld [vmem:[#allocation5] sm:$0xff]
  %v7088 = vld [vmem:[#allocation5 + $0x8] sm:$0xff]
  %v7089 = vld [vmem:[#allocation5 + $0x10] sm:$0xff]
  %v7090 = vld [vmem:[#allocation5 + $0x18] sm:$0xff]
  %v7091 = vld [vmem:[#allocation5 + $0x20] sm:$0xff]
  %v7092 = vld [vmem:[#allocation5 + $0x28] sm:$0xff]
  %v7093 = vld [vmem:[#allocation5 + $0x30] sm:$0xff]
  %v7094 = vld [vmem:[#allocation5 + $0x38] sm:$0xff]
  %v7095 = vld [vmem:[#allocation5 + $0x40] sm:$0xff]
  %v7096 = vld [vmem:[#allocation5 + $0x48] sm:$0xff]
  %v7097 = vld [vmem:[#allocation5 + $0x50] sm:$0xff]
  %v7098 = vld [vmem:[#allocation5 + $0x58] sm:$0xff]
  %v7099 = vld [vmem:[#allocation5 + $0x60] sm:$0xff]
  %v7100 = vld [vmem:[#allocation5 + $0x68] sm:$0xff]
  %v7101 = vld [vmem:[#allocation5 + $0x70] sm:$0xff]
  %v7102 = vld [vmem:[#allocation5 + $0x78] sm:$0xff]
  %v7103 = vld [vmem:[#allocation5 + $0x80] sm:$0xff]
  %v7104 = vld [vmem:[#allocation5 + $0x88] sm:$0xff]
  %v7105 = vld [vmem:[#allocation5 + $0x90] sm:$0xff]
  %v7106 = vld [vmem:[#allocation5 + $0x98] sm:$0xff]
  %v7107 = vld [vmem:[#allocation5 + $0xa0] sm:$0xff]
  %v7108 = vld [vmem:[#allocation5 + $0xa8] sm:$0xff]
  %v7109 = vld [vmem:[#allocation5 + $0xb0] sm:$0xff]
  %v7110 = vld [vmem:[#allocation5 + $0xb8] sm:$0xff]
  %v7111 = vld [vmem:[#allocation5 + $0xc0] sm:$0xff]
  %v7112 = vld [vmem:[#allocation5 + $0xc8] sm:$0xff]
  %v7113 = vld [vmem:[#allocation5 + $0xd0] sm:$0xff]
  %v7114 = vld [vmem:[#allocation5 + $0xd8] sm:$0xff]
  %v7115 = vld [vmem:[#allocation5 + $0xe0] sm:$0xff]
  %v7116 = vld [vmem:[#allocation5 + $0xe8] sm:$0xff]
  %v7117 = vld [vmem:[%s7] sm:$0xff]
  %v7118 = vld [vmem:[%s7 + $0x8] sm:$0xff]
  %v7119 = vld [vmem:[%s7 + $0x10] sm:$0xff]
  %v7120 = vld [vmem:[%s7 + $0x18] sm:$0xff]
  %v7121 = vld [vmem:[%s7 + $0x20] sm:$0xff]
  %v7122 = vld [vmem:[%s7 + $0x28] sm:$0xff]
  %v7123 = vld [vmem:[%s7 + $0x30] sm:$0xff]
  %v7124 = vld [vmem:[%s7 + $0x38] sm:$0xff]
  %v7125 = vld [vmem:[%s7 + $0x40] sm:$0xff]
  %v7126 = vld [vmem:[%s7 + $0x48] sm:$0xff]
  %v7127 = vld [vmem:[%s7 + $0x50] sm:$0xff]
  %v7128 = vld [vmem:[%s7 + $0x58] sm:$0xff]
  %v7129 = vld [vmem:[%s7 + $0x60] sm:$0xff]
  %v7130 = vld [vmem:[%s7 + $0x68] sm:$0xff]
  %v7131 = vld [vmem:[%s7 + $0x70] sm:$0xff]
  %v7132 = vld [vmem:[%s7 + $0x78] sm:$0xff]
  %v7133 = vld [vmem:[%s7 + $0x80] sm:$0xff]
  %v7134 = vld [vmem:[%s7 + $0x88] sm:$0xff]
  %v7135 = vld [vmem:[%s7 + $0x90] sm:$0xff]
  %v7136 = vld [vmem:[%s7 + $0x98] sm:$0xff]
  %v7137 = vld [vmem:[%s7 + $0xa0] sm:$0xff]
  %v7138 = vld [vmem:[%s7 + $0xa8] sm:$0xff]
  %v7139 = vld [vmem:[%s7 + $0xb0] sm:$0xff]
  %v7140 = vld [vmem:[%s7 + $0xb8] sm:$0xff]
  %v7141 = vld [vmem:[%s7 + $0xc0] sm:$0xff]
  %v7142 = vld [vmem:[%s7 + $0xc8] sm:$0xff]
  %v7143 = vld [vmem:[%s7 + $0xd0] sm:$0xff]
  %v7144 = vld [vmem:[%s7 + $0xd8] sm:$0xff]
  %v7145 = vld [vmem:[%s7 + $0xe0] sm:$0xff]
  %v7146 = vld [vmem:[%s7 + $0xe8] sm:$0xff]
  %v7147 = vld [vmem:[%s7 + $0xf0] sm:$0xff]
  %v7148 = vld [vmem:[%s7 + $0xf8] sm:$0xff]
  %v7149 = vld [vmem:[%s7 + $0x100] sm:$0xff]
  %v7150 = vld [vmem:[%s7 + $0x108] sm:$0xff]
  %v7151 = vld [vmem:[%s7 + $0x110] sm:$0xff]
  %v7152 = vld [vmem:[%s7 + $0x118] sm:$0xff]
  %v7153 = vld [vmem:[%s7 + $0x120] sm:$0xff]
  %v7154 = vld [vmem:[%s7 + $0x128] sm:$0xff]
  %v7155 = vld [vmem:[%s7 + $0x130] sm:$0xff]
  %v7156 = vld [vmem:[%s7 + $0x138] sm:$0xff]
  %v7157 = vld [vmem:[%s7 + $0x140] sm:$0xff]
  %v7158 = vld [vmem:[%s7 + $0x148] sm:$0xff]
  %v7159 = vld [vmem:[%s7 + $0x150] sm:$0xff]
  %v7160 = vld [vmem:[%s7 + $0x158] sm:$0xff]
  %v7161 = vld [vmem:[%s7 + $0x160] sm:$0xff]
  %v7162 = vld [vmem:[%s7 + $0x168] sm:$0xff]
  %v7163 = vld [vmem:[%s7 + $0x170] sm:$0xff]
  %v7164 = vld [vmem:[%s7 + $0x178] sm:$0xff]
  %v7165 = vld [vmem:[%s7 + $0x180] sm:$0xff]
  %v7166 = vld [vmem:[%s7 + $0x188] sm:$0xff]
  %v7167 = vld [vmem:[%s7 + $0x190] sm:$0xff]
  %v7168 = vld [vmem:[%s7 + $0x198] sm:$0xff]
  %v7169 = vld [vmem:[%s7 + $0x1a0] sm:$0xff]
  %v7170 = vld [vmem:[%s7 + $0x1a8] sm:$0xff]
  %v7171 = vld [vmem:[%s7 + $0x1b0] sm:$0xff]
  %v7172 = vld [vmem:[%s7 + $0x1b8] sm:$0xff]
  %v7173 = vld [vmem:[%s7 + $0x1c0] sm:$0xff]
  %v7174 = vld [vmem:[%s7 + $0x1c8] sm:$0xff]
  %v7175 = vld [vmem:[%s7 + $0x1d0] sm:$0xff]
  %v7176 = vld [vmem:[%s7 + $0x1d8] sm:$0xff]
  %v7177 = vld [vmem:[%s7 + $0x1e0] sm:$0xff]
  %v7178 = vld [vmem:[%s7 + $0x1e8] sm:$0xff]
  %v7179 = vld [vmem:[%s7 + $0x1f0] sm:$0xff]
  %v7180 = vld [vmem:[%s7 + $0x1f8] sm:$0xff]
  %v7181 = vld [vmem:[%s7 + $0x200] sm:$0xff]
  %v7182 = vld [vmem:[%s7 + $0x208] sm:$0xff]
  %v7183 = vld [vmem:[%s7 + $0x210] sm:$0xff]
  %v7184 = vld [vmem:[%s7 + $0x218] sm:$0xff]
  %v7185 = vld [vmem:[%s7 + $0x220] sm:$0xff]
  %v7186 = vld [vmem:[%s7 + $0x228] sm:$0xff]
  %v7187 = vld [vmem:[%s7 + $0x230] sm:$0xff]
  %v7188 = vld [vmem:[%s7 + $0x238] sm:$0xff]
  %v7189 = vld [vmem:[%s7 + $0x240] sm:$0xff]
  %v7190 = vld [vmem:[%s7 + $0x248] sm:$0xff]
  %v7191 = vld [vmem:[%s7 + $0x250] sm:$0xff]
  %v7192 = vld [vmem:[%s7 + $0x258] sm:$0xff]
  %v7193 = vld [vmem:[%s7 + $0x260] sm:$0xff]
  %v7194 = vld [vmem:[%s7 + $0x268] sm:$0xff]
  %v7195 = vld [vmem:[%s7 + $0x270] sm:$0xff]
  %v7196 = vld [vmem:[%s7 + $0x278] sm:$0xff]
  %v7197 = vld [vmem:[%s7 + $0x280] sm:$0xff]
  %v7198 = vld [vmem:[%s7 + $0x288] sm:$0xff]
  %v7199 = vld [vmem:[%s7 + $0x290] sm:$0xff]
  %v7200 = vld [vmem:[%s7 + $0x298] sm:$0xff]
  %v7201 = vld [vmem:[%s7 + $0x2a0] sm:$0xff]
  %v7202 = vld [vmem:[%s7 + $0x2a8] sm:$0xff]
  %v7203 = vld [vmem:[%s7 + $0x2b0] sm:$0xff]
  %v7204 = vld [vmem:[%s7 + $0x2b8] sm:$0xff]
  %v7205 = vld [vmem:[%s7 + $0x2c0] sm:$0xff]
  %v7206 = vld [vmem:[%s7 + $0x2c8] sm:$0xff]
  %v7207 = vld [vmem:[%s7 + $0x2d0] sm:$0xff]
  %v7208 = vld [vmem:[%s7 + $0x2d8] sm:$0xff]
  %v7209 = vld [vmem:[%s7 + $0x2e0] sm:$0xff]
  %v7210 = vld [vmem:[%s7 + $0x2e8] sm:$0xff]
  %v7211 = vld [vmem:[%s7 + $0x2f0] sm:$0xff]
  %v7212 = vld [vmem:[%s7 + $0x2f8] sm:$0xff]
  %v7213 = vld [vmem:[%s7 + $0x300] sm:$0xff]
  %v7214 = vld [vmem:[%s7 + $0x308] sm:$0xff]
  %v7215 = vld [vmem:[%s7 + $0x310] sm:$0xff]
  %v7216 = vld [vmem:[%s7 + $0x318] sm:$0xff]
  %v7217 = vld [vmem:[%s7 + $0x320] sm:$0xff]
  %v7218 = vld [vmem:[%s7 + $0x328] sm:$0xff]
  %v7219 = vld [vmem:[%s7 + $0x330] sm:$0xff]
  %v7220 = vld [vmem:[%s7 + $0x338] sm:$0xff]
  %v7221 = vld [vmem:[%s7 + $0x340] sm:$0xff]
  %v7222 = vld [vmem:[%s7 + $0x348] sm:$0xff]
  %v7223 = vld [vmem:[%s7 + $0x350] sm:$0xff]
  %v7224 = vld [vmem:[%s7 + $0x358] sm:$0xff]
  %v7225 = vld [vmem:[%s7 + $0x360] sm:$0xff]
  %v7226 = vld [vmem:[%s7 + $0x368] sm:$0xff]
  %v7227 = vld [vmem:[%s7 + $0x370] sm:$0xff]
  %v7228 = vld [vmem:[%s7 + $0x378] sm:$0xff]
  %v7229 = vld [vmem:[%s7 + $0x380] sm:$0xff]
  %v7230 = vld [vmem:[%s7 + $0x388] sm:$0xff]
  %v7231 = vld [vmem:[%s7 + $0x390] sm:$0xff]
  %v7232 = vld [vmem:[%s7 + $0x398] sm:$0xff]
  %v7233 = vld [vmem:[%s7 + $0x3a0] sm:$0xff]
  %v7234 = vld [vmem:[%s7 + $0x3a8] sm:$0xff]
  %v7235 = vld [vmem:[%s7 + $0x3b0] sm:$0xff]
  %v7236 = vld [vmem:[%s7 + $0x3b8] sm:$0xff]
  %v7238 = vsel %vm412, %v7087, 0
  %7240 = vmatprep.subr.mxu0 0.0
  %7241 = vmatpush1.msra.mxu0 0.0
  %7242 = vmatprep.subr.mxu0 0.0
  %7243 = vmatpush1.msra.mxu0 0.0
  %7244 = vmatprep.subr.mxu0 0.0
  %7245 = vmatpush1.msra.mxu0 0.0
  %7246 = vmatprep.subr.mxu0 0.0
  %7247 = vmatpush1.msra.mxu0 0.0
  %7248 = vmatprep.subr.mxu0 0.0
  %7249 = vmatpush1.msra.mxu0 0.0
  %7250 = vmatprep.subr.mxu0 0.0
  %7251 = vmatpush1.msra.mxu0 0.0
  %7252 = vmatprep.subr.mxu0 0.0
  %7253 = vmatpush1.msra.mxu0 0.0
  %7254 = vmatprep.subr.mxu0 0.0
  %7255 = vmatpush1.msra.mxu0 0.0
  %7256 = vmatprep.subr.mxu0 0.0
  %7257 = vmatpush1.msra.mxu0 0.0
  %7258 = vmatprep.subr.mxu0 0.0
  %7259 = vmatpush1.msra.mxu0 0.0
  %7260 = vmatprep.subr.mxu0 0.0
  %7261 = vmatpush1.msra.mxu0 0.0
  %7262 = vmatprep.subr.mxu0 0.0
  %7263 = vmatpush1.msra.mxu0 0.0
  %7264 = vmatprep.subr.mxu0 0.0
  %7265 = vmatpush1.msra.mxu0 %v7120
  %7266 = vmatprep.subr.mxu0 0.0
  %7267 = vmatpush1.msra.mxu0 %v7119
  %7268 = vmatprep.subr.mxu0 0.0
  %7269 = vmatpush1.msra.mxu0 %v7118
  %7270 = vmatprep.subr.mxu0 0.0
  %7271 = vmatpush1.msra.mxu0 %v7117
  %7272 = vmatprep.subr.mxu0 0.0
  %7273 = vmatpush2.msra.mxu0 0.0
  %7274 = vmatprep.subr.mxu0 0.0
  %7275 = vmatpush2.msra.mxu0 0.0
  %7276 = vmatprep.subr.mxu0 0.0
  %7277 = vmatpush2.msra.mxu0 0.0
  %7278 = vmatprep.subr.mxu0 0.0
  %7279 = vmatpush2.msra.mxu0 0.0
  %7280 = vmatprep.subr.mxu0 0.0
  %7281 = vmatpush2.msra.mxu0 0.0
  %7282 = vmatprep.subr.mxu0 0.0
  %7283 = vmatpush2.msra.mxu0 0.0
  %7284 = vmatprep.subr.mxu0 0.0
  %7285 = vmatpush2.msra.mxu0 0.0
  %7286 = vmatprep.subr.mxu0 0.0
  %7287 = vmatpush2.msra.mxu0 0.0
  %7288 = vmatprep.subr.mxu0 0.0
  %7289 = vmatpush2.msra.mxu0 0.0
  %7290 = vmatprep.subr.mxu0 0.0
  %7291 = vmatpush2.msra.mxu0 0.0
  %7292 = vmatprep.subr.mxu0 0.0
  %7293 = vmatpush2.msra.mxu0 0.0
  %7294 = vmatprep.subr.mxu0 0.0
  %7295 = vmatpush2.msra.mxu0 0.0
  %7296 = vmatprep.subr.mxu0 0.0
  %7297 = vmatpush2.msra.mxu0 0.0
  %7298 = vmatprep.subr.mxu0 0.0
  %7299 = vmatpush2.msra.mxu0 0.0
  %7300 = vmatprep.subr.mxu0 0.0
  %7301 = vmatpush2.msra.mxu0 0.0
  %7302 = vmatprep.subr.mxu0 0.0
  %7303 = vmatpush2.msra.mxu0 0.0
  %7304 = vmatprep.mubr.f32.mxu0 0.0
  %7305 = vmatmul.mubr.f32.gmra.mxu0 %v7238
  %v7306 = vpop.f32.mrf.mxu0
  %v7307 = vadd.f32 0.0, %v7306
  %v7308 = vpop.f32.mrf.mxu0
  %7309 = vdwg.mxu0
  %v7311 = vsel %vm412, %v7088, 0
  %7313 = vmatprep.subr.mxu0 0.0
  %7314 = vmatpush1.msra.mxu0 0.0
  %7315 = vmatprep.subr.mxu0 0.0
  %7316 = vmatpush1.msra.mxu0 0.0
  %7317 = vmatprep.subr.mxu0 0.0
  %7318 = vmatpush1.msra.mxu0 0.0
  %7319 = vmatprep.subr.mxu0 0.0
  %7320 = vmatpush1.msra.mxu0 0.0
  %7321 = vmatprep.subr.mxu0 0.0
  %7322 = vmatpush1.msra.mxu0 0.0
  %7323 = vmatprep.subr.mxu0 0.0
  %7324 = vmatpush1.msra.mxu0 0.0
  %7325 = vmatprep.subr.mxu0 0.0
  %7326 = vmatpush1.msra.mxu0 0.0
  %7327 = vmatprep.subr.mxu0 0.0
  %7328 = vmatpush1.msra.mxu0 0.0
  %7329 = vmatprep.subr.mxu0 0.0
  %7330 = vmatpush1.msra.mxu0 0.0
  %7331 = vmatprep.subr.mxu0 0.0
  %7332 = vmatpush1.msra.mxu0 0.0
  %7333 = vmatprep.subr.mxu0 0.0
  %7334 = vmatpush1.msra.mxu0 0.0
  %7335 = vmatprep.subr.mxu0 0.0
  %7336 = vmatpush1.msra.mxu0 0.0
  %7337 = vmatprep.subr.mxu0 0.0
  %7338 = vmatpush1.msra.mxu0 %v7124
  %7339 = vmatprep.subr.mxu0 0.0
  %7340 = vmatpush1.msra.mxu0 %v7123
  %7341 = vmatprep.subr.mxu0 0.0
  %7342 = vmatpush1.msra.mxu0 %v7122
  %7343 = vmatprep.subr.mxu0 0.0
  %7344 = vmatpush1.msra.mxu0 %v7121
  %7345 = vmatprep.subr.mxu0 0.0
  %7346 = vmatpush2.msra.mxu0 0.0
  %7347 = vmatprep.subr.mxu0 0.0
  %7348 = vmatpush2.msra.mxu0 0.0
  %7349 = vmatprep.subr.mxu0 0.0
  %7350 = vmatpush2.msra.mxu0 0.0
  %7351 = vmatprep.subr.mxu0 0.0
  %7352 = vmatpush2.msra.mxu0 0.0
  %7353 = vmatprep.subr.mxu0 0.0
  %7354 = vmatpush2.msra.mxu0 0.0
  %7355 = vmatprep.subr.mxu0 0.0
  %7356 = vmatpush2.msra.mxu0 0.0
  %7357 = vmatprep.subr.mxu0 0.0
  %7358 = vmatpush2.msra.mxu0 0.0
  %7359 = vmatprep.subr.mxu0 0.0
  %7360 = vmatpush2.msra.mxu0 0.0
  %7361 = vmatprep.subr.mxu0 0.0
  %7362 = vmatpush2.msra.mxu0 0.0
  %7363 = vmatprep.subr.mxu0 0.0
  %7364 = vmatpush2.msra.mxu0 0.0
  %7365 = vmatprep.subr.mxu0 0.0
  %7366 = vmatpush2.msra.mxu0 0.0
  %7367 = vmatprep.subr.mxu0 0.0
  %7368 = vmatpush2.msra.mxu0 0.0
  %7369 = vmatprep.subr.mxu0 0.0
  %7370 = vmatpush2.msra.mxu0 0.0
  %7371 = vmatprep.subr.mxu0 0.0
  %7372 = vmatpush2.msra.mxu0 0.0
  %7373 = vmatprep.subr.mxu0 0.0
  %7374 = vmatpush2.msra.mxu0 0.0
  %7375 = vmatprep.subr.mxu0 0.0
  %7376 = vmatpush2.msra.mxu0 0.0
  %7377 = vmatprep.mubr.f32.mxu0 0.0
  %7378 = vmatmul.mubr.f32.gmra.mxu0 %v7311
  %v7379 = vpop.f32.mrf.mxu0
  %v7380 = vadd.f32 0.0, %v7379
  %v7381 = vpop.f32.mrf.mxu0
  %7382 = vdwg.mxu0
  %v7384 = vsel %vm412, %v7089, 0
  %7386 = vmatprep.subr.mxu0 0.0
  %7387 = vmatpush1.msra.mxu0 0.0
  %7388 = vmatprep.subr.mxu0 0.0
  %7389 = vmatpush1.msra.mxu0 0.0
  %7390 = vmatprep.subr.mxu0 0.0
  %7391 = vmatpush1.msra.mxu0 0.0
  %7392 = vmatprep.subr.mxu0 0.0
  %7393 = vmatpush1.msra.mxu0 0.0
  %7394 = vmatprep.subr.mxu0 0.0
  %7395 = vmatpush1.msra.mxu0 0.0
  %7396 = vmatprep.subr.mxu0 0.0
  %7397 = vmatpush1.msra.mxu0 0.0
  %7398 = vmatprep.subr.mxu0 0.0
  %7399 = vmatpush1.msra.mxu0 0.0
  %7400 = vmatprep.subr.mxu0 0.0
  %7401 = vmatpush1.msra.mxu0 0.0
  %7402 = vmatprep.subr.mxu0 0.0
  %7403 = vmatpush1.msra.mxu0 0.0
  %7404 = vmatprep.subr.mxu0 0.0
  %7405 = vmatpush1.msra.mxu0 0.0
  %7406 = vmatprep.subr.mxu0 0.0
  %7407 = vmatpush1.msra.mxu0 0.0
  %7408 = vmatprep.subr.mxu0 0.0
  %7409 = vmatpush1.msra.mxu0 0.0
  %7410 = vmatprep.subr.mxu0 0.0
  %7411 = vmatpush1.msra.mxu0 %v7128
  %7412 = vmatprep.subr.mxu0 0.0
  %7413 = vmatpush1.msra.mxu0 %v7127
  %7414 = vmatprep.subr.mxu0 0.0
  %7415 = vmatpush1.msra.mxu0 %v7126
  %7416 = vmatprep.subr.mxu0 0.0
  %7417 = vmatpush1.msra.mxu0 %v7125
  %7418 = vmatprep.subr.mxu0 0.0
  %7419 = vmatpush2.msra.mxu0 0.0
  %7420 = vmatprep.subr.mxu0 0.0
  %7421 = vmatpush2.msra.mxu0 0.0
  %7422 = vmatprep.subr.mxu0 0.0
  %7423 = vmatpush2.msra.mxu0 0.0
  %7424 = vmatprep.subr.mxu0 0.0
  %7425 = vmatpush2.msra.mxu0 0.0
  %7426 = vmatprep.subr.mxu0 0.0
  %7427 = vmatpush2.msra.mxu0 0.0
  %7428 = vmatprep.subr.mxu0 0.0
  %7429 = vmatpush2.msra.mxu0 0.0
  %7430 = vmatprep.subr.mxu0 0.0
  %7431 = vmatpush2.msra.mxu0 0.0
  %7432 = vmatprep.subr.mxu0 0.0
  %7433 = vmatpush2.msra.mxu0 0.0
  %7434 = vmatprep.subr.mxu0 0.0
  %7435 = vmatpush2.msra.mxu0 0.0
  %7436 = vmatprep.subr.mxu0 0.0
  %7437 = vmatpush2.msra.mxu0 0.0
  %7438 = vmatprep.subr.mxu0 0.0
  %7439 = vmatpush2.msra.mxu0 0.0
  %7440 = vmatprep.subr.mxu0 0.0
  %7441 = vmatpush2.msra.mxu0 0.0
  %7442 = vmatprep.subr.mxu0 0.0
  %7443 = vmatpush2.msra.mxu0 0.0
  %7444 = vmatprep.subr.mxu0 0.0
  %7445 = vmatpush2.msra.mxu0 0.0
  %7446 = vmatprep.subr.mxu0 0.0
  %7447 = vmatpush2.msra.mxu0 0.0
  %7448 = vmatprep.subr.mxu0 0.0
  %7449 = vmatpush2.msra.mxu0 0.0
  %7450 = vmatprep.mubr.f32.mxu0 0.0
  %7451 = vmatmul.mubr.f32.gmra.mxu0 %v7384
  %v7452 = vpop.f32.mrf.mxu0
  %v7453 = vadd.f32 0.0, %v7452
  %v7454 = vpop.f32.mrf.mxu0
  %7455 = vdwg.mxu0
  %v7457 = vsel %vm412, %v7090, 0
  %7459 = vmatprep.subr.mxu0 0.0
  %7460 = vmatpush1.msra.mxu0 0.0
  %7461 = vmatprep.subr.mxu0 0.0
  %7462 = vmatpush1.msra.mxu0 0.0
  %7463 = vmatprep.subr.mxu0 0.0
  %7464 = vmatpush1.msra.mxu0 0.0
  %7465 = vmatprep.subr.mxu0 0.0
  %7466 = vmatpush1.msra.mxu0 0.0
  %7467 = vmatprep.subr.mxu0 0.0
  %7468 = vmatpush1.msra.mxu0 0.0
  %7469 = vmatprep.subr.mxu0 0.0
  %7470 = vmatpush1.msra.mxu0 0.0
  %7471 = vmatprep.subr.mxu0 0.0
  %7472 = vmatpush1.msra.mxu0 0.0
  %7473 = vmatprep.subr.mxu0 0.0
  %7474 = vmatpush1.msra.mxu0 0.0
  %7475 = vmatprep.subr.mxu0 0.0
  %7476 = vmatpush1.msra.mxu0 0.0
  %7477 = vmatprep.subr.mxu0 0.0
  %7478 = vmatpush1.msra.mxu0 0.0
  %7479 = vmatprep.subr.mxu0 0.0
  %7480 = vmatpush1.msra.mxu0 0.0
  %7481 = vmatprep.subr.mxu0 0.0
  %7482 = vmatpush1.msra.mxu0 0.0
  %7483 = vmatprep.subr.mxu0 0.0
  %7484 = vmatpush1.msra.mxu0 %v7132
  %7485 = vmatprep.subr.mxu0 0.0
  %7486 = vmatpush1.msra.mxu0 %v7131
  %7487 = vmatprep.subr.mxu0 0.0
  %7488 = vmatpush1.msra.mxu0 %v7130
  %7489 = vmatprep.subr.mxu0 0.0
  %7490 = vmatpush1.msra.mxu0 %v7129
  %7491 = vmatprep.subr.mxu0 0.0
  %7492 = vmatpush2.msra.mxu0 0.0
  %7493 = vmatprep.subr.mxu0 0.0
  %7494 = vmatpush2.msra.mxu0 0.0
  %7495 = vmatprep.subr.mxu0 0.0
  %7496 = vmatpush2.msra.mxu0 0.0
  %7497 = vmatprep.subr.mxu0 0.0
  %7498 = vmatpush2.msra.mxu0 0.0
  %7499 = vmatprep.subr.mxu0 0.0
  %7500 = vmatpush2.msra.mxu0 0.0
  %7501 = vmatprep.subr.mxu0 0.0
  %7502 = vmatpush2.msra.mxu0 0.0
  %7503 = vmatprep.subr.mxu0 0.0
  %7504 = vmatpush2.msra.mxu0 0.0
  %7505 = vmatprep.subr.mxu0 0.0
  %7506 = vmatpush2.msra.mxu0 0.0
  %7507 = vmatprep.subr.mxu0 0.0
  %7508 = vmatpush2.msra.mxu0 0.0
  %7509 = vmatprep.subr.mxu0 0.0
  %7510 = vmatpush2.msra.mxu0 0.0
  %7511 = vmatprep.subr.mxu0 0.0
  %7512 = vmatpush2.msra.mxu0 0.0
  %7513 = vmatprep.subr.mxu0 0.0
  %7514 = vmatpush2.msra.mxu0 0.0
  %7515 = vmatprep.subr.mxu0 0.0
  %7516 = vmatpush2.msra.mxu0 0.0
  %7517 = vmatprep.subr.mxu0 0.0
  %7518 = vmatpush2.msra.mxu0 0.0
  %7519 = vmatprep.subr.mxu0 0.0
  %7520 = vmatpush2.msra.mxu0 0.0
  %7521 = vmatprep.subr.mxu0 0.0
  %7522 = vmatpush2.msra.mxu0 0.0
  %7523 = vmatprep.mubr.f32.mxu0 0.0
  %7524 = vmatmul.mubr.f32.gmra.mxu0 %v7457
  %v7525 = vpop.f32.mrf.mxu0
  %v7526 = vadd.f32 0.0, %v7525
  %v7527 = vpop.f32.mrf.mxu0
  %7528 = vdwg.mxu0
  %v7530 = vsel %vm412, %v7091, 0
  %7532 = vmatprep.subr.mxu0 0.0
  %7533 = vmatpush1.msra.mxu0 0.0
  %7534 = vmatprep.subr.mxu0 0.0
  %7535 = vmatpush1.msra.mxu0 0.0
  %7536 = vmatprep.subr.mxu0 0.0
  %7537 = vmatpush1.msra.mxu0 0.0
  %7538 = vmatprep.subr.mxu0 0.0
  %7539 = vmatpush1.msra.mxu0 0.0
  %7540 = vmatprep.subr.mxu0 0.0
  %7541 = vmatpush1.msra.mxu0 0.0
  %7542 = vmatprep.subr.mxu0 0.0
  %7543 = vmatpush1.msra.mxu0 0.0
  %7544 = vmatprep.subr.mxu0 0.0
  %7545 = vmatpush1.msra.mxu0 0.0
  %7546 = vmatprep.subr.mxu0 0.0
  %7547 = vmatpush1.msra.mxu0 0.0
  %7548 = vmatprep.subr.mxu0 0.0
  %7549 = vmatpush1.msra.mxu0 0.0
  %7550 = vmatprep.subr.mxu0 0.0
  %7551 = vmatpush1.msra.mxu0 0.0
  %7552 = vmatprep.subr.mxu0 0.0
  %7553 = vmatpush1.msra.mxu0 0.0
  %7554 = vmatprep.subr.mxu0 0.0
  %7555 = vmatpush1.msra.mxu0 0.0
  %7556 = vmatprep.subr.mxu0 0.0
  %7557 = vmatpush1.msra.mxu0 %v7136
  %7558 = vmatprep.subr.mxu0 0.0
  %7559 = vmatpush1.msra.mxu0 %v7135
  %7560 = vmatprep.subr.mxu0 0.0
  %7561 = vmatpush1.msra.mxu0 %v7134
  %7562 = vmatprep.subr.mxu0 0.0
  %7563 = vmatpush1.msra.mxu0 %v7133
  %7564 = vmatprep.subr.mxu0 0.0
  %7565 = vmatpush2.msra.mxu0 0.0
  %7566 = vmatprep.subr.mxu0 0.0
  %7567 = vmatpush2.msra.mxu0 0.0
  %7568 = vmatprep.subr.mxu0 0.0
  %7569 = vmatpush2.msra.mxu0 0.0
  %7570 = vmatprep.subr.mxu0 0.0
  %7571 = vmatpush2.msra.mxu0 0.0
  %7572 = vmatprep.subr.mxu0 0.0
  %7573 = vmatpush2.msra.mxu0 0.0
  %7574 = vmatprep.subr.mxu0 0.0
  %7575 = vmatpush2.msra.mxu0 0.0
  %7576 = vmatprep.subr.mxu0 0.0
  %7577 = vmatpush2.msra.mxu0 0.0
  %7578 = vmatprep.subr.mxu0 0.0
  %7579 = vmatpush2.msra.mxu0 0.0
  %7580 = vmatprep.subr.mxu0 0.0
  %7581 = vmatpush2.msra.mxu0 0.0
  %7582 = vmatprep.subr.mxu0 0.0
  %7583 = vmatpush2.msra.mxu0 0.0
  %7584 = vmatprep.subr.mxu0 0.0
  %7585 = vmatpush2.msra.mxu0 0.0
  %7586 = vmatprep.subr.mxu0 0.0
  %7587 = vmatpush2.msra.mxu0 0.0
  %7588 = vmatprep.subr.mxu0 0.0
  %7589 = vmatpush2.msra.mxu0 0.0
  %7590 = vmatprep.subr.mxu0 0.0
  %7591 = vmatpush2.msra.mxu0 0.0
  %7592 = vmatprep.subr.mxu0 0.0
  %7593 = vmatpush2.msra.mxu0 0.0
  %7594 = vmatprep.subr.mxu0 0.0
  %7595 = vmatpush2.msra.mxu0 0.0
  %7596 = vmatprep.mubr.f32.mxu0 0.0
  %7597 = vmatmul.mubr.f32.gmra.mxu0 %v7530
  %v7598 = vpop.f32.mrf.mxu0
  %v7599 = vadd.f32 0.0, %v7598
  %v7600 = vpop.f32.mrf.mxu0
  %7601 = vdwg.mxu0
  %v7603 = vsel %vm412, %v7092, 0
  %7605 = vmatprep.subr.mxu0 0.0
  %7606 = vmatpush1.msra.mxu0 0.0
  %7607 = vmatprep.subr.mxu0 0.0
  %7608 = vmatpush1.msra.mxu0 0.0
  %7609 = vmatprep.subr.mxu0 0.0
  %7610 = vmatpush1.msra.mxu0 0.0
  %7611 = vmatprep.subr.mxu0 0.0
  %7612 = vmatpush1.msra.mxu0 0.0
  %7613 = vmatprep.subr.mxu0 0.0
  %7614 = vmatpush1.msra.mxu0 0.0
  %7615 = vmatprep.subr.mxu0 0.0
  %7616 = vmatpush1.msra.mxu0 0.0
  %7617 = vmatprep.subr.mxu0 0.0
  %7618 = vmatpush1.msra.mxu0 0.0
  %7619 = vmatprep.subr.mxu0 0.0
  %7620 = vmatpush1.msra.mxu0 0.0
  %7621 = vmatprep.subr.mxu0 0.0
  %7622 = vmatpush1.msra.mxu0 0.0
  %7623 = vmatprep.subr.mxu0 0.0
  %7624 = vmatpush1.msra.mxu0 0.0
  %7625 = vmatprep.subr.mxu0 0.0
  %7626 = vmatpush1.msra.mxu0 0.0
  %7627 = vmatprep.subr.mxu0 0.0
  %7628 = vmatpush1.msra.mxu0 0.0
  %7629 = vmatprep.subr.mxu0 0.0
  %7630 = vmatpush1.msra.mxu0 %v7140
  %7631 = vmatprep.subr.mxu0 0.0
  %7632 = vmatpush1.msra.mxu0 %v7139
  %7633 = vmatprep.subr.mxu0 0.0
  %7634 = vmatpush1.msra.mxu0 %v7138
  %7635 = vmatprep.subr.mxu0 0.0
  %7636 = vmatpush1.msra.mxu0 %v7137
  %7637 = vmatprep.subr.mxu0 0.0
  %7638 = vmatpush2.msra.mxu0 0.0
  %7639 = vmatprep.subr.mxu0 0.0
  %7640 = vmatpush2.msra.mxu0 0.0
  %7641 = vmatprep.subr.mxu0 0.0
  %7642 = vmatpush2.msra.mxu0 0.0
  %7643 = vmatprep.subr.mxu0 0.0
  %7644 = vmatpush2.msra.mxu0 0.0
  %7645 = vmatprep.subr.mxu0 0.0
  %7646 = vmatpush2.msra.mxu0 0.0
  %7647 = vmatprep.subr.mxu0 0.0
  %7648 = vmatpush2.msra.mxu0 0.0
  %7649 = vmatprep.subr.mxu0 0.0
  %7650 = vmatpush2.msra.mxu0 0.0
  %7651 = vmatprep.subr.mxu0 0.0
  %7652 = vmatpush2.msra.mxu0 0.0
  %7653 = vmatprep.subr.mxu0 0.0
  %7654 = vmatpush2.msra.mxu0 0.0
  %7655 = vmatprep.subr.mxu0 0.0
  %7656 = vmatpush2.msra.mxu0 0.0
  %7657 = vmatprep.subr.mxu0 0.0
  %7658 = vmatpush2.msra.mxu0 0.0
  %7659 = vmatprep.subr.mxu0 0.0
  %7660 = vmatpush2.msra.mxu0 0.0
  %7661 = vmatprep.subr.mxu0 0.0
  %7662 = vmatpush2.msra.mxu0 0.0
  %7663 = vmatprep.subr.mxu0 0.0
  %7664 = vmatpush2.msra.mxu0 0.0
  %7665 = vmatprep.subr.mxu0 0.0
  %7666 = vmatpush2.msra.mxu0 0.0
  %7667 = vmatprep.subr.mxu0 0.0
  %7668 = vmatpush2.msra.mxu0 0.0
  %7669 = vmatprep.mubr.f32.mxu0 0.0
  %7670 = vmatmul.mubr.f32.gmra.mxu0 %v7603
  %v7671 = vpop.f32.mrf.mxu0
  %v7672 = vadd.f32 0.0, %v7671
  %v7673 = vpop.f32.mrf.mxu0
  %7674 = vdwg.mxu0
  %v7676 = vsel %vm412, %v7093, 0
  %7678 = vmatprep.subr.mxu0 0.0
  %7679 = vmatpush1.msra.mxu0 0.0
  %7680 = vmatprep.subr.mxu0 0.0
  %7681 = vmatpush1.msra.mxu0 0.0
  %7682 = vmatprep.subr.mxu0 0.0
  %7683 = vmatpush1.msra.mxu0 0.0
  %7684 = vmatprep.subr.mxu0 0.0
  %7685 = vmatpush1.msra.mxu0 0.0
  %7686 = vmatprep.subr.mxu0 0.0
  %7687 = vmatpush1.msra.mxu0 0.0
  %7688 = vmatprep.subr.mxu0 0.0
  %7689 = vmatpush1.msra.mxu0 0.0
  %7690 = vmatprep.subr.mxu0 0.0
  %7691 = vmatpush1.msra.mxu0 0.0
  %7692 = vmatprep.subr.mxu0 0.0
  %7693 = vmatpush1.msra.mxu0 0.0
  %7694 = vmatprep.subr.mxu0 0.0
  %7695 = vmatpush1.msra.mxu0 0.0
  %7696 = vmatprep.subr.mxu0 0.0
  %7697 = vmatpush1.msra.mxu0 0.0
  %7698 = vmatprep.subr.mxu0 0.0
  %7699 = vmatpush1.msra.mxu0 0.0
  %7700 = vmatprep.subr.mxu0 0.0
  %7701 = vmatpush1.msra.mxu0 0.0
  %7702 = vmatprep.subr.mxu0 0.0
  %7703 = vmatpush1.msra.mxu0 %v7144
  %7704 = vmatprep.subr.mxu0 0.0
  %7705 = vmatpush1.msra.mxu0 %v7143
  %7706 = vmatprep.subr.mxu0 0.0
  %7707 = vmatpush1.msra.mxu0 %v7142
  %7708 = vmatprep.subr.mxu0 0.0
  %7709 = vmatpush1.msra.mxu0 %v7141
  %7710 = vmatprep.subr.mxu0 0.0
  %7711 = vmatpush2.msra.mxu0 0.0
  %7712 = vmatprep.subr.mxu0 0.0
  %7713 = vmatpush2.msra.mxu0 0.0
  %7714 = vmatprep.subr.mxu0 0.0
  %7715 = vmatpush2.msra.mxu0 0.0
  %7716 = vmatprep.subr.mxu0 0.0
  %7717 = vmatpush2.msra.mxu0 0.0
  %7718 = vmatprep.subr.mxu0 0.0
  %7719 = vmatpush2.msra.mxu0 0.0
  %7720 = vmatprep.subr.mxu0 0.0
  %7721 = vmatpush2.msra.mxu0 0.0
  %7722 = vmatprep.subr.mxu0 0.0
  %7723 = vmatpush2.msra.mxu0 0.0
  %7724 = vmatprep.subr.mxu0 0.0
  %7725 = vmatpush2.msra.mxu0 0.0
  %7726 = vmatprep.subr.mxu0 0.0
  %7727 = vmatpush2.msra.mxu0 0.0
  %7728 = vmatprep.subr.mxu0 0.0
  %7729 = vmatpush2.msra.mxu0 0.0
  %7730 = vmatprep.subr.mxu0 0.0
  %7731 = vmatpush2.msra.mxu0 0.0
  %7732 = vmatprep.subr.mxu0 0.0
  %7733 = vmatpush2.msra.mxu0 0.0
  %7734 = vmatprep.subr.mxu0 0.0
  %7735 = vmatpush2.msra.mxu0 0.0
  %7736 = vmatprep.subr.mxu0 0.0
  %7737 = vmatpush2.msra.mxu0 0.0
  %7738 = vmatprep.subr.mxu0 0.0
  %7739 = vmatpush2.msra.mxu0 0.0
  %7740 = vmatprep.subr.mxu0 0.0
  %7741 = vmatpush2.msra.mxu0 0.0
  %7742 = vmatprep.mubr.f32.mxu0 0.0
  %7743 = vmatmul.mubr.f32.gmra.mxu0 %v7676
  %v7744 = vpop.f32.mrf.mxu0
  %v7745 = vadd.f32 0.0, %v7744
  %v7746 = vpop.f32.mrf.mxu0
  %7747 = vdwg.mxu0
  %v7749 = vsel %vm412, %v7094, 0
  %7751 = vmatprep.subr.mxu0 0.0
  %7752 = vmatpush1.msra.mxu0 0.0
  %7753 = vmatprep.subr.mxu0 0.0
  %7754 = vmatpush1.msra.mxu0 0.0
  %7755 = vmatprep.subr.mxu0 0.0
  %7756 = vmatpush1.msra.mxu0 0.0
  %7757 = vmatprep.subr.mxu0 0.0
  %7758 = vmatpush1.msra.mxu0 0.0
  %7759 = vmatprep.subr.mxu0 0.0
  %7760 = vmatpush1.msra.mxu0 0.0
  %7761 = vmatprep.subr.mxu0 0.0
  %7762 = vmatpush1.msra.mxu0 0.0
  %7763 = vmatprep.subr.mxu0 0.0
  %7764 = vmatpush1.msra.mxu0 0.0
  %7765 = vmatprep.subr.mxu0 0.0
  %7766 = vmatpush1.msra.mxu0 0.0
  %7767 = vmatprep.subr.mxu0 0.0
  %7768 = vmatpush1.msra.mxu0 0.0
  %7769 = vmatprep.subr.mxu0 0.0
  %7770 = vmatpush1.msra.mxu0 0.0
  %7771 = vmatprep.subr.mxu0 0.0
  %7772 = vmatpush1.msra.mxu0 0.0
  %7773 = vmatprep.subr.mxu0 0.0
  %7774 = vmatpush1.msra.mxu0 0.0
  %7775 = vmatprep.subr.mxu0 0.0
  %7776 = vmatpush1.msra.mxu0 %v7148
  %7777 = vmatprep.subr.mxu0 0.0
  %7778 = vmatpush1.msra.mxu0 %v7147
  %7779 = vmatprep.subr.mxu0 0.0
  %7780 = vmatpush1.msra.mxu0 %v7146
  %7781 = vmatprep.subr.mxu0 0.0
  %7782 = vmatpush1.msra.mxu0 %v7145
  %7783 = vmatprep.subr.mxu0 0.0
  %7784 = vmatpush2.msra.mxu0 0.0
  %7785 = vmatprep.subr.mxu0 0.0
  %7786 = vmatpush2.msra.mxu0 0.0
  %7787 = vmatprep.subr.mxu0 0.0
  %7788 = vmatpush2.msra.mxu0 0.0
  %7789 = vmatprep.subr.mxu0 0.0
  %7790 = vmatpush2.msra.mxu0 0.0
  %7791 = vmatprep.subr.mxu0 0.0
  %7792 = vmatpush2.msra.mxu0 0.0
  %7793 = vmatprep.subr.mxu0 0.0
  %7794 = vmatpush2.msra.mxu0 0.0
  %7795 = vmatprep.subr.mxu0 0.0
  %7796 = vmatpush2.msra.mxu0 0.0
  %7797 = vmatprep.subr.mxu0 0.0
  %7798 = vmatpush2.msra.mxu0 0.0
  %7799 = vmatprep.subr.mxu0 0.0
  %7800 = vmatpush2.msra.mxu0 0.0
  %7801 = vmatprep.subr.mxu0 0.0
  %7802 = vmatpush2.msra.mxu0 0.0
  %7803 = vmatprep.subr.mxu0 0.0
  %7804 = vmatpush2.msra.mxu0 0.0
  %7805 = vmatprep.subr.mxu0 0.0
  %7806 = vmatpush2.msra.mxu0 0.0
  %7807 = vmatprep.subr.mxu0 0.0
  %7808 = vmatpush2.msra.mxu0 0.0
  %7809 = vmatprep.subr.mxu0 0.0
  %7810 = vmatpush2.msra.mxu0 0.0
  %7811 = vmatprep.subr.mxu0 0.0
  %7812 = vmatpush2.msra.mxu0 0.0
  %7813 = vmatprep.subr.mxu0 0.0
  %7814 = vmatpush2.msra.mxu0 0.0
  %7815 = vmatprep.mubr.f32.mxu0 0.0
  %7816 = vmatmul.mubr.f32.gmra.mxu0 %v7749
  %v7817 = vpop.f32.mrf.mxu0
  %v7818 = vadd.f32 0.0, %v7817
  %v7819 = vpop.f32.mrf.mxu0
  %7820 = vdwg.mxu0
  %v7822 = vsel %vm412, %v7095, 0
  %7824 = vmatprep.subr.mxu0 0.0
  %7825 = vmatpush1.msra.mxu0 0.0
  %7826 = vmatprep.subr.mxu0 0.0
  %7827 = vmatpush1.msra.mxu0 0.0
  %7828 = vmatprep.subr.mxu0 0.0
  %7829 = vmatpush1.msra.mxu0 0.0
  %7830 = vmatprep.subr.mxu0 0.0
  %7831 = vmatpush1.msra.mxu0 0.0
  %7832 = vmatprep.subr.mxu0 0.0
  %7833 = vmatpush1.msra.mxu0 0.0
  %7834 = vmatprep.subr.mxu0 0.0
  %7835 = vmatpush1.msra.mxu0 0.0
  %7836 = vmatprep.subr.mxu0 0.0
  %7837 = vmatpush1.msra.mxu0 0.0
  %7838 = vmatprep.subr.mxu0 0.0
  %7839 = vmatpush1.msra.mxu0 0.0
  %7840 = vmatprep.subr.mxu0 0.0
  %7841 = vmatpush1.msra.mxu0 0.0
  %7842 = vmatprep.subr.mxu0 0.0
  %7843 = vmatpush1.msra.mxu0 0.0
  %7844 = vmatprep.subr.mxu0 0.0
  %7845 = vmatpush1.msra.mxu0 0.0
  %7846 = vmatprep.subr.mxu0 0.0
  %7847 = vmatpush1.msra.mxu0 0.0
  %7848 = vmatprep.subr.mxu0 0.0
  %7849 = vmatpush1.msra.mxu0 %v7152
  %7850 = vmatprep.subr.mxu0 0.0
  %7851 = vmatpush1.msra.mxu0 %v7151
  %7852 = vmatprep.subr.mxu0 0.0
  %7853 = vmatpush1.msra.mxu0 %v7150
  %7854 = vmatprep.subr.mxu0 0.0
  %7855 = vmatpush1.msra.mxu0 %v7149
  %7856 = vmatprep.subr.mxu0 0.0
  %7857 = vmatpush2.msra.mxu0 0.0
  %7858 = vmatprep.subr.mxu0 0.0
  %7859 = vmatpush2.msra.mxu0 0.0
  %7860 = vmatprep.subr.mxu0 0.0
  %7861 = vmatpush2.msra.mxu0 0.0
  %7862 = vmatprep.subr.mxu0 0.0
  %7863 = vmatpush2.msra.mxu0 0.0
  %7864 = vmatprep.subr.mxu0 0.0
  %7865 = vmatpush2.msra.mxu0 0.0
  %7866 = vmatprep.subr.mxu0 0.0
  %7867 = vmatpush2.msra.mxu0 0.0
  %7868 = vmatprep.subr.mxu0 0.0
  %7869 = vmatpush2.msra.mxu0 0.0
  %7870 = vmatprep.subr.mxu0 0.0
  %7871 = vmatpush2.msra.mxu0 0.0
  %7872 = vmatprep.subr.mxu0 0.0
  %7873 = vmatpush2.msra.mxu0 0.0
  %7874 = vmatprep.subr.mxu0 0.0
  %7875 = vmatpush2.msra.mxu0 0.0
  %7876 = vmatprep.subr.mxu0 0.0
  %7877 = vmatpush2.msra.mxu0 0.0
  %7878 = vmatprep.subr.mxu0 0.0
  %7879 = vmatpush2.msra.mxu0 0.0
  %7880 = vmatprep.subr.mxu0 0.0
  %7881 = vmatpush2.msra.mxu0 0.0
  %7882 = vmatprep.subr.mxu0 0.0
  %7883 = vmatpush2.msra.mxu0 0.0
  %7884 = vmatprep.subr.mxu0 0.0
  %7885 = vmatpush2.msra.mxu0 0.0
  %7886 = vmatprep.subr.mxu0 0.0
  %7887 = vmatpush2.msra.mxu0 0.0
  %7888 = vmatprep.mubr.f32.mxu0 0.0
  %7889 = vmatmul.mubr.f32.gmra.mxu0 %v7822
  %v7890 = vpop.f32.mrf.mxu0
  %v7891 = vadd.f32 0.0, %v7890
  %v7892 = vpop.f32.mrf.mxu0
  %7893 = vdwg.mxu0
  %v7895 = vsel %vm412, %v7096, 0
  %7897 = vmatprep.subr.mxu0 0.0
  %7898 = vmatpush1.msra.mxu0 0.0
  %7899 = vmatprep.subr.mxu0 0.0
  %7900 = vmatpush1.msra.mxu0 0.0
  %7901 = vmatprep.subr.mxu0 0.0
  %7902 = vmatpush1.msra.mxu0 0.0
  %7903 = vmatprep.subr.mxu0 0.0
  %7904 = vmatpush1.msra.mxu0 0.0
  %7905 = vmatprep.subr.mxu0 0.0
  %7906 = vmatpush1.msra.mxu0 0.0
  %7907 = vmatprep.subr.mxu0 0.0
  %7908 = vmatpush1.msra.mxu0 0.0
  %7909 = vmatprep.subr.mxu0 0.0
  %7910 = vmatpush1.msra.mxu0 0.0
  %7911 = vmatprep.subr.mxu0 0.0
  %7912 = vmatpush1.msra.mxu0 0.0
  %7913 = vmatprep.subr.mxu0 0.0
  %7914 = vmatpush1.msra.mxu0 0.0
  %7915 = vmatprep.subr.mxu0 0.0
  %7916 = vmatpush1.msra.mxu0 0.0
  %7917 = vmatprep.subr.mxu0 0.0
  %7918 = vmatpush1.msra.mxu0 0.0
  %7919 = vmatprep.subr.mxu0 0.0
  %7920 = vmatpush1.msra.mxu0 0.0
  %7921 = vmatprep.subr.mxu0 0.0
  %7922 = vmatpush1.msra.mxu0 %v7156
  %7923 = vmatprep.subr.mxu0 0.0
  %7924 = vmatpush1.msra.mxu0 %v7155
  %7925 = vmatprep.subr.mxu0 0.0
  %7926 = vmatpush1.msra.mxu0 %v7154
  %7927 = vmatprep.subr.mxu0 0.0
  %7928 = vmatpush1.msra.mxu0 %v7153
  %7929 = vmatprep.subr.mxu0 0.0
  %7930 = vmatpush2.msra.mxu0 0.0
  %7931 = vmatprep.subr.mxu0 0.0
  %7932 = vmatpush2.msra.mxu0 0.0
  %7933 = vmatprep.subr.mxu0 0.0
  %7934 = vmatpush2.msra.mxu0 0.0
  %7935 = vmatprep.subr.mxu0 0.0
  %7936 = vmatpush2.msra.mxu0 0.0
  %7937 = vmatprep.subr.mxu0 0.0
  %7938 = vmatpush2.msra.mxu0 0.0
  %7939 = vmatprep.subr.mxu0 0.0
  %7940 = vmatpush2.msra.mxu0 0.0
  %7941 = vmatprep.subr.mxu0 0.0
  %7942 = vmatpush2.msra.mxu0 0.0
  %7943 = vmatprep.subr.mxu0 0.0
  %7944 = vmatpush2.msra.mxu0 0.0
  %7945 = vmatprep.subr.mxu0 0.0
  %7946 = vmatpush2.msra.mxu0 0.0
  %7947 = vmatprep.subr.mxu0 0.0
  %7948 = vmatpush2.msra.mxu0 0.0
  %7949 = vmatprep.subr.mxu0 0.0
  %7950 = vmatpush2.msra.mxu0 0.0
  %7951 = vmatprep.subr.mxu0 0.0
  %7952 = vmatpush2.msra.mxu0 0.0
  %7953 = vmatprep.subr.mxu0 0.0
  %7954 = vmatpush2.msra.mxu0 0.0
  %7955 = vmatprep.subr.mxu0 0.0
  %7956 = vmatpush2.msra.mxu0 0.0
  %7957 = vmatprep.subr.mxu0 0.0
  %7958 = vmatpush2.msra.mxu0 0.0
  %7959 = vmatprep.subr.mxu0 0.0
  %7960 = vmatpush2.msra.mxu0 0.0
  %7961 = vmatprep.mubr.f32.mxu0 0.0
  %7962 = vmatmul.mubr.f32.gmra.mxu0 %v7895
  %v7963 = vpop.f32.mrf.mxu0
  %v7964 = vadd.f32 0.0, %v7963
  %v7965 = vpop.f32.mrf.mxu0
  %7966 = vdwg.mxu0
  %v7968 = vsel %vm412, %v7097, 0
  %7970 = vmatprep.subr.mxu0 0.0
  %7971 = vmatpush1.msra.mxu0 0.0
  %7972 = vmatprep.subr.mxu0 0.0
  %7973 = vmatpush1.msra.mxu0 0.0
  %7974 = vmatprep.subr.mxu0 0.0
  %7975 = vmatpush1.msra.mxu0 0.0
  %7976 = vmatprep.subr.mxu0 0.0
  %7977 = vmatpush1.msra.mxu0 0.0
  %7978 = vmatprep.subr.mxu0 0.0
  %7979 = vmatpush1.msra.mxu0 0.0
  %7980 = vmatprep.subr.mxu0 0.0
  %7981 = vmatpush1.msra.mxu0 0.0
  %7982 = vmatprep.subr.mxu0 0.0
  %7983 = vmatpush1.msra.mxu0 0.0
  %7984 = vmatprep.subr.mxu0 0.0
  %7985 = vmatpush1.msra.mxu0 0.0
  %7986 = vmatprep.subr.mxu0 0.0
  %7987 = vmatpush1.msra.mxu0 0.0
  %7988 = vmatprep.subr.mxu0 0.0
  %7989 = vmatpush1.msra.mxu0 0.0
  %7990 = vmatprep.subr.mxu0 0.0
  %7991 = vmatpush1.msra.mxu0 0.0
  %7992 = vmatprep.subr.mxu0 0.0
  %7993 = vmatpush1.msra.mxu0 0.0
  %7994 = vmatprep.subr.mxu0 0.0
  %7995 = vmatpush1.msra.mxu0 %v7160
  %7996 = vmatprep.subr.mxu0 0.0
  %7997 = vmatpush1.msra.mxu0 %v7159
  %7998 = vmatprep.subr.mxu0 0.0
  %7999 = vmatpush1.msra.mxu0 %v7158
  %8000 = vmatprep.subr.mxu0 0.0
  %8001 = vmatpush1.msra.mxu0 %v7157
  %8002 = vmatprep.subr.mxu0 0.0
  %8003 = vmatpush2.msra.mxu0 0.0
  %8004 = vmatprep.subr.mxu0 0.0
  %8005 = vmatpush2.msra.mxu0 0.0
  %8006 = vmatprep.subr.mxu0 0.0
  %8007 = vmatpush2.msra.mxu0 0.0
  %8008 = vmatprep.subr.mxu0 0.0
  %8009 = vmatpush2.msra.mxu0 0.0
  %8010 = vmatprep.subr.mxu0 0.0
  %8011 = vmatpush2.msra.mxu0 0.0
  %8012 = vmatprep.subr.mxu0 0.0
  %8013 = vmatpush2.msra.mxu0 0.0
  %8014 = vmatprep.subr.mxu0 0.0
  %8015 = vmatpush2.msra.mxu0 0.0
  %8016 = vmatprep.subr.mxu0 0.0
  %8017 = vmatpush2.msra.mxu0 0.0
  %8018 = vmatprep.subr.mxu0 0.0
  %8019 = vmatpush2.msra.mxu0 0.0
  %8020 = vmatprep.subr.mxu0 0.0
  %8021 = vmatpush2.msra.mxu0 0.0
  %8022 = vmatprep.subr.mxu0 0.0
  %8023 = vmatpush2.msra.mxu0 0.0
  %8024 = vmatprep.subr.mxu0 0.0
  %8025 = vmatpush2.msra.mxu0 0.0
  %8026 = vmatprep.subr.mxu0 0.0
  %8027 = vmatpush2.msra.mxu0 0.0
  %8028 = vmatprep.subr.mxu0 0.0
  %8029 = vmatpush2.msra.mxu0 0.0
  %8030 = vmatprep.subr.mxu0 0.0
  %8031 = vmatpush2.msra.mxu0 0.0
  %8032 = vmatprep.subr.mxu0 0.0
  %8033 = vmatpush2.msra.mxu0 0.0
  %8034 = vmatprep.mubr.f32.mxu0 0.0
  %8035 = vmatmul.mubr.f32.gmra.mxu0 %v7968
  %v8036 = vpop.f32.mrf.mxu0
  %v8037 = vadd.f32 0.0, %v8036
  %v8038 = vpop.f32.mrf.mxu0
  %8039 = vdwg.mxu0
  %v8041 = vsel %vm412, %v7098, 0
  %8043 = vmatprep.subr.mxu0 0.0
  %8044 = vmatpush1.msra.mxu0 0.0
  %8045 = vmatprep.subr.mxu0 0.0
  %8046 = vmatpush1.msra.mxu0 0.0
  %8047 = vmatprep.subr.mxu0 0.0
  %8048 = vmatpush1.msra.mxu0 0.0
  %8049 = vmatprep.subr.mxu0 0.0
  %8050 = vmatpush1.msra.mxu0 0.0
  %8051 = vmatprep.subr.mxu0 0.0
  %8052 = vmatpush1.msra.mxu0 0.0
  %8053 = vmatprep.subr.mxu0 0.0
  %8054 = vmatpush1.msra.mxu0 0.0
  %8055 = vmatprep.subr.mxu0 0.0
  %8056 = vmatpush1.msra.mxu0 0.0
  %8057 = vmatprep.subr.mxu0 0.0
  %8058 = vmatpush1.msra.mxu0 0.0
  %8059 = vmatprep.subr.mxu0 0.0
  %8060 = vmatpush1.msra.mxu0 0.0
  %8061 = vmatprep.subr.mxu0 0.0
  %8062 = vmatpush1.msra.mxu0 0.0
  %8063 = vmatprep.subr.mxu0 0.0
  %8064 = vmatpush1.msra.mxu0 0.0
  %8065 = vmatprep.subr.mxu0 0.0
  %8066 = vmatpush1.msra.mxu0 0.0
  %8067 = vmatprep.subr.mxu0 0.0
  %8068 = vmatpush1.msra.mxu0 %v7164
  %8069 = vmatprep.subr.mxu0 0.0
  %8070 = vmatpush1.msra.mxu0 %v7163
  %8071 = vmatprep.subr.mxu0 0.0
  %8072 = vmatpush1.msra.mxu0 %v7162
  %8073 = vmatprep.subr.mxu0 0.0
  %8074 = vmatpush1.msra.mxu0 %v7161
  %8075 = vmatprep.subr.mxu0 0.0
  %8076 = vmatpush2.msra.mxu0 0.0
  %8077 = vmatprep.subr.mxu0 0.0
  %8078 = vmatpush2.msra.mxu0 0.0
  %8079 = vmatprep.subr.mxu0 0.0
  %8080 = vmatpush2.msra.mxu0 0.0
  %8081 = vmatprep.subr.mxu0 0.0
  %8082 = vmatpush2.msra.mxu0 0.0
  %8083 = vmatprep.subr.mxu0 0.0
  %8084 = vmatpush2.msra.mxu0 0.0
  %8085 = vmatprep.subr.mxu0 0.0
  %8086 = vmatpush2.msra.mxu0 0.0
  %8087 = vmatprep.subr.mxu0 0.0
  %8088 = vmatpush2.msra.mxu0 0.0
  %8089 = vmatprep.subr.mxu0 0.0
  %8090 = vmatpush2.msra.mxu0 0.0
  %8091 = vmatprep.subr.mxu0 0.0
  %8092 = vmatpush2.msra.mxu0 0.0
  %8093 = vmatprep.subr.mxu0 0.0
  %8094 = vmatpush2.msra.mxu0 0.0
  %8095 = vmatprep.subr.mxu0 0.0
  %8096 = vmatpush2.msra.mxu0 0.0
  %8097 = vmatprep.subr.mxu0 0.0
  %8098 = vmatpush2.msra.mxu0 0.0
  %8099 = vmatprep.subr.mxu0 0.0
  %8100 = vmatpush2.msra.mxu0 0.0
  %8101 = vmatprep.subr.mxu0 0.0
  %8102 = vmatpush2.msra.mxu0 0.0
  %8103 = vmatprep.subr.mxu0 0.0
  %8104 = vmatpush2.msra.mxu0 0.0
  %8105 = vmatprep.subr.mxu0 0.0
  %8106 = vmatpush2.msra.mxu0 0.0
  %8107 = vmatprep.mubr.f32.mxu0 0.0
  %8108 = vmatmul.mubr.f32.gmra.mxu0 %v8041
  %v8109 = vpop.f32.mrf.mxu0
  %v8110 = vadd.f32 0.0, %v8109
  %v8111 = vpop.f32.mrf.mxu0
  %8112 = vdwg.mxu0
  %v8114 = vsel %vm412, %v7099, 0
  %8116 = vmatprep.subr.mxu0 0.0
  %8117 = vmatpush1.msra.mxu0 0.0
  %8118 = vmatprep.subr.mxu0 0.0
  %8119 = vmatpush1.msra.mxu0 0.0
  %8120 = vmatprep.subr.mxu0 0.0
  %8121 = vmatpush1.msra.mxu0 0.0
  %8122 = vmatprep.subr.mxu0 0.0
  %8123 = vmatpush1.msra.mxu0 0.0
  %8124 = vmatprep.subr.mxu0 0.0
  %8125 = vmatpush1.msra.mxu0 0.0
  %8126 = vmatprep.subr.mxu0 0.0
  %8127 = vmatpush1.msra.mxu0 0.0
  %8128 = vmatprep.subr.mxu0 0.0
  %8129 = vmatpush1.msra.mxu0 0.0
  %8130 = vmatprep.subr.mxu0 0.0
  %8131 = vmatpush1.msra.mxu0 0.0
  %8132 = vmatprep.subr.mxu0 0.0
  %8133 = vmatpush1.msra.mxu0 0.0
  %8134 = vmatprep.subr.mxu0 0.0
  %8135 = vmatpush1.msra.mxu0 0.0
  %8136 = vmatprep.subr.mxu0 0.0
  %8137 = vmatpush1.msra.mxu0 0.0
  %8138 = vmatprep.subr.mxu0 0.0
  %8139 = vmatpush1.msra.mxu0 0.0
  %8140 = vmatprep.subr.mxu0 0.0
  %8141 = vmatpush1.msra.mxu0 %v7168
  %8142 = vmatprep.subr.mxu0 0.0
  %8143 = vmatpush1.msra.mxu0 %v7167
  %8144 = vmatprep.subr.mxu0 0.0
  %8145 = vmatpush1.msra.mxu0 %v7166
  %8146 = vmatprep.subr.mxu0 0.0
  %8147 = vmatpush1.msra.mxu0 %v7165
  %8148 = vmatprep.subr.mxu0 0.0
  %8149 = vmatpush2.msra.mxu0 0.0
  %8150 = vmatprep.subr.mxu0 0.0
  %8151 = vmatpush2.msra.mxu0 0.0
  %8152 = vmatprep.subr.mxu0 0.0
  %8153 = vmatpush2.msra.mxu0 0.0
  %8154 = vmatprep.subr.mxu0 0.0
  %8155 = vmatpush2.msra.mxu0 0.0
  %8156 = vmatprep.subr.mxu0 0.0
  %8157 = vmatpush2.msra.mxu0 0.0
  %8158 = vmatprep.subr.mxu0 0.0
  %8159 = vmatpush2.msra.mxu0 0.0
  %8160 = vmatprep.subr.mxu0 0.0
  %8161 = vmatpush2.msra.mxu0 0.0
  %8162 = vmatprep.subr.mxu0 0.0
  %8163 = vmatpush2.msra.mxu0 0.0
  %8164 = vmatprep.subr.mxu0 0.0
  %8165 = vmatpush2.msra.mxu0 0.0
  %8166 = vmatprep.subr.mxu0 0.0
  %8167 = vmatpush2.msra.mxu0 0.0
  %8168 = vmatprep.subr.mxu0 0.0
  %8169 = vmatpush2.msra.mxu0 0.0
  %8170 = vmatprep.subr.mxu0 0.0
  %8171 = vmatpush2.msra.mxu0 0.0
  %8172 = vmatprep.subr.mxu0 0.0
  %8173 = vmatpush2.msra.mxu0 0.0
  %8174 = vmatprep.subr.mxu0 0.0
  %8175 = vmatpush2.msra.mxu0 0.0
  %8176 = vmatprep.subr.mxu0 0.0
  %8177 = vmatpush2.msra.mxu0 0.0
  %8178 = vmatprep.subr.mxu0 0.0
  %8179 = vmatpush2.msra.mxu0 0.0
  %8180 = vmatprep.mubr.f32.mxu0 0.0
  %8181 = vmatmul.mubr.f32.gmra.mxu0 %v8114
  %v8182 = vpop.f32.mrf.mxu0
  %v8183 = vadd.f32 0.0, %v8182
  %v8184 = vpop.f32.mrf.mxu0
  %8185 = vdwg.mxu0
  %v8187 = vsel %vm412, %v7100, 0
  %8189 = vmatprep.subr.mxu0 0.0
  %8190 = vmatpush1.msra.mxu0 0.0
  %8191 = vmatprep.subr.mxu0 0.0
  %8192 = vmatpush1.msra.mxu0 0.0
  %8193 = vmatprep.subr.mxu0 0.0
  %8194 = vmatpush1.msra.mxu0 0.0
  %8195 = vmatprep.subr.mxu0 0.0
  %8196 = vmatpush1.msra.mxu0 0.0
  %8197 = vmatprep.subr.mxu0 0.0
  %8198 = vmatpush1.msra.mxu0 0.0
  %8199 = vmatprep.subr.mxu0 0.0
  %8200 = vmatpush1.msra.mxu0 0.0
  %8201 = vmatprep.subr.mxu0 0.0
  %8202 = vmatpush1.msra.mxu0 0.0
  %8203 = vmatprep.subr.mxu0 0.0
  %8204 = vmatpush1.msra.mxu0 0.0
  %8205 = vmatprep.subr.mxu0 0.0
  %8206 = vmatpush1.msra.mxu0 0.0
  %8207 = vmatprep.subr.mxu0 0.0
  %8208 = vmatpush1.msra.mxu0 0.0
  %8209 = vmatprep.subr.mxu0 0.0
  %8210 = vmatpush1.msra.mxu0 0.0
  %8211 = vmatprep.subr.mxu0 0.0
  %8212 = vmatpush1.msra.mxu0 0.0
  %8213 = vmatprep.subr.mxu0 0.0
  %8214 = vmatpush1.msra.mxu0 %v7172
  %8215 = vmatprep.subr.mxu0 0.0
  %8216 = vmatpush1.msra.mxu0 %v7171
  %8217 = vmatprep.subr.mxu0 0.0
  %8218 = vmatpush1.msra.mxu0 %v7170
  %8219 = vmatprep.subr.mxu0 0.0
  %8220 = vmatpush1.msra.mxu0 %v7169
  %8221 = vmatprep.subr.mxu0 0.0
  %8222 = vmatpush2.msra.mxu0 0.0
  %8223 = vmatprep.subr.mxu0 0.0
  %8224 = vmatpush2.msra.mxu0 0.0
  %8225 = vmatprep.subr.mxu0 0.0
  %8226 = vmatpush2.msra.mxu0 0.0
  %8227 = vmatprep.subr.mxu0 0.0
  %8228 = vmatpush2.msra.mxu0 0.0
  %8229 = vmatprep.subr.mxu0 0.0
  %8230 = vmatpush2.msra.mxu0 0.0
  %8231 = vmatprep.subr.mxu0 0.0
  %8232 = vmatpush2.msra.mxu0 0.0
  %8233 = vmatprep.subr.mxu0 0.0
  %8234 = vmatpush2.msra.mxu0 0.0
  %8235 = vmatprep.subr.mxu0 0.0
  %8236 = vmatpush2.msra.mxu0 0.0
  %8237 = vmatprep.subr.mxu0 0.0
  %8238 = vmatpush2.msra.mxu0 0.0
  %8239 = vmatprep.subr.mxu0 0.0
  %8240 = vmatpush2.msra.mxu0 0.0
  %8241 = vmatprep.subr.mxu0 0.0
  %8242 = vmatpush2.msra.mxu0 0.0
  %8243 = vmatprep.subr.mxu0 0.0
  %8244 = vmatpush2.msra.mxu0 0.0
  %8245 = vmatprep.subr.mxu0 0.0
  %8246 = vmatpush2.msra.mxu0 0.0
  %8247 = vmatprep.subr.mxu0 0.0
  %8248 = vmatpush2.msra.mxu0 0.0
  %8249 = vmatprep.subr.mxu0 0.0
  %8250 = vmatpush2.msra.mxu0 0.0
  %8251 = vmatprep.subr.mxu0 0.0
  %8252 = vmatpush2.msra.mxu0 0.0
  %8253 = vmatprep.mubr.f32.mxu0 0.0
  %8254 = vmatmul.mubr.f32.gmra.mxu0 %v8187
  %v8255 = vpop.f32.mrf.mxu0
  %v8256 = vadd.f32 0.0, %v8255
  %v8257 = vpop.f32.mrf.mxu0
  %8258 = vdwg.mxu0
  %v8260 = vsel %vm412, %v7101, 0
  %8262 = vmatprep.subr.mxu0 0.0
  %8263 = vmatpush1.msra.mxu0 0.0
  %8264 = vmatprep.subr.mxu0 0.0
  %8265 = vmatpush1.msra.mxu0 0.0
  %8266 = vmatprep.subr.mxu0 0.0
  %8267 = vmatpush1.msra.mxu0 0.0
  %8268 = vmatprep.subr.mxu0 0.0
  %8269 = vmatpush1.msra.mxu0 0.0
  %8270 = vmatprep.subr.mxu0 0.0
  %8271 = vmatpush1.msra.mxu0 0.0
  %8272 = vmatprep.subr.mxu0 0.0
  %8273 = vmatpush1.msra.mxu0 0.0
  %8274 = vmatprep.subr.mxu0 0.0
  %8275 = vmatpush1.msra.mxu0 0.0
  %8276 = vmatprep.subr.mxu0 0.0
  %8277 = vmatpush1.msra.mxu0 0.0
  %8278 = vmatprep.subr.mxu0 0.0
  %8279 = vmatpush1.msra.mxu0 0.0
  %8280 = vmatprep.subr.mxu0 0.0
  %8281 = vmatpush1.msra.mxu0 0.0
  %8282 = vmatprep.subr.mxu0 0.0
  %8283 = vmatpush1.msra.mxu0 0.0
  %8284 = vmatprep.subr.mxu0 0.0
  %8285 = vmatpush1.msra.mxu0 0.0
  %8286 = vmatprep.subr.mxu0 0.0
  %8287 = vmatpush1.msra.mxu0 %v7176
  %8288 = vmatprep.subr.mxu0 0.0
  %8289 = vmatpush1.msra.mxu0 %v7175
  %8290 = vmatprep.subr.mxu0 0.0
  %8291 = vmatpush1.msra.mxu0 %v7174
  %8292 = vmatprep.subr.mxu0 0.0
  %8293 = vmatpush1.msra.mxu0 %v7173
  %8294 = vmatprep.subr.mxu0 0.0
  %8295 = vmatpush2.msra.mxu0 0.0
  %8296 = vmatprep.subr.mxu0 0.0
  %8297 = vmatpush2.msra.mxu0 0.0
  %8298 = vmatprep.subr.mxu0 0.0
  %8299 = vmatpush2.msra.mxu0 0.0
  %8300 = vmatprep.subr.mxu0 0.0
  %8301 = vmatpush2.msra.mxu0 0.0
  %8302 = vmatprep.subr.mxu0 0.0
  %8303 = vmatpush2.msra.mxu0 0.0
  %8304 = vmatprep.subr.mxu0 0.0
  %8305 = vmatpush2.msra.mxu0 0.0
  %8306 = vmatprep.subr.mxu0 0.0
  %8307 = vmatpush2.msra.mxu0 0.0
  %8308 = vmatprep.subr.mxu0 0.0
  %8309 = vmatpush2.msra.mxu0 0.0
  %8310 = vmatprep.subr.mxu0 0.0
  %8311 = vmatpush2.msra.mxu0 0.0
  %8312 = vmatprep.subr.mxu0 0.0
  %8313 = vmatpush2.msra.mxu0 0.0
  %8314 = vmatprep.subr.mxu0 0.0
  %8315 = vmatpush2.msra.mxu0 0.0
  %8316 = vmatprep.subr.mxu0 0.0
  %8317 = vmatpush2.msra.mxu0 0.0
  %8318 = vmatprep.subr.mxu0 0.0
  %8319 = vmatpush2.msra.mxu0 0.0
  %8320 = vmatprep.subr.mxu0 0.0
  %8321 = vmatpush2.msra.mxu0 0.0
  %8322 = vmatprep.subr.mxu0 0.0
  %8323 = vmatpush2.msra.mxu0 0.0
  %8324 = vmatprep.subr.mxu0 0.0
  %8325 = vmatpush2.msra.mxu0 0.0
  %8326 = vmatprep.mubr.f32.mxu0 0.0
  %8327 = vmatmul.mubr.f32.gmra.mxu0 %v8260
  %v8328 = vpop.f32.mrf.mxu0
  %v8329 = vadd.f32 0.0, %v8328
  %v8330 = vpop.f32.mrf.mxu0
  %8331 = vdwg.mxu0
  %v8333 = vsel %vm412, %v7102, 0
  %8335 = vmatprep.subr.mxu0 0.0
  %8336 = vmatpush1.msra.mxu0 0.0
  %8337 = vmatprep.subr.mxu0 0.0
  %8338 = vmatpush1.msra.mxu0 0.0
  %8339 = vmatprep.subr.mxu0 0.0
  %8340 = vmatpush1.msra.mxu0 0.0
  %8341 = vmatprep.subr.mxu0 0.0
  %8342 = vmatpush1.msra.mxu0 0.0
  %8343 = vmatprep.subr.mxu0 0.0
  %8344 = vmatpush1.msra.mxu0 0.0
  %8345 = vmatprep.subr.mxu0 0.0
  %8346 = vmatpush1.msra.mxu0 0.0
  %8347 = vmatprep.subr.mxu0 0.0
  %8348 = vmatpush1.msra.mxu0 0.0
  %8349 = vmatprep.subr.mxu0 0.0
  %8350 = vmatpush1.msra.mxu0 0.0
  %8351 = vmatprep.subr.mxu0 0.0
  %8352 = vmatpush1.msra.mxu0 0.0
  %8353 = vmatprep.subr.mxu0 0.0
  %8354 = vmatpush1.msra.mxu0 0.0
  %8355 = vmatprep.subr.mxu0 0.0
  %8356 = vmatpush1.msra.mxu0 0.0
  %8357 = vmatprep.subr.mxu0 0.0
  %8358 = vmatpush1.msra.mxu0 0.0
  %8359 = vmatprep.subr.mxu0 0.0
  %8360 = vmatpush1.msra.mxu0 %v7180
  %8361 = vmatprep.subr.mxu0 0.0
  %8362 = vmatpush1.msra.mxu0 %v7179
  %8363 = vmatprep.subr.mxu0 0.0
  %8364 = vmatpush1.msra.mxu0 %v7178
  %8365 = vmatprep.subr.mxu0 0.0
  %8366 = vmatpush1.msra.mxu0 %v7177
  %8367 = vmatprep.subr.mxu0 0.0
  %8368 = vmatpush2.msra.mxu0 0.0
  %8369 = vmatprep.subr.mxu0 0.0
  %8370 = vmatpush2.msra.mxu0 0.0
  %8371 = vmatprep.subr.mxu0 0.0
  %8372 = vmatpush2.msra.mxu0 0.0
  %8373 = vmatprep.subr.mxu0 0.0
  %8374 = vmatpush2.msra.mxu0 0.0
  %8375 = vmatprep.subr.mxu0 0.0
  %8376 = vmatpush2.msra.mxu0 0.0
  %8377 = vmatprep.subr.mxu0 0.0
  %8378 = vmatpush2.msra.mxu0 0.0
  %8379 = vmatprep.subr.mxu0 0.0
  %8380 = vmatpush2.msra.mxu0 0.0
  %8381 = vmatprep.subr.mxu0 0.0
  %8382 = vmatpush2.msra.mxu0 0.0
  %8383 = vmatprep.subr.mxu0 0.0
  %8384 = vmatpush2.msra.mxu0 0.0
  %8385 = vmatprep.subr.mxu0 0.0
  %8386 = vmatpush2.msra.mxu0 0.0
  %8387 = vmatprep.subr.mxu0 0.0
  %8388 = vmatpush2.msra.mxu0 0.0
  %8389 = vmatprep.subr.mxu0 0.0
  %8390 = vmatpush2.msra.mxu0 0.0
  %8391 = vmatprep.subr.mxu0 0.0
  %8392 = vmatpush2.msra.mxu0 0.0
  %8393 = vmatprep.subr.mxu0 0.0
  %8394 = vmatpush2.msra.mxu0 0.0
  %8395 = vmatprep.subr.mxu0 0.0
  %8396 = vmatpush2.msra.mxu0 0.0
  %8397 = vmatprep.subr.mxu0 0.0
  %8398 = vmatpush2.msra.mxu0 0.0
  %8399 = vmatprep.mubr.f32.mxu0 0.0
  %8400 = vmatmul.mubr.f32.gmra.mxu0 %v8333
  %v8401 = vpop.f32.mrf.mxu0
  %v8402 = vadd.f32 0.0, %v8401
  %v8403 = vpop.f32.mrf.mxu0
  %8404 = vdwg.mxu0
  %v8406 = vsel %vm412, %v7103, 0
  %8408 = vmatprep.subr.mxu0 0.0
  %8409 = vmatpush1.msra.mxu0 0.0
  %8410 = vmatprep.subr.mxu0 0.0
  %8411 = vmatpush1.msra.mxu0 0.0
  %8412 = vmatprep.subr.mxu0 0.0
  %8413 = vmatpush1.msra.mxu0 0.0
  %8414 = vmatprep.subr.mxu0 0.0
  %8415 = vmatpush1.msra.mxu0 0.0
  %8416 = vmatprep.subr.mxu0 0.0
  %8417 = vmatpush1.msra.mxu0 0.0
  %8418 = vmatprep.subr.mxu0 0.0
  %8419 = vmatpush1.msra.mxu0 0.0
  %8420 = vmatprep.subr.mxu0 0.0
  %8421 = vmatpush1.msra.mxu0 0.0
  %8422 = vmatprep.subr.mxu0 0.0
  %8423 = vmatpush1.msra.mxu0 0.0
  %8424 = vmatprep.subr.mxu0 0.0
  %8425 = vmatpush1.msra.mxu0 0.0
  %8426 = vmatprep.subr.mxu0 0.0
  %8427 = vmatpush1.msra.mxu0 0.0
  %8428 = vmatprep.subr.mxu0 0.0
  %8429 = vmatpush1.msra.mxu0 0.0
  %8430 = vmatprep.subr.mxu0 0.0
  %8431 = vmatpush1.msra.mxu0 0.0
  %8432 = vmatprep.subr.mxu0 0.0
  %8433 = vmatpush1.msra.mxu0 %v7184
  %8434 = vmatprep.subr.mxu0 0.0
  %8435 = vmatpush1.msra.mxu0 %v7183
  %8436 = vmatprep.subr.mxu0 0.0
  %8437 = vmatpush1.msra.mxu0 %v7182
  %8438 = vmatprep.subr.mxu0 0.0
  %8439 = vmatpush1.msra.mxu0 %v7181
  %8440 = vmatprep.subr.mxu0 0.0
  %8441 = vmatpush2.msra.mxu0 0.0
  %8442 = vmatprep.subr.mxu0 0.0
  %8443 = vmatpush2.msra.mxu0 0.0
  %8444 = vmatprep.subr.mxu0 0.0
  %8445 = vmatpush2.msra.mxu0 0.0
  %8446 = vmatprep.subr.mxu0 0.0
  %8447 = vmatpush2.msra.mxu0 0.0
  %8448 = vmatprep.subr.mxu0 0.0
  %8449 = vmatpush2.msra.mxu0 0.0
  %8450 = vmatprep.subr.mxu0 0.0
  %8451 = vmatpush2.msra.mxu0 0.0
  %8452 = vmatprep.subr.mxu0 0.0
  %8453 = vmatpush2.msra.mxu0 0.0
  %8454 = vmatprep.subr.mxu0 0.0
  %8455 = vmatpush2.msra.mxu0 0.0
  %8456 = vmatprep.subr.mxu0 0.0
  %8457 = vmatpush2.msra.mxu0 0.0
  %8458 = vmatprep.subr.mxu0 0.0
  %8459 = vmatpush2.msra.mxu0 0.0
  %8460 = vmatprep.subr.mxu0 0.0
  %8461 = vmatpush2.msra.mxu0 0.0
  %8462 = vmatprep.subr.mxu0 0.0
  %8463 = vmatpush2.msra.mxu0 0.0
  %8464 = vmatprep.subr.mxu0 0.0
  %8465 = vmatpush2.msra.mxu0 0.0
  %8466 = vmatprep.subr.mxu0 0.0
  %8467 = vmatpush2.msra.mxu0 0.0
  %8468 = vmatprep.subr.mxu0 0.0
  %8469 = vmatpush2.msra.mxu0 0.0
  %8470 = vmatprep.subr.mxu0 0.0
  %8471 = vmatpush2.msra.mxu0 0.0
  %8472 = vmatprep.mubr.f32.mxu0 0.0
  %8473 = vmatmul.mubr.f32.gmra.mxu0 %v8406
  %v8474 = vpop.f32.mrf.mxu0
  %v8475 = vadd.f32 0.0, %v8474
  %v8476 = vpop.f32.mrf.mxu0
  %8477 = vdwg.mxu0
  %v8479 = vsel %vm412, %v7104, 0
  %8481 = vmatprep.subr.mxu0 0.0
  %8482 = vmatpush1.msra.mxu0 0.0
  %8483 = vmatprep.subr.mxu0 0.0
  %8484 = vmatpush1.msra.mxu0 0.0
  %8485 = vmatprep.subr.mxu0 0.0
  %8486 = vmatpush1.msra.mxu0 0.0
  %8487 = vmatprep.subr.mxu0 0.0
  %8488 = vmatpush1.msra.mxu0 0.0
  %8489 = vmatprep.subr.mxu0 0.0
  %8490 = vmatpush1.msra.mxu0 0.0
  %8491 = vmatprep.subr.mxu0 0.0
  %8492 = vmatpush1.msra.mxu0 0.0
  %8493 = vmatprep.subr.mxu0 0.0
  %8494 = vmatpush1.msra.mxu0 0.0
  %8495 = vmatprep.subr.mxu0 0.0
  %8496 = vmatpush1.msra.mxu0 0.0
  %8497 = vmatprep.subr.mxu0 0.0
  %8498 = vmatpush1.msra.mxu0 0.0
  %8499 = vmatprep.subr.mxu0 0.0
  %8500 = vmatpush1.msra.mxu0 0.0
  %8501 = vmatprep.subr.mxu0 0.0
  %8502 = vmatpush1.msra.mxu0 0.0
  %8503 = vmatprep.subr.mxu0 0.0
  %8504 = vmatpush1.msra.mxu0 0.0
  %8505 = vmatprep.subr.mxu0 0.0
  %8506 = vmatpush1.msra.mxu0 %v7188
  %8507 = vmatprep.subr.mxu0 0.0
  %8508 = vmatpush1.msra.mxu0 %v7187
  %8509 = vmatprep.subr.mxu0 0.0
  %8510 = vmatpush1.msra.mxu0 %v7186
  %8511 = vmatprep.subr.mxu0 0.0
  %8512 = vmatpush1.msra.mxu0 %v7185
  %8513 = vmatprep.subr.mxu0 0.0
  %8514 = vmatpush2.msra.mxu0 0.0
  %8515 = vmatprep.subr.mxu0 0.0
  %8516 = vmatpush2.msra.mxu0 0.0
  %8517 = vmatprep.subr.mxu0 0.0
  %8518 = vmatpush2.msra.mxu0 0.0
  %8519 = vmatprep.subr.mxu0 0.0
  %8520 = vmatpush2.msra.mxu0 0.0
  %8521 = vmatprep.subr.mxu0 0.0
  %8522 = vmatpush2.msra.mxu0 0.0
  %8523 = vmatprep.subr.mxu0 0.0
  %8524 = vmatpush2.msra.mxu0 0.0
  %8525 = vmatprep.subr.mxu0 0.0
  %8526 = vmatpush2.msra.mxu0 0.0
  %8527 = vmatprep.subr.mxu0 0.0
  %8528 = vmatpush2.msra.mxu0 0.0
  %8529 = vmatprep.subr.mxu0 0.0
  %8530 = vmatpush2.msra.mxu0 0.0
  %8531 = vmatprep.subr.mxu0 0.0
  %8532 = vmatpush2.msra.mxu0 0.0
  %8533 = vmatprep.subr.mxu0 0.0
  %8534 = vmatpush2.msra.mxu0 0.0
  %8535 = vmatprep.subr.mxu0 0.0
  %8536 = vmatpush2.msra.mxu0 0.0
  %8537 = vmatprep.subr.mxu0 0.0
  %8538 = vmatpush2.msra.mxu0 0.0
  %8539 = vmatprep.subr.mxu0 0.0
  %8540 = vmatpush2.msra.mxu0 0.0
  %8541 = vmatprep.subr.mxu0 0.0
  %8542 = vmatpush2.msra.mxu0 0.0
  %8543 = vmatprep.subr.mxu0 0.0
  %8544 = vmatpush2.msra.mxu0 0.0
  %8545 = vmatprep.mubr.f32.mxu0 0.0
  %8546 = vmatmul.mubr.f32.gmra.mxu0 %v8479
  %v8547 = vpop.f32.mrf.mxu0
  %v8548 = vadd.f32 0.0, %v8547
  %v8549 = vpop.f32.mrf.mxu0
  %8550 = vdwg.mxu0
  %v8552 = vsel %vm412, %v7105, 0
  %8554 = vmatprep.subr.mxu0 0.0
  %8555 = vmatpush1.msra.mxu0 0.0
  %8556 = vmatprep.subr.mxu0 0.0
  %8557 = vmatpush1.msra.mxu0 0.0
  %8558 = vmatprep.subr.mxu0 0.0
  %8559 = vmatpush1.msra.mxu0 0.0
  %8560 = vmatprep.subr.mxu0 0.0
  %8561 = vmatpush1.msra.mxu0 0.0
  %8562 = vmatprep.subr.mxu0 0.0
  %8563 = vmatpush1.msra.mxu0 0.0
  %8564 = vmatprep.subr.mxu0 0.0
  %8565 = vmatpush1.msra.mxu0 0.0
  %8566 = vmatprep.subr.mxu0 0.0
  %8567 = vmatpush1.msra.mxu0 0.0
  %8568 = vmatprep.subr.mxu0 0.0
  %8569 = vmatpush1.msra.mxu0 0.0
  %8570 = vmatprep.subr.mxu0 0.0
  %8571 = vmatpush1.msra.mxu0 0.0
  %8572 = vmatprep.subr.mxu0 0.0
  %8573 = vmatpush1.msra.mxu0 0.0
  %8574 = vmatprep.subr.mxu0 0.0
  %8575 = vmatpush1.msra.mxu0 0.0
  %8576 = vmatprep.subr.mxu0 0.0
  %8577 = vmatpush1.msra.mxu0 0.0
  %8578 = vmatprep.subr.mxu0 0.0
  %8579 = vmatpush1.msra.mxu0 %v7192
  %8580 = vmatprep.subr.mxu0 0.0
  %8581 = vmatpush1.msra.mxu0 %v7191
  %8582 = vmatprep.subr.mxu0 0.0
  %8583 = vmatpush1.msra.mxu0 %v7190
  %8584 = vmatprep.subr.mxu0 0.0
  %8585 = vmatpush1.msra.mxu0 %v7189
  %8586 = vmatprep.subr.mxu0 0.0
  %8587 = vmatpush2.msra.mxu0 0.0
  %8588 = vmatprep.subr.mxu0 0.0
  %8589 = vmatpush2.msra.mxu0 0.0
  %8590 = vmatprep.subr.mxu0 0.0
  %8591 = vmatpush2.msra.mxu0 0.0
  %8592 = vmatprep.subr.mxu0 0.0
  %8593 = vmatpush2.msra.mxu0 0.0
  %8594 = vmatprep.subr.mxu0 0.0
  %8595 = vmatpush2.msra.mxu0 0.0
  %8596 = vmatprep.subr.mxu0 0.0
  %8597 = vmatpush2.msra.mxu0 0.0
  %8598 = vmatprep.subr.mxu0 0.0
  %8599 = vmatpush2.msra.mxu0 0.0
  %8600 = vmatprep.subr.mxu0 0.0
  %8601 = vmatpush2.msra.mxu0 0.0
  %8602 = vmatprep.subr.mxu0 0.0
  %8603 = vmatpush2.msra.mxu0 0.0
  %8604 = vmatprep.subr.mxu0 0.0
  %8605 = vmatpush2.msra.mxu0 0.0
  %8606 = vmatprep.subr.mxu0 0.0
  %8607 = vmatpush2.msra.mxu0 0.0
  %8608 = vmatprep.subr.mxu0 0.0
  %8609 = vmatpush2.msra.mxu0 0.0
  %8610 = vmatprep.subr.mxu0 0.0
  %8611 = vmatpush2.msra.mxu0 0.0
  %8612 = vmatprep.subr.mxu0 0.0
  %8613 = vmatpush2.msra.mxu0 0.0
  %8614 = vmatprep.subr.mxu0 0.0
  %8615 = vmatpush2.msra.mxu0 0.0
  %8616 = vmatprep.subr.mxu0 0.0
  %8617 = vmatpush2.msra.mxu0 0.0
  %8618 = vmatprep.mubr.f32.mxu0 0.0
  %8619 = vmatmul.mubr.f32.gmra.mxu0 %v8552
  %v8620 = vpop.f32.mrf.mxu0
  %v8621 = vadd.f32 0.0, %v8620
  %v8622 = vpop.f32.mrf.mxu0
  %8623 = vdwg.mxu0
  %v8625 = vsel %vm412, %v7106, 0
  %8627 = vmatprep.subr.mxu0 0.0
  %8628 = vmatpush1.msra.mxu0 0.0
  %8629 = vmatprep.subr.mxu0 0.0
  %8630 = vmatpush1.msra.mxu0 0.0
  %8631 = vmatprep.subr.mxu0 0.0
  %8632 = vmatpush1.msra.mxu0 0.0
  %8633 = vmatprep.subr.mxu0 0.0
  %8634 = vmatpush1.msra.mxu0 0.0
  %8635 = vmatprep.subr.mxu0 0.0
  %8636 = vmatpush1.msra.mxu0 0.0
  %8637 = vmatprep.subr.mxu0 0.0
  %8638 = vmatpush1.msra.mxu0 0.0
  %8639 = vmatprep.subr.mxu0 0.0
  %8640 = vmatpush1.msra.mxu0 0.0
  %8641 = vmatprep.subr.mxu0 0.0
  %8642 = vmatpush1.msra.mxu0 0.0
  %8643 = vmatprep.subr.mxu0 0.0
  %8644 = vmatpush1.msra.mxu0 0.0
  %8645 = vmatprep.subr.mxu0 0.0
  %8646 = vmatpush1.msra.mxu0 0.0
  %8647 = vmatprep.subr.mxu0 0.0
  %8648 = vmatpush1.msra.mxu0 0.0
  %8649 = vmatprep.subr.mxu0 0.0
  %8650 = vmatpush1.msra.mxu0 0.0
  %8651 = vmatprep.subr.mxu0 0.0
  %8652 = vmatpush1.msra.mxu0 %v7196
  %8653 = vmatprep.subr.mxu0 0.0
  %8654 = vmatpush1.msra.mxu0 %v7195
  %8655 = vmatprep.subr.mxu0 0.0
  %8656 = vmatpush1.msra.mxu0 %v7194
  %8657 = vmatprep.subr.mxu0 0.0
  %8658 = vmatpush1.msra.mxu0 %v7193
  %8659 = vmatprep.subr.mxu0 0.0
  %8660 = vmatpush2.msra.mxu0 0.0
  %8661 = vmatprep.subr.mxu0 0.0
  %8662 = vmatpush2.msra.mxu0 0.0
  %8663 = vmatprep.subr.mxu0 0.0
  %8664 = vmatpush2.msra.mxu0 0.0
  %8665 = vmatprep.subr.mxu0 0.0
  %8666 = vmatpush2.msra.mxu0 0.0
  %8667 = vmatprep.subr.mxu0 0.0
  %8668 = vmatpush2.msra.mxu0 0.0
  %8669 = vmatprep.subr.mxu0 0.0
  %8670 = vmatpush2.msra.mxu0 0.0
  %8671 = vmatprep.subr.mxu0 0.0
  %8672 = vmatpush2.msra.mxu0 0.0
  %8673 = vmatprep.subr.mxu0 0.0
  %8674 = vmatpush2.msra.mxu0 0.0
  %8675 = vmatprep.subr.mxu0 0.0
  %8676 = vmatpush2.msra.mxu0 0.0
  %8677 = vmatprep.subr.mxu0 0.0
  %8678 = vmatpush2.msra.mxu0 0.0
  %8679 = vmatprep.subr.mxu0 0.0
  %8680 = vmatpush2.msra.mxu0 0.0
  %8681 = vmatprep.subr.mxu0 0.0
  %8682 = vmatpush2.msra.mxu0 0.0
  %8683 = vmatprep.subr.mxu0 0.0
  %8684 = vmatpush2.msra.mxu0 0.0
  %8685 = vmatprep.subr.mxu0 0.0
  %8686 = vmatpush2.msra.mxu0 0.0
  %8687 = vmatprep.subr.mxu0 0.0
  %8688 = vmatpush2.msra.mxu0 0.0
  %8689 = vmatprep.subr.mxu0 0.0
  %8690 = vmatpush2.msra.mxu0 0.0
  %8691 = vmatprep.mubr.f32.mxu0 0.0
  %8692 = vmatmul.mubr.f32.gmra.mxu0 %v8625
  %v8693 = vpop.f32.mrf.mxu0
  %v8694 = vadd.f32 0.0, %v8693
  %v8695 = vpop.f32.mrf.mxu0
  %8696 = vdwg.mxu0
  %v8698 = vsel %vm412, %v7107, 0
  %8700 = vmatprep.subr.mxu0 0.0
  %8701 = vmatpush1.msra.mxu0 0.0
  %8702 = vmatprep.subr.mxu0 0.0
  %8703 = vmatpush1.msra.mxu0 0.0
  %8704 = vmatprep.subr.mxu0 0.0
  %8705 = vmatpush1.msra.mxu0 0.0
  %8706 = vmatprep.subr.mxu0 0.0
  %8707 = vmatpush1.msra.mxu0 0.0
  %8708 = vmatprep.subr.mxu0 0.0
  %8709 = vmatpush1.msra.mxu0 0.0
  %8710 = vmatprep.subr.mxu0 0.0
  %8711 = vmatpush1.msra.mxu0 0.0
  %8712 = vmatprep.subr.mxu0 0.0
  %8713 = vmatpush1.msra.mxu0 0.0
  %8714 = vmatprep.subr.mxu0 0.0
  %8715 = vmatpush1.msra.mxu0 0.0
  %8716 = vmatprep.subr.mxu0 0.0
  %8717 = vmatpush1.msra.mxu0 0.0
  %8718 = vmatprep.subr.mxu0 0.0
  %8719 = vmatpush1.msra.mxu0 0.0
  %8720 = vmatprep.subr.mxu0 0.0
  %8721 = vmatpush1.msra.mxu0 0.0
  %8722 = vmatprep.subr.mxu0 0.0
  %8723 = vmatpush1.msra.mxu0 0.0
  %8724 = vmatprep.subr.mxu0 0.0
  %8725 = vmatpush1.msra.mxu0 %v7200
  %8726 = vmatprep.subr.mxu0 0.0
  %8727 = vmatpush1.msra.mxu0 %v7199
  %8728 = vmatprep.subr.mxu0 0.0
  %8729 = vmatpush1.msra.mxu0 %v7198
  %8730 = vmatprep.subr.mxu0 0.0
  %8731 = vmatpush1.msra.mxu0 %v7197
  %8732 = vmatprep.subr.mxu0 0.0
  %8733 = vmatpush2.msra.mxu0 0.0
  %8734 = vmatprep.subr.mxu0 0.0
  %8735 = vmatpush2.msra.mxu0 0.0
  %8736 = vmatprep.subr.mxu0 0.0
  %8737 = vmatpush2.msra.mxu0 0.0
  %8738 = vmatprep.subr.mxu0 0.0
  %8739 = vmatpush2.msra.mxu0 0.0
  %8740 = vmatprep.subr.mxu0 0.0
  %8741 = vmatpush2.msra.mxu0 0.0
  %8742 = vmatprep.subr.mxu0 0.0
  %8743 = vmatpush2.msra.mxu0 0.0
  %8744 = vmatprep.subr.mxu0 0.0
  %8745 = vmatpush2.msra.mxu0 0.0
  %8746 = vmatprep.subr.mxu0 0.0
  %8747 = vmatpush2.msra.mxu0 0.0
  %8748 = vmatprep.subr.mxu0 0.0
  %8749 = vmatpush2.msra.mxu0 0.0
  %8750 = vmatprep.subr.mxu0 0.0
  %8751 = vmatpush2.msra.mxu0 0.0
  %8752 = vmatprep.subr.mxu0 0.0
  %8753 = vmatpush2.msra.mxu0 0.0
  %8754 = vmatprep.subr.mxu0 0.0
  %8755 = vmatpush2.msra.mxu0 0.0
  %8756 = vmatprep.subr.mxu0 0.0
  %8757 = vmatpush2.msra.mxu0 0.0
  %8758 = vmatprep.subr.mxu0 0.0
  %8759 = vmatpush2.msra.mxu0 0.0
  %8760 = vmatprep.subr.mxu0 0.0
  %8761 = vmatpush2.msra.mxu0 0.0
  %8762 = vmatprep.subr.mxu0 0.0
  %8763 = vmatpush2.msra.mxu0 0.0
  %8764 = vmatprep.mubr.f32.mxu0 0.0
  %8765 = vmatmul.mubr.f32.gmra.mxu0 %v8698
  %v8766 = vpop.f32.mrf.mxu0
  %v8767 = vadd.f32 0.0, %v8766
  %v8768 = vpop.f32.mrf.mxu0
  %8769 = vdwg.mxu0
  %v8771 = vsel %vm412, %v7108, 0
  %8773 = vmatprep.subr.mxu0 0.0
  %8774 = vmatpush1.msra.mxu0 0.0
  %8775 = vmatprep.subr.mxu0 0.0
  %8776 = vmatpush1.msra.mxu0 0.0
  %8777 = vmatprep.subr.mxu0 0.0
  %8778 = vmatpush1.msra.mxu0 0.0
  %8779 = vmatprep.subr.mxu0 0.0
  %8780 = vmatpush1.msra.mxu0 0.0
  %8781 = vmatprep.subr.mxu0 0.0
  %8782 = vmatpush1.msra.mxu0 0.0
  %8783 = vmatprep.subr.mxu0 0.0
  %8784 = vmatpush1.msra.mxu0 0.0
  %8785 = vmatprep.subr.mxu0 0.0
  %8786 = vmatpush1.msra.mxu0 0.0
  %8787 = vmatprep.subr.mxu0 0.0
  %8788 = vmatpush1.msra.mxu0 0.0
  %8789 = vmatprep.subr.mxu0 0.0
  %8790 = vmatpush1.msra.mxu0 0.0
  %8791 = vmatprep.subr.mxu0 0.0
  %8792 = vmatpush1.msra.mxu0 0.0
  %8793 = vmatprep.subr.mxu0 0.0
  %8794 = vmatpush1.msra.mxu0 0.0
  %8795 = vmatprep.subr.mxu0 0.0
  %8796 = vmatpush1.msra.mxu0 0.0
  %8797 = vmatprep.subr.mxu0 0.0
  %8798 = vmatpush1.msra.mxu0 %v7204
  %8799 = vmatprep.subr.mxu0 0.0
  %8800 = vmatpush1.msra.mxu0 %v7203
  %8801 = vmatprep.subr.mxu0 0.0
  %8802 = vmatpush1.msra.mxu0 %v7202
  %8803 = vmatprep.subr.mxu0 0.0
  %8804 = vmatpush1.msra.mxu0 %v7201
  %8805 = vmatprep.subr.mxu0 0.0
  %8806 = vmatpush2.msra.mxu0 0.0
  %8807 = vmatprep.subr.mxu0 0.0
  %8808 = vmatpush2.msra.mxu0 0.0
  %8809 = vmatprep.subr.mxu0 0.0
  %8810 = vmatpush2.msra.mxu0 0.0
  %8811 = vmatprep.subr.mxu0 0.0
  %8812 = vmatpush2.msra.mxu0 0.0
  %8813 = vmatprep.subr.mxu0 0.0
  %8814 = vmatpush2.msra.mxu0 0.0
  %8815 = vmatprep.subr.mxu0 0.0
  %8816 = vmatpush2.msra.mxu0 0.0
  %8817 = vmatprep.subr.mxu0 0.0
  %8818 = vmatpush2.msra.mxu0 0.0
  %8819 = vmatprep.subr.mxu0 0.0
  %8820 = vmatpush2.msra.mxu0 0.0
  %8821 = vmatprep.subr.mxu0 0.0
  %8822 = vmatpush2.msra.mxu0 0.0
  %8823 = vmatprep.subr.mxu0 0.0
  %8824 = vmatpush2.msra.mxu0 0.0
  %8825 = vmatprep.subr.mxu0 0.0
  %8826 = vmatpush2.msra.mxu0 0.0
  %8827 = vmatprep.subr.mxu0 0.0
  %8828 = vmatpush2.msra.mxu0 0.0
  %8829 = vmatprep.subr.mxu0 0.0
  %8830 = vmatpush2.msra.mxu0 0.0
  %8831 = vmatprep.subr.mxu0 0.0
  %8832 = vmatpush2.msra.mxu0 0.0
  %8833 = vmatprep.subr.mxu0 0.0
  %8834 = vmatpush2.msra.mxu0 0.0
  %8835 = vmatprep.subr.mxu0 0.0
  %8836 = vmatpush2.msra.mxu0 0.0
  %8837 = vmatprep.mubr.f32.mxu0 0.0
  %8838 = vmatmul.mubr.f32.gmra.mxu0 %v8771
  %v8839 = vpop.f32.mrf.mxu0
  %v8840 = vadd.f32 0.0, %v8839
  %v8841 = vpop.f32.mrf.mxu0
  %8842 = vdwg.mxu0
  %v8844 = vsel %vm412, %v7109, 0
  %8846 = vmatprep.subr.mxu0 0.0
  %8847 = vmatpush1.msra.mxu0 0.0
  %8848 = vmatprep.subr.mxu0 0.0
  %8849 = vmatpush1.msra.mxu0 0.0
  %8850 = vmatprep.subr.mxu0 0.0
  %8851 = vmatpush1.msra.mxu0 0.0
  %8852 = vmatprep.subr.mxu0 0.0
  %8853 = vmatpush1.msra.mxu0 0.0
  %8854 = vmatprep.subr.mxu0 0.0
  %8855 = vmatpush1.msra.mxu0 0.0
  %8856 = vmatprep.subr.mxu0 0.0
  %8857 = vmatpush1.msra.mxu0 0.0
  %8858 = vmatprep.subr.mxu0 0.0
  %8859 = vmatpush1.msra.mxu0 0.0
  %8860 = vmatprep.subr.mxu0 0.0
  %8861 = vmatpush1.msra.mxu0 0.0
  %8862 = vmatprep.subr.mxu0 0.0
  %8863 = vmatpush1.msra.mxu0 0.0
  %8864 = vmatprep.subr.mxu0 0.0
  %8865 = vmatpush1.msra.mxu0 0.0
  %8866 = vmatprep.subr.mxu0 0.0
  %8867 = vmatpush1.msra.mxu0 0.0
  %8868 = vmatprep.subr.mxu0 0.0
  %8869 = vmatpush1.msra.mxu0 0.0
  %8870 = vmatprep.subr.mxu0 0.0
  %8871 = vmatpush1.msra.mxu0 %v7208
  %8872 = vmatprep.subr.mxu0 0.0
  %8873 = vmatpush1.msra.mxu0 %v7207
  %8874 = vmatprep.subr.mxu0 0.0
  %8875 = vmatpush1.msra.mxu0 %v7206
  %8876 = vmatprep.subr.mxu0 0.0
  %8877 = vmatpush1.msra.mxu0 %v7205
  %8878 = vmatprep.subr.mxu0 0.0
  %8879 = vmatpush2.msra.mxu0 0.0
  %8880 = vmatprep.subr.mxu0 0.0
  %8881 = vmatpush2.msra.mxu0 0.0
  %8882 = vmatprep.subr.mxu0 0.0
  %8883 = vmatpush2.msra.mxu0 0.0
  %8884 = vmatprep.subr.mxu0 0.0
  %8885 = vmatpush2.msra.mxu0 0.0
  %8886 = vmatprep.subr.mxu0 0.0
  %8887 = vmatpush2.msra.mxu0 0.0
  %8888 = vmatprep.subr.mxu0 0.0
  %8889 = vmatpush2.msra.mxu0 0.0
  %8890 = vmatprep.subr.mxu0 0.0
  %8891 = vmatpush2.msra.mxu0 0.0
  %8892 = vmatprep.subr.mxu0 0.0
  %8893 = vmatpush2.msra.mxu0 0.0
  %8894 = vmatprep.subr.mxu0 0.0
  %8895 = vmatpush2.msra.mxu0 0.0
  %8896 = vmatprep.subr.mxu0 0.0
  %8897 = vmatpush2.msra.mxu0 0.0
  %8898 = vmatprep.subr.mxu0 0.0
  %8899 = vmatpush2.msra.mxu0 0.0
  %8900 = vmatprep.subr.mxu0 0.0
  %8901 = vmatpush2.msra.mxu0 0.0
  %8902 = vmatprep.subr.mxu0 0.0
  %8903 = vmatpush2.msra.mxu0 0.0
  %8904 = vmatprep.subr.mxu0 0.0
  %8905 = vmatpush2.msra.mxu0 0.0
  %8906 = vmatprep.subr.mxu0 0.0
  %8907 = vmatpush2.msra.mxu0 0.0
  %8908 = vmatprep.subr.mxu0 0.0
  %8909 = vmatpush2.msra.mxu0 0.0
  %8910 = vmatprep.mubr.f32.mxu0 0.0
  %8911 = vmatmul.mubr.f32.gmra.mxu0 %v8844
  %v8912 = vpop.f32.mrf.mxu0
  %v8913 = vadd.f32 0.0, %v8912
  %v8914 = vpop.f32.mrf.mxu0
  %8915 = vdwg.mxu0
  %v8917 = vsel %vm412, %v7110, 0
  %8919 = vmatprep.subr.mxu0 0.0
  %8920 = vmatpush1.msra.mxu0 0.0
  %8921 = vmatprep.subr.mxu0 0.0
  %8922 = vmatpush1.msra.mxu0 0.0
  %8923 = vmatprep.subr.mxu0 0.0
  %8924 = vmatpush1.msra.mxu0 0.0
  %8925 = vmatprep.subr.mxu0 0.0
  %8926 = vmatpush1.msra.mxu0 0.0
  %8927 = vmatprep.subr.mxu0 0.0
  %8928 = vmatpush1.msra.mxu0 0.0
  %8929 = vmatprep.subr.mxu0 0.0
  %8930 = vmatpush1.msra.mxu0 0.0
  %8931 = vmatprep.subr.mxu0 0.0
  %8932 = vmatpush1.msra.mxu0 0.0
  %8933 = vmatprep.subr.mxu0 0.0
  %8934 = vmatpush1.msra.mxu0 0.0
  %8935 = vmatprep.subr.mxu0 0.0
  %8936 = vmatpush1.msra.mxu0 0.0
  %8937 = vmatprep.subr.mxu0 0.0
  %8938 = vmatpush1.msra.mxu0 0.0
  %8939 = vmatprep.subr.mxu0 0.0
  %8940 = vmatpush1.msra.mxu0 0.0
  %8941 = vmatprep.subr.mxu0 0.0
  %8942 = vmatpush1.msra.mxu0 0.0
  %8943 = vmatprep.subr.mxu0 0.0
  %8944 = vmatpush1.msra.mxu0 %v7212
  %8945 = vmatprep.subr.mxu0 0.0
  %8946 = vmatpush1.msra.mxu0 %v7211
  %8947 = vmatprep.subr.mxu0 0.0
  %8948 = vmatpush1.msra.mxu0 %v7210
  %8949 = vmatprep.subr.mxu0 0.0
  %8950 = vmatpush1.msra.mxu0 %v7209
  %8951 = vmatprep.subr.mxu0 0.0
  %8952 = vmatpush2.msra.mxu0 0.0
  %8953 = vmatprep.subr.mxu0 0.0
  %8954 = vmatpush2.msra.mxu0 0.0
  %8955 = vmatprep.subr.mxu0 0.0
  %8956 = vmatpush2.msra.mxu0 0.0
  %8957 = vmatprep.subr.mxu0 0.0
  %8958 = vmatpush2.msra.mxu0 0.0
  %8959 = vmatprep.subr.mxu0 0.0
  %8960 = vmatpush2.msra.mxu0 0.0
  %8961 = vmatprep.subr.mxu0 0.0
  %8962 = vmatpush2.msra.mxu0 0.0
  %8963 = vmatprep.subr.mxu0 0.0
  %8964 = vmatpush2.msra.mxu0 0.0
  %8965 = vmatprep.subr.mxu0 0.0
  %8966 = vmatpush2.msra.mxu0 0.0
  %8967 = vmatprep.subr.mxu0 0.0
  %8968 = vmatpush2.msra.mxu0 0.0
  %8969 = vmatprep.subr.mxu0 0.0
  %8970 = vmatpush2.msra.mxu0 0.0
  %8971 = vmatprep.subr.mxu0 0.0
  %8972 = vmatpush2.msra.mxu0 0.0
  %8973 = vmatprep.subr.mxu0 0.0
  %8974 = vmatpush2.msra.mxu0 0.0
  %8975 = vmatprep.subr.mxu0 0.0
  %8976 = vmatpush2.msra.mxu0 0.0
  %8977 = vmatprep.subr.mxu0 0.0
  %8978 = vmatpush2.msra.mxu0 0.0
  %8979 = vmatprep.subr.mxu0 0.0
  %8980 = vmatpush2.msra.mxu0 0.0
  %8981 = vmatprep.subr.mxu0 0.0
  %8982 = vmatpush2.msra.mxu0 0.0
  %8983 = vmatprep.mubr.f32.mxu0 0.0
  %8984 = vmatmul.mubr.f32.gmra.mxu0 %v8917
  %v8985 = vpop.f32.mrf.mxu0
  %v8986 = vadd.f32 0.0, %v8985
  %v8987 = vpop.f32.mrf.mxu0
  %8988 = vdwg.mxu0
  %v8990 = vsel %vm412, %v7111, 0
  %8992 = vmatprep.subr.mxu0 0.0
  %8993 = vmatpush1.msra.mxu0 0.0
  %8994 = vmatprep.subr.mxu0 0.0
  %8995 = vmatpush1.msra.mxu0 0.0
  %8996 = vmatprep.subr.mxu0 0.0
  %8997 = vmatpush1.msra.mxu0 0.0
  %8998 = vmatprep.subr.mxu0 0.0
  %8999 = vmatpush1.msra.mxu0 0.0
  %9000 = vmatprep.subr.mxu0 0.0
  %9001 = vmatpush1.msra.mxu0 0.0
  %9002 = vmatprep.subr.mxu0 0.0
  %9003 = vmatpush1.msra.mxu0 0.0
  %9004 = vmatprep.subr.mxu0 0.0
  %9005 = vmatpush1.msra.mxu0 0.0
  %9006 = vmatprep.subr.mxu0 0.0
  %9007 = vmatpush1.msra.mxu0 0.0
  %9008 = vmatprep.subr.mxu0 0.0
  %9009 = vmatpush1.msra.mxu0 0.0
  %9010 = vmatprep.subr.mxu0 0.0
  %9011 = vmatpush1.msra.mxu0 0.0
  %9012 = vmatprep.subr.mxu0 0.0
  %9013 = vmatpush1.msra.mxu0 0.0
  %9014 = vmatprep.subr.mxu0 0.0
  %9015 = vmatpush1.msra.mxu0 0.0
  %9016 = vmatprep.subr.mxu0 0.0
  %9017 = vmatpush1.msra.mxu0 %v7216
  %9018 = vmatprep.subr.mxu0 0.0
  %9019 = vmatpush1.msra.mxu0 %v7215
  %9020 = vmatprep.subr.mxu0 0.0
  %9021 = vmatpush1.msra.mxu0 %v7214
  %9022 = vmatprep.subr.mxu0 0.0
  %9023 = vmatpush1.msra.mxu0 %v7213
  %9024 = vmatprep.subr.mxu0 0.0
  %9025 = vmatpush2.msra.mxu0 0.0
  %9026 = vmatprep.subr.mxu0 0.0
  %9027 = vmatpush2.msra.mxu0 0.0
  %9028 = vmatprep.subr.mxu0 0.0
  %9029 = vmatpush2.msra.mxu0 0.0
  %9030 = vmatprep.subr.mxu0 0.0
  %9031 = vmatpush2.msra.mxu0 0.0
  %9032 = vmatprep.subr.mxu0 0.0
  %9033 = vmatpush2.msra.mxu0 0.0
  %9034 = vmatprep.subr.mxu0 0.0
  %9035 = vmatpush2.msra.mxu0 0.0
  %9036 = vmatprep.subr.mxu0 0.0
  %9037 = vmatpush2.msra.mxu0 0.0
  %9038 = vmatprep.subr.mxu0 0.0
  %9039 = vmatpush2.msra.mxu0 0.0
  %9040 = vmatprep.subr.mxu0 0.0
  %9041 = vmatpush2.msra.mxu0 0.0
  %9042 = vmatprep.subr.mxu0 0.0
  %9043 = vmatpush2.msra.mxu0 0.0
  %9044 = vmatprep.subr.mxu0 0.0
  %9045 = vmatpush2.msra.mxu0 0.0
  %9046 = vmatprep.subr.mxu0 0.0
  %9047 = vmatpush2.msra.mxu0 0.0
  %9048 = vmatprep.subr.mxu0 0.0
  %9049 = vmatpush2.msra.mxu0 0.0
  %9050 = vmatprep.subr.mxu0 0.0
  %9051 = vmatpush2.msra.mxu0 0.0
  %9052 = vmatprep.subr.mxu0 0.0
  %9053 = vmatpush2.msra.mxu0 0.0
  %9054 = vmatprep.subr.mxu0 0.0
  %9055 = vmatpush2.msra.mxu0 0.0
  %9056 = vmatprep.mubr.f32.mxu0 0.0
  %9057 = vmatmul.mubr.f32.gmra.mxu0 %v8990
  %v9058 = vpop.f32.mrf.mxu0
  %v9059 = vadd.f32 0.0, %v9058
  %v9060 = vpop.f32.mrf.mxu0
  %9061 = vdwg.mxu0
  %v9063 = vsel %vm412, %v7112, 0
  %9065 = vmatprep.subr.mxu0 0.0
  %9066 = vmatpush1.msra.mxu0 0.0
  %9067 = vmatprep.subr.mxu0 0.0
  %9068 = vmatpush1.msra.mxu0 0.0
  %9069 = vmatprep.subr.mxu0 0.0
  %9070 = vmatpush1.msra.mxu0 0.0
  %9071 = vmatprep.subr.mxu0 0.0
  %9072 = vmatpush1.msra.mxu0 0.0
  %9073 = vmatprep.subr.mxu0 0.0
  %9074 = vmatpush1.msra.mxu0 0.0
  %9075 = vmatprep.subr.mxu0 0.0
  %9076 = vmatpush1.msra.mxu0 0.0
  %9077 = vmatprep.subr.mxu0 0.0
  %9078 = vmatpush1.msra.mxu0 0.0
  %9079 = vmatprep.subr.mxu0 0.0
  %9080 = vmatpush1.msra.mxu0 0.0
  %9081 = vmatprep.subr.mxu0 0.0
  %9082 = vmatpush1.msra.mxu0 0.0
  %9083 = vmatprep.subr.mxu0 0.0
  %9084 = vmatpush1.msra.mxu0 0.0
  %9085 = vmatprep.subr.mxu0 0.0
  %9086 = vmatpush1.msra.mxu0 0.0
  %9087 = vmatprep.subr.mxu0 0.0
  %9088 = vmatpush1.msra.mxu0 0.0
  %9089 = vmatprep.subr.mxu0 0.0
  %9090 = vmatpush1.msra.mxu0 %v7220
  %9091 = vmatprep.subr.mxu0 0.0
  %9092 = vmatpush1.msra.mxu0 %v7219
  %9093 = vmatprep.subr.mxu0 0.0
  %9094 = vmatpush1.msra.mxu0 %v7218
  %9095 = vmatprep.subr.mxu0 0.0
  %9096 = vmatpush1.msra.mxu0 %v7217
  %9097 = vmatprep.subr.mxu0 0.0
  %9098 = vmatpush2.msra.mxu0 0.0
  %9099 = vmatprep.subr.mxu0 0.0
  %9100 = vmatpush2.msra.mxu0 0.0
  %9101 = vmatprep.subr.mxu0 0.0
  %9102 = vmatpush2.msra.mxu0 0.0
  %9103 = vmatprep.subr.mxu0 0.0
  %9104 = vmatpush2.msra.mxu0 0.0
  %9105 = vmatprep.subr.mxu0 0.0
  %9106 = vmatpush2.msra.mxu0 0.0
  %9107 = vmatprep.subr.mxu0 0.0
  %9108 = vmatpush2.msra.mxu0 0.0
  %9109 = vmatprep.subr.mxu0 0.0
  %9110 = vmatpush2.msra.mxu0 0.0
  %9111 = vmatprep.subr.mxu0 0.0
  %9112 = vmatpush2.msra.mxu0 0.0
  %9113 = vmatprep.subr.mxu0 0.0
  %9114 = vmatpush2.msra.mxu0 0.0
  %9115 = vmatprep.subr.mxu0 0.0
  %9116 = vmatpush2.msra.mxu0 0.0
  %9117 = vmatprep.subr.mxu0 0.0
  %9118 = vmatpush2.msra.mxu0 0.0
  %9119 = vmatprep.subr.mxu0 0.0
  %9120 = vmatpush2.msra.mxu0 0.0
  %9121 = vmatprep.subr.mxu0 0.0
  %9122 = vmatpush2.msra.mxu0 0.0
  %9123 = vmatprep.subr.mxu0 0.0
  %9124 = vmatpush2.msra.mxu0 0.0
  %9125 = vmatprep.subr.mxu0 0.0
  %9126 = vmatpush2.msra.mxu0 0.0
  %9127 = vmatprep.subr.mxu0 0.0
  %9128 = vmatpush2.msra.mxu0 0.0
  %9129 = vmatprep.mubr.f32.mxu0 0.0
  %9130 = vmatmul.mubr.f32.gmra.mxu0 %v9063
  %v9131 = vpop.f32.mrf.mxu0
  %v9132 = vadd.f32 0.0, %v9131
  %v9133 = vpop.f32.mrf.mxu0
  %9134 = vdwg.mxu0
  %v9136 = vsel %vm412, %v7113, 0
  %9138 = vmatprep.subr.mxu0 0.0
  %9139 = vmatpush1.msra.mxu0 0.0
  %9140 = vmatprep.subr.mxu0 0.0
  %9141 = vmatpush1.msra.mxu0 0.0
  %9142 = vmatprep.subr.mxu0 0.0
  %9143 = vmatpush1.msra.mxu0 0.0
  %9144 = vmatprep.subr.mxu0 0.0
  %9145 = vmatpush1.msra.mxu0 0.0
  %9146 = vmatprep.subr.mxu0 0.0
  %9147 = vmatpush1.msra.mxu0 0.0
  %9148 = vmatprep.subr.mxu0 0.0
  %9149 = vmatpush1.msra.mxu0 0.0
  %9150 = vmatprep.subr.mxu0 0.0
  %9151 = vmatpush1.msra.mxu0 0.0
  %9152 = vmatprep.subr.mxu0 0.0
  %9153 = vmatpush1.msra.mxu0 0.0
  %9154 = vmatprep.subr.mxu0 0.0
  %9155 = vmatpush1.msra.mxu0 0.0
  %9156 = vmatprep.subr.mxu0 0.0
  %9157 = vmatpush1.msra.mxu0 0.0
  %9158 = vmatprep.subr.mxu0 0.0
  %9159 = vmatpush1.msra.mxu0 0.0
  %9160 = vmatprep.subr.mxu0 0.0
  %9161 = vmatpush1.msra.mxu0 0.0
  %9162 = vmatprep.subr.mxu0 0.0
  %9163 = vmatpush1.msra.mxu0 %v7224
  %9164 = vmatprep.subr.mxu0 0.0
  %9165 = vmatpush1.msra.mxu0 %v7223
  %9166 = vmatprep.subr.mxu0 0.0
  %9167 = vmatpush1.msra.mxu0 %v7222
  %9168 = vmatprep.subr.mxu0 0.0
  %9169 = vmatpush1.msra.mxu0 %v7221
  %9170 = vmatprep.subr.mxu0 0.0
  %9171 = vmatpush2.msra.mxu0 0.0
  %9172 = vmatprep.subr.mxu0 0.0
  %9173 = vmatpush2.msra.mxu0 0.0
  %9174 = vmatprep.subr.mxu0 0.0
  %9175 = vmatpush2.msra.mxu0 0.0
  %9176 = vmatprep.subr.mxu0 0.0
  %9177 = vmatpush2.msra.mxu0 0.0
  %9178 = vmatprep.subr.mxu0 0.0
  %9179 = vmatpush2.msra.mxu0 0.0
  %9180 = vmatprep.subr.mxu0 0.0
  %9181 = vmatpush2.msra.mxu0 0.0
  %9182 = vmatprep.subr.mxu0 0.0
  %9183 = vmatpush2.msra.mxu0 0.0
  %9184 = vmatprep.subr.mxu0 0.0
  %9185 = vmatpush2.msra.mxu0 0.0
  %9186 = vmatprep.subr.mxu0 0.0
  %9187 = vmatpush2.msra.mxu0 0.0
  %9188 = vmatprep.subr.mxu0 0.0
  %9189 = vmatpush2.msra.mxu0 0.0
  %9190 = vmatprep.subr.mxu0 0.0
  %9191 = vmatpush2.msra.mxu0 0.0
  %9192 = vmatprep.subr.mxu0 0.0
  %9193 = vmatpush2.msra.mxu0 0.0
  %9194 = vmatprep.subr.mxu0 0.0
  %9195 = vmatpush2.msra.mxu0 0.0
  %9196 = vmatprep.subr.mxu0 0.0
  %9197 = vmatpush2.msra.mxu0 0.0
  %9198 = vmatprep.subr.mxu0 0.0
  %9199 = vmatpush2.msra.mxu0 0.0
  %9200 = vmatprep.subr.mxu0 0.0
  %9201 = vmatpush2.msra.mxu0 0.0
  %9202 = vmatprep.mubr.f32.mxu0 0.0
  %9203 = vmatmul.mubr.f32.gmra.mxu0 %v9136
  %v9204 = vpop.f32.mrf.mxu0
  %v9205 = vadd.f32 0.0, %v9204
  %v9206 = vpop.f32.mrf.mxu0
  %9207 = vdwg.mxu0
  %v9209 = vsel %vm412, %v7114, 0
  %9211 = vmatprep.subr.mxu0 0.0
  %9212 = vmatpush1.msra.mxu0 0.0
  %9213 = vmatprep.subr.mxu0 0.0
  %9214 = vmatpush1.msra.mxu0 0.0
  %9215 = vmatprep.subr.mxu0 0.0
  %9216 = vmatpush1.msra.mxu0 0.0
  %9217 = vmatprep.subr.mxu0 0.0
  %9218 = vmatpush1.msra.mxu0 0.0
  %9219 = vmatprep.subr.mxu0 0.0
  %9220 = vmatpush1.msra.mxu0 0.0
  %9221 = vmatprep.subr.mxu0 0.0
  %9222 = vmatpush1.msra.mxu0 0.0
  %9223 = vmatprep.subr.mxu0 0.0
  %9224 = vmatpush1.msra.mxu0 0.0
  %9225 = vmatprep.subr.mxu0 0.0
  %9226 = vmatpush1.msra.mxu0 0.0
  %9227 = vmatprep.subr.mxu0 0.0
  %9228 = vmatpush1.msra.mxu0 0.0
  %9229 = vmatprep.subr.mxu0 0.0
  %9230 = vmatpush1.msra.mxu0 0.0
  %9231 = vmatprep.subr.mxu0 0.0
  %9232 = vmatpush1.msra.mxu0 0.0
  %9233 = vmatprep.subr.mxu0 0.0
  %9234 = vmatpush1.msra.mxu0 0.0
  %9235 = vmatprep.subr.mxu0 0.0
  %9236 = vmatpush1.msra.mxu0 %v7228
  %9237 = vmatprep.subr.mxu0 0.0
  %9238 = vmatpush1.msra.mxu0 %v7227
  %9239 = vmatprep.subr.mxu0 0.0
  %9240 = vmatpush1.msra.mxu0 %v7226
  %9241 = vmatprep.subr.mxu0 0.0
  %9242 = vmatpush1.msra.mxu0 %v7225
  %9243 = vmatprep.subr.mxu0 0.0
  %9244 = vmatpush2.msra.mxu0 0.0
  %9245 = vmatprep.subr.mxu0 0.0
  %9246 = vmatpush2.msra.mxu0 0.0
  %9247 = vmatprep.subr.mxu0 0.0
  %9248 = vmatpush2.msra.mxu0 0.0
  %9249 = vmatprep.subr.mxu0 0.0
  %9250 = vmatpush2.msra.mxu0 0.0
  %9251 = vmatprep.subr.mxu0 0.0
  %9252 = vmatpush2.msra.mxu0 0.0
  %9253 = vmatprep.subr.mxu0 0.0
  %9254 = vmatpush2.msra.mxu0 0.0
  %9255 = vmatprep.subr.mxu0 0.0
  %9256 = vmatpush2.msra.mxu0 0.0
  %9257 = vmatprep.subr.mxu0 0.0
  %9258 = vmatpush2.msra.mxu0 0.0
  %9259 = vmatprep.subr.mxu0 0.0
  %9260 = vmatpush2.msra.mxu0 0.0
  %9261 = vmatprep.subr.mxu0 0.0
  %9262 = vmatpush2.msra.mxu0 0.0
  %9263 = vmatprep.subr.mxu0 0.0
  %9264 = vmatpush2.msra.mxu0 0.0
  %9265 = vmatprep.subr.mxu0 0.0
  %9266 = vmatpush2.msra.mxu0 0.0
  %9267 = vmatprep.subr.mxu0 0.0
  %9268 = vmatpush2.msra.mxu0 0.0
  %9269 = vmatprep.subr.mxu0 0.0
  %9270 = vmatpush2.msra.mxu0 0.0
  %9271 = vmatprep.subr.mxu0 0.0
  %9272 = vmatpush2.msra.mxu0 0.0
  %9273 = vmatprep.subr.mxu0 0.0
  %9274 = vmatpush2.msra.mxu0 0.0
  %9275 = vmatprep.mubr.f32.mxu0 0.0
  %9276 = vmatmul.mubr.f32.gmra.mxu0 %v9209
  %v9277 = vpop.f32.mrf.mxu0
  %v9278 = vadd.f32 0.0, %v9277
  %v9279 = vpop.f32.mrf.mxu0
  %9280 = vdwg.mxu0
  %v9282 = vsel %vm412, %v7115, 0
  %9284 = vmatprep.subr.mxu0 0.0
  %9285 = vmatpush1.msra.mxu0 0.0
  %9286 = vmatprep.subr.mxu0 0.0
  %9287 = vmatpush1.msra.mxu0 0.0
  %9288 = vmatprep.subr.mxu0 0.0
  %9289 = vmatpush1.msra.mxu0 0.0
  %9290 = vmatprep.subr.mxu0 0.0
  %9291 = vmatpush1.msra.mxu0 0.0
  %9292 = vmatprep.subr.mxu0 0.0
  %9293 = vmatpush1.msra.mxu0 0.0
  %9294 = vmatprep.subr.mxu0 0.0
  %9295 = vmatpush1.msra.mxu0 0.0
  %9296 = vmatprep.subr.mxu0 0.0
  %9297 = vmatpush1.msra.mxu0 0.0
  %9298 = vmatprep.subr.mxu0 0.0
  %9299 = vmatpush1.msra.mxu0 0.0
  %9300 = vmatprep.subr.mxu0 0.0
  %9301 = vmatpush1.msra.mxu0 0.0
  %9302 = vmatprep.subr.mxu0 0.0
  %9303 = vmatpush1.msra.mxu0 0.0
  %9304 = vmatprep.subr.mxu0 0.0
  %9305 = vmatpush1.msra.mxu0 0.0
  %9306 = vmatprep.subr.mxu0 0.0
  %9307 = vmatpush1.msra.mxu0 0.0
  %9308 = vmatprep.subr.mxu0 0.0
  %9309 = vmatpush1.msra.mxu0 %v7232
  %9310 = vmatprep.subr.mxu0 0.0
  %9311 = vmatpush1.msra.mxu0 %v7231
  %9312 = vmatprep.subr.mxu0 0.0
  %9313 = vmatpush1.msra.mxu0 %v7230
  %9314 = vmatprep.subr.mxu0 0.0
  %9315 = vmatpush1.msra.mxu0 %v7229
  %9316 = vmatprep.subr.mxu0 0.0
  %9317 = vmatpush2.msra.mxu0 0.0
  %9318 = vmatprep.subr.mxu0 0.0
  %9319 = vmatpush2.msra.mxu0 0.0
  %9320 = vmatprep.subr.mxu0 0.0
  %9321 = vmatpush2.msra.mxu0 0.0
  %9322 = vmatprep.subr.mxu0 0.0
  %9323 = vmatpush2.msra.mxu0 0.0
  %9324 = vmatprep.subr.mxu0 0.0
  %9325 = vmatpush2.msra.mxu0 0.0
  %9326 = vmatprep.subr.mxu0 0.0
  %9327 = vmatpush2.msra.mxu0 0.0
  %9328 = vmatprep.subr.mxu0 0.0
  %9329 = vmatpush2.msra.mxu0 0.0
  %9330 = vmatprep.subr.mxu0 0.0
  %9331 = vmatpush2.msra.mxu0 0.0
  %9332 = vmatprep.subr.mxu0 0.0
  %9333 = vmatpush2.msra.mxu0 0.0
  %9334 = vmatprep.subr.mxu0 0.0
  %9335 = vmatpush2.msra.mxu0 0.0
  %9336 = vmatprep.subr.mxu0 0.0
  %9337 = vmatpush2.msra.mxu0 0.0
  %9338 = vmatprep.subr.mxu0 0.0
  %9339 = vmatpush2.msra.mxu0 0.0
  %9340 = vmatprep.subr.mxu0 0.0
  %9341 = vmatpush2.msra.mxu0 0.0
  %9342 = vmatprep.subr.mxu0 0.0
  %9343 = vmatpush2.msra.mxu0 0.0
  %9344 = vmatprep.subr.mxu0 0.0
  %9345 = vmatpush2.msra.mxu0 0.0
  %9346 = vmatprep.subr.mxu0 0.0
  %9347 = vmatpush2.msra.mxu0 0.0
  %9348 = vmatprep.mubr.f32.mxu0 0.0
  %9349 = vmatmul.mubr.f32.gmra.mxu0 %v9282
  %v9350 = vpop.f32.mrf.mxu0
  %v9351 = vadd.f32 0.0, %v9350
  %v9352 = vpop.f32.mrf.mxu0
  %9353 = vdwg.mxu0
  %v9355 = vsel %vm412, %v7116, 0
  %9357 = vmatprep.subr.mxu0 0.0
  %9358 = vmatpush1.msra.mxu0 0.0
  %9359 = vmatprep.subr.mxu0 0.0
  %9360 = vmatpush1.msra.mxu0 0.0
  %9361 = vmatprep.subr.mxu0 0.0
  %9362 = vmatpush1.msra.mxu0 0.0
  %9363 = vmatprep.subr.mxu0 0.0
  %9364 = vmatpush1.msra.mxu0 0.0
  %9365 = vmatprep.subr.mxu0 0.0
  %9366 = vmatpush1.msra.mxu0 0.0
  %9367 = vmatprep.subr.mxu0 0.0
  %9368 = vmatpush1.msra.mxu0 0.0
  %9369 = vmatprep.subr.mxu0 0.0
  %9370 = vmatpush1.msra.mxu0 0.0
  %9371 = vmatprep.subr.mxu0 0.0
  %9372 = vmatpush1.msra.mxu0 0.0
  %9373 = vmatprep.subr.mxu0 0.0
  %9374 = vmatpush1.msra.mxu0 0.0
  %9375 = vmatprep.subr.mxu0 0.0
  %9376 = vmatpush1.msra.mxu0 0.0
  %9377 = vmatprep.subr.mxu0 0.0
  %9378 = vmatpush1.msra.mxu0 0.0
  %9379 = vmatprep.subr.mxu0 0.0
  %9380 = vmatpush1.msra.mxu0 0.0
  %9381 = vmatprep.subr.mxu0 0.0
  %9382 = vmatpush1.msra.mxu0 %v7236
  %9383 = vmatprep.subr.mxu0 0.0
  %9384 = vmatpush1.msra.mxu0 %v7235
  %9385 = vmatprep.subr.mxu0 0.0
  %9386 = vmatpush1.msra.mxu0 %v7234
  %9387 = vmatprep.subr.mxu0 0.0
  %9388 = vmatpush1.msra.mxu0 %v7233
  %9389 = vmatprep.subr.mxu0 0.0
  %9390 = vmatpush2.msra.mxu0 0.0
  %9391 = vmatprep.subr.mxu0 0.0
  %9392 = vmatpush2.msra.mxu0 0.0
  %9393 = vmatprep.subr.mxu0 0.0
  %9394 = vmatpush2.msra.mxu0 0.0
  %9395 = vmatprep.subr.mxu0 0.0
  %9396 = vmatpush2.msra.mxu0 0.0
  %9397 = vmatprep.subr.mxu0 0.0
  %9398 = vmatpush2.msra.mxu0 0.0
  %9399 = vmatprep.subr.mxu0 0.0
  %9400 = vmatpush2.msra.mxu0 0.0
  %9401 = vmatprep.subr.mxu0 0.0
  %9402 = vmatpush2.msra.mxu0 0.0
  %9403 = vmatprep.subr.mxu0 0.0
  %9404 = vmatpush2.msra.mxu0 0.0
  %9405 = vmatprep.subr.mxu0 0.0
  %9406 = vmatpush2.msra.mxu0 0.0
  %9407 = vmatprep.subr.mxu0 0.0
  %9408 = vmatpush2.msra.mxu0 0.0
  %9409 = vmatprep.subr.mxu0 0.0
  %9410 = vmatpush2.msra.mxu0 0.0
  %9411 = vmatprep.subr.mxu0 0.0
  %9412 = vmatpush2.msra.mxu0 0.0
  %9413 = vmatprep.subr.mxu0 0.0
  %9414 = vmatpush2.msra.mxu0 0.0
  %9415 = vmatprep.subr.mxu0 0.0
  %9416 = vmatpush2.msra.mxu0 0.0
  %9417 = vmatprep.subr.mxu0 0.0
  %9418 = vmatpush2.msra.mxu0 0.0
  %9419 = vmatprep.subr.mxu0 0.0
  %9420 = vmatpush2.msra.mxu0 0.0
  %9421 = vmatprep.mubr.f32.mxu0 0.0
  %9422 = vmatmul.mubr.f32.gmra.mxu0 %v9355
  %v9423 = vpop.f32.mrf.mxu0
  %v9424 = vadd.f32 0.0, %v9423
  %v9425 = vpop.f32.mrf.mxu0
  %9426 = vdwg.mxu0
  %vm9427 = vcmask 408576
  %v9428 = vsel %vm9427, %v7307, 0.0
  %v9429 = vsel %vm9427, %v7380, 0.0
  %v9430 = vadd.f32 %v9428, %v9429
  %v9431 = vsel %vm9427, %v7453, 0.0
  %v9432 = vadd.f32 %v9430, %v9431
  %v9433 = vsel %vm9427, %v7526, 0.0
  %v9434 = vadd.f32 %v9432, %v9433
  %v9435 = vsel %vm9427, %v7599, 0.0
  %v9436 = vadd.f32 %v9434, %v9435
  %v9437 = vsel %vm9427, %v7672, 0.0
  %v9438 = vadd.f32 %v9436, %v9437
  %v9439 = vsel %vm9427, %v7745, 0.0
  %v9440 = vadd.f32 %v9438, %v9439
  %v9441 = vsel %vm9427, %v7818, 0.0
  %v9442 = vadd.f32 %v9440, %v9441
  %v9443 = vsel %vm9427, %v7891, 0.0
  %v9444 = vadd.f32 %v9442, %v9443
  %v9445 = vsel %vm9427, %v7964, 0.0
  %v9446 = vadd.f32 %v9444, %v9445
  %v9447 = vsel %vm9427, %v8037, 0.0
  %v9448 = vadd.f32 %v9446, %v9447
  %v9449 = vsel %vm9427, %v8110, 0.0
  %v9450 = vadd.f32 %v9448, %v9449
  %v9451 = vsel %vm9427, %v8183, 0.0
  %v9452 = vadd.f32 %v9450, %v9451
  %v9453 = vsel %vm9427, %v8256, 0.0
  %v9454 = vadd.f32 %v9452, %v9453
  %v9455 = vsel %vm9427, %v8329, 0.0
  %v9456 = vadd.f32 %v9454, %v9455
  %v9457 = vsel %vm9427, %v8402, 0.0
  %v9458 = vadd.f32 %v9456, %v9457
  %v9459 = vsel %vm9427, %v8475, 0.0
  %v9460 = vadd.f32 %v9458, %v9459
  %v9461 = vsel %vm9427, %v8548, 0.0
  %v9462 = vadd.f32 %v9460, %v9461
  %v9463 = vsel %vm9427, %v8621, 0.0
  %v9464 = vadd.f32 %v9462, %v9463
  %v9465 = vsel %vm9427, %v8694, 0.0
  %v9466 = vadd.f32 %v9464, %v9465
  %v9467 = vsel %vm9427, %v8767, 0.0
  %v9468 = vadd.f32 %v9466, %v9467
  %v9469 = vsel %vm9427, %v8840, 0.0
  %v9470 = vadd.f32 %v9468, %v9469
  %v9471 = vsel %vm9427, %v8913, 0.0
  %v9472 = vadd.f32 %v9470, %v9471
  %v9473 = vsel %vm9427, %v8986, 0.0
  %v9474 = vadd.f32 %v9472, %v9473
  %v9475 = vsel %vm9427, %v9059, 0.0
  %v9476 = vadd.f32 %v9474, %v9475
  %v9477 = vsel %vm9427, %v9132, 0.0
  %v9478 = vadd.f32 %v9476, %v9477
  %v9479 = vsel %vm9427, %v9205, 0.0
  %v9480 = vadd.f32 %v9478, %v9479
  %v9481 = vsel %vm9427, %v9278, 0.0
  %v9482 = vadd.f32 %v9480, %v9481
  %v9483 = vsel %vm9427, %v9351, 0.0
  %v9484 = vadd.f32 %v9482, %v9483
  %v9485 = vsel %vm9427, %v9424, 0.0
  %v9486 = vadd.f32 %v9484, %v9485
  %v9487 = vld [vmem:[%s8] sm:$0x1]
  %v9489 = vlaneseq
  %v9490 = vshrl.u32 %v9489, 7
  %v9491 = vsub.s32 0, %v9490
  %v9492 = vrot.slane %v9487, %v9491
  %v9494 = vadd.f32 %v9486, %v9492
  %v9495 = vlaneseq
  %v9496 = vand.u32 %v9495, 127
  %vm9497 = vcmp.lt.s32.totalorder %v9496, 50
  %v9498 = vsel %vm9497, %v9494, -1e+30
  %v9499 = vsel %vm9427, %v9498, -inf
  %9500 = vmax.xlane.f32.xlu0 %v9499
  %v9501 = vpop.xlane.xlu0 %9500
  %v9502 = vsub.f32 %v9494, %v9501
  %v9503 = vsel %vm9497, %v9502, -1e+30
  %v9504 = vmul.f32 %v9503, 1.442695
  %v9505 = vpow.pop %v9504
  %v9506 = vsel %vm9427, %v9505, 0.0
  %9507 = vadd.xlane.f32.xlu0 %v9506
  %v9508 = vpop.xlane.xlu0 %9507
  %v9509 = vlog2.pop %v9508
  %v9510 = vmul.f32 %v9509, 0.6931472
  %v9511 = vsub.f32 %v9502, %v9510
  %9512 = vst.msk [vmem:[%s9] sm:$0xff] %vm9427, %v9511
  // Predicated region
  $region38: #{forward.1} parent=0 // pred_check
    _
  $region39: #{forward.1} parent=0 // pred_check_branch
    %9514 = sbr.rel (0) target = $region41
  $region40: #{forward.1} parent=0 // pred_region
    _
  $region41: #{forward.1} parent=0 // pred_fallthru
    _
  // Predicated region
  $region42: #{forward.1} parent=0 // pred_check
    _
  $region43: #{forward.1} parent=0 // pred_check_branch
    %9516 = sbr.rel (0) target = $region45
  $region44: #{forward.1} parent=0 // pred_region
    _
  $region45: #{forward.1} parent=0 // pred_fallthru
    _

</llo_original>
